<compile_context>
chip_gen: v6e
topology: v6e:2x2x1
jax: 0.10.0
libtpu: 0.0.40
codegen_flags: <defaults>
</compile_context>

<pallas_src>
import functools

import jax
import jax.numpy as jnp
from jax.experimental import pallas as pl
from jax.experimental.pallas import tpu as pltpu

FP8_DTYPE = jnp.float8_e5m2
FP8_MAX = float(jnp.finfo(FP8_DTYPE).max)   # 57344.0 == torch.finfo(float8_e5m2).max
BLOCK = 128                                 # quantization block (128 cols / 128x128)
EPS = 1e-30                                 # amax clamp: avoids div-by-zero on all-zero blocks
VMEM_LIMIT = 32 * 1024 * 1024               # safe on v5e/v6e (128 MiB phys) and v7x (64 MiB)


# ---------------------------------------------------------------------------
# helpers
# ---------------------------------------------------------------------------
def _round_up(x, m):
    return ((x + m - 1) // m) * m


def _pick_tile(dim, candidates):
    for c in candidates:
        if c <= dim and dim % c == 0:
            return c
    return dim


def _pick_k_tile(k):      # matmul K tile (also the quant kernels' column tile)
    return _pick_tile(k, (1024, 512, 256, 128))


def _pick_row_tile(m):    # M tile (m is always a multiple of 128 after padding)
    return _pick_tile(m, (512, 256, 128))


def _pick_col_tile(n):    # matmul N tile
    return _pick_tile(n, (512, 256, 128))


# ---------------------------------------------------------------------------
# act_quant_block: per-row, per-128-column-block abs-max quantization -> fp8.
# 2-D grid (row tiles x K tiles); scales written directly in (ksteps, M, kbk)
# layout, i.e. exactly what fp8_matmul consumes.
# ---------------------------------------------------------------------------
def _act_quant_kernel(x_ref, y_ref, s_ref, *, kbk):
    scales = []
    for kk in range(kbk):                                        # 128-wide sub-blocks
        lo = kk * BLOCK
        blk = x_ref[:, lo:lo + BLOCK].astype(jnp.float32)        # (tm, 128)
        amax = jnp.maximum(jnp.max(jnp.abs(blk), axis=1, keepdims=True), EPS)
        q = jnp.clip(blk * (FP8_MAX / amax), -FP8_MAX, FP8_MAX)
        y_ref[:, lo:lo + BLOCK] = q.astype(FP8_DTYPE)
        scales.append(amax * (1.0 / FP8_MAX))
    s_ref[...] = jnp.concatenate(scales, axis=1)[None]           # (1, tm, kbk)


def act_quant_block(x, k_tile=None):
    M, K = x.shape
    assert K % BLOCK == 0 and M % BLOCK == 0
    tk = k_tile or _pick_k_tile(K)
    assert K % tk == 0
    ksteps, kbk = K // tk, tk // BLOCK
    tm = _pick_row_tile(M)
    kern = functools.partial(_act_quant_kernel, kbk=kbk)
    y, s = pl.pallas_call(
        kern,
        grid=(M // tm, ksteps),
        in_specs=[pl.BlockSpec((tm, tk), lambda i, c: (i, c))],
        out_specs=[pl.BlockSpec((tm, tk), lambda i, c: (i, c)),
                   pl.BlockSpec((1, tm, kbk), lambda i, c: (c, i, 0))],
        out_shape=[jax.ShapeDtypeStruct((M, K), FP8_DTYPE),
                   jax.ShapeDtypeStruct((ksteps, M, kbk), jnp.float32)],
        compiler_params=pltpu.CompilerParams(
            dimension_semantics=("parallel", "parallel"),
            vmem_limit_bytes=VMEM_LIMIT),
    )(x)
    return y, s


# ---------------------------------------------------------------------------
# weight_quant_block: per-(128x128)-block abs-max quantization -> fp8.
# One-time cost (hoist via quantize_mlp_weights).
# ---------------------------------------------------------------------------
def _weight_quant_kernel(w_ref, qw_ref, s_ref, *, v):
    scales = []
    for j in range(v):
        lo = j * BLOCK
        blk = w_ref[:, lo:lo + BLOCK].astype(jnp.float32)        # (128, 128)
        amax = jnp.maximum(jnp.max(jnp.abs(blk), axis=(0, 1), keepdims=True), EPS)
        q = jnp.clip(blk * (FP8_MAX / amax), -FP8_MAX, FP8_MAX)
        qw_ref[:, lo:lo + BLOCK] = q.astype(FP8_DTYPE)
        scales.append((amax * (1.0 / FP8_MAX)).reshape(1, 1, 1))
    s_ref[...] = jnp.concatenate(scales, axis=2)                 # (1, 1, v)


def weight_quant_block(w):
    # w: (N, K) like torch.nn.Linear.weight. Quantized values kept in (N, K) layout.
    N, K = w.shape
    assert N % BLOCK == 0 and K % BLOCK == 0
    u, v = N // BLOCK, K // BLOCK
    # TODO(synk): also grid over K for very large in_features (K*512B per row block).
    kern = functools.partial(_weight_quant_kernel, v=v)
    qw, s3 = pl.pallas_call(
        kern,
        grid=(u,),
        in_specs=[pl.BlockSpec((BLOCK, K), lambda i: (i, 0))],
        out_specs=[pl.BlockSpec((BLOCK, K), lambda i: (i, 0)),
                   pl.BlockSpec((1, 1, v), lambda i: (i, 0, 0))],
        out_shape=[jax.ShapeDtypeStruct((N, K), FP8_DTYPE),
                   jax.ShapeDtypeStruct((u, 1, v), jnp.float32)],
        compiler_params=pltpu.CompilerParams(
            dimension_semantics=("parallel",),
            vmem_limit_bytes=VMEM_LIMIT),
    )(w)
    return qw, s3.reshape(u, v)


def expand_weight_scales(sw, K):
    # (N//128, K//128) -> (ksteps, N, kbk) lane-expanded table blocked per (k, j) tile.
    u, v = sw.shape
    N = u * BLOCK
    assert v * BLOCK == K
    tk = _pick_k_tile(K)
    ksteps, kbk = K // tk, tk // BLOCK
    swn = jnp.repeat(sw, BLOCK, axis=0)                          # (N, K//128)
    return swn.reshape(N, ksteps, kbk).transpose(1, 0, 2)        # (ksteps, N, kbk)


# ---------------------------------------------------------------------------
# fp8_matmul: y = x @ w.T with per-(row, 128-K-block) act scales and
# per-(128x128)-block weight scales.  Grid (M/tm, N/tn, K/tk); per grid step the
# fp8 operand tiles are dequantized (pre-scaled) into bf16 VMEM scratch and a
# single dot_general over tk accumulates into an f32 VMEM accumulator.
# ---------------------------------------------------------------------------
def _fp8_matmul_kernel(qx_ref, qw_ref, sx_ref, sw_ref, o_ref,
                       acc_ref, xs_ref, ws_ref, *, kbk):
    k = pl.program_id(2)

    @pl.when(k == 0)
    def _init():
        acc_ref[...] = jnp.zeros_like(acc_ref)

    sx = sx_ref[...]                                             # (1, tm, kbk) f32
    sw = sw_ref[...]                                             # (1, tn, kbk) f32
    for kk in range(kbk):                                        # 128-wide K sub-blocks
        lo = kk * BLOCK
        xq = qx_ref[:, lo:lo + BLOCK].astype(jnp.float32)        # fp8 -> f32, (tm, 128)
        wq = qw_ref[:, lo:lo + BLOCK].astype(jnp.float32)        # fp8 -> f32, (tn, 128)
        xs_ref[:, lo:lo + BLOCK] = (xq * sx[0, :, kk:kk + 1]).astype(jnp.bfloat16)
        ws_ref[:, lo:lo + BLOCK] = (wq * sw[0, :, kk:kk + 1]).astype(jnp.bfloat16)

    # One MXU contraction over the full tk (x @ w.T), accumulated once per k step.
    acc_ref[...] += jax.lax.dot_general(
        xs_ref[...], ws_ref[...], (((1,), (1,)), ((), ())),
        preferred_element_type=jnp.float32)

    @pl.when(k == pl.num_programs(2) - 1)
    def _finalize():
        o_ref[...] = acc_ref[...].astype(o_ref.dtype)


def fp8_matmul(qx, qw, sx3, swn3):
    # qx: (M, K) fp8, qw: (N, K) fp8, sx3: (ksteps, M, kbk) f32,
    # swn3: (ksteps, N, kbk) f32  ->  (M, N) bf16
    M, K = qx.shape
    N, K2 = qw.shape
    assert K == K2 and K % BLOCK == 0 and N % BLOCK == 0 and M % BLOCK == 0
    tk = _pick_k_tile(K)
    ksteps, kbk = K // tk, tk // BLOCK
    assert sx3.shape == (ksteps, M, kbk)
    assert swn3.shape == (ksteps, N, kbk)

    tm = _pick_row_tile(M)
    tn = _pick_col_tile(N)

    kern = functools.partial(_fp8_matmul_kernel, kbk=kbk)
    return pl.pallas_call(
        kern,
        grid=(M // tm, N // tn, ksteps),
        in_specs=[
            pl.BlockSpec((tm, tk), lambda i, j, k: (i, k)),
            pl.BlockSpec((tn, tk), lambda i, j, k: (j, k)),
            pl.BlockSpec((1, tm, kbk), lambda i, j, k: (k, i, 0)),
            pl.BlockSpec((1, tn, kbk), lambda i, j, k: (k, j, 0)),
        ],
        out_specs=pl.BlockSpec((tm, tn), lambda i, j, k: (i, j)),
        out_shape=jax.ShapeDtypeStruct((M, N), jnp.bfloat16),
        scratch_shapes=[pltpu.VMEM((tm, tn), jnp.float32),       # f32 accumulator
                        pltpu.VMEM((tm, tk), jnp.bfloat16),      # dequantized x tile
                        pltpu.VMEM((tn, tk), jnp.bfloat16)],     # dequantized w tile
        compiler_params=pltpu.CompilerParams(
            dimension_semantics=("parallel", "parallel", "arbitrary"),
            vmem_limit_bytes=VMEM_LIMIT),
    )(qx, qw, sx3, swn3)


# ---------------------------------------------------------------------------
# fused silu ('up-gate') + act quant: act = up * gate * sigmoid(gate), then
# per-(row,128-col) fp8 quant.  2-D grid over (row tiles, inter column tiles);
# the up and gate halves of up_gate are two views of the same array.
# ---------------------------------------------------------------------------
def _silu_quant_kernel(up_ref, gate_ref, y_ref, s_ref, *, kbk):
    scales = []
    for kk in range(kbk):
        lo = kk * BLOCK
        up = up_ref[:, lo:lo + BLOCK].astype(jnp.float32)
        gate = gate_ref[:, lo:lo + BLOCK].astype(jnp.float32)
        act = (up * gate * jax.nn.sigmoid(gate)).astype(jnp.bfloat16)  # torch bf16 round trip
        blk = act.astype(jnp.float32)
        amax = jnp.maximum(jnp.max(jnp.abs(blk), axis=1, keepdims=True), EPS)
        q = jnp.clip(blk * (FP8_MAX / amax), -FP8_MAX, FP8_MAX)
        y_ref[:, lo:lo + BLOCK] = q.astype(FP8_DTYPE)
        scales.append(amax * (1.0 / FP8_MAX))
    s_ref[...] = jnp.concatenate(scales, axis=1)[None]           # (1, tm, kbk)


def silu_act_quant(up_gate, k_tile=None):
    M, N2 = up_gate.shape
    inter = N2 // 2
    assert inter % BLOCK == 0 and M % BLOCK == 0
    tk = k_tile or _pick_k_tile(inter)
    assert inter % tk == 0
    csteps, kbk = inter // tk, tk // BLOCK
    tm = _pick_row_tile(M)
    gate_off = inter // tk                                       # column-block offset of gate half
    kern = functools.partial(_silu_quant_kernel, kbk=kbk)
    q, s = pl.pallas_call(
        kern,
        grid=(M // tm, csteps),
        in_specs=[pl.BlockSpec((tm, tk), lambda i, c: (i, c)),              # up half
                  pl.BlockSpec((tm, tk), lambda i, c: (i, c + gate_off))],  # gate half
        out_specs=[pl.BlockSpec((tm, tk), lambda i, c: (i, c)),
                   pl.BlockSpec((1, tm, kbk), lambda i, c: (c, i, 0))],
        out_shape=[jax.ShapeDtypeStruct((M, inter), FP8_DTYPE),
                   jax.ShapeDtypeStruct((csteps, M, kbk), jnp.float32)],
        compiler_params=pltpu.CompilerParams(
            dimension_semantics=("parallel", "parallel"),
            vmem_limit_bytes=VMEM_LIMIT),
    )(up_gate, up_gate)
    return q, s


# ---------------------------------------------------------------------------
# Fp8MLP.forward
# ---------------------------------------------------------------------------
def quantize_mlp_weights(w_up_gate, w_down):
    # Hoist / cache weight quantization + scale lane-expansion; reuse across steps.
    qw_ug, sw_ug = weight_quant_block(w_up_gate)
    qw_dn, sw_dn = weight_quant_block(w_down)
    return {
        "qw_up_gate": qw_ug,
        "swn_up_gate": expand_weight_scales(sw_ug, w_up_gate.shape[1]),
        "qw_down": qw_dn,
        "swn_down": expand_weight_scales(sw_dn, w_down.shape[1]),
    }


def fp8_mlp_forward_quantized(hidden_states, qweights):
    shape = hidden_states.shape
    hidden = shape[-1]
    x = hidden_states.reshape(-1, hidden)
    M = x.shape[0]
    M_pad = _round_up(M, BLOCK)                                  # MXU-shaped row tiles
    if M_pad != M:
        x = jnp.pad(x, ((0, M_pad - M), (0, 0)))

    qx, sx3 = act_quant_block(x)
    up_gate = fp8_matmul(qx, qweights["qw_up_gate"], sx3, qweights["swn_up_gate"])
    qa, sa3 = silu_act_quant(up_gate)                            # fused silu + quant
    y = fp8_matmul(qa, qweights["qw_down"], sa3, qweights["swn_down"])

    if M_pad != M:
        y = y[:M]
    return y.reshape(shape)


def fp8_mlp_forward(hidden_states, w_up_gate, w_down):
    # Spec-faithful path (quantizes weights inside the call, like the torch module).
    return fp8_mlp_forward_quantized(hidden_states,
                                     quantize_mlp_weights(w_up_gate, w_down))


# ---------------------------------------------------------------------------
# Pure-JAX reference with exact "scale after matmul in f32" semantics (== torch
# path).  The Pallas kernel pre-scales operands and rounds them to bf16 before
# the MXU (<=2^-9 per operand), so the two agree to a few percent, not bitwise.
# ---------------------------------------------------------------------------
def _ref_act_quant(x):
    xf = x.astype(jnp.float32)
    M, N = xf.shape
    kb = N // BLOCK
    xr = xf.reshape(M, kb, BLOCK)
    amax = jnp.maximum(jnp.max(jnp.abs(xr), axis=-1, keepdims=True), EPS)
    q = jnp.clip(xr * (FP8_MAX / amax), -FP8_MAX, FP8_MAX)
    q = q.astype(FP8_DTYPE).astype(jnp.float32).reshape(M, N)
    s = (amax * (1.0 / FP8_MAX)).reshape(M, kb)
    return q, s


def _ref_weight_quant(w):
    N, K = w.shape
    u, v = N // BLOCK, K // BLOCK
    wr = w.astype(jnp.float32).reshape(u, BLOCK, v, BLOCK)
    amax = jnp.maximum(jnp.max(jnp.abs(wr), axis=(1, 3), keepdims=True), EPS)
    q = jnp.clip(wr * (FP8_MAX / amax), -FP8_MAX, FP8_MAX)
    q = q.astype(FP8_DTYPE).astype(jnp.float32).reshape(N, K)
    s = (amax * (1.0 / FP8_MAX)).reshape(u, v)
    return q, s


def _ref_matmul(qx, qw, sx, sw):
    M, K = qx.shape
    N, _ = qw.shape
    kb = K // BLOCK
    acc = jnp.zeros((M, N), jnp.float32)
    for k in range(kb):
        part = jnp.dot(qx[:, k * BLOCK:(k + 1) * BLOCK],
                       qw[:, k * BLOCK:(k + 1) * BLOCK].T)
        scale = sx[:, k][:, None] * jnp.repeat(sw[:, k], BLOCK)[None, :]
        acc = acc + part * scale
    return acc.astype(jnp.bfloat16)


def _ref_mlp(x, w_ug, w_dn):
    shape = x.shape
    x2 = x.reshape(-1, shape[-1])
    qw_ug, sw_ug = _ref_weight_quant(w_ug)
    qw_dn, sw_dn = _ref_weight_quant(w_dn)
    qx, sx = _ref_act_quant(x2)
    ug = _ref_matmul(qx, qw_ug, sx, sw_ug)
    inter = ug.shape[-1] // 2
    up = ug[:, :inter].astype(jnp.float32)
    gate = ug[:, inter:].astype(jnp.float32)
    act = (up * gate * jax.nn.sigmoid(gate)).astype(jnp.bfloat16)
    qa, sa = _ref_act_quant(act)
    y = _ref_matmul(qa, qw_dn, sa, sw_dn)
    return y.reshape(shape)


if __name__ == "__main__":
    # Small shapes; hidden/inter must be multiples of 128, rows are padded internally.
    batch, seq, hidden, inter = 2, 48, 256, 256      # M = 96 -> exercises the row padding
    key = jax.random.PRNGKey(0)
    k1, k2, k3 = jax.random.split(key, 3)

    hidden_states = jax.random.normal(k1, (batch, seq, hidden), jnp.float32).astype(jnp.bfloat16)
    # nn.Linear-style deterministic init: U(-1/sqrt(fan_in), 1/sqrt(fan_in)), float32.
    b_ug = 1.0 / (hidden ** 0.5)
    w_up_gate = jax.random.uniform(k2, (2 * inter, hidden), jnp.float32, -b_ug, b_ug)
    b_dn = 1.0 / (inter ** 0.5)
    w_down = jax.random.uniform(k3, (hidden, inter), jnp.float32, -b_dn, b_dn)

    out = jax.jit(fp8_mlp_forward)(hidden_states, w_up_gate, w_down)
    out = jax.block_until_ready(out)

    assert out.shape == (batch, seq, hidden) and out.dtype == jnp.bfloat16

    ref = _ref_mlp(hidden_states, w_up_gate, w_down)
    o32 = out.astype(jnp.float32)
    r32 = ref.astype(jnp.float32)
    # Relative Frobenius error (robust metric; operand bf16 pre-scaling vs the exact
    # reference contributes ~1-3%), plus a loose element-wise gross-error check.
    rel_fro = float(jnp.linalg.norm(o32 - r32) / (jnp.linalg.norm(r32) + 1e-6))
    rel_max = float(jnp.max(jnp.abs(o32 - r32)) / (jnp.max(jnp.abs(r32)) + 1e-6))
    assert rel_fro < 5e-2, f"mismatch: rel_fro={rel_fro}"
    assert rel_max < 1.25e-1, f"mismatch: rel_max={rel_max}"

    print("KERNEL_OK")
</pallas_src>

<mosaic_0001>
module attributes {stable_mosaic.version = 11 : i64} {
  func.func @_act_quant_kernel(%arg0: i32, %arg1: i32, %arg2: memref<128x256xbf16, #tpu.memory_space<vmem>>, %arg3: memref<128x256xf8E5M2, #tpu.memory_space<vmem>>, %arg4: memref<1x128x2xf32, #tpu.memory_space<vmem>>) attributes {dimension_semantics = [#tpu.dimension_semantics<parallel>, #tpu.dimension_semantics<parallel>], iteration_bounds = array<i64: 1, 1>, scalar_prefetch = 0 : i64, scratch_operands = 0 : i64, tpu.core_type = #tpu.core_type<tc>, window_params = [{transform_indices = @transform_0, window_bounds = array<i64: 128, 256>}, {transform_indices = @transform_1, window_bounds = array<i64: 128, 256>}, {transform_indices = @transform_2, window_bounds = array<i64: 1, 128, 2>}]} {
    %c0 = arith.constant 0 : index
    %c0_0 = arith.constant 0 : index
    %0 = vector.load %arg2[%c0, %c0_0] : memref<128x256xbf16, #tpu.memory_space<vmem>>, vector<128x128xbf16>
    %1 = arith.extf %0 : vector<128x128xbf16> to vector<128x128xf32>
    %2 = math.absf %1 : vector<128x128xf32>
    %cst = arith.constant dense<0xFF800000> : vector<128xf32>
    %3 = vector.multi_reduction <maximumf>, %2, %cst [1] : vector<128x128xf32> to vector<128xf32>
    %4 = vector.shape_cast %3 : vector<128xf32> to vector<128x1xf32>
    %cst_1 = arith.constant 1.000000e-30 : f32
    %5 = vector.broadcast %cst_1 : f32 to vector<128x1xf32>
    %6 = arith.maximumf %4, %5 : vector<128x1xf32>
    %cst_2 = arith.constant 5.734400e+04 : f32
    %7 = vector.broadcast %cst_2 : f32 to vector<128x1xf32>
    %8 = arith.divf %7, %6 : vector<128x1xf32>
    %9 = vector.broadcast %8 : vector<128x1xf32> to vector<128x128xf32>
    %10 = arith.mulf %1, %9 : vector<128x128xf32>
    %cst_3 = arith.constant -5.734400e+04 : f32
    %cst_4 = arith.constant 5.734400e+04 : f32
    %11 = vector.broadcast %cst_3 : f32 to vector<128x128xf32>
    %12 = arith.maximumf %11, %10 : vector<128x128xf32>
    %13 = vector.broadcast %cst_4 : f32 to vector<128x128xf32>
    %14 = arith.minimumf %13, %12 : vector<128x128xf32>
    %15 = arith.truncf %14 : vector<128x128xf32> to vector<128x128xf8E5M2>
    %c0_5 = arith.constant 0 : index
    %c0_6 = arith.constant 0 : index
    %16 = vector.load %arg3[%c0_5, %c0_6] : memref<128x256xf8E5M2, #tpu.memory_space<vmem>>, vector<128x128xf8E5M2>
    tpu.vector_store %arg3[%c0_5, %c0_6], %15 {strides = array<i32>} : memref<128x256xf8E5M2, #tpu.memory_space<vmem>>, vector<128x128xf8E5M2>,
    %cst_7 = arith.constant 1.74386169E-5 : f32
    %17 = vector.broadcast %cst_7 : f32 to vector<128x1xf32>
    %18 = arith.mulf %6, %17 : vector<128x1xf32>
    %c0_8 = arith.constant 0 : index
    %c128 = arith.constant 128 : index
    %19 = vector.load %arg2[%c0_8, %c128] : memref<128x256xbf16, #tpu.memory_space<vmem>>, vector<128x128xbf16>
    %20 = arith.extf %19 : vector<128x128xbf16> to vector<128x128xf32>
    %21 = math.absf %20 : vector<128x128xf32>
    %cst_9 = arith.constant dense<0xFF800000> : vector<128xf32>
    %22 = vector.multi_reduction <maximumf>, %21, %cst_9 [1] : vector<128x128xf32> to vector<128xf32>
    %23 = vector.shape_cast %22 : vector<128xf32> to vector<128x1xf32>
    %cst_10 = arith.constant 1.000000e-30 : f32
    %24 = vector.broadcast %cst_10 : f32 to vector<128x1xf32>
    %25 = arith.maximumf %23, %24 : vector<128x1xf32>
    %cst_11 = arith.constant 5.734400e+04 : f32
    %26 = vector.broadcast %cst_11 : f32 to vector<128x1xf32>
    %27 = arith.divf %26, %25 : vector<128x1xf32>
    %28 = vector.broadcast %27 : vector<128x1xf32> to vector<128x128xf32>
    %29 = arith.mulf %20, %28 : vector<128x128xf32>
    %cst_12 = arith.constant -5.734400e+04 : f32
    %cst_13 = arith.constant 5.734400e+04 : f32
    %30 = vector.broadcast %cst_12 : f32 to vector<128x128xf32>
    %31 = arith.maximumf %30, %29 : vector<128x128xf32>
    %32 = vector.broadcast %cst_13 : f32 to vector<128x128xf32>
    %33 = arith.minimumf %32, %31 : vector<128x128xf32>
    %34 = arith.truncf %33 : vector<128x128xf32> to vector<128x128xf8E5M2>
    %c0_14 = arith.constant 0 : index
    %c128_15 = arith.constant 128 : index
    %35 = vector.load %arg3[%c0_14, %c128_15] : memref<128x256xf8E5M2, #tpu.memory_space<vmem>>, vector<128x128xf8E5M2>
    tpu.vector_store %arg3[%c0_14, %c128_15], %34 {strides = array<i32>} : memref<128x256xf8E5M2, #tpu.memory_space<vmem>>, vector<128x128xf8E5M2>,
    %cst_16 = arith.constant 1.74386169E-5 : f32
    %36 = vector.broadcast %cst_16 : f32 to vector<128x1xf32>
    %37 = arith.mulf %25, %36 : vector<128x1xf32>
    %38 = tpu.concatenate %18, %37 in 1 : vector<128x1xf32>, vector<128x1xf32> -> vector<128x2xf32>
    %39 = vector.shape_cast %38 : vector<128x2xf32> to vector<1x128x2xf32>
    %c0_17 = arith.constant 0 : index
    %c0_18 = arith.constant 0 : index
    %c0_19 = arith.constant 0 : index
    %40 = vector.load %arg4[%c0_17, %c0_18, %c0_19] : memref<1x128x2xf32, #tpu.memory_space<vmem>>, vector<1x128x2xf32>
    tpu.vector_store %arg4[%c0_17, %c0_18, %c0_19], %39 {strides = array<i32>} : memref<1x128x2xf32, #tpu.memory_space<vmem>>, vector<1x128x2xf32>,
    return
  }
  func.func @transform_0(%arg0: i32, %arg1: i32) -> (i32, i32) {
    %c0_i32 = arith.constant 0 : i32
    return %arg0, %arg1 : i32, i32
  }
  func.func @transform_1(%arg0: i32, %arg1: i32) -> (i32, i32) {
    %c0_i32 = arith.constant 0 : i32
    return %arg0, %arg1 : i32, i32
  }
  func.func @transform_2(%arg0: i32, %arg1: i32) -> (i32, i32, i32) {
    %c0_i32 = arith.constant 0 : i32
    %c0_i32_0 = arith.constant 0 : i32
    return %arg1, %arg0, %c0_i32 : i32, i32, i32
  }
}

module attributes {stable_mosaic.version = 11 : i64} {
  func.func @_weight_quant_kernel(%arg0: i32, %arg1: memref<128x256xf32, #tpu.memory_space<vmem>>, %arg2: memref<128x256xf8E5M2, #tpu.memory_space<vmem>>, %arg3: memref<1x1x2xf32, #tpu.memory_space<vmem>>) attributes {dimension_semantics = [#tpu.dimension_semantics<parallel>], iteration_bounds = array<i64: 4>, scalar_prefetch = 0 : i64, scratch_operands = 0 : i64, tpu.core_type = #tpu.core_type<tc>, window_params = [{transform_indices = @transform_0, window_bounds = array<i64: 128, 256>}, {transform_indices = @transform_1, window_bounds = array<i64: 128, 256>}, {transform_indices = @transform_2, window_bounds = array<i64: 1, 1, 2>}]} {
    %c0 = arith.constant 0 : index
    %c0_0 = arith.constant 0 : index
    %0 = vector.load %arg1[%c0, %c0_0] : memref<128x256xf32, #tpu.memory_space<vmem>>, vector<128x128xf32>
    %1 = math.absf %0 : vector<128x128xf32>
    %2 = vector.shape_cast %1 : vector<128x128xf32> to vector<1x128x128xf32>
    %cst = arith.constant dense<0xFF800000> : vector<1xf32>
    %3 = vector.multi_reduction <maximumf>, %2, %cst [1, 2] : vector<1x128x128xf32> to vector<1xf32>
    %4 = vector.shape_cast %3 : vector<1xf32> to vector<1x1x1xf32>
    %5 = vector.extract %4[0, 0, 0] : f32 from vector<1x1x1xf32>
    %6 = vector.broadcast %5 : f32 to vector<1x1xf32>
    %cst_1 = arith.constant 1.000000e-30 : f32
    %7 = vector.broadcast %cst_1 : f32 to vector<1x1xf32>
    %8 = arith.maximumf %6, %7 : vector<1x1xf32>
    %cst_2 = arith.constant 5.734400e+04 : f32
    %9 = vector.broadcast %cst_2 : f32 to vector<1x1xf32>
    %10 = arith.divf %9, %8 : vector<1x1xf32>
    %11 = vector.broadcast %10 : vector<1x1xf32> to vector<128x128xf32>
    %12 = arith.mulf %0, %11 : vector<128x128xf32>
    %cst_3 = arith.constant -5.734400e+04 : f32
    %cst_4 = arith.constant 5.734400e+04 : f32
    %13 = vector.broadcast %cst_3 : f32 to vector<128x128xf32>
    %14 = arith.maximumf %13, %12 : vector<128x128xf32>
    %15 = vector.broadcast %cst_4 : f32 to vector<128x128xf32>
    %16 = arith.minimumf %15, %14 : vector<128x128xf32>
    %17 = arith.truncf %16 : vector<128x128xf32> to vector<128x128xf8E5M2>
    %c0_5 = arith.constant 0 : index
    %c0_6 = arith.constant 0 : index
    %18 = vector.load %arg2[%c0_5, %c0_6] : memref<128x256xf8E5M2, #tpu.memory_space<vmem>>, vector<128x128xf8E5M2>
    tpu.vector_store %arg2[%c0_5, %c0_6], %17 {strides = array<i32>} : memref<128x256xf8E5M2, #tpu.memory_space<vmem>>, vector<128x128xf8E5M2>,
    %cst_7 = arith.constant 1.74386169E-5 : f32
    %19 = vector.broadcast %cst_7 : f32 to vector<1x1xf32>
    %20 = arith.mulf %8, %19 : vector<1x1xf32>
    %21 = vector.shape_cast %20 : vector<1x1xf32> to vector<1x1x1xf32>
    %c0_8 = arith.constant 0 : index
    %c128 = arith.constant 128 : index
    %22 = vector.load %arg1[%c0_8, %c128] : memref<128x256xf32, #tpu.memory_space<vmem>>, vector<128x128xf32>
    %23 = math.absf %22 : vector<128x128xf32>
    %24 = vector.shape_cast %23 : vector<128x128xf32> to vector<1x128x128xf32>
    %cst_9 = arith.constant dense<0xFF800000> : vector<1xf32>
    %25 = vector.multi_reduction <maximumf>, %24, %cst_9 [1, 2] : vector<1x128x128xf32> to vector<1xf32>
    %26 = vector.shape_cast %25 : vector<1xf32> to vector<1x1x1xf32>
    %27 = vector.extract %26[0, 0, 0] : f32 from vector<1x1x1xf32>
    %28 = vector.broadcast %27 : f32 to vector<1x1xf32>
    %cst_10 = arith.constant 1.000000e-30 : f32
    %29 = vector.broadcast %cst_10 : f32 to vector<1x1xf32>
    %30 = arith.maximumf %28, %29 : vector<1x1xf32>
    %cst_11 = arith.constant 5.734400e+04 : f32
    %31 = vector.broadcast %cst_11 : f32 to vector<1x1xf32>
    %32 = arith.divf %31, %30 : vector<1x1xf32>
    %33 = vector.broadcast %32 : vector<1x1xf32> to vector<128x128xf32>
    %34 = arith.mulf %22, %33 : vector<128x128xf32>
    %cst_12 = arith.constant -5.734400e+04 : f32
    %cst_13 = arith.constant 5.734400e+04 : f32
    %35 = vector.broadcast %cst_12 : f32 to vector<128x128xf32>
    %36 = arith.maximumf %35, %34 : vector<128x128xf32>
    %37 = vector.broadcast %cst_13 : f32 to vector<128x128xf32>
    %38 = arith.minimumf %37, %36 : vector<128x128xf32>
    %39 = arith.truncf %38 : vector<128x128xf32> to vector<128x128xf8E5M2>
    %c0_14 = arith.constant 0 : index
    %c128_15 = arith.constant 128 : index
    %40 = vector.load %arg2[%c0_14, %c128_15] : memref<128x256xf8E5M2, #tpu.memory_space<vmem>>, vector<128x128xf8E5M2>
    tpu.vector_store %arg2[%c0_14, %c128_15], %39 {strides = array<i32>} : memref<128x256xf8E5M2, #tpu.memory_space<vmem>>, vector<128x128xf8E5M2>,
    %cst_16 = arith.constant 1.74386169E-5 : f32
    %41 = vector.broadcast %cst_16 : f32 to vector<1x1xf32>
    %42 = arith.mulf %30, %41 : vector<1x1xf32>
    %43 = vector.shape_cast %42 : vector<1x1xf32> to vector<1x1x1xf32>
    %44 = tpu.concatenate %21, %43 in 2 : vector<1x1x1xf32>, vector<1x1x1xf32> -> vector<1x1x2xf32>
    %c0_17 = arith.constant 0 : index
    %c0_18 = arith.constant 0 : index
    %c0_19 = arith.constant 0 : index
    %45 = vector.load %arg3[%c0_17, %c0_18, %c0_19] : memref<1x1x2xf32, #tpu.memory_space<vmem>>, vector<1x1x2xf32>
    tpu.vector_store %arg3[%c0_17, %c0_18, %c0_19], %44 {strides = array<i32>} : memref<1x1x2xf32, #tpu.memory_space<vmem>>, vector<1x1x2xf32>,
    return
  }
  func.func @transform_0(%arg0: i32) -> (i32, i32) {
    %c0_i32 = arith.constant 0 : i32
    %c0_i32_0 = arith.constant 0 : i32
    return %arg0, %c0_i32 : i32, i32
  }
  func.func @transform_1(%arg0: i32) -> (i32, i32) {
    %c0_i32 = arith.constant 0 : i32
    %c0_i32_0 = arith.constant 0 : i32
    return %arg0, %c0_i32 : i32, i32
  }
  func.func @transform_2(%arg0: i32) -> (i32, i32, i32) {
    %c0_i32 = arith.constant 0 : i32
    %c0_i32_0 = arith.constant 0 : i32
    %c0_i32_1 = arith.constant 0 : i32
    return %arg0, %c0_i32, %c0_i32_0 : i32, i32, i32
  }
}

module attributes {stable_mosaic.version = 11 : i64} {
  func.func @_silu_quant_kernel(%arg0: i32, %arg1: i32, %arg2: memref<128x256xbf16, #tpu.memory_space<vmem>>, %arg3: memref<128x256xbf16, #tpu.memory_space<vmem>>, %arg4: memref<128x256xf8E5M2, #tpu.memory_space<vmem>>, %arg5: memref<1x128x2xf32, #tpu.memory_space<vmem>>) attributes {dimension_semantics = [#tpu.dimension_semantics<parallel>, #tpu.dimension_semantics<parallel>], iteration_bounds = array<i64: 1, 1>, scalar_prefetch = 0 : i64, scratch_operands = 0 : i64, tpu.core_type = #tpu.core_type<tc>, window_params = [{transform_indices = @transform_0, window_bounds = array<i64: 128, 256>}, {transform_indices = @transform_1, window_bounds = array<i64: 128, 256>}, {transform_indices = @transform_2, window_bounds = array<i64: 128, 256>}, {transform_indices = @transform_3, window_bounds = array<i64: 1, 128, 2>}]} {
    %c0 = arith.constant 0 : index
    %c0_0 = arith.constant 0 : index
    %0 = vector.load %arg2[%c0, %c0_0] : memref<128x256xbf16, #tpu.memory_space<vmem>>, vector<128x128xbf16>
    %1 = arith.extf %0 : vector<128x128xbf16> to vector<128x128xf32>
    %c0_1 = arith.constant 0 : index
    %c0_2 = arith.constant 0 : index
    %2 = vector.load %arg3[%c0_1, %c0_2] : memref<128x256xbf16, #tpu.memory_space<vmem>>, vector<128x128xbf16>
    %3 = arith.extf %2 : vector<128x128xbf16> to vector<128x128xf32>
    %4 = arith.mulf %1, %3 : vector<128x128xf32>
    %5 = arith.negf %3 : vector<128x128xf32>
    %6 = math.exp %5 : vector<128x128xf32>
    %cst = arith.constant 1.000000e+00 : f32
    %7 = vector.broadcast %cst : f32 to vector<128x128xf32>
    %8 = arith.addf %7, %6 : vector<128x128xf32>
    %9 = arith.divf %7, %8 : vector<128x128xf32>
    %10 = arith.mulf %4, %9 : vector<128x128xf32>
    %11 = arith.truncf %10 : vector<128x128xf32> to vector<128x128xbf16>
    %12 = arith.extf %11 : vector<128x128xbf16> to vector<128x128xf32>
    %13 = math.absf %12 : vector<128x128xf32>
    %cst_3 = arith.constant dense<0xFF800000> : vector<128xf32>
    %14 = vector.multi_reduction <maximumf>, %13, %cst_3 [1] : vector<128x128xf32> to vector<128xf32>
    %15 = vector.shape_cast %14 : vector<128xf32> to vector<128x1xf32>
    %cst_4 = arith.constant 1.000000e-30 : f32
    %16 = vector.broadcast %cst_4 : f32 to vector<128x1xf32>
    %17 = arith.maximumf %15, %16 : vector<128x1xf32>
    %cst_5 = arith.constant 5.734400e+04 : f32
    %18 = vector.broadcast %cst_5 : f32 to vector<128x1xf32>
    %19 = arith.divf %18, %17 : vector<128x1xf32>
    %20 = vector.broadcast %19 : vector<128x1xf32> to vector<128x128xf32>
    %21 = arith.mulf %12, %20 : vector<128x128xf32>
    %cst_6 = arith.constant -5.734400e+04 : f32
    %cst_7 = arith.constant 5.734400e+04 : f32
    %22 = vector.broadcast %cst_6 : f32 to vector<128x128xf32>
    %23 = arith.maximumf %22, %21 : vector<128x128xf32>
    %24 = vector.broadcast %cst_7 : f32 to vector<128x128xf32>
    %25 = arith.minimumf %24, %23 : vector<128x128xf32>
    %26 = arith.truncf %25 : vector<128x128xf32> to vector<128x128xf8E5M2>
    %c0_8 = arith.constant 0 : index
    %c0_9 = arith.constant 0 : index
    %27 = vector.load %arg4[%c0_8, %c0_9] : memref<128x256xf8E5M2, #tpu.memory_space<vmem>>, vector<128x128xf8E5M2>
    tpu.vector_store %arg4[%c0_8, %c0_9], %26 {strides = array<i32>} : memref<128x256xf8E5M2, #tpu.memory_space<vmem>>, vector<128x128xf8E5M2>,
    %cst_10 = arith.constant 1.74386169E-5 : f32
    %28 = vector.broadcast %cst_10 : f32 to vector<128x1xf32>
    %29 = arith.mulf %17, %28 : vector<128x1xf32>
    %c0_11 = arith.constant 0 : index
    %c128 = arith.constant 128 : index
    %30 = vector.load %arg2[%c0_11, %c128] : memref<128x256xbf16, #tpu.memory_space<vmem>>, vector<128x128xbf16>
    %31 = arith.extf %30 : vector<128x128xbf16> to vector<128x128xf32>
    %c0_12 = arith.constant 0 : index
    %c128_13 = arith.constant 128 : index
    %32 = vector.load %arg3[%c0_12, %c128_13] : memref<128x256xbf16, #tpu.memory_space<vmem>>, vector<128x128xbf16>
    %33 = arith.extf %32 : vector<128x128xbf16> to vector<128x128xf32>
    %34 = arith.mulf %31, %33 : vector<128x128xf32>
    %35 = arith.negf %33 : vector<128x128xf32>
    %36 = math.exp %35 : vector<128x128xf32>
    %cst_14 = arith.constant 1.000000e+00 : f32
    %37 = vector.broadcast %cst_14 : f32 to vector<128x128xf32>
    %38 = arith.addf %37, %36 : vector<128x128xf32>
    %39 = arith.divf %37, %38 : vector<128x128xf32>
    %40 = arith.mulf %34, %39 : vector<128x128xf32>
    %41 = arith.truncf %40 : vector<128x128xf32> to vector<128x128xbf16>
    %42 = arith.extf %41 : vector<128x128xbf16> to vector<128x128xf32>
    %43 = math.absf %42 : vector<128x128xf32>
    %cst_15 = arith.constant dense<0xFF800000> : vector<128xf32>
    %44 = vector.multi_reduction <maximumf>, %43, %cst_15 [1] : vector<128x128xf32> to vector<128xf32>
    %45 = vector.shape_cast %44 : vector<128xf32> to vector<128x1xf32>
    %cst_16 = arith.constant 1.000000e-30 : f32
    %46 = vector.broadcast %cst_16 : f32 to vector<128x1xf32>
    %47 = arith.maximumf %45, %46 : vector<128x1xf32>
    %cst_17 = arith.constant 5.734400e+04 : f32
    %48 = vector.broadcast %cst_17 : f32 to vector<128x1xf32>
    %49 = arith.divf %48, %47 : vector<128x1xf32>
    %50 = vector.broadcast %49 : vector<128x1xf32> to vector<128x128xf32>
    %51 = arith.mulf %42, %50 : vector<128x128xf32>
    %cst_18 = arith.constant -5.734400e+04 : f32
    %cst_19 = arith.constant 5.734400e+04 : f32
    %52 = vector.broadcast %cst_18 : f32 to vector<128x128xf32>
    %53 = arith.maximumf %52, %51 : vector<128x128xf32>
    %54 = vector.broadcast %cst_19 : f32 to vector<128x128xf32>
    %55 = arith.minimumf %54, %53 : vector<128x128xf32>
    %56 = arith.truncf %55 : vector<128x128xf32> to vector<128x128xf8E5M2>
    %c0_20 = arith.constant 0 : index
    %c128_21 = arith.constant 128 : index
    %57 = vector.load %arg4[%c0_20, %c128_21] : memref<128x256xf8E5M2, #tpu.memory_space<vmem>>, vector<128x128xf8E5M2>
    tpu.vector_store %arg4[%c0_20, %c128_21], %56 {strides = array<i32>} : memref<128x256xf8E5M2, #tpu.memory_space<vmem>>, vector<128x128xf8E5M2>,
    %cst_22 = arith.constant 1.74386169E-5 : f32
    %58 = vector.broadcast %cst_22 : f32 to vector<128x1xf32>
    %59 = arith.mulf %47, %58 : vector<128x1xf32>
    %60 = tpu.concatenate %29, %59 in 1 : vector<128x1xf32>, vector<128x1xf32> -> vector<128x2xf32>
    %61 = vector.shape_cast %60 : vector<128x2xf32> to vector<1x128x2xf32>
    %c0_23 = arith.constant 0 : index
    %c0_24 = arith.constant 0 : index
    %c0_25 = arith.constant 0 : index
    %62 = vector.load %arg5[%c0_23, %c0_24, %c0_25] : memref<1x128x2xf32, #tpu.memory_space<vmem>>, vector<1x128x2xf32>
    tpu.vector_store %arg5[%c0_23, %c0_24, %c0_25], %61 {strides = array<i32>} : memref<1x128x2xf32, #tpu.memory_space<vmem>>, vector<1x128x2xf32>,
    return
  }
  func.func @transform_0(%arg0: i32, %arg1: i32) -> (i32, i32) {
    %c0_i32 = arith.constant 0 : i32
    return %arg0, %arg1 : i32, i32
  }
  func.func @transform_1(%arg0: i32, %arg1: i32) -> (i32, i32) {
    %c1_i32 = arith.constant 1 : i32
    %0 = arith.addi %arg1, %c1_i32 : i32
    %c0_i32 = arith.constant 0 : i32
    return %arg0, %0 : i32, i32
  }
  func.func @transform_2(%arg0: i32, %arg1: i32) -> (i32, i32) {
    %c0_i32 = arith.constant 0 : i32
    return %arg0, %arg1 : i32, i32
  }
  func.func @transform_3(%arg0: i32, %arg1: i32) -> (i32, i32, i32) {
    %c0_i32 = arith.constant 0 : i32
    %c0_i32_0 = arith.constant 0 : i32
    return %arg1, %arg0, %c0_i32 : i32, i32, i32
  }
}

module attributes {stable_mosaic.version = 11 : i64} {
  func.func @_fp8_matmul_kernel(%arg0: i32, %arg1: i32, %arg2: i32, %arg3: memref<128x256xf8E5M2, #tpu.memory_space<vmem>>, %arg4: memref<512x256xf8E5M2, #tpu.memory_space<vmem>>, %arg5: memref<1x128x2xf32, #tpu.memory_space<vmem>>, %arg6: memref<1x512x2xf32, #tpu.memory_space<vmem>>, %arg7: memref<128x512xbf16, #tpu.memory_space<vmem>>, %arg8: memref<128x512xf32, #tpu.memory_space<vmem>>, %arg9: memref<128x256xbf16, #tpu.memory_space<vmem>>, %arg10: memref<512x256xbf16, #tpu.memory_space<vmem>>) attributes {dimension_semantics = [#tpu.dimension_semantics<parallel>, #tpu.dimension_semantics<parallel>, #tpu.dimension_semantics<arbitrary>], iteration_bounds = array<i64: 1, 1, 1>, scalar_prefetch = 0 : i64, scratch_operands = 3 : i64, tpu.core_type = #tpu.core_type<tc>, window_params = [{transform_indices = @transform_0, window_bounds = array<i64: 128, 256>}, {transform_indices = @transform_1, window_bounds = array<i64: 512, 256>}, {transform_indices = @transform_2, window_bounds = array<i64: 1, 128, 2>}, {transform_indices = @transform_3, window_bounds = array<i64: 1, 512, 2>}, {transform_indices = @transform_4, window_bounds = array<i64: 128, 512>}]} {
    %c0_i32 = arith.constant 0 : i32
    %0 = arith.cmpi eq, %arg2, %c0_i32 : i32
    %1 = arith.extui %0 : i1 to i32
    %c0_i32_0 = arith.constant 0 : i32
    %2 = arith.cmpi ne, %1, %c0_i32_0 : i32
    scf.if %2 {
      %cst_31 = arith.constant 0.000000e+00 : f32
      %46 = vector.broadcast %cst_31 : f32 to vector<128x512xf32>
      %c0_32 = arith.constant 0 : index
      %c0_33 = arith.constant 0 : index
      %47 = vector.load %arg8[%c0_32, %c0_33] : memref<128x512xf32, #tpu.memory_space<vmem>>, vector<128x512xf32>
      tpu.vector_store %arg8[%c0_32, %c0_33], %46 {strides = array<i32>} : memref<128x512xf32, #tpu.memory_space<vmem>>, vector<128x512xf32>,
    } else {
    }
    %c0 = arith.constant 0 : index
    %c0_1 = arith.constant 0 : index
    %c0_2 = arith.constant 0 : index
    %3 = vector.load %arg5[%c0, %c0_1, %c0_2] : memref<1x128x2xf32, #tpu.memory_space<vmem>>, vector<1x128x2xf32>
    %c0_3 = arith.constant 0 : index
    %c0_4 = arith.constant 0 : index
    %c0_5 = arith.constant 0 : index
    %4 = vector.load %arg6[%c0_3, %c0_4, %c0_5] : memref<1x512x2xf32, #tpu.memory_space<vmem>>, vector<1x512x2xf32>
    %c0_6 = arith.constant 0 : index
    %c0_7 = arith.constant 0 : index
    %5 = vector.load %arg3[%c0_6, %c0_7] : memref<128x256xf8E5M2, #tpu.memory_space<vmem>>, vector<128x128xf8E5M2>
    %6 = arith.extf %5 : vector<128x128xf8E5M2> to vector<128x128xf32>
    %c0_8 = arith.constant 0 : index
    %c0_9 = arith.constant 0 : index
    %7 = vector.load %arg4[%c0_8, %c0_9] : memref<512x256xf8E5M2, #tpu.memory_space<vmem>>, vector<512x128xf8E5M2>
    %8 = arith.extf %7 : vector<512x128xf8E5M2> to vector<512x128xf32>
    %9 = vector.extract_strided_slice %3 {offsets = [0, 0, 0], sizes = [1, 128, 1], strides = [1, 1, 1]} : vector<1x128x2xf32> to vector<1x128x1xf32>
    %10 = vector.shape_cast %9 : vector<1x128x1xf32> to vector<128x1xf32>
    %11 = vector.broadcast %10 : vector<128x1xf32> to vector<128x128xf32>
    %12 = arith.mulf %6, %11 : vector<128x128xf32>
    %13 = arith.truncf %12 : vector<128x128xf32> to vector<128x128xbf16>
    %c0_10 = arith.constant 0 : index
    %c0_11 = arith.constant 0 : index
    %14 = vector.load %arg9[%c0_10, %c0_11] : memref<128x256xbf16, #tpu.memory_space<vmem>>, vector<128x128xbf16>
    tpu.vector_store %arg9[%c0_10, %c0_11], %13 {strides = array<i32>} : memref<128x256xbf16, #tpu.memory_space<vmem>>, vector<128x128xbf16>,
    %15 = vector.extract_strided_slice %4 {offsets = [0, 0, 0], sizes = [1, 512, 1], strides = [1, 1, 1]} : vector<1x512x2xf32> to vector<1x512x1xf32>
    %16 = vector.shape_cast %15 : vector<1x512x1xf32> to vector<512x1xf32>
    %17 = vector.broadcast %16 : vector<512x1xf32> to vector<512x128xf32>
    %18 = arith.mulf %8, %17 : vector<512x128xf32>
    %19 = arith.truncf %18 : vector<512x128xf32> to vector<512x128xbf16>
    %c0_12 = arith.constant 0 : index
    %c0_13 = arith.constant 0 : index
    %20 = vector.load %arg10[%c0_12, %c0_13] : memref<512x256xbf16, #tpu.memory_space<vmem>>, vector<512x128xbf16>
    tpu.vector_store %arg10[%c0_12, %c0_13], %19 {strides = array<i32>} : memref<512x256xbf16, #tpu.memory_space<vmem>>, vector<512x128xbf16>,
    %c0_14 = arith.constant 0 : index
    %c128 = arith.constant 128 : index
    %21 = vector.load %arg3[%c0_14, %c128] : memref<128x256xf8E5M2, #tpu.memory_space<vmem>>, vector<128x128xf8E5M2>
    %22 = arith.extf %21 : vector<128x128xf8E5M2> to vector<128x128xf32>
    %c0_15 = arith.constant 0 : index
    %c128_16 = arith.constant 128 : index
    %23 = vector.load %arg4[%c0_15, %c128_16] : memref<512x256xf8E5M2, #tpu.memory_space<vmem>>, vector<512x128xf8E5M2>
    %24 = arith.extf %23 : vector<512x128xf8E5M2> to vector<512x128xf32>
    %25 = vector.extract_strided_slice %3 {offsets = [0, 0, 1], sizes = [1, 128, 1], strides = [1, 1, 1]} : vector<1x128x2xf32> to vector<1x128x1xf32>
    %26 = vector.shape_cast %25 : vector<1x128x1xf32> to vector<128x1xf32>
    %27 = vector.broadcast %26 : vector<128x1xf32> to vector<128x128xf32>
    %28 = arith.mulf %22, %27 : vector<128x128xf32>
    %29 = arith.truncf %28 : vector<128x128xf32> to vector<128x128xbf16>
    %c0_17 = arith.constant 0 : index
    %c128_18 = arith.constant 128 : index
    %30 = vector.load %arg9[%c0_17, %c128_18] : memref<128x256xbf16, #tpu.memory_space<vmem>>, vector<128x128xbf16>
    tpu.vector_store %arg9[%c0_17, %c128_18], %29 {strides = array<i32>} : memref<128x256xbf16, #tpu.memory_space<vmem>>, vector<128x128xbf16>,
    %31 = vector.extract_strided_slice %4 {offsets = [0, 0, 1], sizes = [1, 512, 1], strides = [1, 1, 1]} : vector<1x512x2xf32> to vector<1x512x1xf32>
    %32 = vector.shape_cast %31 : vector<1x512x1xf32> to vector<512x1xf32>
    %33 = vector.broadcast %32 : vector<512x1xf32> to vector<512x128xf32>
    %34 = arith.mulf %24, %33 : vector<512x128xf32>
    %35 = arith.truncf %34 : vector<512x128xf32> to vector<512x128xbf16>
    %c0_19 = arith.constant 0 : index
    %c128_20 = arith.constant 128 : index
    %36 = vector.load %arg10[%c0_19, %c128_20] : memref<512x256xbf16, #tpu.memory_space<vmem>>, vector<512x128xbf16>
    tpu.vector_store %arg10[%c0_19, %c128_20], %35 {strides = array<i32>} : memref<512x256xbf16, #tpu.memory_space<vmem>>, vector<512x128xbf16>,
    %c0_21 = arith.constant 0 : index
    %c0_22 = arith.constant 0 : index
    %37 = vector.load %arg8[%c0_21, %c0_22] : memref<128x512xf32, #tpu.memory_space<vmem>>, vector<128x512xf32>
    %c0_23 = arith.constant 0 : index
    %c0_24 = arith.constant 0 : index
    %38 = vector.load %arg9[%c0_23, %c0_24] : memref<128x256xbf16, #tpu.memory_space<vmem>>, vector<128x256xbf16>
    %c0_25 = arith.constant 0 : index
    %c0_26 = arith.constant 0 : index
    %39 = vector.load %arg10[%c0_25, %c0_26] : memref<512x256xbf16, #tpu.memory_space<vmem>>, vector<512x256xbf16>
    %cst = arith.constant dense<0.000000e+00> : vector<128x512xf32>
    %40 = tpu.matmul %38, %39, %cst {dimension_numbers = #tpu.dot_dimension_numbers<[1], [1], [0], [0], [0, 0, 1, 0], [], []>} : vector<128x256xbf16>, vector<512x256xbf16>, vector<128x512xf32> -> vector<128x512xf32>
    %41 = arith.addf %37, %40 : vector<128x512xf32>
    %c0_27 = arith.constant 0 : index
    %c0_28 = arith.constant 0 : index
    %42 = vector.load %arg8[%c0_27, %c0_28] : memref<128x512xf32, #tpu.memory_space<vmem>>, vector<128x512xf32>
    tpu.vector_store %arg8[%c0_27, %c0_28], %41 {strides = array<i32>} : memref<128x512xf32, #tpu.memory_space<vmem>>, vector<128x512xf32>,
    %c0_i32_29 = arith.constant 0 : i32
    %43 = arith.cmpi eq, %arg2, %c0_i32_29 : i32
    %44 = arith.extui %43 : i1 to i32
    %c0_i32_30 = arith.constant 0 : i32
    %45 = arith.cmpi ne, %44, %c0_i32_30 : i32
    scf.if %45 {
      %c0_31 = arith.constant 0 : index
      %c0_32 = arith.constant 0 : index
      %46 = vector.load %arg8[%c0_31, %c0_32] : memref<128x512xf32, #tpu.memory_space<vmem>>, vector<128x512xf32>
      %47 = arith.truncf %46 : vector<128x512xf32> to vector<128x512xbf16>
      %c0_33 = arith.constant 0 : index
      %c0_34 = arith.constant 0 : index
      %48 = vector.load %arg7[%c0_33, %c0_34] : memref<128x512xbf16, #tpu.memory_space<vmem>>, vector<128x512xbf16>
      tpu.vector_store %arg7[%c0_33, %c0_34], %47 {strides = array<i32>} : memref<128x512xbf16, #tpu.memory_space<vmem>>, vector<128x512xbf16>,
    } else {
    }
    return
  }
  func.func @transform_0(%arg0: i32, %arg1: i32, %arg2: i32) -> (i32, i32) {
    %c0_i32 = arith.constant 0 : i32
    return %arg0, %arg2 : i32, i32
  }
  func.func @transform_1(%arg0: i32, %arg1: i32, %arg2: i32) -> (i32, i32) {
    %c0_i32 = arith.constant 0 : i32
    return %arg1, %arg2 : i32, i32
  }
  func.func @transform_2(%arg0: i32, %arg1: i32, %arg2: i32) -> (i32, i32, i32) {
    %c0_i32 = arith.constant 0 : i32
    %c0_i32_0 = arith.constant 0 : i32
    return %arg2, %arg0, %c0_i32 : i32, i32, i32
  }
  func.func @transform_3(%arg0: i32, %arg1: i32, %arg2: i32) -> (i32, i32, i32) {
    %c0_i32 = arith.constant 0 : i32
    %c0_i32_0 = arith.constant 0 : i32
    return %arg2, %arg1, %c0_i32 : i32, i32, i32
  }
  func.func @transform_4(%arg0: i32, %arg1: i32, %arg2: i32) -> (i32, i32) {
    %c0_i32 = arith.constant 0 : i32
    return %arg0, %arg1 : i32, i32
  }
}

module attributes {stable_mosaic.version = 11 : i64} {
  func.func @_fp8_matmul_kernel(%arg0: i32, %arg1: i32, %arg2: i32, %arg3: memref<128x256xf8E5M2, #tpu.memory_space<vmem>>, %arg4: memref<256x256xf8E5M2, #tpu.memory_space<vmem>>, %arg5: memref<1x128x2xf32, #tpu.memory_space<vmem>>, %arg6: memref<1x256x2xf32, #tpu.memory_space<vmem>>, %arg7: memref<128x256xbf16, #tpu.memory_space<vmem>>, %arg8: memref<128x256xf32, #tpu.memory_space<vmem>>, %arg9: memref<128x256xbf16, #tpu.memory_space<vmem>>, %arg10: memref<256x256xbf16, #tpu.memory_space<vmem>>) attributes {dimension_semantics = [#tpu.dimension_semantics<parallel>, #tpu.dimension_semantics<parallel>, #tpu.dimension_semantics<arbitrary>], iteration_bounds = array<i64: 1, 1, 1>, scalar_prefetch = 0 : i64, scratch_operands = 3 : i64, tpu.core_type = #tpu.core_type<tc>, window_params = [{transform_indices = @transform_0, window_bounds = array<i64: 128, 256>}, {transform_indices = @transform_1, window_bounds = array<i64: 256, 256>}, {transform_indices = @transform_2, window_bounds = array<i64: 1, 128, 2>}, {transform_indices = @transform_3, window_bounds = array<i64: 1, 256, 2>}, {transform_indices = @transform_4, window_bounds = array<i64: 128, 256>}]} {
    %c0_i32 = arith.constant 0 : i32
    %0 = arith.cmpi eq, %arg2, %c0_i32 : i32
    %1 = arith.extui %0 : i1 to i32
    %c0_i32_0 = arith.constant 0 : i32
    %2 = arith.cmpi ne, %1, %c0_i32_0 : i32
    scf.if %2 {
      %cst_31 = arith.constant 0.000000e+00 : f32
      %46 = vector.broadcast %cst_31 : f32 to vector<128x256xf32>
      %c0_32 = arith.constant 0 : index
      %c0_33 = arith.constant 0 : index
      %47 = vector.load %arg8[%c0_32, %c0_33] : memref<128x256xf32, #tpu.memory_space<vmem>>, vector<128x256xf32>
      tpu.vector_store %arg8[%c0_32, %c0_33], %46 {strides = array<i32>} : memref<128x256xf32, #tpu.memory_space<vmem>>, vector<128x256xf32>,
    } else {
    }
    %c0 = arith.constant 0 : index
    %c0_1 = arith.constant 0 : index
    %c0_2 = arith.constant 0 : index
    %3 = vector.load %arg5[%c0, %c0_1, %c0_2] : memref<1x128x2xf32, #tpu.memory_space<vmem>>, vector<1x128x2xf32>
    %c0_3 = arith.constant 0 : index
    %c0_4 = arith.constant 0 : index
    %c0_5 = arith.constant 0 : index
    %4 = vector.load %arg6[%c0_3, %c0_4, %c0_5] : memref<1x256x2xf32, #tpu.memory_space<vmem>>, vector<1x256x2xf32>
    %c0_6 = arith.constant 0 : index
    %c0_7 = arith.constant 0 : index
    %5 = vector.load %arg3[%c0_6, %c0_7] : memref<128x256xf8E5M2, #tpu.memory_space<vmem>>, vector<128x128xf8E5M2>
    %6 = arith.extf %5 : vector<128x128xf8E5M2> to vector<128x128xf32>
    %c0_8 = arith.constant 0 : index
    %c0_9 = arith.constant 0 : index
    %7 = vector.load %arg4[%c0_8, %c0_9] : memref<256x256xf8E5M2, #tpu.memory_space<vmem>>, vector<256x128xf8E5M2>
    %8 = arith.extf %7 : vector<256x128xf8E5M2> to vector<256x128xf32>
    %9 = vector.extract_strided_slice %3 {offsets = [0, 0, 0], sizes = [1, 128, 1], strides = [1, 1, 1]} : vector<1x128x2xf32> to vector<1x128x1xf32>
    %10 = vector.shape_cast %9 : vector<1x128x1xf32> to vector<128x1xf32>
    %11 = vector.broadcast %10 : vector<128x1xf32> to vector<128x128xf32>
    %12 = arith.mulf %6, %11 : vector<128x128xf32>
    %13 = arith.truncf %12 : vector<128x128xf32> to vector<128x128xbf16>
    %c0_10 = arith.constant 0 : index
    %c0_11 = arith.constant 0 : index
    %14 = vector.load %arg9[%c0_10, %c0_11] : memref<128x256xbf16, #tpu.memory_space<vmem>>, vector<128x128xbf16>
    tpu.vector_store %arg9[%c0_10, %c0_11], %13 {strides = array<i32>} : memref<128x256xbf16, #tpu.memory_space<vmem>>, vector<128x128xbf16>,
    %15 = vector.extract_strided_slice %4 {offsets = [0, 0, 0], sizes = [1, 256, 1], strides = [1, 1, 1]} : vector<1x256x2xf32> to vector<1x256x1xf32>
    %16 = vector.shape_cast %15 : vector<1x256x1xf32> to vector<256x1xf32>
    %17 = vector.broadcast %16 : vector<256x1xf32> to vector<256x128xf32>
    %18 = arith.mulf %8, %17 : vector<256x128xf32>
    %19 = arith.truncf %18 : vector<256x128xf32> to vector<256x128xbf16>
    %c0_12 = arith.constant 0 : index
    %c0_13 = arith.constant 0 : index
    %20 = vector.load %arg10[%c0_12, %c0_13] : memref<256x256xbf16, #tpu.memory_space<vmem>>, vector<256x128xbf16>
    tpu.vector_store %arg10[%c0_12, %c0_13], %19 {strides = array<i32>} : memref<256x256xbf16, #tpu.memory_space<vmem>>, vector<256x128xbf16>,
    %c0_14 = arith.constant 0 : index
    %c128 = arith.constant 128 : index
    %21 = vector.load %arg3[%c0_14, %c128] : memref<128x256xf8E5M2, #tpu.memory_space<vmem>>, vector<128x128xf8E5M2>
    %22 = arith.extf %21 : vector<128x128xf8E5M2> to vector<128x128xf32>
    %c0_15 = arith.constant 0 : index
    %c128_16 = arith.constant 128 : index
    %23 = vector.load %arg4[%c0_15, %c128_16] : memref<256x256xf8E5M2, #tpu.memory_space<vmem>>, vector<256x128xf8E5M2>
    %24 = arith.extf %23 : vector<256x128xf8E5M2> to vector<256x128xf32>
    %25 = vector.extract_strided_slice %3 {offsets = [0, 0, 1], sizes = [1, 128, 1], strides = [1, 1, 1]} : vector<1x128x2xf32> to vector<1x128x1xf32>
    %26 = vector.shape_cast %25 : vector<1x128x1xf32> to vector<128x1xf32>
    %27 = vector.broadcast %26 : vector<128x1xf32> to vector<128x128xf32>
    %28 = arith.mulf %22, %27 : vector<128x128xf32>
    %29 = arith.truncf %28 : vector<128x128xf32> to vector<128x128xbf16>
    %c0_17 = arith.constant 0 : index
    %c128_18 = arith.constant 128 : index
    %30 = vector.load %arg9[%c0_17, %c128_18] : memref<128x256xbf16, #tpu.memory_space<vmem>>, vector<128x128xbf16>
    tpu.vector_store %arg9[%c0_17, %c128_18], %29 {strides = array<i32>} : memref<128x256xbf16, #tpu.memory_space<vmem>>, vector<128x128xbf16>,
    %31 = vector.extract_strided_slice %4 {offsets = [0, 0, 1], sizes = [1, 256, 1], strides = [1, 1, 1]} : vector<1x256x2xf32> to vector<1x256x1xf32>
    %32 = vector.shape_cast %31 : vector<1x256x1xf32> to vector<256x1xf32>
    %33 = vector.broadcast %32 : vector<256x1xf32> to vector<256x128xf32>
    %34 = arith.mulf %24, %33 : vector<256x128xf32>
    %35 = arith.truncf %34 : vector<256x128xf32> to vector<256x128xbf16>
    %c0_19 = arith.constant 0 : index
    %c128_20 = arith.constant 128 : index
    %36 = vector.load %arg10[%c0_19, %c128_20] : memref<256x256xbf16, #tpu.memory_space<vmem>>, vector<256x128xbf16>
    tpu.vector_store %arg10[%c0_19, %c128_20], %35 {strides = array<i32>} : memref<256x256xbf16, #tpu.memory_space<vmem>>, vector<256x128xbf16>,
    %c0_21 = arith.constant 0 : index
    %c0_22 = arith.constant 0 : index
    %37 = vector.load %arg8[%c0_21, %c0_22] : memref<128x256xf32, #tpu.memory_space<vmem>>, vector<128x256xf32>
    %c0_23 = arith.constant 0 : index
    %c0_24 = arith.constant 0 : index
    %38 = vector.load %arg9[%c0_23, %c0_24] : memref<128x256xbf16, #tpu.memory_space<vmem>>, vector<128x256xbf16>
    %c0_25 = arith.constant 0 : index
    %c0_26 = arith.constant 0 : index
    %39 = vector.load %arg10[%c0_25, %c0_26] : memref<256x256xbf16, #tpu.memory_space<vmem>>, vector<256x256xbf16>
    %cst = arith.constant dense<0.000000e+00> : vector<128x256xf32>
    %40 = tpu.matmul %38, %39, %cst {dimension_numbers = #tpu.dot_dimension_numbers<[1], [1], [0], [0], [0, 0, 1, 0], [], []>} : vector<128x256xbf16>, vector<256x256xbf16>, vector<128x256xf32> -> vector<128x256xf32>
    %41 = arith.addf %37, %40 : vector<128x256xf32>
    %c0_27 = arith.constant 0 : index
    %c0_28 = arith.constant 0 : index
    %42 = vector.load %arg8[%c0_27, %c0_28] : memref<128x256xf32, #tpu.memory_space<vmem>>, vector<128x256xf32>
    tpu.vector_store %arg8[%c0_27, %c0_28], %41 {strides = array<i32>} : memref<128x256xf32, #tpu.memory_space<vmem>>, vector<128x256xf32>,
    %c0_i32_29 = arith.constant 0 : i32
    %43 = arith.cmpi eq, %arg2, %c0_i32_29 : i32
    %44 = arith.extui %43 : i1 to i32
    %c0_i32_30 = arith.constant 0 : i32
    %45 = arith.cmpi ne, %44, %c0_i32_30 : i32
    scf.if %45 {
      %c0_31 = arith.constant 0 : index
      %c0_32 = arith.constant 0 : index
      %46 = vector.load %arg8[%c0_31, %c0_32] : memref<128x256xf32, #tpu.memory_space<vmem>>, vector<128x256xf32>
      %47 = arith.truncf %46 : vector<128x256xf32> to vector<128x256xbf16>
      %c0_33 = arith.constant 0 : index
      %c0_34 = arith.constant 0 : index
      %48 = vector.load %arg7[%c0_33, %c0_34] : memref<128x256xbf16, #tpu.memory_space<vmem>>, vector<128x256xbf16>
      tpu.vector_store %arg7[%c0_33, %c0_34], %47 {strides = array<i32>} : memref<128x256xbf16, #tpu.memory_space<vmem>>, vector<128x256xbf16>,
    } else {
    }
    return
  }
  func.func @transform_0(%arg0: i32, %arg1: i32, %arg2: i32) -> (i32, i32) {
    %c0_i32 = arith.constant 0 : i32
    return %arg0, %arg2 : i32, i32
  }
  func.func @transform_1(%arg0: i32, %arg1: i32, %arg2: i32) -> (i32, i32) {
    %c0_i32 = arith.constant 0 : i32
    return %arg1, %arg2 : i32, i32
  }
  func.func @transform_2(%arg0: i32, %arg1: i32, %arg2: i32) -> (i32, i32, i32) {
    %c0_i32 = arith.constant 0 : i32
    %c0_i32_0 = arith.constant 0 : i32
    return %arg2, %arg0, %c0_i32 : i32, i32, i32
  }
  func.func @transform_3(%arg0: i32, %arg1: i32, %arg2: i32) -> (i32, i32, i32) {
    %c0_i32 = arith.constant 0 : i32
    %c0_i32_0 = arith.constant 0 : i32
    return %arg2, %arg1, %c0_i32 : i32, i32, i32
  }
  func.func @transform_4(%arg0: i32, %arg1: i32, %arg2: i32) -> (i32, i32) {
    %c0_i32 = arith.constant 0 : i32
    return %arg0, %arg1 : i32, i32
  }
}

module attributes {stable_mosaic.version = 11 : i64} {
  func.func @_weight_quant_kernel(%arg0: i32, %arg1: memref<128x256xf32, #tpu.memory_space<vmem>>, %arg2: memref<128x256xf8E5M2, #tpu.memory_space<vmem>>, %arg3: memref<1x1x2xf32, #tpu.memory_space<vmem>>) attributes {dimension_semantics = [#tpu.dimension_semantics<parallel>], iteration_bounds = array<i64: 2>, scalar_prefetch = 0 : i64, scratch_operands = 0 : i64, tpu.core_type = #tpu.core_type<tc>, window_params = [{transform_indices = @transform_0, window_bounds = array<i64: 128, 256>}, {transform_indices = @transform_1, window_bounds = array<i64: 128, 256>}, {transform_indices = @transform_2, window_bounds = array<i64: 1, 1, 2>}]} {
    %c0 = arith.constant 0 : index
    %c0_0 = arith.constant 0 : index
    %0 = vector.load %arg1[%c0, %c0_0] : memref<128x256xf32, #tpu.memory_space<vmem>>, vector<128x128xf32>
    %1 = math.absf %0 : vector<128x128xf32>
    %2 = vector.shape_cast %1 : vector<128x128xf32> to vector<1x128x128xf32>
    %cst = arith.constant dense<0xFF800000> : vector<1xf32>
    %3 = vector.multi_reduction <maximumf>, %2, %cst [1, 2] : vector<1x128x128xf32> to vector<1xf32>
    %4 = vector.shape_cast %3 : vector<1xf32> to vector<1x1x1xf32>
    %5 = vector.extract %4[0, 0, 0] : f32 from vector<1x1x1xf32>
    %6 = vector.broadcast %5 : f32 to vector<1x1xf32>
    %cst_1 = arith.constant 1.000000e-30 : f32
    %7 = vector.broadcast %cst_1 : f32 to vector<1x1xf32>
    %8 = arith.maximumf %6, %7 : vector<1x1xf32>
    %cst_2 = arith.constant 5.734400e+04 : f32
    %9 = vector.broadcast %cst_2 : f32 to vector<1x1xf32>
    %10 = arith.divf %9, %8 : vector<1x1xf32>
    %11 = vector.broadcast %10 : vector<1x1xf32> to vector<128x128xf32>
    %12 = arith.mulf %0, %11 : vector<128x128xf32>
    %cst_3 = arith.constant -5.734400e+04 : f32
    %cst_4 = arith.constant 5.734400e+04 : f32
    %13 = vector.broadcast %cst_3 : f32 to vector<128x128xf32>
    %14 = arith.maximumf %13, %12 : vector<128x128xf32>
    %15 = vector.broadcast %cst_4 : f32 to vector<128x128xf32>
    %16 = arith.minimumf %15, %14 : vector<128x128xf32>
    %17 = arith.truncf %16 : vector<128x128xf32> to vector<128x128xf8E5M2>
    %c0_5 = arith.constant 0 : index
    %c0_6 = arith.constant 0 : index
    %18 = vector.load %arg2[%c0_5, %c0_6] : memref<128x256xf8E5M2, #tpu.memory_space<vmem>>, vector<128x128xf8E5M2>
    tpu.vector_store %arg2[%c0_5, %c0_6], %17 {strides = array<i32>} : memref<128x256xf8E5M2, #tpu.memory_space<vmem>>, vector<128x128xf8E5M2>,
    %cst_7 = arith.constant 1.74386169E-5 : f32
    %19 = vector.broadcast %cst_7 : f32 to vector<1x1xf32>
    %20 = arith.mulf %8, %19 : vector<1x1xf32>
    %21 = vector.shape_cast %20 : vector<1x1xf32> to vector<1x1x1xf32>
    %c0_8 = arith.constant 0 : index
    %c128 = arith.constant 128 : index
    %22 = vector.load %arg1[%c0_8, %c128] : memref<128x256xf32, #tpu.memory_space<vmem>>, vector<128x128xf32>
    %23 = math.absf %22 : vector<128x128xf32>
    %24 = vector.shape_cast %23 : vector<128x128xf32> to vector<1x128x128xf32>
    %cst_9 = arith.constant dense<0xFF800000> : vector<1xf32>
    %25 = vector.multi_reduction <maximumf>, %24, %cst_9 [1, 2] : vector<1x128x128xf32> to vector<1xf32>
    %26 = vector.shape_cast %25 : vector<1xf32> to vector<1x1x1xf32>
    %27 = vector.extract %26[0, 0, 0] : f32 from vector<1x1x1xf32>
    %28 = vector.broadcast %27 : f32 to vector<1x1xf32>
    %cst_10 = arith.constant 1.000000e-30 : f32
    %29 = vector.broadcast %cst_10 : f32 to vector<1x1xf32>
    %30 = arith.maximumf %28, %29 : vector<1x1xf32>
    %cst_11 = arith.constant 5.734400e+04 : f32
    %31 = vector.broadcast %cst_11 : f32 to vector<1x1xf32>
    %32 = arith.divf %31, %30 : vector<1x1xf32>
    %33 = vector.broadcast %32 : vector<1x1xf32> to vector<128x128xf32>
    %34 = arith.mulf %22, %33 : vector<128x128xf32>
    %cst_12 = arith.constant -5.734400e+04 : f32
    %cst_13 = arith.constant 5.734400e+04 : f32
    %35 = vector.broadcast %cst_12 : f32 to vector<128x128xf32>
    %36 = arith.maximumf %35, %34 : vector<128x128xf32>
    %37 = vector.broadcast %cst_13 : f32 to vector<128x128xf32>
    %38 = arith.minimumf %37, %36 : vector<128x128xf32>
    %39 = arith.truncf %38 : vector<128x128xf32> to vector<128x128xf8E5M2>
    %c0_14 = arith.constant 0 : index
    %c128_15 = arith.constant 128 : index
    %40 = vector.load %arg2[%c0_14, %c128_15] : memref<128x256xf8E5M2, #tpu.memory_space<vmem>>, vector<128x128xf8E5M2>
    tpu.vector_store %arg2[%c0_14, %c128_15], %39 {strides = array<i32>} : memref<128x256xf8E5M2, #tpu.memory_space<vmem>>, vector<128x128xf8E5M2>,
    %cst_16 = arith.constant 1.74386169E-5 : f32
    %41 = vector.broadcast %cst_16 : f32 to vector<1x1xf32>
    %42 = arith.mulf %30, %41 : vector<1x1xf32>
    %43 = vector.shape_cast %42 : vector<1x1xf32> to vector<1x1x1xf32>
    %44 = tpu.concatenate %21, %43 in 2 : vector<1x1x1xf32>, vector<1x1x1xf32> -> vector<1x1x2xf32>
    %c0_17 = arith.constant 0 : index
    %c0_18 = arith.constant 0 : index
    %c0_19 = arith.constant 0 : index
    %45 = vector.load %arg3[%c0_17, %c0_18, %c0_19] : memref<1x1x2xf32, #tpu.memory_space<vmem>>, vector<1x1x2xf32>
    tpu.vector_store %arg3[%c0_17, %c0_18, %c0_19], %44 {strides = array<i32>} : memref<1x1x2xf32, #tpu.memory_space<vmem>>, vector<1x1x2xf32>,
    return
  }
  func.func @transform_0(%arg0: i32) -> (i32, i32) {
    %c0_i32 = arith.constant 0 : i32
    %c0_i32_0 = arith.constant 0 : i32
    return %arg0, %c0_i32 : i32, i32
  }
  func.func @transform_1(%arg0: i32) -> (i32, i32) {
    %c0_i32 = arith.constant 0 : i32
    %c0_i32_0 = arith.constant 0 : i32
    return %arg0, %c0_i32 : i32, i32
  }
  func.func @transform_2(%arg0: i32) -> (i32, i32, i32) {
    %c0_i32 = arith.constant 0 : i32
    %c0_i32_0 = arith.constant 0 : i32
    %c0_i32_1 = arith.constant 0 : i32
    return %arg0, %c0_i32, %c0_i32_0 : i32, i32, i32
  }
}

</mosaic_0001>

<llo_original>
// kernel: fp8_mlp_forward.6
$region0: #{fp8_mlp_forward.6}
  #allocation0 [shape = 'u32[]', space=smem, size = 0x4, offset = 0x4, fixed_abs, tag = 'smem constant byte address 0x4 - core index']
  #allocation1 [shape = 'u32[144,128]{1,0:T(1,128)}', space=vmem, size = 0x12000, scoped, tag = 'internal scratch']
  %s0 = inlined_call_operand.hbm [shape: f32[512,256], index: 0, kind: input, shape index: {}]
  %s1 = inlined_call_operand.vmem [shape: f8e5m2[512,256], index: 1, kind: output, shape index: {0}]
  %s2 = inlined_call_operand.vmem [shape: f32[4,1,2], index: 2, kind: output, shape index: {1}]
  %3 = xla_tuple %s1, %s2
  %s4 = sld [smem:[#allocation0]]
  $region49: #{fp8_mlp_forward.6} parent=0
    _
  %s6 = ssub.s32 1, %s4
  %s7 = scalar_select 0, %s6, %s4
  $region1: #{fp8_mlp_forward.6} parent=0
    #allocation2 [shape = 'u8[262144]{0}', space=vmem, size = 0x40000, scoped, tag = 'input window, operand 0']
    #allocation3 [shape = 's32[2]{0}', space=sflag, size = 0x8, scoped, tag = 'scoped memory for fp8_mlp_forward.6']
    %8 = vsyncpa [#allocation3], 0
    %s9 = scalar_lea.sflag [#allocation3], 1
    %10 = vsyncpa %s9, 0
    loop: start=0, step=1, limit=6
    $region2: #{fp8_mlp_forward.6} parent=1 // loop_pre_header
      _
    $region3: #{fp8_mlp_forward.6} parent=1 // loop_header
      %s12 = sphi 0, %s16
      %p13 = scmp.ge.s32.totalorder %s12, 6
      %s22 = sphi 0, %s24
      %s25 = sphi 0, %s22
      %s26 = sphi 0, %s25
      %s42 = sphi 0, %s26
      %s48 = sphi 0, %s50
      %s51 = sphi 0, %s48
      %s52 = sphi 0, %s51
      %s68 = sphi 0, %s52
      %s74 = sphi 0, %s76
      %s77 = sphi 0, %s74
      %s78 = sphi 0, %s77
      %s94 = sphi 0, %s78
    $region4: #{fp8_mlp_forward.6} parent=1 // loop_header_branch
      %15 = sbr.rel (%p13) target = $region8
    $region5: #{fp8_mlp_forward.6} parent=1 // loop_body
      %s17 = ssub.s32 %s12, 1
      %s18 = ssub.s32 %s12, 2
      %s19 = sadd.s32 %s12, 1
      %s20 = ssub.s32 %s12, %s19
      %p21 = scmp.eq.s32.totalorder %s20, 0
      %s23 = sadd.s32 %s22, 1
      %s24 = scalar_select %p21, %s22, %s23
      %p27 = pneg %p21
      %p28 = scmp.eq.s32.totalorder %s12, 3
      %p29 = por %p27, %p28
      %p30 = scmp.ne.s32.totalorder %s22, %s25
      %p31 = scmp.eq.s32.totalorder %s12, 0
      %p32 = por %p30, %p31
      %p33 = scmp.ne.s32.totalorder %s22, %s25
      %p34 = scmp.eq.s32.totalorder %s17, 3
      %p35 = por %p33, %p34
      %p36 = scmp.ne.s32.totalorder %s25, %s26
      %p37 = scmp.eq.s32.totalorder %s17, 0
      %p38 = por %p36, %p37
      %p39 = scmp.ne.s32.totalorder %s25, %s26
      %p40 = scmp.eq.s32.totalorder %s18, 3
      %p41 = por %p39, %p40
      %p43 = scmp.ne.s32.totalorder %s26, %s42
      %p44 = scmp.eq.s32.totalorder %s18, 0
      %p45 = por %p43, %p44
      %s46 = ssub.s32 %s12, %s19
      %p47 = scmp.eq.s32.totalorder %s46, 0
      %s49 = sadd.s32 %s48, 1
      %s50 = scalar_select %p47, %s48, %s49
      %p53 = pneg %p47
      %p54 = scmp.eq.s32.totalorder %s12, 3
      %p55 = por %p53, %p54
      %p56 = scmp.ne.s32.totalorder %s48, %s51
      %p57 = scmp.eq.s32.totalorder %s12, 0
      %p58 = por %p56, %p57
      %p59 = scmp.ne.s32.totalorder %s48, %s51
      %p60 = scmp.eq.s32.totalorder %s17, 3
      %p61 = por %p59, %p60
      %p62 = scmp.ne.s32.totalorder %s51, %s52
      %p63 = scmp.eq.s32.totalorder %s17, 0
      %p64 = por %p62, %p63
      %p65 = scmp.ne.s32.totalorder %s51, %s52
      %p66 = scmp.eq.s32.totalorder %s18, 3
      %p67 = por %p65, %p66
      %p69 = scmp.ne.s32.totalorder %s52, %s68
      %p70 = scmp.eq.s32.totalorder %s18, 0
      %p71 = por %p69, %p70
      %s72 = ssub.s32 %s12, %s19
      %p73 = scmp.eq.s32.totalorder %s72, 0
      %s75 = sadd.s32 %s74, 1
      %s76 = scalar_select %p73, %s74, %s75
      %p79 = pneg %p73
      %p80 = scmp.eq.s32.totalorder %s12, 3
      %p81 = por %p79, %p80
      %p82 = scmp.ne.s32.totalorder %s74, %s77
      %p83 = scmp.eq.s32.totalorder %s12, 0
      %p84 = por %p82, %p83
      %p85 = scmp.ne.s32.totalorder %s74, %s77
      %p86 = scmp.eq.s32.totalorder %s17, 3
      %p87 = por %p85, %p86
      %p88 = scmp.ne.s32.totalorder %s77, %s78
      %p89 = scmp.eq.s32.totalorder %s17, 0
      %p90 = por %p88, %p89
      %p91 = scmp.ne.s32.totalorder %s77, %s78
      %p92 = scmp.eq.s32.totalorder %s18, 3
      %p93 = por %p91, %p92
      %p95 = scmp.ne.s32.totalorder %s78, %s94
      %p96 = scmp.eq.s32.totalorder %s18, 0
      %p97 = por %p95, %p96
      %p98 = scmp.le.s32.totalorder 1, %s12
      %p99 = scmp.lt.s32.totalorder %s12, 5
      %p100 = pnand %p98, %p99
      %p101 = pneg %p100
      // Predicated region
      $region9: #{fp8_mlp_forward.6} parent=5 // pred_check
        _
      $region10: #{fp8_mlp_forward.6} parent=5 // pred_check_branch
        %103 = sbr.rel (%p100) target = $region12
      $region11: #{fp8_mlp_forward.6} parent=5 // pred_region
        %s104 = ssub.s32 %s12, 1
      $region12: #{fp8_mlp_forward.6} parent=5 // pred_fallthru
        _
      %p105 = scmp.lt.s32.totalorder %s12, 4
      // Predicated region
      $region13: #{fp8_mlp_forward.6} parent=5 // pred_check
        %p106 = pneg %p105
      $region14: #{fp8_mlp_forward.6} parent=5 // pred_check_branch
        %108 = sbr.rel (%p106) target = $region16
      $region15: #{fp8_mlp_forward.6} parent=5 // pred_region
        // Predicated region
        $region17: #{fp8_mlp_forward.6} parent=15 // pred_check
          %p109 = pneg %p32
        $region18: #{fp8_mlp_forward.6} parent=15 // pred_check_branch
          %111 = sbr.rel (%p109) target = $region20
        $region19: #{fp8_mlp_forward.6} parent=15 // pred_region
          %s112 = sand.u32 %s22, 1
          %s113 = scalar_lea.sflag [#allocation3], %s112
          %s114 = sand.u32 %s22, 1
          %s115 = smul.addr %s114, 256
          %s116 = scalar_lea.vmem [#allocation2], %s115
          %s117 = smul.u32 16, %s12
          %s119 = ssub.s32 4096, 4096
          %120 = vsyncadd %s113, %s119
          %s121 = smul.addr %s117, 2
          %s122 = smul.addr %s121, 128
          %s123 = scalar_lea.hbm %s0, %s122
          %s124 = sshll.u32 %s116, 4
          %s125 = int_to_ptr.vmem [resolvable:$true] %s124
          %130 = dma.hbm_to_vmem [thread:$0]  %s123, 4096, %s125, %s113, 256, 256, 16
        $region20: #{fp8_mlp_forward.6} parent=15 // pred_fallthru
          _
      $region16: #{fp8_mlp_forward.6} parent=5 // pred_fallthru
        _
      %p131 = scmp.le.s32.totalorder 1, %s12
      %p132 = scmp.lt.s32.totalorder %s12, 5
      %p133 = pnand %p131, %p132
      %p134 = pneg %p133
      // Predicated region
      $region21: #{fp8_mlp_forward.6} parent=5 // pred_check
        _
      $region22: #{fp8_mlp_forward.6} parent=5 // pred_check_branch
        %136 = sbr.rel (%p133) target = $region24
      $region23: #{fp8_mlp_forward.6} parent=5 // pred_region
        %s137 = ssub.s32 %s12, 1
        %s138 = sand.u32 %s25, 1
        %s139 = scalar_lea.sflag [#allocation3], %s138
        %s140 = sand.u32 %s25, 1
        %s141 = smul.addr %s140, 256
        %s142 = scalar_lea.vmem [#allocation2], %s141
        // Predicated region
        $region25: #{fp8_mlp_forward.6} parent=23 // pred_check
          %p143 = pneg %p38
        $region26: #{fp8_mlp_forward.6} parent=23 // pred_check_branch
          %145 = sbr.rel (%p143) target = $region28
        $region27: #{fp8_mlp_forward.6} parent=23 // pred_region
          %146 = dma.done %s139, 4096
        $region28: #{fp8_mlp_forward.6} parent=23 // pred_fallthru
          _
        %s147 = sand.u32 %s25, 1
        %s148 = scalar_lea.sflag [#allocation3], %s147
        %s149 = sand.u32 %s25, 1
        %s150 = smul.addr %s149, 256
        %s151 = scalar_lea.vmem [#allocation2], %s150
        %p152 = pneg %p38
        %p153 = pneg %p35
        %p154 = pneg %p64
        %p155 = pneg %p61
        %s156 = smul.u32 4, %s17
        %p157 = scmp.lt.s32.totalorder %s156, 15
        %s158 = scalar_select %p157, %s156, 15
        %s159 = smul.addr %s158, 2
        %s160 = smul.addr %s159, 8
        %s161 = scalar_lea.vmem %s1, %s160
        %p162 = pneg %p90
        %p163 = pneg %p87
        %p164 = scmp.lt.s32.totalorder %s17, 3
        %s165 = scalar_select %p164, %s17, 3
        %s166 = scalar_lea.vmem %s2, %s165
        %s167 = smul.u32 16, %s17
        %s168 = smul.u32 4, %s17
        %p169 = scmp.lt.s32.totalorder %s168, 15
        %s170 = scalar_select %p169, %s168, 15
        %s171 = smul.addr %s170, 2
        %s172 = smul.addr %s171, 8
        %s173 = scalar_lea.vmem %s1, %s172
        %s174 = smul.u32 4, %s17
        %p175 = scmp.lt.s32.totalorder %s17, 3
        %s176 = scalar_select %p175, %s17, 3
        %s177 = scalar_lea.vmem %s2, %s176
        %v178 = vld [vmem:[%s142] sm:$0xff]
        %v179 = vld [vmem:[%s142 + $0x10] sm:$0xff]
        %v180 = vld [vmem:[%s142 + $0x20] sm:$0xff]
        %v181 = vld [vmem:[%s142 + $0x30] sm:$0xff]
        %v182 = vld [vmem:[%s142 + $0x40] sm:$0xff]
        %v183 = vld [vmem:[%s142 + $0x50] sm:$0xff]
        %v184 = vld [vmem:[%s142 + $0x60] sm:$0xff]
        %v185 = vld [vmem:[%s142 + $0x70] sm:$0xff]
        %v186 = vld [vmem:[%s142 + $0x80] sm:$0xff]
        %v187 = vld [vmem:[%s142 + $0x90] sm:$0xff]
        %v188 = vld [vmem:[%s142 + $0xa0] sm:$0xff]
        %v189 = vld [vmem:[%s142 + $0xb0] sm:$0xff]
        %v190 = vld [vmem:[%s142 + $0xc0] sm:$0xff]
        %v191 = vld [vmem:[%s142 + $0xd0] sm:$0xff]
        %v192 = vld [vmem:[%s142 + $0xe0] sm:$0xff]
        %v193 = vld [vmem:[%s142 + $0xf0] sm:$0xff]
        %v194 = vand.u32 2147483647, %v178
        %v195 = vand.u32 2147483647, %v179
        %v196 = vand.u32 2147483647, %v180
        %v197 = vand.u32 2147483647, %v181
        %v198 = vand.u32 2147483647, %v182
        %v199 = vand.u32 2147483647, %v183
        %v200 = vand.u32 2147483647, %v184
        %v201 = vand.u32 2147483647, %v185
        %v202 = vand.u32 2147483647, %v186
        %v203 = vand.u32 2147483647, %v187
        %v204 = vand.u32 2147483647, %v188
        %v205 = vand.u32 2147483647, %v189
        %v206 = vand.u32 2147483647, %v190
        %v207 = vand.u32 2147483647, %v191
        %v208 = vand.u32 2147483647, %v192
        %v209 = vand.u32 2147483647, %v193
        %v210 = vmax.f32 %v194, %v198
        %v211 = vmax.f32 %v195, %v199
        %v212 = vmax.f32 %v196, %v200
        %v213 = vmax.f32 %v197, %v201
        %v214 = vmax.f32 %v210, %v202
        %v215 = vmax.f32 %v211, %v203
        %v216 = vmax.f32 %v212, %v204
        %v217 = vmax.f32 %v213, %v205
        %v218 = vmax.f32 %v214, %v206
        %v219 = vmax.f32 %v215, %v207
        %v220 = vmax.f32 %v216, %v208
        %v221 = vmax.f32 %v217, %v209
        %v222 = vmax.f32 %v218, %v219
        %v223 = vmax.f32 %v220, %v221
        %v224 = vmax.f32 %v222, %v223
        %225 = vmax.xlane.f32.xlu0 %v224
        %v226 = vpop.xlane.xlu0 %225
        %v227 = vrot.slane %v226, 4
        %v228 = vmax.f32 %v226, %v227
        %v229 = vrot.slane %v228, 2
        %v230 = vmax.f32 %v228, %v229
        %v231 = vrot.slane %v230, 1
        %v232 = vmax.f32 %v230, %v231
        %s233 = vtos %v232
        %v234 = vstv %s233
        %v235 = vmax.f32 %v234, 1e-30
        %v236 = vrcp.pop %v235
        %v237 = vmul.f32 57344.0, %v236
        %v238 = vmul.f32 %v178, %v237
        %v239 = vmul.f32 %v179, %v237
        %v240 = vmul.f32 %v180, %v237
        %v241 = vmul.f32 %v181, %v237
        %v242 = vmul.f32 %v182, %v237
        %v243 = vmul.f32 %v183, %v237
        %v244 = vmul.f32 %v184, %v237
        %v245 = vmul.f32 %v185, %v237
        %v246 = vmul.f32 %v186, %v237
        %v247 = vmul.f32 %v187, %v237
        %v248 = vmul.f32 %v188, %v237
        %v249 = vmul.f32 %v189, %v237
        %v250 = vmul.f32 %v190, %v237
        %v251 = vmul.f32 %v191, %v237
        %v252 = vmul.f32 %v192, %v237
        %v253 = vmul.f32 %v193, %v237
        %v254 = vmax.f32 %v238, -57344.0
        %v255 = vmax.f32 %v239, -57344.0
        %v256 = vmax.f32 %v240, -57344.0
        %v257 = vmax.f32 %v241, -57344.0
        %v258 = vmax.f32 %v242, -57344.0
        %v259 = vmax.f32 %v243, -57344.0
        %v260 = vmax.f32 %v244, -57344.0
        %v261 = vmax.f32 %v245, -57344.0
        %v262 = vmax.f32 %v246, -57344.0
        %v263 = vmax.f32 %v247, -57344.0
        %v264 = vmax.f32 %v248, -57344.0
        %v265 = vmax.f32 %v249, -57344.0
        %v266 = vmax.f32 %v250, -57344.0
        %v267 = vmax.f32 %v251, -57344.0
        %v268 = vmax.f32 %v252, -57344.0
        %v269 = vmax.f32 %v253, -57344.0
        %v270 = vmin.f32 %v254, 57344.0
        %v271 = vmin.f32 %v255, 57344.0
        %v272 = vmin.f32 %v256, 57344.0
        %v273 = vmin.f32 %v257, 57344.0
        %v274 = vmin.f32 %v258, 57344.0
        %v275 = vmin.f32 %v259, 57344.0
        %v276 = vmin.f32 %v260, 57344.0
        %v277 = vmin.f32 %v261, 57344.0
        %v278 = vmin.f32 %v262, 57344.0
        %v279 = vmin.f32 %v263, 57344.0
        %v280 = vmin.f32 %v264, 57344.0
        %v281 = vmin.f32 %v265, 57344.0
        %v282 = vmin.f32 %v266, 57344.0
        %v283 = vmin.f32 %v267, 57344.0
        %v284 = vmin.f32 %v268, 57344.0
        %v285 = vmin.f32 %v269, 57344.0
        %v286 = vcvt.f32.f8e5m2 %v270
        %v287 = vcvt.f32.f8e5m2 %v271
        %v288 = vcvt.f32.f8e5m2 %v272
        %v289 = vcvt.f32.f8e5m2 %v273
        %v290 = vpack.c.b16 %v287, %v286
        %v291 = vpack.c.b16 %v289, %v288
        %v292 = vpack.c.b8 %v291, %v290
        %v294 = vcvt.f32.f8e5m2 %v274
        %v295 = vcvt.f32.f8e5m2 %v275
        %v296 = vcvt.f32.f8e5m2 %v276
        %v297 = vcvt.f32.f8e5m2 %v277
        %v298 = vpack.c.b16 %v295, %v294
        %v299 = vpack.c.b16 %v297, %v296
        %v300 = vpack.c.b8 %v299, %v298
        %v302 = vcvt.f32.f8e5m2 %v278
        %v303 = vcvt.f32.f8e5m2 %v279
        %v304 = vcvt.f32.f8e5m2 %v280
        %v305 = vcvt.f32.f8e5m2 %v281
        %v306 = vpack.c.b16 %v303, %v302
        %v307 = vpack.c.b16 %v305, %v304
        %v308 = vpack.c.b8 %v307, %v306
        %v310 = vcvt.f32.f8e5m2 %v282
        %v311 = vcvt.f32.f8e5m2 %v283
        %v312 = vcvt.f32.f8e5m2 %v284
        %v313 = vcvt.f32.f8e5m2 %v285
        %v314 = vpack.c.b16 %v311, %v310
        %v315 = vpack.c.b16 %v313, %v312
        %v316 = vpack.c.b8 %v315, %v314
        %318 = vst [vmem:[%s173] sm:$0xff] %v292
        %319 = vst [vmem:[%s173 + $0x10] sm:$0xff] %v300
        %320 = vst [vmem:[%s173 + $0x20] sm:$0xff] %v308
        %321 = vst [vmem:[%s173 + $0x30] sm:$0xff] %v316
        %v322 = vmul.f32 %v235, 1.7438617e-05
        %v323 = vld [vmem:[%s142 + $0x8] sm:$0xff]
        %v324 = vld [vmem:[%s142 + $0x18] sm:$0xff]
        %v325 = vld [vmem:[%s142 + $0x28] sm:$0xff]
        %v326 = vld [vmem:[%s142 + $0x38] sm:$0xff]
        %v327 = vld [vmem:[%s142 + $0x48] sm:$0xff]
        %v328 = vld [vmem:[%s142 + $0x58] sm:$0xff]
        %v329 = vld [vmem:[%s142 + $0x68] sm:$0xff]
        %v330 = vld [vmem:[%s142 + $0x78] sm:$0xff]
        %v331 = vld [vmem:[%s142 + $0x88] sm:$0xff]
        %v332 = vld [vmem:[%s142 + $0x98] sm:$0xff]
        %v333 = vld [vmem:[%s142 + $0xa8] sm:$0xff]
        %v334 = vld [vmem:[%s142 + $0xb8] sm:$0xff]
        %v335 = vld [vmem:[%s142 + $0xc8] sm:$0xff]
        %v336 = vld [vmem:[%s142 + $0xd8] sm:$0xff]
        %v337 = vld [vmem:[%s142 + $0xe8] sm:$0xff]
        %v338 = vld [vmem:[%s142 + $0xf8] sm:$0xff]
        %v339 = vand.u32 2147483647, %v323
        %v340 = vand.u32 2147483647, %v324
        %v341 = vand.u32 2147483647, %v325
        %v342 = vand.u32 2147483647, %v326
        %v343 = vand.u32 2147483647, %v327
        %v344 = vand.u32 2147483647, %v328
        %v345 = vand.u32 2147483647, %v329
        %v346 = vand.u32 2147483647, %v330
        %v347 = vand.u32 2147483647, %v331
        %v348 = vand.u32 2147483647, %v332
        %v349 = vand.u32 2147483647, %v333
        %v350 = vand.u32 2147483647, %v334
        %v351 = vand.u32 2147483647, %v335
        %v352 = vand.u32 2147483647, %v336
        %v353 = vand.u32 2147483647, %v337
        %v354 = vand.u32 2147483647, %v338
        %v355 = vmax.f32 %v339, %v343
        %v356 = vmax.f32 %v340, %v344
        %v357 = vmax.f32 %v341, %v345
        %v358 = vmax.f32 %v342, %v346
        %v359 = vmax.f32 %v355, %v347
        %v360 = vmax.f32 %v356, %v348
        %v361 = vmax.f32 %v357, %v349
        %v362 = vmax.f32 %v358, %v350
        %v363 = vmax.f32 %v359, %v351
        %v364 = vmax.f32 %v360, %v352
        %v365 = vmax.f32 %v361, %v353
        %v366 = vmax.f32 %v362, %v354
        %v367 = vmax.f32 %v363, %v364
        %v368 = vmax.f32 %v365, %v366
        %v369 = vmax.f32 %v367, %v368
        %370 = vmax.xlane.f32.xlu0 %v369
        %v371 = vpop.xlane.xlu0 %370
        %v372 = vrot.slane %v371, 4
        %v373 = vmax.f32 %v371, %v372
        %v374 = vrot.slane %v373, 2
        %v375 = vmax.f32 %v373, %v374
        %v376 = vrot.slane %v375, 1
        %v377 = vmax.f32 %v375, %v376
        %s378 = vtos %v377
        %v379 = vstv %s378
        %v380 = vmax.f32 %v379, 1e-30
        %v381 = vrcp.pop %v380
        %v382 = vmul.f32 57344.0, %v381
        %v383 = vmul.f32 %v323, %v382
        %v384 = vmul.f32 %v324, %v382
        %v385 = vmul.f32 %v325, %v382
        %v386 = vmul.f32 %v326, %v382
        %v387 = vmul.f32 %v327, %v382
        %v388 = vmul.f32 %v328, %v382
        %v389 = vmul.f32 %v329, %v382
        %v390 = vmul.f32 %v330, %v382
        %v391 = vmul.f32 %v331, %v382
        %v392 = vmul.f32 %v332, %v382
        %v393 = vmul.f32 %v333, %v382
        %v394 = vmul.f32 %v334, %v382
        %v395 = vmul.f32 %v335, %v382
        %v396 = vmul.f32 %v336, %v382
        %v397 = vmul.f32 %v337, %v382
        %v398 = vmul.f32 %v338, %v382
        %v399 = vmax.f32 %v383, -57344.0
        %v400 = vmax.f32 %v384, -57344.0
        %v401 = vmax.f32 %v385, -57344.0
        %v402 = vmax.f32 %v386, -57344.0
        %v403 = vmax.f32 %v387, -57344.0
        %v404 = vmax.f32 %v388, -57344.0
        %v405 = vmax.f32 %v389, -57344.0
        %v406 = vmax.f32 %v390, -57344.0
        %v407 = vmax.f32 %v391, -57344.0
        %v408 = vmax.f32 %v392, -57344.0
        %v409 = vmax.f32 %v393, -57344.0
        %v410 = vmax.f32 %v394, -57344.0
        %v411 = vmax.f32 %v395, -57344.0
        %v412 = vmax.f32 %v396, -57344.0
        %v413 = vmax.f32 %v397, -57344.0
        %v414 = vmax.f32 %v398, -57344.0
        %v415 = vmin.f32 %v399, 57344.0
        %v416 = vmin.f32 %v400, 57344.0
        %v417 = vmin.f32 %v401, 57344.0
        %v418 = vmin.f32 %v402, 57344.0
        %v419 = vmin.f32 %v403, 57344.0
        %v420 = vmin.f32 %v404, 57344.0
        %v421 = vmin.f32 %v405, 57344.0
        %v422 = vmin.f32 %v406, 57344.0
        %v423 = vmin.f32 %v407, 57344.0
        %v424 = vmin.f32 %v408, 57344.0
        %v425 = vmin.f32 %v409, 57344.0
        %v426 = vmin.f32 %v410, 57344.0
        %v427 = vmin.f32 %v411, 57344.0
        %v428 = vmin.f32 %v412, 57344.0
        %v429 = vmin.f32 %v413, 57344.0
        %v430 = vmin.f32 %v414, 57344.0
        %v431 = vcvt.f32.f8e5m2 %v415
        %v432 = vcvt.f32.f8e5m2 %v416
        %v433 = vcvt.f32.f8e5m2 %v417
        %v434 = vcvt.f32.f8e5m2 %v418
        %v435 = vpack.c.b16 %v432, %v431
        %v436 = vpack.c.b16 %v434, %v433
        %v437 = vpack.c.b8 %v436, %v435
        %v439 = vcvt.f32.f8e5m2 %v419
        %v440 = vcvt.f32.f8e5m2 %v420
        %v441 = vcvt.f32.f8e5m2 %v421
        %v442 = vcvt.f32.f8e5m2 %v422
        %v443 = vpack.c.b16 %v440, %v439
        %v444 = vpack.c.b16 %v442, %v441
        %v445 = vpack.c.b8 %v444, %v443
        %v447 = vcvt.f32.f8e5m2 %v423
        %v448 = vcvt.f32.f8e5m2 %v424
        %v449 = vcvt.f32.f8e5m2 %v425
        %v450 = vcvt.f32.f8e5m2 %v426
        %v451 = vpack.c.b16 %v448, %v447
        %v452 = vpack.c.b16 %v450, %v449
        %v453 = vpack.c.b8 %v452, %v451
        %v455 = vcvt.f32.f8e5m2 %v427
        %v456 = vcvt.f32.f8e5m2 %v428
        %v457 = vcvt.f32.f8e5m2 %v429
        %v458 = vcvt.f32.f8e5m2 %v430
        %v459 = vpack.c.b16 %v456, %v455
        %v460 = vpack.c.b16 %v458, %v457
        %v461 = vpack.c.b8 %v460, %v459
        %463 = vst [vmem:[%s173 + $0x8] sm:$0xff] %v437
        %464 = vst [vmem:[%s173 + $0x18] sm:$0xff] %v445
        %465 = vst [vmem:[%s173 + $0x28] sm:$0xff] %v453
        %466 = vst [vmem:[%s173 + $0x38] sm:$0xff] %v461
        %v467 = vmul.f32 %v380, 1.7438617e-05
        %vm468 = vcmask 7168
        %v469 = vsel %vm468, %v322, %v467
        %vm470 = vcmask 8192
        %471 = vst.msk [vmem:[%s177] sm:$0x1] %vm470, %v469
        %s472 = smul.u32 4, %s17
        %p473 = scmp.lt.s32.totalorder %s472, 15
        %s474 = scalar_select %p473, %s472, 15
        %s475 = smul.addr %s474, 2
        %s476 = smul.addr %s475, 8
        %s477 = scalar_lea.vmem %s1, %s476
        %p478 = scmp.lt.s32.totalorder %s17, 3
        %s479 = scalar_select %p478, %s17, 3
        %s480 = scalar_lea.vmem %s2, %s479
        // Predicated region
        $region29: #{fp8_mlp_forward.6} parent=23 // pred_check
          %p481 = pneg %p61
        $region30: #{fp8_mlp_forward.6} parent=23 // pred_check_branch
          %483 = sbr.rel (%p481) target = $region32
        $region31: #{fp8_mlp_forward.6} parent=23 // pred_region
          %s484 = smul.u32 4, %s17
        $region32: #{fp8_mlp_forward.6} parent=23 // pred_fallthru
          _
        // Predicated region
        $region33: #{fp8_mlp_forward.6} parent=23 // pred_check
          %p485 = pneg %p87
        $region34: #{fp8_mlp_forward.6} parent=23 // pred_check_branch
          %487 = sbr.rel (%p485) target = $region36
        $region35: #{fp8_mlp_forward.6} parent=23 // pred_region
          _
        $region36: #{fp8_mlp_forward.6} parent=23 // pred_fallthru
          _
      $region24: #{fp8_mlp_forward.6} parent=5 // pred_fallthru
        _
      %p488 = scmp.le.s32.totalorder 2, %s12
      // Predicated region
      $region37: #{fp8_mlp_forward.6} parent=5 // pred_check
        %p489 = pneg %p488
      $region38: #{fp8_mlp_forward.6} parent=5 // pred_check_branch
        %491 = sbr.rel (%p489) target = $region40
      $region39: #{fp8_mlp_forward.6} parent=5 // pred_region
        %s492 = ssub.s32 %s12, 2
        // Predicated region
        $region41: #{fp8_mlp_forward.6} parent=39 // pred_check
          %p493 = pneg %p67
        $region42: #{fp8_mlp_forward.6} parent=39 // pred_check_branch
          %495 = sbr.rel (%p493) target = $region44
        $region43: #{fp8_mlp_forward.6} parent=39 // pred_region
          %s496 = smul.u32 4, %s18
          %p497 = scmp.lt.s32.totalorder %s496, 15
          %s498 = scalar_select %p497, %s496, 15
          %s499 = smul.addr %s498, 2
          %s500 = smul.addr %s499, 8
          %s501 = scalar_lea.vmem %s1, %s500
        $region44: #{fp8_mlp_forward.6} parent=39 // pred_fallthru
          _
        // Predicated region
        $region45: #{fp8_mlp_forward.6} parent=39 // pred_check
          %p502 = pneg %p93
        $region46: #{fp8_mlp_forward.6} parent=39 // pred_check_branch
          %504 = sbr.rel (%p502) target = $region48
        $region47: #{fp8_mlp_forward.6} parent=39 // pred_region
          %p505 = scmp.lt.s32.totalorder %s18, 3
          %s506 = scalar_select %p505, %s18, 3
          %s507 = scalar_lea.vmem %s2, %s506
        $region48: #{fp8_mlp_forward.6} parent=39 // pred_fallthru
          _
      $region40: #{fp8_mlp_forward.6} parent=5 // pred_fallthru
        _
    $region6: #{fp8_mlp_forward.6} parent=1 // loop_footer
      %s16 = sadd.s32 1, %s12
    $region7: #{fp8_mlp_forward.6} parent=1 // loop_footer_branch
      %11 = sbr.rel target = $region3
    $region8: #{fp8_mlp_forward.6} parent=1 // loop_exit
      _
    %508 = vsyncpa [#allocation3], 1
    %s509 = scalar_lea.sflag [#allocation3], 1
    %510 = vsyncpa %s509, 1

// kernel: fp8_mlp_forward.8
$region0: #{fp8_mlp_forward.8}
  #allocation0 [shape = 'u32[]', space=smem, size = 0x4, offset = 0x4, fixed_abs, tag = 'smem constant byte address 0x4 - core index']
  #allocation1 [shape = 'u32[144,128]{1,0:T(1,128)}', space=vmem, size = 0x12000, scoped, tag = 'internal scratch']
  %s0 = inlined_call_operand.vmem [shape: bf16[128,256], index: 0, kind: input, shape index: {}]
  %s1 = inlined_call_operand.vmem [shape: f8e5m2[128,256], index: 1, kind: output, shape index: {0}]
  %s2 = inlined_call_operand.vmem [shape: f32[1,128,2], index: 2, kind: output, shape index: {1}]
  %3 = xla_tuple %s1, %s2
  %s4 = sld [smem:[#allocation0]]
  $region22: #{fp8_mlp_forward.8} parent=0
    _
  %s6 = ssub.s32 1, %s4
  %s7 = scalar_select 0, %s6, %s4
  // Predicated region
  $region2: #{fp8_mlp_forward.8} parent=0 // pred_check
    _
  $region3: #{fp8_mlp_forward.8} parent=0 // pred_check_branch
    %9 = sbr.rel (0) target = $region5
  $region4: #{fp8_mlp_forward.8} parent=0 // pred_region
    _
  $region5: #{fp8_mlp_forward.8} parent=0 // pred_fallthru
    _
  %v10 = vld [vmem:[%s0] sm:$0xf]
  %v11 = vld [vmem:[%s0 + $0x8] sm:$0xf]
  %v12 = vld [vmem:[%s0 + $0x10] sm:$0xf]
  %v13 = vld [vmem:[%s0 + $0x18] sm:$0xf]
  %v14 = vld [vmem:[%s0 + $0x20] sm:$0xf]
  %v15 = vld [vmem:[%s0 + $0x28] sm:$0xf]
  %v16 = vld [vmem:[%s0 + $0x30] sm:$0xf]
  %v17 = vld [vmem:[%s0 + $0x38] sm:$0xf]
  %v18 = vld [vmem:[%s0 + $0x40] sm:$0xf]
  %v19 = vld [vmem:[%s0 + $0x48] sm:$0xf]
  %v20 = vld [vmem:[%s0 + $0x50] sm:$0xf]
  %v21 = vld [vmem:[%s0 + $0x58] sm:$0xf]
  %v22 = vld [vmem:[%s0 + $0x60] sm:$0xf]
  %v23 = vld [vmem:[%s0 + $0x68] sm:$0xf]
  %v24 = vld [vmem:[%s0 + $0x70] sm:$0xf]
  %v25 = vld [vmem:[%s0 + $0x78] sm:$0xf]
  %v26 = vunpack.c.l.bf16 %v10
  %v27 = vunpack.c.l.bf16 %v11
  %v28 = vunpack.c.l.bf16 %v12
  %v29 = vunpack.c.l.bf16 %v13
  %v30 = vunpack.c.l.bf16 %v14
  %v31 = vunpack.c.l.bf16 %v15
  %v32 = vunpack.c.l.bf16 %v16
  %v33 = vunpack.c.l.bf16 %v17
  %v34 = vunpack.c.l.bf16 %v18
  %v35 = vunpack.c.l.bf16 %v19
  %v36 = vunpack.c.l.bf16 %v20
  %v37 = vunpack.c.l.bf16 %v21
  %v38 = vunpack.c.l.bf16 %v22
  %v39 = vunpack.c.l.bf16 %v23
  %v40 = vunpack.c.l.bf16 %v24
  %v41 = vunpack.c.l.bf16 %v25
  %v42 = vand.u32 2147483647, %v26
  %v43 = vand.u32 2147483647, %v27
  %v44 = vand.u32 2147483647, %v28
  %v45 = vand.u32 2147483647, %v29
  %v46 = vand.u32 2147483647, %v30
  %v47 = vand.u32 2147483647, %v31
  %v48 = vand.u32 2147483647, %v32
  %v49 = vand.u32 2147483647, %v33
  %v50 = vand.u32 2147483647, %v34
  %v51 = vand.u32 2147483647, %v35
  %v52 = vand.u32 2147483647, %v36
  %v53 = vand.u32 2147483647, %v37
  %v54 = vand.u32 2147483647, %v38
  %v55 = vand.u32 2147483647, %v39
  %v56 = vand.u32 2147483647, %v40
  %v57 = vand.u32 2147483647, %v41
  %58 = vmax.xlane.f32.xlu0 %v42
  %v59 = vpop.xlane.xlu0 %58
  %60 = vmax.xlane.f32.xlu0 %v43
  %v61 = vpop.xlane.xlu0 %60
  %62 = vmax.xlane.f32.xlu0 %v44
  %v63 = vpop.xlane.xlu0 %62
  %64 = vmax.xlane.f32.xlu0 %v45
  %v65 = vpop.xlane.xlu0 %64
  %66 = vmax.xlane.f32.xlu0 %v46
  %v67 = vpop.xlane.xlu0 %66
  %68 = vmax.xlane.f32.xlu0 %v47
  %v69 = vpop.xlane.xlu0 %68
  %70 = vmax.xlane.f32.xlu0 %v48
  %v71 = vpop.xlane.xlu0 %70
  %72 = vmax.xlane.f32.xlu0 %v49
  %v73 = vpop.xlane.xlu0 %72
  %74 = vmax.xlane.f32.xlu0 %v50
  %v75 = vpop.xlane.xlu0 %74
  %76 = vmax.xlane.f32.xlu0 %v51
  %v77 = vpop.xlane.xlu0 %76
  %78 = vmax.xlane.f32.xlu0 %v52
  %v79 = vpop.xlane.xlu0 %78
  %80 = vmax.xlane.f32.xlu0 %v53
  %v81 = vpop.xlane.xlu0 %80
  %82 = vmax.xlane.f32.xlu0 %v54
  %v83 = vpop.xlane.xlu0 %82
  %84 = vmax.xlane.f32.xlu0 %v55
  %v85 = vpop.xlane.xlu0 %84
  %86 = vmax.xlane.f32.xlu0 %v56
  %v87 = vpop.xlane.xlu0 %86
  %88 = vmax.xlane.f32.xlu0 %v57
  %v89 = vpop.xlane.xlu0 %88
  %v90 = vmax.f32 %v59, 1e-30
  %v91 = vmax.f32 %v61, 1e-30
  %v92 = vmax.f32 %v63, 1e-30
  %v93 = vmax.f32 %v65, 1e-30
  %v94 = vmax.f32 %v67, 1e-30
  %v95 = vmax.f32 %v69, 1e-30
  %v96 = vmax.f32 %v71, 1e-30
  %v97 = vmax.f32 %v73, 1e-30
  %v98 = vmax.f32 %v75, 1e-30
  %v99 = vmax.f32 %v77, 1e-30
  %v100 = vmax.f32 %v79, 1e-30
  %v101 = vmax.f32 %v81, 1e-30
  %v102 = vmax.f32 %v83, 1e-30
  %v103 = vmax.f32 %v85, 1e-30
  %v104 = vmax.f32 %v87, 1e-30
  %v105 = vmax.f32 %v89, 1e-30
  %v106 = vrcp.pop %v90
  %v107 = vmul.f32 57344.0, %v106
  %v108 = vrcp.pop %v91
  %v109 = vmul.f32 57344.0, %v108
  %v110 = vrcp.pop %v92
  %v111 = vmul.f32 57344.0, %v110
  %v112 = vrcp.pop %v93
  %v113 = vmul.f32 57344.0, %v112
  %v114 = vrcp.pop %v94
  %v115 = vmul.f32 57344.0, %v114
  %v116 = vrcp.pop %v95
  %v117 = vmul.f32 57344.0, %v116
  %v118 = vrcp.pop %v96
  %v119 = vmul.f32 57344.0, %v118
  %v120 = vrcp.pop %v97
  %v121 = vmul.f32 57344.0, %v120
  %v122 = vrcp.pop %v98
  %v123 = vmul.f32 57344.0, %v122
  %v124 = vrcp.pop %v99
  %v125 = vmul.f32 57344.0, %v124
  %v126 = vrcp.pop %v100
  %v127 = vmul.f32 57344.0, %v126
  %v128 = vrcp.pop %v101
  %v129 = vmul.f32 57344.0, %v128
  %v130 = vrcp.pop %v102
  %v131 = vmul.f32 57344.0, %v130
  %v132 = vrcp.pop %v103
  %v133 = vmul.f32 57344.0, %v132
  %v134 = vrcp.pop %v104
  %v135 = vmul.f32 57344.0, %v134
  %v136 = vrcp.pop %v105
  %v137 = vmul.f32 57344.0, %v136
  %v138 = vmul.f32 %v26, %v107
  %v139 = vmul.f32 %v27, %v109
  %v140 = vmul.f32 %v28, %v111
  %v141 = vmul.f32 %v29, %v113
  %v142 = vmul.f32 %v30, %v115
  %v143 = vmul.f32 %v31, %v117
  %v144 = vmul.f32 %v32, %v119
  %v145 = vmul.f32 %v33, %v121
  %v146 = vmul.f32 %v34, %v123
  %v147 = vmul.f32 %v35, %v125
  %v148 = vmul.f32 %v36, %v127
  %v149 = vmul.f32 %v37, %v129
  %v150 = vmul.f32 %v38, %v131
  %v151 = vmul.f32 %v39, %v133
  %v152 = vmul.f32 %v40, %v135
  %v153 = vmul.f32 %v41, %v137
  %v154 = vmax.f32 %v138, -57344.0
  %v155 = vmax.f32 %v139, -57344.0
  %v156 = vmax.f32 %v140, -57344.0
  %v157 = vmax.f32 %v141, -57344.0
  %v158 = vmax.f32 %v142, -57344.0
  %v159 = vmax.f32 %v143, -57344.0
  %v160 = vmax.f32 %v144, -57344.0
  %v161 = vmax.f32 %v145, -57344.0
  %v162 = vmax.f32 %v146, -57344.0
  %v163 = vmax.f32 %v147, -57344.0
  %v164 = vmax.f32 %v148, -57344.0
  %v165 = vmax.f32 %v149, -57344.0
  %v166 = vmax.f32 %v150, -57344.0
  %v167 = vmax.f32 %v151, -57344.0
  %v168 = vmax.f32 %v152, -57344.0
  %v169 = vmax.f32 %v153, -57344.0
  %v170 = vmin.f32 %v154, 57344.0
  %v171 = vmin.f32 %v155, 57344.0
  %v172 = vmin.f32 %v156, 57344.0
  %v173 = vmin.f32 %v157, 57344.0
  %v174 = vmin.f32 %v158, 57344.0
  %v175 = vmin.f32 %v159, 57344.0
  %v176 = vmin.f32 %v160, 57344.0
  %v177 = vmin.f32 %v161, 57344.0
  %v178 = vmin.f32 %v162, 57344.0
  %v179 = vmin.f32 %v163, 57344.0
  %v180 = vmin.f32 %v164, 57344.0
  %v181 = vmin.f32 %v165, 57344.0
  %v182 = vmin.f32 %v166, 57344.0
  %v183 = vmin.f32 %v167, 57344.0
  %v184 = vmin.f32 %v168, 57344.0
  %v185 = vmin.f32 %v169, 57344.0
  %v186 = vcvt.f32.f8e5m2 %v170
  %v187 = vcvt.f32.f8e5m2 %v171
  %v188 = vcvt.f32.f8e5m2 %v172
  %v189 = vcvt.f32.f8e5m2 %v173
  %v190 = vpack.c.b16 %v187, %v186
  %v191 = vpack.c.b16 %v189, %v188
  %v192 = vpack.c.b8 %v191, %v190
  %v194 = vcvt.f32.f8e5m2 %v174
  %v195 = vcvt.f32.f8e5m2 %v175
  %v196 = vcvt.f32.f8e5m2 %v176
  %v197 = vcvt.f32.f8e5m2 %v177
  %v198 = vpack.c.b16 %v195, %v194
  %v199 = vpack.c.b16 %v197, %v196
  %v200 = vpack.c.b8 %v199, %v198
  %v202 = vcvt.f32.f8e5m2 %v178
  %v203 = vcvt.f32.f8e5m2 %v179
  %v204 = vcvt.f32.f8e5m2 %v180
  %v205 = vcvt.f32.f8e5m2 %v181
  %v206 = vpack.c.b16 %v203, %v202
  %v207 = vpack.c.b16 %v205, %v204
  %v208 = vpack.c.b8 %v207, %v206
  %v210 = vcvt.f32.f8e5m2 %v182
  %v211 = vcvt.f32.f8e5m2 %v183
  %v212 = vcvt.f32.f8e5m2 %v184
  %v213 = vcvt.f32.f8e5m2 %v185
  %v214 = vpack.c.b16 %v211, %v210
  %v215 = vpack.c.b16 %v213, %v212
  %v216 = vpack.c.b8 %v215, %v214
  %218 = vst [vmem:[%s1] sm:$0xff] %v192
  %219 = vst [vmem:[%s1 + $0x10] sm:$0xff] %v200
  %220 = vst [vmem:[%s1 + $0x20] sm:$0xff] %v208
  %221 = vst [vmem:[%s1 + $0x30] sm:$0xff] %v216
  %v222 = vmul.f32 %v90, 1.7438617e-05
  %v223 = vmul.f32 %v91, 1.7438617e-05
  %v224 = vmul.f32 %v92, 1.7438617e-05
  %v225 = vmul.f32 %v93, 1.7438617e-05
  %v226 = vmul.f32 %v94, 1.7438617e-05
  %v227 = vmul.f32 %v95, 1.7438617e-05
  %v228 = vmul.f32 %v96, 1.7438617e-05
  %v229 = vmul.f32 %v97, 1.7438617e-05
  %v230 = vmul.f32 %v98, 1.7438617e-05
  %v231 = vmul.f32 %v99, 1.7438617e-05
  %v232 = vmul.f32 %v100, 1.7438617e-05
  %v233 = vmul.f32 %v101, 1.7438617e-05
  %v234 = vmul.f32 %v102, 1.7438617e-05
  %v235 = vmul.f32 %v103, 1.7438617e-05
  %v236 = vmul.f32 %v104, 1.7438617e-05
  %v237 = vmul.f32 %v105, 1.7438617e-05
  %v238 = vld [vmem:[%s0 + $0x4] sm:$0xf]
  %v239 = vld [vmem:[%s0 + $0xc] sm:$0xf]
  %v240 = vld [vmem:[%s0 + $0x14] sm:$0xf]
  %v241 = vld [vmem:[%s0 + $0x1c] sm:$0xf]
  %v242 = vld [vmem:[%s0 + $0x24] sm:$0xf]
  %v243 = vld [vmem:[%s0 + $0x2c] sm:$0xf]
  %v244 = vld [vmem:[%s0 + $0x34] sm:$0xf]
  %v245 = vld [vmem:[%s0 + $0x3c] sm:$0xf]
  %v246 = vld [vmem:[%s0 + $0x44] sm:$0xf]
  %v247 = vld [vmem:[%s0 + $0x4c] sm:$0xf]
  %v248 = vld [vmem:[%s0 + $0x54] sm:$0xf]
  %v249 = vld [vmem:[%s0 + $0x5c] sm:$0xf]
  %v250 = vld [vmem:[%s0 + $0x64] sm:$0xf]
  %v251 = vld [vmem:[%s0 + $0x6c] sm:$0xf]
  %v252 = vld [vmem:[%s0 + $0x74] sm:$0xf]
  %v253 = vld [vmem:[%s0 + $0x7c] sm:$0xf]
  %v254 = vunpack.c.l.bf16 %v238
  %v255 = vunpack.c.l.bf16 %v239
  %v256 = vunpack.c.l.bf16 %v240
  %v257 = vunpack.c.l.bf16 %v241
  %v258 = vunpack.c.l.bf16 %v242
  %v259 = vunpack.c.l.bf16 %v243
  %v260 = vunpack.c.l.bf16 %v244
  %v261 = vunpack.c.l.bf16 %v245
  %v262 = vunpack.c.l.bf16 %v246
  %v263 = vunpack.c.l.bf16 %v247
  %v264 = vunpack.c.l.bf16 %v248
  %v265 = vunpack.c.l.bf16 %v249
  %v266 = vunpack.c.l.bf16 %v250
  %v267 = vunpack.c.l.bf16 %v251
  %v268 = vunpack.c.l.bf16 %v252
  %v269 = vunpack.c.l.bf16 %v253
  %v270 = vand.u32 2147483647, %v254
  %v271 = vand.u32 2147483647, %v255
  %v272 = vand.u32 2147483647, %v256
  %v273 = vand.u32 2147483647, %v257
  %v274 = vand.u32 2147483647, %v258
  %v275 = vand.u32 2147483647, %v259
  %v276 = vand.u32 2147483647, %v260
  %v277 = vand.u32 2147483647, %v261
  %v278 = vand.u32 2147483647, %v262
  %v279 = vand.u32 2147483647, %v263
  %v280 = vand.u32 2147483647, %v264
  %v281 = vand.u32 2147483647, %v265
  %v282 = vand.u32 2147483647, %v266
  %v283 = vand.u32 2147483647, %v267
  %v284 = vand.u32 2147483647, %v268
  %v285 = vand.u32 2147483647, %v269
  %286 = vmax.xlane.f32.xlu0 %v270
  %v287 = vpop.xlane.xlu0 %286
  %288 = vmax.xlane.f32.xlu0 %v271
  %v289 = vpop.xlane.xlu0 %288
  %290 = vmax.xlane.f32.xlu0 %v272
  %v291 = vpop.xlane.xlu0 %290
  %292 = vmax.xlane.f32.xlu0 %v273
  %v293 = vpop.xlane.xlu0 %292
  %294 = vmax.xlane.f32.xlu0 %v274
  %v295 = vpop.xlane.xlu0 %294
  %296 = vmax.xlane.f32.xlu0 %v275
  %v297 = vpop.xlane.xlu0 %296
  %298 = vmax.xlane.f32.xlu0 %v276
  %v299 = vpop.xlane.xlu0 %298
  %300 = vmax.xlane.f32.xlu0 %v277
  %v301 = vpop.xlane.xlu0 %300
  %302 = vmax.xlane.f32.xlu0 %v278
  %v303 = vpop.xlane.xlu0 %302
  %304 = vmax.xlane.f32.xlu0 %v279
  %v305 = vpop.xlane.xlu0 %304
  %306 = vmax.xlane.f32.xlu0 %v280
  %v307 = vpop.xlane.xlu0 %306
  %308 = vmax.xlane.f32.xlu0 %v281
  %v309 = vpop.xlane.xlu0 %308
  %310 = vmax.xlane.f32.xlu0 %v282
  %v311 = vpop.xlane.xlu0 %310
  %312 = vmax.xlane.f32.xlu0 %v283
  %v313 = vpop.xlane.xlu0 %312
  %314 = vmax.xlane.f32.xlu0 %v284
  %v315 = vpop.xlane.xlu0 %314
  %316 = vmax.xlane.f32.xlu0 %v285
  %v317 = vpop.xlane.xlu0 %316
  %v318 = vmax.f32 %v287, 1e-30
  %v319 = vmax.f32 %v289, 1e-30
  %v320 = vmax.f32 %v291, 1e-30
  %v321 = vmax.f32 %v293, 1e-30
  %v322 = vmax.f32 %v295, 1e-30
  %v323 = vmax.f32 %v297, 1e-30
  %v324 = vmax.f32 %v299, 1e-30
  %v325 = vmax.f32 %v301, 1e-30
  %v326 = vmax.f32 %v303, 1e-30
  %v327 = vmax.f32 %v305, 1e-30
  %v328 = vmax.f32 %v307, 1e-30
  %v329 = vmax.f32 %v309, 1e-30
  %v330 = vmax.f32 %v311, 1e-30
  %v331 = vmax.f32 %v313, 1e-30
  %v332 = vmax.f32 %v315, 1e-30
  %v333 = vmax.f32 %v317, 1e-30
  %v334 = vrcp.pop %v318
  %v335 = vmul.f32 57344.0, %v334
  %v336 = vrcp.pop %v319
  %v337 = vmul.f32 57344.0, %v336
  %v338 = vrcp.pop %v320
  %v339 = vmul.f32 57344.0, %v338
  %v340 = vrcp.pop %v321
  %v341 = vmul.f32 57344.0, %v340
  %v342 = vrcp.pop %v322
  %v343 = vmul.f32 57344.0, %v342
  %v344 = vrcp.pop %v323
  %v345 = vmul.f32 57344.0, %v344
  %v346 = vrcp.pop %v324
  %v347 = vmul.f32 57344.0, %v346
  %v348 = vrcp.pop %v325
  %v349 = vmul.f32 57344.0, %v348
  %v350 = vrcp.pop %v326
  %v351 = vmul.f32 57344.0, %v350
  %v352 = vrcp.pop %v327
  %v353 = vmul.f32 57344.0, %v352
  %v354 = vrcp.pop %v328
  %v355 = vmul.f32 57344.0, %v354
  %v356 = vrcp.pop %v329
  %v357 = vmul.f32 57344.0, %v356
  %v358 = vrcp.pop %v330
  %v359 = vmul.f32 57344.0, %v358
  %v360 = vrcp.pop %v331
  %v361 = vmul.f32 57344.0, %v360
  %v362 = vrcp.pop %v332
  %v363 = vmul.f32 57344.0, %v362
  %v364 = vrcp.pop %v333
  %v365 = vmul.f32 57344.0, %v364
  %v366 = vmul.f32 %v254, %v335
  %v367 = vmul.f32 %v255, %v337
  %v368 = vmul.f32 %v256, %v339
  %v369 = vmul.f32 %v257, %v341
  %v370 = vmul.f32 %v258, %v343
  %v371 = vmul.f32 %v259, %v345
  %v372 = vmul.f32 %v260, %v347
  %v373 = vmul.f32 %v261, %v349
  %v374 = vmul.f32 %v262, %v351
  %v375 = vmul.f32 %v263, %v353
  %v376 = vmul.f32 %v264, %v355
  %v377 = vmul.f32 %v265, %v357
  %v378 = vmul.f32 %v266, %v359
  %v379 = vmul.f32 %v267, %v361
  %v380 = vmul.f32 %v268, %v363
  %v381 = vmul.f32 %v269, %v365
  %v382 = vmax.f32 %v366, -57344.0
  %v383 = vmax.f32 %v367, -57344.0
  %v384 = vmax.f32 %v368, -57344.0
  %v385 = vmax.f32 %v369, -57344.0
  %v386 = vmax.f32 %v370, -57344.0
  %v387 = vmax.f32 %v371, -57344.0
  %v388 = vmax.f32 %v372, -57344.0
  %v389 = vmax.f32 %v373, -57344.0
  %v390 = vmax.f32 %v374, -57344.0
  %v391 = vmax.f32 %v375, -57344.0
  %v392 = vmax.f32 %v376, -57344.0
  %v393 = vmax.f32 %v377, -57344.0
  %v394 = vmax.f32 %v378, -57344.0
  %v395 = vmax.f32 %v379, -57344.0
  %v396 = vmax.f32 %v380, -57344.0
  %v397 = vmax.f32 %v381, -57344.0
  %v398 = vmin.f32 %v382, 57344.0
  %v399 = vmin.f32 %v383, 57344.0
  %v400 = vmin.f32 %v384, 57344.0
  %v401 = vmin.f32 %v385, 57344.0
  %v402 = vmin.f32 %v386, 57344.0
  %v403 = vmin.f32 %v387, 57344.0
  %v404 = vmin.f32 %v388, 57344.0
  %v405 = vmin.f32 %v389, 57344.0
  %v406 = vmin.f32 %v390, 57344.0
  %v407 = vmin.f32 %v391, 57344.0
  %v408 = vmin.f32 %v392, 57344.0
  %v409 = vmin.f32 %v393, 57344.0
  %v410 = vmin.f32 %v394, 57344.0
  %v411 = vmin.f32 %v395, 57344.0
  %v412 = vmin.f32 %v396, 57344.0
  %v413 = vmin.f32 %v397, 57344.0
  %v414 = vcvt.f32.f8e5m2 %v398
  %v415 = vcvt.f32.f8e5m2 %v399
  %v416 = vcvt.f32.f8e5m2 %v400
  %v417 = vcvt.f32.f8e5m2 %v401
  %v418 = vpack.c.b16 %v415, %v414
  %v419 = vpack.c.b16 %v417, %v416
  %v420 = vpack.c.b8 %v419, %v418
  %v422 = vcvt.f32.f8e5m2 %v402
  %v423 = vcvt.f32.f8e5m2 %v403
  %v424 = vcvt.f32.f8e5m2 %v404
  %v425 = vcvt.f32.f8e5m2 %v405
  %v426 = vpack.c.b16 %v423, %v422
  %v427 = vpack.c.b16 %v425, %v424
  %v428 = vpack.c.b8 %v427, %v426
  %v430 = vcvt.f32.f8e5m2 %v406
  %v431 = vcvt.f32.f8e5m2 %v407
  %v432 = vcvt.f32.f8e5m2 %v408
  %v433 = vcvt.f32.f8e5m2 %v409
  %v434 = vpack.c.b16 %v431, %v430
  %v435 = vpack.c.b16 %v433, %v432
  %v436 = vpack.c.b8 %v435, %v434
  %v438 = vcvt.f32.f8e5m2 %v410
  %v439 = vcvt.f32.f8e5m2 %v411
  %v440 = vcvt.f32.f8e5m2 %v412
  %v441 = vcvt.f32.f8e5m2 %v413
  %v442 = vpack.c.b16 %v439, %v438
  %v443 = vpack.c.b16 %v441, %v440
  %v444 = vpack.c.b8 %v443, %v442
  %446 = vst [vmem:[%s1 + $0x8] sm:$0xff] %v420
  %447 = vst [vmem:[%s1 + $0x18] sm:$0xff] %v428
  %448 = vst [vmem:[%s1 + $0x28] sm:$0xff] %v436
  %449 = vst [vmem:[%s1 + $0x38] sm:$0xff] %v444
  %v450 = vmul.f32 %v318, 1.7438617e-05
  %v451 = vmul.f32 %v319, 1.7438617e-05
  %v452 = vmul.f32 %v320, 1.7438617e-05
  %v453 = vmul.f32 %v321, 1.7438617e-05
  %v454 = vmul.f32 %v322, 1.7438617e-05
  %v455 = vmul.f32 %v323, 1.7438617e-05
  %v456 = vmul.f32 %v324, 1.7438617e-05
  %v457 = vmul.f32 %v325, 1.7438617e-05
  %v458 = vmul.f32 %v326, 1.7438617e-05
  %v459 = vmul.f32 %v327, 1.7438617e-05
  %v460 = vmul.f32 %v328, 1.7438617e-05
  %v461 = vmul.f32 %v329, 1.7438617e-05
  %v462 = vmul.f32 %v330, 1.7438617e-05
  %v463 = vmul.f32 %v331, 1.7438617e-05
  %v464 = vmul.f32 %v332, 1.7438617e-05
  %v465 = vmul.f32 %v333, 1.7438617e-05
  %vm466 = vcmask 7168
  %v467 = vsel %vm466, %v222, %v450
  %v468 = vsel %vm466, %v223, %v451
  %v469 = vsel %vm466, %v224, %v452
  %v470 = vsel %vm466, %v225, %v453
  %v471 = vsel %vm466, %v226, %v454
  %v472 = vsel %vm466, %v227, %v455
  %v473 = vsel %vm466, %v228, %v456
  %v474 = vsel %vm466, %v229, %v457
  %v475 = vsel %vm466, %v230, %v458
  %v476 = vsel %vm466, %v231, %v459
  %v477 = vsel %vm466, %v232, %v460
  %v478 = vsel %vm466, %v233, %v461
  %v479 = vsel %vm466, %v234, %v462
  %v480 = vsel %vm466, %v235, %v463
  %v481 = vsel %vm466, %v236, %v464
  %v482 = vsel %vm466, %v237, %v465
  %vm483 = vcmask 15360
  %484 = vst.msk [vmem:[%s2] sm:$0xff] %vm483, %v467
  %485 = vst.msk [vmem:[%s2 + $0x8] sm:$0xff] %vm483, %v468
  %486 = vst.msk [vmem:[%s2 + $0x10] sm:$0xff] %vm483, %v469
  %487 = vst.msk [vmem:[%s2 + $0x18] sm:$0xff] %vm483, %v470
  %488 = vst.msk [vmem:[%s2 + $0x20] sm:$0xff] %vm483, %v471
  %489 = vst.msk [vmem:[%s2 + $0x28] sm:$0xff] %vm483, %v472
  %490 = vst.msk [vmem:[%s2 + $0x30] sm:$0xff] %vm483, %v473
  %491 = vst.msk [vmem:[%s2 + $0x38] sm:$0xff] %vm483, %v474
  %492 = vst.msk [vmem:[%s2 + $0x40] sm:$0xff] %vm483, %v475
  %493 = vst.msk [vmem:[%s2 + $0x48] sm:$0xff] %vm483, %v476
  %494 = vst.msk [vmem:[%s2 + $0x50] sm:$0xff] %vm483, %v477
  %495 = vst.msk [vmem:[%s2 + $0x58] sm:$0xff] %vm483, %v478
  %496 = vst.msk [vmem:[%s2 + $0x60] sm:$0xff] %vm483, %v479
  %497 = vst.msk [vmem:[%s2 + $0x68] sm:$0xff] %vm483, %v480
  %498 = vst.msk [vmem:[%s2 + $0x70] sm:$0xff] %vm483, %v481
  %499 = vst.msk [vmem:[%s2 + $0x78] sm:$0xff] %vm483, %v482
  // Predicated region
  $region6: #{fp8_mlp_forward.8} parent=0 // pred_check
    _
  $region7: #{fp8_mlp_forward.8} parent=0 // pred_check_branch
    %501 = sbr.rel (0) target = $region9
  $region8: #{fp8_mlp_forward.8} parent=0 // pred_region
    _
  $region9: #{fp8_mlp_forward.8} parent=0 // pred_fallthru
    _
  // Predicated region
  $region10: #{fp8_mlp_forward.8} parent=0 // pred_check
    _
  $region11: #{fp8_mlp_forward.8} parent=0 // pred_check_branch
    %503 = sbr.rel (0) target = $region13
  $region12: #{fp8_mlp_forward.8} parent=0 // pred_region
    _
  $region13: #{fp8_mlp_forward.8} parent=0 // pred_fallthru
    _
  // Predicated region
  $region14: #{fp8_mlp_forward.8} parent=0 // pred_check
    _
  $region15: #{fp8_mlp_forward.8} parent=0 // pred_check_branch
    %505 = sbr.rel (0) target = $region17
  $region16: #{fp8_mlp_forward.8} parent=0 // pred_region
    _
  $region17: #{fp8_mlp_forward.8} parent=0 // pred_fallthru
    _
  // Predicated region
  $region18: #{fp8_mlp_forward.8} parent=0 // pred_check
    _
  $region19: #{fp8_mlp_forward.8} parent=0 // pred_check_branch
    %507 = sbr.rel (0) target = $region21
  $region20: #{fp8_mlp_forward.8} parent=0 // pred_region
    _
  $region21: #{fp8_mlp_forward.8} parent=0 // pred_fallthru
    _

// kernel: fp8_mlp_forward.10
$region0: #{fp8_mlp_forward.10}
  #allocation0 [shape = 'u32[]', space=smem, size = 0x4, offset = 0x4, fixed_abs, tag = 'smem constant byte address 0x4 - core index']
  #allocation1 [shape = 'u32[144,128]{1,0:T(1,128)}', space=vmem, size = 0x12000, scoped, tag = 'internal scratch']
  %s0 = inlined_call_operand.vmem [shape: bf16[128,512], index: 0, kind: input, shape index: {}, may-alias: {0,1}]
  %s1 = inlined_call_operand.vmem [shape: bf16[128,512], index: 1, kind: input, shape index: {}, may-alias: {0,1}]
  %s2 = inlined_call_operand.vmem [shape: f8e5m2[128,256], index: 2, kind: output, shape index: {0}]
  %s3 = inlined_call_operand.vmem [shape: f32[1,128,2], index: 3, kind: output, shape index: {1}]
  %4 = xla_tuple %s2, %s3
  %s5 = sld [smem:[#allocation0]]
  $region102: #{fp8_mlp_forward.10} parent=0
    _
  %s7 = ssub.s32 1, %s5
  %s8 = scalar_select 0, %s7, %s5
  $region1: #{fp8_mlp_forward.10} parent=0
    #allocation2 [shape = 'u8[65536]{0}', space=vmem, size = 0x10000, scoped, tag = 'input window, operand 0, single buffered']
    #allocation3 [shape = 'u8[65536]{0}', space=vmem, size = 0x10000, scoped, tag = 'input window, operand 1, single buffered']
    // Predicated region
    $region2: #{fp8_mlp_forward.10} parent=1 // pred_check
      _
    $region3: #{fp8_mlp_forward.10} parent=1 // pred_check_branch
      %10 = sbr.rel (0) target = $region5
    $region4: #{fp8_mlp_forward.10} parent=1 // pred_region
      // Predicated region
      $region6: #{fp8_mlp_forward.10} parent=4 // pred_check
        _
      $region7: #{fp8_mlp_forward.10} parent=4 // pred_check_branch
        %12 = sbr.rel (0) target = $region9
      $region8: #{fp8_mlp_forward.10} parent=4 // pred_region
        // Predicated region
        $region10: #{fp8_mlp_forward.10} parent=8 // pred_check
          _
        $region11: #{fp8_mlp_forward.10} parent=8 // pred_check_branch
          %14 = sbr.rel (0) target = $region13
        $region12: #{fp8_mlp_forward.10} parent=8 // pred_region
          // Predicated region
          $region25: #{fp8_mlp_forward.10} parent=12 // pred_check
            _
          $region26: #{fp8_mlp_forward.10} parent=12 // pred_check_branch
            %60 = sbr.rel (0) target = $region28
          $region27: #{fp8_mlp_forward.10} parent=12 // pred_region
            loop: start=0, step=1, limit=1
            $region29: #{fp8_mlp_forward.10} parent=27 // loop_pre_header
              _
            $region30: #{fp8_mlp_forward.10} parent=27 // loop_header
              %s62 = sphi 0, %s66
              %p63 = scmp.ge.s32.totalorder %s62, 1
              %s67 = sphi %s0, %s0
              %s68 = sphi [#allocation2], [#allocation2]
            $region31: #{fp8_mlp_forward.10} parent=27 // loop_header_branch
              %65 = sbr.rel (%p63) target = $region35
            $region32: #{fp8_mlp_forward.10} parent=27 // loop_body
              %v69 = vld [vmem:[%s67] sm:$0xff]
              %70 = vst [vmem:[%s68] sm:$0xff] %v69
              %v71 = vld [vmem:[%s67 + $0x10] sm:$0xff]
              %72 = vst [vmem:[%s68 + $0x8] sm:$0xff] %v71
              %v73 = vld [vmem:[%s67 + $0x20] sm:$0xff]
              %74 = vst [vmem:[%s68 + $0x10] sm:$0xff] %v73
              %v75 = vld [vmem:[%s67 + $0x30] sm:$0xff]
              %76 = vst [vmem:[%s68 + $0x18] sm:$0xff] %v75
              %v77 = vld [vmem:[%s67 + $0x40] sm:$0xff]
              %78 = vst [vmem:[%s68 + $0x20] sm:$0xff] %v77
              %v79 = vld [vmem:[%s67 + $0x50] sm:$0xff]
              %80 = vst [vmem:[%s68 + $0x28] sm:$0xff] %v79
              %v81 = vld [vmem:[%s67 + $0x60] sm:$0xff]
              %82 = vst [vmem:[%s68 + $0x30] sm:$0xff] %v81
              %v83 = vld [vmem:[%s67 + $0x70] sm:$0xff]
              %84 = vst [vmem:[%s68 + $0x38] sm:$0xff] %v83
              %v85 = vld [vmem:[%s67 + $0x80] sm:$0xff]
              %86 = vst [vmem:[%s68 + $0x40] sm:$0xff] %v85
              %v87 = vld [vmem:[%s67 + $0x90] sm:$0xff]
              %88 = vst [vmem:[%s68 + $0x48] sm:$0xff] %v87
              %v89 = vld [vmem:[%s67 + $0xa0] sm:$0xff]
              %90 = vst [vmem:[%s68 + $0x50] sm:$0xff] %v89
              %v91 = vld [vmem:[%s67 + $0xb0] sm:$0xff]
              %92 = vst [vmem:[%s68 + $0x58] sm:$0xff] %v91
              %v93 = vld [vmem:[%s67 + $0xc0] sm:$0xff]
              %94 = vst [vmem:[%s68 + $0x60] sm:$0xff] %v93
              %v95 = vld [vmem:[%s67 + $0xd0] sm:$0xff]
              %96 = vst [vmem:[%s68 + $0x68] sm:$0xff] %v95
              %v97 = vld [vmem:[%s67 + $0xe0] sm:$0xff]
              %98 = vst [vmem:[%s68 + $0x70] sm:$0xff] %v97
              %v99 = vld [vmem:[%s67 + $0xf0] sm:$0xff]
              %100 = vst [vmem:[%s68 + $0x78] sm:$0xff] %v99
            $region33: #{fp8_mlp_forward.10} parent=27 // loop_footer
              %s66 = sadd.s32 1, %s62
            $region34: #{fp8_mlp_forward.10} parent=27 // loop_footer_branch
              %61 = sbr.rel target = $region30
            $region35: #{fp8_mlp_forward.10} parent=27 // loop_exit
              _
          $region28: #{fp8_mlp_forward.10} parent=12 // pred_fallthru
            _
          // Predicated region
          $region36: #{fp8_mlp_forward.10} parent=12 // pred_check
            _
          $region37: #{fp8_mlp_forward.10} parent=12 // pred_check_branch
            %102 = sbr.rel target = $region39
          $region38: #{fp8_mlp_forward.10} parent=12 // pred_region
            _
          $region39: #{fp8_mlp_forward.10} parent=12 // pred_fallthru
            _
        $region13: #{fp8_mlp_forward.10} parent=8 // pred_fallthru
          _
        // Predicated region
        $region14: #{fp8_mlp_forward.10} parent=8 // pred_check
          _
        $region15: #{fp8_mlp_forward.10} parent=8 // pred_check_branch
          %16 = sbr.rel target = $region17
        $region16: #{fp8_mlp_forward.10} parent=8 // pred_region
          %s18 = ssub.s32 256, 1
          loop: start=0, step=1, limit=1
          $region18: #{fp8_mlp_forward.10} parent=16 // loop_pre_header
            _
          $region19: #{fp8_mlp_forward.10} parent=16 // loop_header
            %s20 = sphi 0, %s24
            %p21 = scmp.ge.s32.totalorder %s20, 1
            %s25 = sphi %s0, %s0
            %s26 = sphi [#allocation2], [#allocation2]
          $region20: #{fp8_mlp_forward.10} parent=16 // loop_header_branch
            %23 = sbr.rel (%p21) target = $region24
          $region21: #{fp8_mlp_forward.10} parent=16 // loop_body
            %v27 = vld [vmem:[%s25] sm:%s18]
            %28 = vst [vmem:[%s26] sm:%s18] %v27
            %v29 = vld [vmem:[%s25 + $0x10] sm:%s18]
            %30 = vst [vmem:[%s26 + $0x8] sm:%s18] %v29
            %v31 = vld [vmem:[%s25 + $0x20] sm:%s18]
            %32 = vst [vmem:[%s26 + $0x10] sm:%s18] %v31
            %v33 = vld [vmem:[%s25 + $0x30] sm:%s18]
            %34 = vst [vmem:[%s26 + $0x18] sm:%s18] %v33
            %v35 = vld [vmem:[%s25 + $0x40] sm:%s18]
            %36 = vst [vmem:[%s26 + $0x20] sm:%s18] %v35
            %v37 = vld [vmem:[%s25 + $0x50] sm:%s18]
            %38 = vst [vmem:[%s26 + $0x28] sm:%s18] %v37
            %v39 = vld [vmem:[%s25 + $0x60] sm:%s18]
            %40 = vst [vmem:[%s26 + $0x30] sm:%s18] %v39
            %v41 = vld [vmem:[%s25 + $0x70] sm:%s18]
            %42 = vst [vmem:[%s26 + $0x38] sm:%s18] %v41
            %v43 = vld [vmem:[%s25 + $0x80] sm:%s18]
            %44 = vst [vmem:[%s26 + $0x40] sm:%s18] %v43
            %v45 = vld [vmem:[%s25 + $0x90] sm:%s18]
            %46 = vst [vmem:[%s26 + $0x48] sm:%s18] %v45
            %v47 = vld [vmem:[%s25 + $0xa0] sm:%s18]
            %48 = vst [vmem:[%s26 + $0x50] sm:%s18] %v47
            %v49 = vld [vmem:[%s25 + $0xb0] sm:%s18]
            %50 = vst [vmem:[%s26 + $0x58] sm:%s18] %v49
            %v51 = vld [vmem:[%s25 + $0xc0] sm:%s18]
            %52 = vst [vmem:[%s26 + $0x60] sm:%s18] %v51
            %v53 = vld [vmem:[%s25 + $0xd0] sm:%s18]
            %54 = vst [vmem:[%s26 + $0x68] sm:%s18] %v53
            %v55 = vld [vmem:[%s25 + $0xe0] sm:%s18]
            %56 = vst [vmem:[%s26 + $0x70] sm:%s18] %v55
            %v57 = vld [vmem:[%s25 + $0xf0] sm:%s18]
            %58 = vst [vmem:[%s26 + $0x78] sm:%s18] %v57
          $region22: #{fp8_mlp_forward.10} parent=16 // loop_footer
            %s24 = sadd.s32 1, %s20
          $region23: #{fp8_mlp_forward.10} parent=16 // loop_footer_branch
            %19 = sbr.rel target = $region19
          $region24: #{fp8_mlp_forward.10} parent=16 // loop_exit
            _
        $region17: #{fp8_mlp_forward.10} parent=8 // pred_fallthru
          _
      $region9: #{fp8_mlp_forward.10} parent=4 // pred_fallthru
        _
      %103 = vnop
    $region5: #{fp8_mlp_forward.10} parent=1 // pred_fallthru
      _
    // Predicated region
    $region40: #{fp8_mlp_forward.10} parent=1 // pred_check
      _
    $region41: #{fp8_mlp_forward.10} parent=1 // pred_check_branch
      %105 = sbr.rel (0) target = $region43
    $region42: #{fp8_mlp_forward.10} parent=1 // pred_region
      %s106 = sadd.s32 0, 1
      %s107 = smul.u32 2, %s106
      %s108 = smul.addr %s107, 4
      %s109 = scalar_lea.vmem %s1, %s108
      // Predicated region
      $region44: #{fp8_mlp_forward.10} parent=42 // pred_check
        _
      $region45: #{fp8_mlp_forward.10} parent=42 // pred_check_branch
        %111 = sbr.rel (0) target = $region47
      $region46: #{fp8_mlp_forward.10} parent=42 // pred_region
        // Predicated region
        $region48: #{fp8_mlp_forward.10} parent=46 // pred_check
          _
        $region49: #{fp8_mlp_forward.10} parent=46 // pred_check_branch
          %113 = sbr.rel (0) target = $region51
        $region50: #{fp8_mlp_forward.10} parent=46 // pred_region
          // Predicated region
          $region63: #{fp8_mlp_forward.10} parent=50 // pred_check
            _
          $region64: #{fp8_mlp_forward.10} parent=50 // pred_check_branch
            %159 = sbr.rel (0) target = $region66
          $region65: #{fp8_mlp_forward.10} parent=50 // pred_region
            loop: start=0, step=1, limit=1
            $region67: #{fp8_mlp_forward.10} parent=65 // loop_pre_header
              _
            $region68: #{fp8_mlp_forward.10} parent=65 // loop_header
              %s161 = sphi 0, %s165
              %p162 = scmp.ge.s32.totalorder %s161, 1
              %s166 = sphi %s109, %s109
              %s167 = sphi [#allocation3], [#allocation3]
            $region69: #{fp8_mlp_forward.10} parent=65 // loop_header_branch
              %164 = sbr.rel (%p162) target = $region73
            $region70: #{fp8_mlp_forward.10} parent=65 // loop_body
              %v168 = vld [vmem:[%s166] sm:$0xff]
              %169 = vst [vmem:[%s167] sm:$0xff] %v168
              %v170 = vld [vmem:[%s166 + $0x10] sm:$0xff]
              %171 = vst [vmem:[%s167 + $0x8] sm:$0xff] %v170
              %v172 = vld [vmem:[%s166 + $0x20] sm:$0xff]
              %173 = vst [vmem:[%s167 + $0x10] sm:$0xff] %v172
              %v174 = vld [vmem:[%s166 + $0x30] sm:$0xff]
              %175 = vst [vmem:[%s167 + $0x18] sm:$0xff] %v174
              %v176 = vld [vmem:[%s166 + $0x40] sm:$0xff]
              %177 = vst [vmem:[%s167 + $0x20] sm:$0xff] %v176
              %v178 = vld [vmem:[%s166 + $0x50] sm:$0xff]
              %179 = vst [vmem:[%s167 + $0x28] sm:$0xff] %v178
              %v180 = vld [vmem:[%s166 + $0x60] sm:$0xff]
              %181 = vst [vmem:[%s167 + $0x30] sm:$0xff] %v180
              %v182 = vld [vmem:[%s166 + $0x70] sm:$0xff]
              %183 = vst [vmem:[%s167 + $0x38] sm:$0xff] %v182
              %v184 = vld [vmem:[%s166 + $0x80] sm:$0xff]
              %185 = vst [vmem:[%s167 + $0x40] sm:$0xff] %v184
              %v186 = vld [vmem:[%s166 + $0x90] sm:$0xff]
              %187 = vst [vmem:[%s167 + $0x48] sm:$0xff] %v186
              %v188 = vld [vmem:[%s166 + $0xa0] sm:$0xff]
              %189 = vst [vmem:[%s167 + $0x50] sm:$0xff] %v188
              %v190 = vld [vmem:[%s166 + $0xb0] sm:$0xff]
              %191 = vst [vmem:[%s167 + $0x58] sm:$0xff] %v190
              %v192 = vld [vmem:[%s166 + $0xc0] sm:$0xff]
              %193 = vst [vmem:[%s167 + $0x60] sm:$0xff] %v192
              %v194 = vld [vmem:[%s166 + $0xd0] sm:$0xff]
              %195 = vst [vmem:[%s167 + $0x68] sm:$0xff] %v194
              %v196 = vld [vmem:[%s166 + $0xe0] sm:$0xff]
              %197 = vst [vmem:[%s167 + $0x70] sm:$0xff] %v196
              %v198 = vld [vmem:[%s166 + $0xf0] sm:$0xff]
              %199 = vst [vmem:[%s167 + $0x78] sm:$0xff] %v198
            $region71: #{fp8_mlp_forward.10} parent=65 // loop_footer
              %s165 = sadd.s32 1, %s161
            $region72: #{fp8_mlp_forward.10} parent=65 // loop_footer_branch
              %160 = sbr.rel target = $region68
            $region73: #{fp8_mlp_forward.10} parent=65 // loop_exit
              _
          $region66: #{fp8_mlp_forward.10} parent=50 // pred_fallthru
            _
          // Predicated region
          $region74: #{fp8_mlp_forward.10} parent=50 // pred_check
            _
          $region75: #{fp8_mlp_forward.10} parent=50 // pred_check_branch
            %201 = sbr.rel target = $region77
          $region76: #{fp8_mlp_forward.10} parent=50 // pred_region
            _
          $region77: #{fp8_mlp_forward.10} parent=50 // pred_fallthru
            _
        $region51: #{fp8_mlp_forward.10} parent=46 // pred_fallthru
          _
        // Predicated region
        $region52: #{fp8_mlp_forward.10} parent=46 // pred_check
          _
        $region53: #{fp8_mlp_forward.10} parent=46 // pred_check_branch
          %115 = sbr.rel target = $region55
        $region54: #{fp8_mlp_forward.10} parent=46 // pred_region
          %s117 = ssub.s32 256, 1
          loop: start=0, step=1, limit=1
          $region56: #{fp8_mlp_forward.10} parent=54 // loop_pre_header
            _
          $region57: #{fp8_mlp_forward.10} parent=54 // loop_header
            %s119 = sphi 0, %s123
            %p120 = scmp.ge.s32.totalorder %s119, 1
            %s124 = sphi %s109, %s109
            %s125 = sphi [#allocation3], [#allocation3]
          $region58: #{fp8_mlp_forward.10} parent=54 // loop_header_branch
            %122 = sbr.rel (%p120) target = $region62
          $region59: #{fp8_mlp_forward.10} parent=54 // loop_body
            %v126 = vld [vmem:[%s124] sm:%s117]
            %127 = vst [vmem:[%s125] sm:%s117] %v126
            %v128 = vld [vmem:[%s124 + $0x10] sm:%s117]
            %129 = vst [vmem:[%s125 + $0x8] sm:%s117] %v128
            %v130 = vld [vmem:[%s124 + $0x20] sm:%s117]
            %131 = vst [vmem:[%s125 + $0x10] sm:%s117] %v130
            %v132 = vld [vmem:[%s124 + $0x30] sm:%s117]
            %133 = vst [vmem:[%s125 + $0x18] sm:%s117] %v132
            %v134 = vld [vmem:[%s124 + $0x40] sm:%s117]
            %135 = vst [vmem:[%s125 + $0x20] sm:%s117] %v134
            %v136 = vld [vmem:[%s124 + $0x50] sm:%s117]
            %137 = vst [vmem:[%s125 + $0x28] sm:%s117] %v136
            %v138 = vld [vmem:[%s124 + $0x60] sm:%s117]
            %139 = vst [vmem:[%s125 + $0x30] sm:%s117] %v138
            %v140 = vld [vmem:[%s124 + $0x70] sm:%s117]
            %141 = vst [vmem:[%s125 + $0x38] sm:%s117] %v140
            %v142 = vld [vmem:[%s124 + $0x80] sm:%s117]
            %143 = vst [vmem:[%s125 + $0x40] sm:%s117] %v142
            %v144 = vld [vmem:[%s124 + $0x90] sm:%s117]
            %145 = vst [vmem:[%s125 + $0x48] sm:%s117] %v144
            %v146 = vld [vmem:[%s124 + $0xa0] sm:%s117]
            %147 = vst [vmem:[%s125 + $0x50] sm:%s117] %v146
            %v148 = vld [vmem:[%s124 + $0xb0] sm:%s117]
            %149 = vst [vmem:[%s125 + $0x58] sm:%s117] %v148
            %v150 = vld [vmem:[%s124 + $0xc0] sm:%s117]
            %151 = vst [vmem:[%s125 + $0x60] sm:%s117] %v150
            %v152 = vld [vmem:[%s124 + $0xd0] sm:%s117]
            %153 = vst [vmem:[%s125 + $0x68] sm:%s117] %v152
            %v154 = vld [vmem:[%s124 + $0xe0] sm:%s117]
            %155 = vst [vmem:[%s125 + $0x70] sm:%s117] %v154
            %v156 = vld [vmem:[%s124 + $0xf0] sm:%s117]
            %157 = vst [vmem:[%s125 + $0x78] sm:%s117] %v156
          $region60: #{fp8_mlp_forward.10} parent=54 // loop_footer
            %s123 = sadd.s32 1, %s119
          $region61: #{fp8_mlp_forward.10} parent=54 // loop_footer_branch
            %118 = sbr.rel target = $region57
          $region62: #{fp8_mlp_forward.10} parent=54 // loop_exit
            _
        $region55: #{fp8_mlp_forward.10} parent=46 // pred_fallthru
          _
      $region47: #{fp8_mlp_forward.10} parent=42 // pred_fallthru
        _
      %202 = vnop
    $region43: #{fp8_mlp_forward.10} parent=1 // pred_fallthru
      _
    // Predicated region
    $region78: #{fp8_mlp_forward.10} parent=1 // pred_check
      _
    $region79: #{fp8_mlp_forward.10} parent=1 // pred_check_branch
      %204 = sbr.rel (0) target = $region81
    $region80: #{fp8_mlp_forward.10} parent=1 // pred_region
      _
    $region81: #{fp8_mlp_forward.10} parent=1 // pred_fallthru
      _
    // Predicated region
    $region82: #{fp8_mlp_forward.10} parent=1 // pred_check
      _
    $region83: #{fp8_mlp_forward.10} parent=1 // pred_check_branch
      %206 = sbr.rel (0) target = $region85
    $region84: #{fp8_mlp_forward.10} parent=1 // pred_region
      _
    $region85: #{fp8_mlp_forward.10} parent=1 // pred_fallthru
      _
    %s207 = sadd.s32 0, 1
    %s208 = smul.u32 2, %s207
    %v209 = vld [vmem:[#allocation2] sm:$0xf]
    %v210 = vld [vmem:[#allocation2 + $0x8] sm:$0xf]
    %v211 = vld [vmem:[#allocation2 + $0x10] sm:$0xf]
    %v212 = vld [vmem:[#allocation2 + $0x18] sm:$0xf]
    %v213 = vld [vmem:[#allocation2 + $0x20] sm:$0xf]
    %v214 = vld [vmem:[#allocation2 + $0x28] sm:$0xf]
    %v215 = vld [vmem:[#allocation2 + $0x30] sm:$0xf]
    %v216 = vld [vmem:[#allocation2 + $0x38] sm:$0xf]
    %v217 = vld [vmem:[#allocation2 + $0x40] sm:$0xf]
    %v218 = vld [vmem:[#allocation2 + $0x48] sm:$0xf]
    %v219 = vld [vmem:[#allocation2 + $0x50] sm:$0xf]
    %v220 = vld [vmem:[#allocation2 + $0x58] sm:$0xf]
    %v221 = vld [vmem:[#allocation2 + $0x60] sm:$0xf]
    %v222 = vld [vmem:[#allocation2 + $0x68] sm:$0xf]
    %v223 = vld [vmem:[#allocation2 + $0x70] sm:$0xf]
    %v224 = vld [vmem:[#allocation2 + $0x78] sm:$0xf]
    %v225 = vunpack.c.l.bf16 %v209
    %v226 = vunpack.c.l.bf16 %v210
    %v227 = vunpack.c.l.bf16 %v211
    %v228 = vunpack.c.l.bf16 %v212
    %v229 = vunpack.c.l.bf16 %v213
    %v230 = vunpack.c.l.bf16 %v214
    %v231 = vunpack.c.l.bf16 %v215
    %v232 = vunpack.c.l.bf16 %v216
    %v233 = vunpack.c.l.bf16 %v217
    %v234 = vunpack.c.l.bf16 %v218
    %v235 = vunpack.c.l.bf16 %v219
    %v236 = vunpack.c.l.bf16 %v220
    %v237 = vunpack.c.l.bf16 %v221
    %v238 = vunpack.c.l.bf16 %v222
    %v239 = vunpack.c.l.bf16 %v223
    %v240 = vunpack.c.l.bf16 %v224
    %v241 = vld [vmem:[#allocation3] sm:$0xf]
    %v242 = vld [vmem:[#allocation3 + $0x8] sm:$0xf]
    %v243 = vld [vmem:[#allocation3 + $0x10] sm:$0xf]
    %v244 = vld [vmem:[#allocation3 + $0x18] sm:$0xf]
    %v245 = vld [vmem:[#allocation3 + $0x20] sm:$0xf]
    %v246 = vld [vmem:[#allocation3 + $0x28] sm:$0xf]
    %v247 = vld [vmem:[#allocation3 + $0x30] sm:$0xf]
    %v248 = vld [vmem:[#allocation3 + $0x38] sm:$0xf]
    %v249 = vld [vmem:[#allocation3 + $0x40] sm:$0xf]
    %v250 = vld [vmem:[#allocation3 + $0x48] sm:$0xf]
    %v251 = vld [vmem:[#allocation3 + $0x50] sm:$0xf]
    %v252 = vld [vmem:[#allocation3 + $0x58] sm:$0xf]
    %v253 = vld [vmem:[#allocation3 + $0x60] sm:$0xf]
    %v254 = vld [vmem:[#allocation3 + $0x68] sm:$0xf]
    %v255 = vld [vmem:[#allocation3 + $0x70] sm:$0xf]
    %v256 = vld [vmem:[#allocation3 + $0x78] sm:$0xf]
    %v257 = vunpack.c.l.bf16 %v241
    %v258 = vunpack.c.l.bf16 %v242
    %v259 = vunpack.c.l.bf16 %v243
    %v260 = vunpack.c.l.bf16 %v244
    %v261 = vunpack.c.l.bf16 %v245
    %v262 = vunpack.c.l.bf16 %v246
    %v263 = vunpack.c.l.bf16 %v247
    %v264 = vunpack.c.l.bf16 %v248
    %v265 = vunpack.c.l.bf16 %v249
    %v266 = vunpack.c.l.bf16 %v250
    %v267 = vunpack.c.l.bf16 %v251
    %v268 = vunpack.c.l.bf16 %v252
    %v269 = vunpack.c.l.bf16 %v253
    %v270 = vunpack.c.l.bf16 %v254
    %v271 = vunpack.c.l.bf16 %v255
    %v272 = vunpack.c.l.bf16 %v256
    %v273 = vmul.f32 %v225, %v257
    %v274 = vmul.f32 %v226, %v258
    %v275 = vmul.f32 %v227, %v259
    %v276 = vmul.f32 %v228, %v260
    %v277 = vmul.f32 %v229, %v261
    %v278 = vmul.f32 %v230, %v262
    %v279 = vmul.f32 %v231, %v263
    %v280 = vmul.f32 %v232, %v264
    %v281 = vmul.f32 %v233, %v265
    %v282 = vmul.f32 %v234, %v266
    %v283 = vmul.f32 %v235, %v267
    %v284 = vmul.f32 %v236, %v268
    %v285 = vmul.f32 %v237, %v269
    %v286 = vmul.f32 %v238, %v270
    %v287 = vmul.f32 %v239, %v271
    %v288 = vmul.f32 %v240, %v272
    %v289 = vxor.u32 %v257, 2147483648
    %v290 = vxor.u32 %v258, 2147483648
    %v291 = vxor.u32 %v259, 2147483648
    %v292 = vxor.u32 %v260, 2147483648
    %v293 = vxor.u32 %v261, 2147483648
    %v294 = vxor.u32 %v262, 2147483648
    %v295 = vxor.u32 %v263, 2147483648
    %v296 = vxor.u32 %v264, 2147483648
    %v297 = vxor.u32 %v265, 2147483648
    %v298 = vxor.u32 %v266, 2147483648
    %v299 = vxor.u32 %v267, 2147483648
    %v300 = vxor.u32 %v268, 2147483648
    %v301 = vxor.u32 %v269, 2147483648
    %v302 = vxor.u32 %v270, 2147483648
    %v303 = vxor.u32 %v271, 2147483648
    %v304 = vxor.u32 %v272, 2147483648
    %v305 = vmul.f32 %v289, 1.442695
    %v306 = vpow.pop %v305
    %v307 = vmul.f32 %v290, 1.442695
    %v308 = vpow.pop %v307
    %v309 = vmul.f32 %v291, 1.442695
    %v310 = vpow.pop %v309
    %v311 = vmul.f32 %v292, 1.442695
    %v312 = vpow.pop %v311
    %v313 = vmul.f32 %v293, 1.442695
    %v314 = vpow.pop %v313
    %v315 = vmul.f32 %v294, 1.442695
    %v316 = vpow.pop %v315
    %v317 = vmul.f32 %v295, 1.442695
    %v318 = vpow.pop %v317
    %v319 = vmul.f32 %v296, 1.442695
    %v320 = vpow.pop %v319
    %v321 = vmul.f32 %v297, 1.442695
    %v322 = vpow.pop %v321
    %v323 = vmul.f32 %v298, 1.442695
    %v324 = vpow.pop %v323
    %v325 = vmul.f32 %v299, 1.442695
    %v326 = vpow.pop %v325
    %v327 = vmul.f32 %v300, 1.442695
    %v328 = vpow.pop %v327
    %v329 = vmul.f32 %v301, 1.442695
    %v330 = vpow.pop %v329
    %v331 = vmul.f32 %v302, 1.442695
    %v332 = vpow.pop %v331
    %v333 = vmul.f32 %v303, 1.442695
    %v334 = vpow.pop %v333
    %v335 = vmul.f32 %v304, 1.442695
    %v336 = vpow.pop %v335
    %v337 = vadd.f32 %v306, 1.0
    %v338 = vadd.f32 %v308, 1.0
    %v339 = vadd.f32 %v310, 1.0
    %v340 = vadd.f32 %v312, 1.0
    %v341 = vadd.f32 %v314, 1.0
    %v342 = vadd.f32 %v316, 1.0
    %v343 = vadd.f32 %v318, 1.0
    %v344 = vadd.f32 %v320, 1.0
    %v345 = vadd.f32 %v322, 1.0
    %v346 = vadd.f32 %v324, 1.0
    %v347 = vadd.f32 %v326, 1.0
    %v348 = vadd.f32 %v328, 1.0
    %v349 = vadd.f32 %v330, 1.0
    %v350 = vadd.f32 %v332, 1.0
    %v351 = vadd.f32 %v334, 1.0
    %v352 = vadd.f32 %v336, 1.0
    %v353 = vrcp.pop %v337
    %v354 = vmul.f32 1.0, %v353
    %v355 = vrcp.pop %v338
    %v356 = vmul.f32 1.0, %v355
    %v357 = vrcp.pop %v339
    %v358 = vmul.f32 1.0, %v357
    %v359 = vrcp.pop %v340
    %v360 = vmul.f32 1.0, %v359
    %v361 = vrcp.pop %v341
    %v362 = vmul.f32 1.0, %v361
    %v363 = vrcp.pop %v342
    %v364 = vmul.f32 1.0, %v363
    %v365 = vrcp.pop %v343
    %v366 = vmul.f32 1.0, %v365
    %v367 = vrcp.pop %v344
    %v368 = vmul.f32 1.0, %v367
    %v369 = vrcp.pop %v345
    %v370 = vmul.f32 1.0, %v369
    %v371 = vrcp.pop %v346
    %v372 = vmul.f32 1.0, %v371
    %v373 = vrcp.pop %v347
    %v374 = vmul.f32 1.0, %v373
    %v375 = vrcp.pop %v348
    %v376 = vmul.f32 1.0, %v375
    %v377 = vrcp.pop %v349
    %v378 = vmul.f32 1.0, %v377
    %v379 = vrcp.pop %v350
    %v380 = vmul.f32 1.0, %v379
    %v381 = vrcp.pop %v351
    %v382 = vmul.f32 1.0, %v381
    %v383 = vrcp.pop %v352
    %v384 = vmul.f32 1.0, %v383
    %v385 = vmul.f32 %v273, %v354
    %v386 = vmul.f32 %v274, %v356
    %v387 = vmul.f32 %v275, %v358
    %v388 = vmul.f32 %v276, %v360
    %v389 = vmul.f32 %v277, %v362
    %v390 = vmul.f32 %v278, %v364
    %v391 = vmul.f32 %v279, %v366
    %v392 = vmul.f32 %v280, %v368
    %v393 = vmul.f32 %v281, %v370
    %v394 = vmul.f32 %v282, %v372
    %v395 = vmul.f32 %v283, %v374
    %v396 = vmul.f32 %v284, %v376
    %v397 = vmul.f32 %v285, %v378
    %v398 = vmul.f32 %v286, %v380
    %v399 = vmul.f32 %v287, %v382
    %v400 = vmul.f32 %v288, %v384
    %v401 = vpack.c.bf16 %v386, %v385
    %v402 = vpack.c.bf16 %v388, %v387
    %v403 = vpack.c.bf16 %v390, %v389
    %v404 = vpack.c.bf16 %v392, %v391
    %v405 = vpack.c.bf16 %v394, %v393
    %v406 = vpack.c.bf16 %v396, %v395
    %v407 = vpack.c.bf16 %v398, %v397
    %v408 = vpack.c.bf16 %v400, %v399
    %v409 = vunpack.c.l.bf16 %v401
    %v410 = vunpack.c.h.bf16 %v401
    %v411 = vunpack.c.l.bf16 %v402
    %v412 = vunpack.c.h.bf16 %v402
    %v413 = vunpack.c.l.bf16 %v403
    %v414 = vunpack.c.h.bf16 %v403
    %v415 = vunpack.c.l.bf16 %v404
    %v416 = vunpack.c.h.bf16 %v404
    %v417 = vunpack.c.l.bf16 %v405
    %v418 = vunpack.c.h.bf16 %v405
    %v419 = vunpack.c.l.bf16 %v406
    %v420 = vunpack.c.h.bf16 %v406
    %v421 = vunpack.c.l.bf16 %v407
    %v422 = vunpack.c.h.bf16 %v407
    %v423 = vunpack.c.l.bf16 %v408
    %v424 = vunpack.c.h.bf16 %v408
    %v425 = vand.u32 2147483647, %v409
    %v426 = vand.u32 2147483647, %v410
    %v427 = vand.u32 2147483647, %v411
    %v428 = vand.u32 2147483647, %v412
    %v429 = vand.u32 2147483647, %v413
    %v430 = vand.u32 2147483647, %v414
    %v431 = vand.u32 2147483647, %v415
    %v432 = vand.u32 2147483647, %v416
    %v433 = vand.u32 2147483647, %v417
    %v434 = vand.u32 2147483647, %v418
    %v435 = vand.u32 2147483647, %v419
    %v436 = vand.u32 2147483647, %v420
    %v437 = vand.u32 2147483647, %v421
    %v438 = vand.u32 2147483647, %v422
    %v439 = vand.u32 2147483647, %v423
    %v440 = vand.u32 2147483647, %v424
    %441 = vmax.xlane.f32.xlu0 %v425
    %v442 = vpop.xlane.xlu0 %441
    %443 = vmax.xlane.f32.xlu0 %v426
    %v444 = vpop.xlane.xlu0 %443
    %445 = vmax.xlane.f32.xlu0 %v427
    %v446 = vpop.xlane.xlu0 %445
    %447 = vmax.xlane.f32.xlu0 %v428
    %v448 = vpop.xlane.xlu0 %447
    %449 = vmax.xlane.f32.xlu0 %v429
    %v450 = vpop.xlane.xlu0 %449
    %451 = vmax.xlane.f32.xlu0 %v430
    %v452 = vpop.xlane.xlu0 %451
    %453 = vmax.xlane.f32.xlu0 %v431
    %v454 = vpop.xlane.xlu0 %453
    %455 = vmax.xlane.f32.xlu0 %v432
    %v456 = vpop.xlane.xlu0 %455
    %457 = vmax.xlane.f32.xlu0 %v433
    %v458 = vpop.xlane.xlu0 %457
    %459 = vmax.xlane.f32.xlu0 %v434
    %v460 = vpop.xlane.xlu0 %459
    %461 = vmax.xlane.f32.xlu0 %v435
    %v462 = vpop.xlane.xlu0 %461
    %463 = vmax.xlane.f32.xlu0 %v436
    %v464 = vpop.xlane.xlu0 %463
    %465 = vmax.xlane.f32.xlu0 %v437
    %v466 = vpop.xlane.xlu0 %465
    %467 = vmax.xlane.f32.xlu0 %v438
    %v468 = vpop.xlane.xlu0 %467
    %469 = vmax.xlane.f32.xlu0 %v439
    %v470 = vpop.xlane.xlu0 %469
    %471 = vmax.xlane.f32.xlu0 %v440
    %v472 = vpop.xlane.xlu0 %471
    %v473 = vmax.f32 %v442, 1e-30
    %v474 = vmax.f32 %v444, 1e-30
    %v475 = vmax.f32 %v446, 1e-30
    %v476 = vmax.f32 %v448, 1e-30
    %v477 = vmax.f32 %v450, 1e-30
    %v478 = vmax.f32 %v452, 1e-30
    %v479 = vmax.f32 %v454, 1e-30
    %v480 = vmax.f32 %v456, 1e-30
    %v481 = vmax.f32 %v458, 1e-30
    %v482 = vmax.f32 %v460, 1e-30
    %v483 = vmax.f32 %v462, 1e-30
    %v484 = vmax.f32 %v464, 1e-30
    %v485 = vmax.f32 %v466, 1e-30
    %v486 = vmax.f32 %v468, 1e-30
    %v487 = vmax.f32 %v470, 1e-30
    %v488 = vmax.f32 %v472, 1e-30
    %v489 = vrcp.pop %v473
    %v490 = vmul.f32 57344.0, %v489
    %v491 = vrcp.pop %v474
    %v492 = vmul.f32 57344.0, %v491
    %v493 = vrcp.pop %v475
    %v494 = vmul.f32 57344.0, %v493
    %v495 = vrcp.pop %v476
    %v496 = vmul.f32 57344.0, %v495
    %v497 = vrcp.pop %v477
    %v498 = vmul.f32 57344.0, %v497
    %v499 = vrcp.pop %v478
    %v500 = vmul.f32 57344.0, %v499
    %v501 = vrcp.pop %v479
    %v502 = vmul.f32 57344.0, %v501
    %v503 = vrcp.pop %v480
    %v504 = vmul.f32 57344.0, %v503
    %v505 = vrcp.pop %v481
    %v506 = vmul.f32 57344.0, %v505
    %v507 = vrcp.pop %v482
    %v508 = vmul.f32 57344.0, %v507
    %v509 = vrcp.pop %v483
    %v510 = vmul.f32 57344.0, %v509
    %v511 = vrcp.pop %v484
    %v512 = vmul.f32 57344.0, %v511
    %v513 = vrcp.pop %v485
    %v514 = vmul.f32 57344.0, %v513
    %v515 = vrcp.pop %v486
    %v516 = vmul.f32 57344.0, %v515
    %v517 = vrcp.pop %v487
    %v518 = vmul.f32 57344.0, %v517
    %v519 = vrcp.pop %v488
    %v520 = vmul.f32 57344.0, %v519
    %v521 = vmul.f32 %v409, %v490
    %v522 = vmul.f32 %v410, %v492
    %v523 = vmul.f32 %v411, %v494
    %v524 = vmul.f32 %v412, %v496
    %v525 = vmul.f32 %v413, %v498
    %v526 = vmul.f32 %v414, %v500
    %v527 = vmul.f32 %v415, %v502
    %v528 = vmul.f32 %v416, %v504
    %v529 = vmul.f32 %v417, %v506
    %v530 = vmul.f32 %v418, %v508
    %v531 = vmul.f32 %v419, %v510
    %v532 = vmul.f32 %v420, %v512
    %v533 = vmul.f32 %v421, %v514
    %v534 = vmul.f32 %v422, %v516
    %v535 = vmul.f32 %v423, %v518
    %v536 = vmul.f32 %v424, %v520
    %v537 = vmax.f32 %v521, -57344.0
    %v538 = vmax.f32 %v522, -57344.0
    %v539 = vmax.f32 %v523, -57344.0
    %v540 = vmax.f32 %v524, -57344.0
    %v541 = vmax.f32 %v525, -57344.0
    %v542 = vmax.f32 %v526, -57344.0
    %v543 = vmax.f32 %v527, -57344.0
    %v544 = vmax.f32 %v528, -57344.0
    %v545 = vmax.f32 %v529, -57344.0
    %v546 = vmax.f32 %v530, -57344.0
    %v547 = vmax.f32 %v531, -57344.0
    %v548 = vmax.f32 %v532, -57344.0
    %v549 = vmax.f32 %v533, -57344.0
    %v550 = vmax.f32 %v534, -57344.0
    %v551 = vmax.f32 %v535, -57344.0
    %v552 = vmax.f32 %v536, -57344.0
    %v553 = vmin.f32 %v537, 57344.0
    %v554 = vmin.f32 %v538, 57344.0
    %v555 = vmin.f32 %v539, 57344.0
    %v556 = vmin.f32 %v540, 57344.0
    %v557 = vmin.f32 %v541, 57344.0
    %v558 = vmin.f32 %v542, 57344.0
    %v559 = vmin.f32 %v543, 57344.0
    %v560 = vmin.f32 %v544, 57344.0
    %v561 = vmin.f32 %v545, 57344.0
    %v562 = vmin.f32 %v546, 57344.0
    %v563 = vmin.f32 %v547, 57344.0
    %v564 = vmin.f32 %v548, 57344.0
    %v565 = vmin.f32 %v549, 57344.0
    %v566 = vmin.f32 %v550, 57344.0
    %v567 = vmin.f32 %v551, 57344.0
    %v568 = vmin.f32 %v552, 57344.0
    %v569 = vcvt.f32.f8e5m2 %v553
    %v570 = vcvt.f32.f8e5m2 %v554
    %v571 = vcvt.f32.f8e5m2 %v555
    %v572 = vcvt.f32.f8e5m2 %v556
    %v573 = vpack.c.b16 %v570, %v569
    %v574 = vpack.c.b16 %v572, %v571
    %v575 = vpack.c.b8 %v574, %v573
    %v577 = vcvt.f32.f8e5m2 %v557
    %v578 = vcvt.f32.f8e5m2 %v558
    %v579 = vcvt.f32.f8e5m2 %v559
    %v580 = vcvt.f32.f8e5m2 %v560
    %v581 = vpack.c.b16 %v578, %v577
    %v582 = vpack.c.b16 %v580, %v579
    %v583 = vpack.c.b8 %v582, %v581
    %v585 = vcvt.f32.f8e5m2 %v561
    %v586 = vcvt.f32.f8e5m2 %v562
    %v587 = vcvt.f32.f8e5m2 %v563
    %v588 = vcvt.f32.f8e5m2 %v564
    %v589 = vpack.c.b16 %v586, %v585
    %v590 = vpack.c.b16 %v588, %v587
    %v591 = vpack.c.b8 %v590, %v589
    %v593 = vcvt.f32.f8e5m2 %v565
    %v594 = vcvt.f32.f8e5m2 %v566
    %v595 = vcvt.f32.f8e5m2 %v567
    %v596 = vcvt.f32.f8e5m2 %v568
    %v597 = vpack.c.b16 %v594, %v593
    %v598 = vpack.c.b16 %v596, %v595
    %v599 = vpack.c.b8 %v598, %v597
    %601 = vst [vmem:[%s2] sm:$0xff] %v575
    %602 = vst [vmem:[%s2 + $0x10] sm:$0xff] %v583
    %603 = vst [vmem:[%s2 + $0x20] sm:$0xff] %v591
    %604 = vst [vmem:[%s2 + $0x30] sm:$0xff] %v599
    %v605 = vmul.f32 %v473, 1.7438617e-05
    %v606 = vmul.f32 %v474, 1.7438617e-05
    %v607 = vmul.f32 %v475, 1.7438617e-05
    %v608 = vmul.f32 %v476, 1.7438617e-05
    %v609 = vmul.f32 %v477, 1.7438617e-05
    %v610 = vmul.f32 %v478, 1.7438617e-05
    %v611 = vmul.f32 %v479, 1.7438617e-05
    %v612 = vmul.f32 %v480, 1.7438617e-05
    %v613 = vmul.f32 %v481, 1.7438617e-05
    %v614 = vmul.f32 %v482, 1.7438617e-05
    %v615 = vmul.f32 %v483, 1.7438617e-05
    %v616 = vmul.f32 %v484, 1.7438617e-05
    %v617 = vmul.f32 %v485, 1.7438617e-05
    %v618 = vmul.f32 %v486, 1.7438617e-05
    %v619 = vmul.f32 %v487, 1.7438617e-05
    %v620 = vmul.f32 %v488, 1.7438617e-05
    %v621 = vld [vmem:[#allocation2 + $0x4] sm:$0xf]
    %v622 = vld [vmem:[#allocation2 + $0xc] sm:$0xf]
    %v623 = vld [vmem:[#allocation2 + $0x14] sm:$0xf]
    %v624 = vld [vmem:[#allocation2 + $0x1c] sm:$0xf]
    %v625 = vld [vmem:[#allocation2 + $0x24] sm:$0xf]
    %v626 = vld [vmem:[#allocation2 + $0x2c] sm:$0xf]
    %v627 = vld [vmem:[#allocation2 + $0x34] sm:$0xf]
    %v628 = vld [vmem:[#allocation2 + $0x3c] sm:$0xf]
    %v629 = vld [vmem:[#allocation2 + $0x44] sm:$0xf]
    %v630 = vld [vmem:[#allocation2 + $0x4c] sm:$0xf]
    %v631 = vld [vmem:[#allocation2 + $0x54] sm:$0xf]
    %v632 = vld [vmem:[#allocation2 + $0x5c] sm:$0xf]
    %v633 = vld [vmem:[#allocation2 + $0x64] sm:$0xf]
    %v634 = vld [vmem:[#allocation2 + $0x6c] sm:$0xf]
    %v635 = vld [vmem:[#allocation2 + $0x74] sm:$0xf]
    %v636 = vld [vmem:[#allocation2 + $0x7c] sm:$0xf]
    %v637 = vunpack.c.l.bf16 %v621
    %v638 = vunpack.c.l.bf16 %v622
    %v639 = vunpack.c.l.bf16 %v623
    %v640 = vunpack.c.l.bf16 %v624
    %v641 = vunpack.c.l.bf16 %v625
    %v642 = vunpack.c.l.bf16 %v626
    %v643 = vunpack.c.l.bf16 %v627
    %v644 = vunpack.c.l.bf16 %v628
    %v645 = vunpack.c.l.bf16 %v629
    %v646 = vunpack.c.l.bf16 %v630
    %v647 = vunpack.c.l.bf16 %v631
    %v648 = vunpack.c.l.bf16 %v632
    %v649 = vunpack.c.l.bf16 %v633
    %v650 = vunpack.c.l.bf16 %v634
    %v651 = vunpack.c.l.bf16 %v635
    %v652 = vunpack.c.l.bf16 %v636
    %v653 = vld [vmem:[#allocation3 + $0x4] sm:$0xf]
    %v654 = vld [vmem:[#allocation3 + $0xc] sm:$0xf]
    %v655 = vld [vmem:[#allocation3 + $0x14] sm:$0xf]
    %v656 = vld [vmem:[#allocation3 + $0x1c] sm:$0xf]
    %v657 = vld [vmem:[#allocation3 + $0x24] sm:$0xf]
    %v658 = vld [vmem:[#allocation3 + $0x2c] sm:$0xf]
    %v659 = vld [vmem:[#allocation3 + $0x34] sm:$0xf]
    %v660 = vld [vmem:[#allocation3 + $0x3c] sm:$0xf]
    %v661 = vld [vmem:[#allocation3 + $0x44] sm:$0xf]
    %v662 = vld [vmem:[#allocation3 + $0x4c] sm:$0xf]
    %v663 = vld [vmem:[#allocation3 + $0x54] sm:$0xf]
    %v664 = vld [vmem:[#allocation3 + $0x5c] sm:$0xf]
    %v665 = vld [vmem:[#allocation3 + $0x64] sm:$0xf]
    %v666 = vld [vmem:[#allocation3 + $0x6c] sm:$0xf]
    %v667 = vld [vmem:[#allocation3 + $0x74] sm:$0xf]
    %v668 = vld [vmem:[#allocation3 + $0x7c] sm:$0xf]
    %v669 = vunpack.c.l.bf16 %v653
    %v670 = vunpack.c.l.bf16 %v654
    %v671 = vunpack.c.l.bf16 %v655
    %v672 = vunpack.c.l.bf16 %v656
    %v673 = vunpack.c.l.bf16 %v657
    %v674 = vunpack.c.l.bf16 %v658
    %v675 = vunpack.c.l.bf16 %v659
    %v676 = vunpack.c.l.bf16 %v660
    %v677 = vunpack.c.l.bf16 %v661
    %v678 = vunpack.c.l.bf16 %v662
    %v679 = vunpack.c.l.bf16 %v663
    %v680 = vunpack.c.l.bf16 %v664
    %v681 = vunpack.c.l.bf16 %v665
    %v682 = vunpack.c.l.bf16 %v666
    %v683 = vunpack.c.l.bf16 %v667
    %v684 = vunpack.c.l.bf16 %v668
    %v685 = vmul.f32 %v637, %v669
    %v686 = vmul.f32 %v638, %v670
    %v687 = vmul.f32 %v639, %v671
    %v688 = vmul.f32 %v640, %v672
    %v689 = vmul.f32 %v641, %v673
    %v690 = vmul.f32 %v642, %v674
    %v691 = vmul.f32 %v643, %v675
    %v692 = vmul.f32 %v644, %v676
    %v693 = vmul.f32 %v645, %v677
    %v694 = vmul.f32 %v646, %v678
    %v695 = vmul.f32 %v647, %v679
    %v696 = vmul.f32 %v648, %v680
    %v697 = vmul.f32 %v649, %v681
    %v698 = vmul.f32 %v650, %v682
    %v699 = vmul.f32 %v651, %v683
    %v700 = vmul.f32 %v652, %v684
    %v701 = vxor.u32 %v669, 2147483648
    %v702 = vxor.u32 %v670, 2147483648
    %v703 = vxor.u32 %v671, 2147483648
    %v704 = vxor.u32 %v672, 2147483648
    %v705 = vxor.u32 %v673, 2147483648
    %v706 = vxor.u32 %v674, 2147483648
    %v707 = vxor.u32 %v675, 2147483648
    %v708 = vxor.u32 %v676, 2147483648
    %v709 = vxor.u32 %v677, 2147483648
    %v710 = vxor.u32 %v678, 2147483648
    %v711 = vxor.u32 %v679, 2147483648
    %v712 = vxor.u32 %v680, 2147483648
    %v713 = vxor.u32 %v681, 2147483648
    %v714 = vxor.u32 %v682, 2147483648
    %v715 = vxor.u32 %v683, 2147483648
    %v716 = vxor.u32 %v684, 2147483648
    %v717 = vmul.f32 %v701, 1.442695
    %v718 = vpow.pop %v717
    %v719 = vmul.f32 %v702, 1.442695
    %v720 = vpow.pop %v719
    %v721 = vmul.f32 %v703, 1.442695
    %v722 = vpow.pop %v721
    %v723 = vmul.f32 %v704, 1.442695
    %v724 = vpow.pop %v723
    %v725 = vmul.f32 %v705, 1.442695
    %v726 = vpow.pop %v725
    %v727 = vmul.f32 %v706, 1.442695
    %v728 = vpow.pop %v727
    %v729 = vmul.f32 %v707, 1.442695
    %v730 = vpow.pop %v729
    %v731 = vmul.f32 %v708, 1.442695
    %v732 = vpow.pop %v731
    %v733 = vmul.f32 %v709, 1.442695
    %v734 = vpow.pop %v733
    %v735 = vmul.f32 %v710, 1.442695
    %v736 = vpow.pop %v735
    %v737 = vmul.f32 %v711, 1.442695
    %v738 = vpow.pop %v737
    %v739 = vmul.f32 %v712, 1.442695
    %v740 = vpow.pop %v739
    %v741 = vmul.f32 %v713, 1.442695
    %v742 = vpow.pop %v741
    %v743 = vmul.f32 %v714, 1.442695
    %v744 = vpow.pop %v743
    %v745 = vmul.f32 %v715, 1.442695
    %v746 = vpow.pop %v745
    %v747 = vmul.f32 %v716, 1.442695
    %v748 = vpow.pop %v747
    %v749 = vadd.f32 %v718, 1.0
    %v750 = vadd.f32 %v720, 1.0
    %v751 = vadd.f32 %v722, 1.0
    %v752 = vadd.f32 %v724, 1.0
    %v753 = vadd.f32 %v726, 1.0
    %v754 = vadd.f32 %v728, 1.0
    %v755 = vadd.f32 %v730, 1.0
    %v756 = vadd.f32 %v732, 1.0
    %v757 = vadd.f32 %v734, 1.0
    %v758 = vadd.f32 %v736, 1.0
    %v759 = vadd.f32 %v738, 1.0
    %v760 = vadd.f32 %v740, 1.0
    %v761 = vadd.f32 %v742, 1.0
    %v762 = vadd.f32 %v744, 1.0
    %v763 = vadd.f32 %v746, 1.0
    %v764 = vadd.f32 %v748, 1.0
    %v765 = vrcp.pop %v749
    %v766 = vmul.f32 1.0, %v765
    %v767 = vrcp.pop %v750
    %v768 = vmul.f32 1.0, %v767
    %v769 = vrcp.pop %v751
    %v770 = vmul.f32 1.0, %v769
    %v771 = vrcp.pop %v752
    %v772 = vmul.f32 1.0, %v771
    %v773 = vrcp.pop %v753
    %v774 = vmul.f32 1.0, %v773
    %v775 = vrcp.pop %v754
    %v776 = vmul.f32 1.0, %v775
    %v777 = vrcp.pop %v755
    %v778 = vmul.f32 1.0, %v777
    %v779 = vrcp.pop %v756
    %v780 = vmul.f32 1.0, %v779
    %v781 = vrcp.pop %v757
    %v782 = vmul.f32 1.0, %v781
    %v783 = vrcp.pop %v758
    %v784 = vmul.f32 1.0, %v783
    %v785 = vrcp.pop %v759
    %v786 = vmul.f32 1.0, %v785
    %v787 = vrcp.pop %v760
    %v788 = vmul.f32 1.0, %v787
    %v789 = vrcp.pop %v761
    %v790 = vmul.f32 1.0, %v789
    %v791 = vrcp.pop %v762
    %v792 = vmul.f32 1.0, %v791
    %v793 = vrcp.pop %v763
    %v794 = vmul.f32 1.0, %v793
    %v795 = vrcp.pop %v764
    %v796 = vmul.f32 1.0, %v795
    %v797 = vmul.f32 %v685, %v766
    %v798 = vmul.f32 %v686, %v768
    %v799 = vmul.f32 %v687, %v770
    %v800 = vmul.f32 %v688, %v772
    %v801 = vmul.f32 %v689, %v774
    %v802 = vmul.f32 %v690, %v776
    %v803 = vmul.f32 %v691, %v778
    %v804 = vmul.f32 %v692, %v780
    %v805 = vmul.f32 %v693, %v782
    %v806 = vmul.f32 %v694, %v784
    %v807 = vmul.f32 %v695, %v786
    %v808 = vmul.f32 %v696, %v788
    %v809 = vmul.f32 %v697, %v790
    %v810 = vmul.f32 %v698, %v792
    %v811 = vmul.f32 %v699, %v794
    %v812 = vmul.f32 %v700, %v796
    %v813 = vpack.c.bf16 %v798, %v797
    %v814 = vpack.c.bf16 %v800, %v799
    %v815 = vpack.c.bf16 %v802, %v801
    %v816 = vpack.c.bf16 %v804, %v803
    %v817 = vpack.c.bf16 %v806, %v805
    %v818 = vpack.c.bf16 %v808, %v807
    %v819 = vpack.c.bf16 %v810, %v809
    %v820 = vpack.c.bf16 %v812, %v811
    %v821 = vunpack.c.l.bf16 %v813
    %v822 = vunpack.c.h.bf16 %v813
    %v823 = vunpack.c.l.bf16 %v814
    %v824 = vunpack.c.h.bf16 %v814
    %v825 = vunpack.c.l.bf16 %v815
    %v826 = vunpack.c.h.bf16 %v815
    %v827 = vunpack.c.l.bf16 %v816
    %v828 = vunpack.c.h.bf16 %v816
    %v829 = vunpack.c.l.bf16 %v817
    %v830 = vunpack.c.h.bf16 %v817
    %v831 = vunpack.c.l.bf16 %v818
    %v832 = vunpack.c.h.bf16 %v818
    %v833 = vunpack.c.l.bf16 %v819
    %v834 = vunpack.c.h.bf16 %v819
    %v835 = vunpack.c.l.bf16 %v820
    %v836 = vunpack.c.h.bf16 %v820
    %v837 = vand.u32 2147483647, %v821
    %v838 = vand.u32 2147483647, %v822
    %v839 = vand.u32 2147483647, %v823
    %v840 = vand.u32 2147483647, %v824
    %v841 = vand.u32 2147483647, %v825
    %v842 = vand.u32 2147483647, %v826
    %v843 = vand.u32 2147483647, %v827
    %v844 = vand.u32 2147483647, %v828
    %v845 = vand.u32 2147483647, %v829
    %v846 = vand.u32 2147483647, %v830
    %v847 = vand.u32 2147483647, %v831
    %v848 = vand.u32 2147483647, %v832
    %v849 = vand.u32 2147483647, %v833
    %v850 = vand.u32 2147483647, %v834
    %v851 = vand.u32 2147483647, %v835
    %v852 = vand.u32 2147483647, %v836
    %853 = vmax.xlane.f32.xlu0 %v837
    %v854 = vpop.xlane.xlu0 %853
    %855 = vmax.xlane.f32.xlu0 %v838
    %v856 = vpop.xlane.xlu0 %855
    %857 = vmax.xlane.f32.xlu0 %v839
    %v858 = vpop.xlane.xlu0 %857
    %859 = vmax.xlane.f32.xlu0 %v840
    %v860 = vpop.xlane.xlu0 %859
    %861 = vmax.xlane.f32.xlu0 %v841
    %v862 = vpop.xlane.xlu0 %861
    %863 = vmax.xlane.f32.xlu0 %v842
    %v864 = vpop.xlane.xlu0 %863
    %865 = vmax.xlane.f32.xlu0 %v843
    %v866 = vpop.xlane.xlu0 %865
    %867 = vmax.xlane.f32.xlu0 %v844
    %v868 = vpop.xlane.xlu0 %867
    %869 = vmax.xlane.f32.xlu0 %v845
    %v870 = vpop.xlane.xlu0 %869
    %871 = vmax.xlane.f32.xlu0 %v846
    %v872 = vpop.xlane.xlu0 %871
    %873 = vmax.xlane.f32.xlu0 %v847
    %v874 = vpop.xlane.xlu0 %873
    %875 = vmax.xlane.f32.xlu0 %v848
    %v876 = vpop.xlane.xlu0 %875
    %877 = vmax.xlane.f32.xlu0 %v849
    %v878 = vpop.xlane.xlu0 %877
    %879 = vmax.xlane.f32.xlu0 %v850
    %v880 = vpop.xlane.xlu0 %879
    %881 = vmax.xlane.f32.xlu0 %v851
    %v882 = vpop.xlane.xlu0 %881
    %883 = vmax.xlane.f32.xlu0 %v852
    %v884 = vpop.xlane.xlu0 %883
    %v885 = vmax.f32 %v854, 1e-30
    %v886 = vmax.f32 %v856, 1e-30
    %v887 = vmax.f32 %v858, 1e-30
    %v888 = vmax.f32 %v860, 1e-30
    %v889 = vmax.f32 %v862, 1e-30
    %v890 = vmax.f32 %v864, 1e-30
    %v891 = vmax.f32 %v866, 1e-30
    %v892 = vmax.f32 %v868, 1e-30
    %v893 = vmax.f32 %v870, 1e-30
    %v894 = vmax.f32 %v872, 1e-30
    %v895 = vmax.f32 %v874, 1e-30
    %v896 = vmax.f32 %v876, 1e-30
    %v897 = vmax.f32 %v878, 1e-30
    %v898 = vmax.f32 %v880, 1e-30
    %v899 = vmax.f32 %v882, 1e-30
    %v900 = vmax.f32 %v884, 1e-30
    %v901 = vrcp.pop %v885
    %v902 = vmul.f32 57344.0, %v901
    %v903 = vrcp.pop %v886
    %v904 = vmul.f32 57344.0, %v903
    %v905 = vrcp.pop %v887
    %v906 = vmul.f32 57344.0, %v905
    %v907 = vrcp.pop %v888
    %v908 = vmul.f32 57344.0, %v907
    %v909 = vrcp.pop %v889
    %v910 = vmul.f32 57344.0, %v909
    %v911 = vrcp.pop %v890
    %v912 = vmul.f32 57344.0, %v911
    %v913 = vrcp.pop %v891
    %v914 = vmul.f32 57344.0, %v913
    %v915 = vrcp.pop %v892
    %v916 = vmul.f32 57344.0, %v915
    %v917 = vrcp.pop %v893
    %v918 = vmul.f32 57344.0, %v917
    %v919 = vrcp.pop %v894
    %v920 = vmul.f32 57344.0, %v919
    %v921 = vrcp.pop %v895
    %v922 = vmul.f32 57344.0, %v921
    %v923 = vrcp.pop %v896
    %v924 = vmul.f32 57344.0, %v923
    %v925 = vrcp.pop %v897
    %v926 = vmul.f32 57344.0, %v925
    %v927 = vrcp.pop %v898
    %v928 = vmul.f32 57344.0, %v927
    %v929 = vrcp.pop %v899
    %v930 = vmul.f32 57344.0, %v929
    %v931 = vrcp.pop %v900
    %v932 = vmul.f32 57344.0, %v931
    %v933 = vmul.f32 %v821, %v902
    %v934 = vmul.f32 %v822, %v904
    %v935 = vmul.f32 %v823, %v906
    %v936 = vmul.f32 %v824, %v908
    %v937 = vmul.f32 %v825, %v910
    %v938 = vmul.f32 %v826, %v912
    %v939 = vmul.f32 %v827, %v914
    %v940 = vmul.f32 %v828, %v916
    %v941 = vmul.f32 %v829, %v918
    %v942 = vmul.f32 %v830, %v920
    %v943 = vmul.f32 %v831, %v922
    %v944 = vmul.f32 %v832, %v924
    %v945 = vmul.f32 %v833, %v926
    %v946 = vmul.f32 %v834, %v928
    %v947 = vmul.f32 %v835, %v930
    %v948 = vmul.f32 %v836, %v932
    %v949 = vmax.f32 %v933, -57344.0
    %v950 = vmax.f32 %v934, -57344.0
    %v951 = vmax.f32 %v935, -57344.0
    %v952 = vmax.f32 %v936, -57344.0
    %v953 = vmax.f32 %v937, -57344.0
    %v954 = vmax.f32 %v938, -57344.0
    %v955 = vmax.f32 %v939, -57344.0
    %v956 = vmax.f32 %v940, -57344.0
    %v957 = vmax.f32 %v941, -57344.0
    %v958 = vmax.f32 %v942, -57344.0
    %v959 = vmax.f32 %v943, -57344.0
    %v960 = vmax.f32 %v944, -57344.0
    %v961 = vmax.f32 %v945, -57344.0
    %v962 = vmax.f32 %v946, -57344.0
    %v963 = vmax.f32 %v947, -57344.0
    %v964 = vmax.f32 %v948, -57344.0
    %v965 = vmin.f32 %v949, 57344.0
    %v966 = vmin.f32 %v950, 57344.0
    %v967 = vmin.f32 %v951, 57344.0
    %v968 = vmin.f32 %v952, 57344.0
    %v969 = vmin.f32 %v953, 57344.0
    %v970 = vmin.f32 %v954, 57344.0
    %v971 = vmin.f32 %v955, 57344.0
    %v972 = vmin.f32 %v956, 57344.0
    %v973 = vmin.f32 %v957, 57344.0
    %v974 = vmin.f32 %v958, 57344.0
    %v975 = vmin.f32 %v959, 57344.0
    %v976 = vmin.f32 %v960, 57344.0
    %v977 = vmin.f32 %v961, 57344.0
    %v978 = vmin.f32 %v962, 57344.0
    %v979 = vmin.f32 %v963, 57344.0
    %v980 = vmin.f32 %v964, 57344.0
    %v981 = vcvt.f32.f8e5m2 %v965
    %v982 = vcvt.f32.f8e5m2 %v966
    %v983 = vcvt.f32.f8e5m2 %v967
    %v984 = vcvt.f32.f8e5m2 %v968
    %v985 = vpack.c.b16 %v982, %v981
    %v986 = vpack.c.b16 %v984, %v983
    %v987 = vpack.c.b8 %v986, %v985
    %v989 = vcvt.f32.f8e5m2 %v969
    %v990 = vcvt.f32.f8e5m2 %v970
    %v991 = vcvt.f32.f8e5m2 %v971
    %v992 = vcvt.f32.f8e5m2 %v972
    %v993 = vpack.c.b16 %v990, %v989
    %v994 = vpack.c.b16 %v992, %v991
    %v995 = vpack.c.b8 %v994, %v993
    %v997 = vcvt.f32.f8e5m2 %v973
    %v998 = vcvt.f32.f8e5m2 %v974
    %v999 = vcvt.f32.f8e5m2 %v975
    %v1000 = vcvt.f32.f8e5m2 %v976
    %v1001 = vpack.c.b16 %v998, %v997
    %v1002 = vpack.c.b16 %v1000, %v999
    %v1003 = vpack.c.b8 %v1002, %v1001
    %v1005 = vcvt.f32.f8e5m2 %v977
    %v1006 = vcvt.f32.f8e5m2 %v978
    %v1007 = vcvt.f32.f8e5m2 %v979
    %v1008 = vcvt.f32.f8e5m2 %v980
    %v1009 = vpack.c.b16 %v1006, %v1005
    %v1010 = vpack.c.b16 %v1008, %v1007
    %v1011 = vpack.c.b8 %v1010, %v1009
    %1013 = vst [vmem:[%s2 + $0x8] sm:$0xff] %v987
    %1014 = vst [vmem:[%s2 + $0x18] sm:$0xff] %v995
    %1015 = vst [vmem:[%s2 + $0x28] sm:$0xff] %v1003
    %1016 = vst [vmem:[%s2 + $0x38] sm:$0xff] %v1011
    %v1017 = vmul.f32 %v885, 1.7438617e-05
    %v1018 = vmul.f32 %v886, 1.7438617e-05
    %v1019 = vmul.f32 %v887, 1.7438617e-05
    %v1020 = vmul.f32 %v888, 1.7438617e-05
    %v1021 = vmul.f32 %v889, 1.7438617e-05
    %v1022 = vmul.f32 %v890, 1.7438617e-05
    %v1023 = vmul.f32 %v891, 1.7438617e-05
    %v1024 = vmul.f32 %v892, 1.7438617e-05
    %v1025 = vmul.f32 %v893, 1.7438617e-05
    %v1026 = vmul.f32 %v894, 1.7438617e-05
    %v1027 = vmul.f32 %v895, 1.7438617e-05
    %v1028 = vmul.f32 %v896, 1.7438617e-05
    %v1029 = vmul.f32 %v897, 1.7438617e-05
    %v1030 = vmul.f32 %v898, 1.7438617e-05
    %v1031 = vmul.f32 %v899, 1.7438617e-05
    %v1032 = vmul.f32 %v900, 1.7438617e-05
    %vm1033 = vcmask 7168
    %v1034 = vsel %vm1033, %v605, %v1017
    %v1035 = vsel %vm1033, %v606, %v1018
    %v1036 = vsel %vm1033, %v607, %v1019
    %v1037 = vsel %vm1033, %v608, %v1020
    %v1038 = vsel %vm1033, %v609, %v1021
    %v1039 = vsel %vm1033, %v610, %v1022
    %v1040 = vsel %vm1033, %v611, %v1023
    %v1041 = vsel %vm1033, %v612, %v1024
    %v1042 = vsel %vm1033, %v613, %v1025
    %v1043 = vsel %vm1033, %v614, %v1026
    %v1044 = vsel %vm1033, %v615, %v1027
    %v1045 = vsel %vm1033, %v616, %v1028
    %v1046 = vsel %vm1033, %v617, %v1029
    %v1047 = vsel %vm1033, %v618, %v1030
    %v1048 = vsel %vm1033, %v619, %v1031
    %v1049 = vsel %vm1033, %v620, %v1032
    %vm1050 = vcmask 15360
    %1051 = vst.msk [vmem:[%s3] sm:$0xff] %vm1050, %v1034
    %1052 = vst.msk [vmem:[%s3 + $0x8] sm:$0xff] %vm1050, %v1035
    %1053 = vst.msk [vmem:[%s3 + $0x10] sm:$0xff] %vm1050, %v1036
    %1054 = vst.msk [vmem:[%s3 + $0x18] sm:$0xff] %vm1050, %v1037
    %1055 = vst.msk [vmem:[%s3 + $0x20] sm:$0xff] %vm1050, %v1038
    %1056 = vst.msk [vmem:[%s3 + $0x28] sm:$0xff] %vm1050, %v1039
    %1057 = vst.msk [vmem:[%s3 + $0x30] sm:$0xff] %vm1050, %v1040
    %1058 = vst.msk [vmem:[%s3 + $0x38] sm:$0xff] %vm1050, %v1041
    %1059 = vst.msk [vmem:[%s3 + $0x40] sm:$0xff] %vm1050, %v1042
    %1060 = vst.msk [vmem:[%s3 + $0x48] sm:$0xff] %vm1050, %v1043
    %1061 = vst.msk [vmem:[%s3 + $0x50] sm:$0xff] %vm1050, %v1044
    %1062 = vst.msk [vmem:[%s3 + $0x58] sm:$0xff] %vm1050, %v1045
    %1063 = vst.msk [vmem:[%s3 + $0x60] sm:$0xff] %vm1050, %v1046
    %1064 = vst.msk [vmem:[%s3 + $0x68] sm:$0xff] %vm1050, %v1047
    %1065 = vst.msk [vmem:[%s3 + $0x70] sm:$0xff] %vm1050, %v1048
    %1066 = vst.msk [vmem:[%s3 + $0x78] sm:$0xff] %vm1050, %v1049
    // Predicated region
    $region86: #{fp8_mlp_forward.10} parent=1 // pred_check
      _
    $region87: #{fp8_mlp_forward.10} parent=1 // pred_check_branch
      %1068 = sbr.rel (0) target = $region89
    $region88: #{fp8_mlp_forward.10} parent=1 // pred_region
      _
    $region89: #{fp8_mlp_forward.10} parent=1 // pred_fallthru
      _
    // Predicated region
    $region90: #{fp8_mlp_forward.10} parent=1 // pred_check
      _
    $region91: #{fp8_mlp_forward.10} parent=1 // pred_check_branch
      %1070 = sbr.rel (0) target = $region93
    $region92: #{fp8_mlp_forward.10} parent=1 // pred_region
      _
    $region93: #{fp8_mlp_forward.10} parent=1 // pred_fallthru
      _
    // Predicated region
    $region94: #{fp8_mlp_forward.10} parent=1 // pred_check
      _
    $region95: #{fp8_mlp_forward.10} parent=1 // pred_check_branch
      %1072 = sbr.rel (0) target = $region97
    $region96: #{fp8_mlp_forward.10} parent=1 // pred_region
      _
    $region97: #{fp8_mlp_forward.10} parent=1 // pred_fallthru
      _
    // Predicated region
    $region98: #{fp8_mlp_forward.10} parent=1 // pred_check
      _
    $region99: #{fp8_mlp_forward.10} parent=1 // pred_check_branch
      %1074 = sbr.rel (0) target = $region101
    $region100: #{fp8_mlp_forward.10} parent=1 // pred_region
      _
    $region101: #{fp8_mlp_forward.10} parent=1 // pred_fallthru
      _

// kernel: fp8_mlp_forward.7
$region0: #{fp8_mlp_forward.7}
  #allocation0 [shape = 'u32[]', space=smem, size = 0x4, offset = 0x4, fixed_abs, tag = 'smem constant byte address 0x4 - core index']
  #allocation1 [shape = 'u32[144,128]{1,0:T(1,128)}', space=vmem, size = 0x12000, scoped, tag = 'internal scratch']
  %s0 = inlined_call_operand.vmem [shape: f32[256,256], index: 0, kind: input, shape index: {}]
  %s1 = inlined_call_operand.vmem [shape: f8e5m2[256,256], index: 1, kind: output, shape index: {0}]
  %s2 = inlined_call_operand.vmem [shape: f32[2,1,2], index: 2, kind: output, shape index: {1}]
  %3 = xla_tuple %s1, %s2
  %s4 = sld [smem:[#allocation0]]
  $region45: #{fp8_mlp_forward.7} parent=0
    _
  %s6 = ssub.s32 1, %s4
  %s7 = scalar_select 0, %s6, %s4
  loop: start=0, step=1, limit=4
  $region2: #{fp8_mlp_forward.7} parent=0 // loop_pre_header
    _
  $region3: #{fp8_mlp_forward.7} parent=0 // loop_header
    %s9 = sphi 0, %s13
    %p10 = scmp.ge.s32.totalorder %s9, 4
    %s19 = sphi 0, %s21
    %s22 = sphi 0, %s19
    %s23 = sphi 0, %s22
    %s39 = sphi 0, %s23
    %s45 = sphi 0, %s47
    %s48 = sphi 0, %s45
    %s49 = sphi 0, %s48
    %s65 = sphi 0, %s49
    %s71 = sphi 0, %s73
    %s74 = sphi 0, %s71
    %s75 = sphi 0, %s74
    %s91 = sphi 0, %s75
  $region4: #{fp8_mlp_forward.7} parent=0 // loop_header_branch
    %12 = sbr.rel (%p10) target = $region8
  $region5: #{fp8_mlp_forward.7} parent=0 // loop_body
    %s14 = ssub.s32 %s9, 1
    %s15 = ssub.s32 %s9, 2
    %s16 = sadd.s32 %s9, 1
    %s17 = ssub.s32 %s9, %s16
    %p18 = scmp.eq.s32.totalorder %s17, 0
    %s20 = sadd.s32 %s19, 1
    %s21 = scalar_select %p18, %s19, %s20
    %p24 = pneg %p18
    %p25 = scmp.eq.s32.totalorder %s9, 1
    %p26 = por %p24, %p25
    %p27 = scmp.ne.s32.totalorder %s19, %s22
    %p28 = scmp.eq.s32.totalorder %s9, 0
    %p29 = por %p27, %p28
    %p30 = scmp.ne.s32.totalorder %s19, %s22
    %p31 = scmp.eq.s32.totalorder %s14, 1
    %p32 = por %p30, %p31
    %p33 = scmp.ne.s32.totalorder %s22, %s23
    %p34 = scmp.eq.s32.totalorder %s14, 0
    %p35 = por %p33, %p34
    %p36 = scmp.ne.s32.totalorder %s22, %s23
    %p37 = scmp.eq.s32.totalorder %s15, 1
    %p38 = por %p36, %p37
    %p40 = scmp.ne.s32.totalorder %s23, %s39
    %p41 = scmp.eq.s32.totalorder %s15, 0
    %p42 = por %p40, %p41
    %s43 = ssub.s32 %s9, %s16
    %p44 = scmp.eq.s32.totalorder %s43, 0
    %s46 = sadd.s32 %s45, 1
    %s47 = scalar_select %p44, %s45, %s46
    %p50 = pneg %p44
    %p51 = scmp.eq.s32.totalorder %s9, 1
    %p52 = por %p50, %p51
    %p53 = scmp.ne.s32.totalorder %s45, %s48
    %p54 = scmp.eq.s32.totalorder %s9, 0
    %p55 = por %p53, %p54
    %p56 = scmp.ne.s32.totalorder %s45, %s48
    %p57 = scmp.eq.s32.totalorder %s14, 1
    %p58 = por %p56, %p57
    %p59 = scmp.ne.s32.totalorder %s48, %s49
    %p60 = scmp.eq.s32.totalorder %s14, 0
    %p61 = por %p59, %p60
    %p62 = scmp.ne.s32.totalorder %s48, %s49
    %p63 = scmp.eq.s32.totalorder %s15, 1
    %p64 = por %p62, %p63
    %p66 = scmp.ne.s32.totalorder %s49, %s65
    %p67 = scmp.eq.s32.totalorder %s15, 0
    %p68 = por %p66, %p67
    %s69 = ssub.s32 %s9, %s16
    %p70 = scmp.eq.s32.totalorder %s69, 0
    %s72 = sadd.s32 %s71, 1
    %s73 = scalar_select %p70, %s71, %s72
    %p76 = pneg %p70
    %p77 = scmp.eq.s32.totalorder %s9, 1
    %p78 = por %p76, %p77
    %p79 = scmp.ne.s32.totalorder %s71, %s74
    %p80 = scmp.eq.s32.totalorder %s9, 0
    %p81 = por %p79, %p80
    %p82 = scmp.ne.s32.totalorder %s71, %s74
    %p83 = scmp.eq.s32.totalorder %s14, 1
    %p84 = por %p82, %p83
    %p85 = scmp.ne.s32.totalorder %s74, %s75
    %p86 = scmp.eq.s32.totalorder %s14, 0
    %p87 = por %p85, %p86
    %p88 = scmp.ne.s32.totalorder %s74, %s75
    %p89 = scmp.eq.s32.totalorder %s15, 1
    %p90 = por %p88, %p89
    %p92 = scmp.ne.s32.totalorder %s75, %s91
    %p93 = scmp.eq.s32.totalorder %s15, 0
    %p94 = por %p92, %p93
    %p95 = scmp.le.s32.totalorder 1, %s9
    %p96 = scmp.lt.s32.totalorder %s9, 3
    %p97 = pnand %p95, %p96
    %p98 = pneg %p97
    // Predicated region
    $region9: #{fp8_mlp_forward.7} parent=5 // pred_check
      _
    $region10: #{fp8_mlp_forward.7} parent=5 // pred_check_branch
      %100 = sbr.rel (%p97) target = $region12
    $region11: #{fp8_mlp_forward.7} parent=5 // pred_region
      %s101 = ssub.s32 %s9, 1
    $region12: #{fp8_mlp_forward.7} parent=5 // pred_fallthru
      _
    %p102 = scmp.lt.s32.totalorder %s9, 2
    // Predicated region
    $region13: #{fp8_mlp_forward.7} parent=5 // pred_check
      %p103 = pneg %p102
    $region14: #{fp8_mlp_forward.7} parent=5 // pred_check_branch
      %105 = sbr.rel (%p103) target = $region16
    $region15: #{fp8_mlp_forward.7} parent=5 // pred_region
      // Predicated region
      $region17: #{fp8_mlp_forward.7} parent=15 // pred_check
        %p106 = pneg %p29
      $region18: #{fp8_mlp_forward.7} parent=15 // pred_check_branch
        %108 = sbr.rel (%p106) target = $region20
      $region19: #{fp8_mlp_forward.7} parent=15 // pred_region
        %s109 = smul.u32 16, %s9
        %p110 = scmp.lt.s32.totalorder %s109, 31
        %s111 = scalar_select %p110, %s109, 31
        %s112 = smul.addr %s111, 2
        %s113 = smul.addr %s112, 8
        %s114 = scalar_lea.vmem %s0, %s113
        %s115 = smul.u32 16, %s9
      $region20: #{fp8_mlp_forward.7} parent=15 // pred_fallthru
        _
    $region16: #{fp8_mlp_forward.7} parent=5 // pred_fallthru
      _
    %p116 = scmp.le.s32.totalorder 1, %s9
    %p117 = scmp.lt.s32.totalorder %s9, 3
    %p118 = pnand %p116, %p117
    %p119 = pneg %p118
    // Predicated region
    $region21: #{fp8_mlp_forward.7} parent=5 // pred_check
      _
    $region22: #{fp8_mlp_forward.7} parent=5 // pred_check_branch
      %121 = sbr.rel (%p118) target = $region24
    $region23: #{fp8_mlp_forward.7} parent=5 // pred_region
      %s122 = ssub.s32 %s9, 1
      %s123 = smul.u32 16, %s14
      %p124 = scmp.lt.s32.totalorder %s123, 31
      %s125 = scalar_select %p124, %s123, 31
      %s126 = smul.addr %s125, 2
      %s127 = smul.addr %s126, 8
      %s128 = scalar_lea.vmem %s0, %s127
      %p129 = pneg %p35
      %p130 = pneg %p32
      %p131 = pneg %p61
      %p132 = pneg %p58
      %s133 = smul.u32 4, %s14
      %p134 = scmp.lt.s32.totalorder %s133, 7
      %s135 = scalar_select %p134, %s133, 7
      %s136 = smul.addr %s135, 2
      %s137 = smul.addr %s136, 8
      %s138 = scalar_lea.vmem %s1, %s137
      %p139 = pneg %p87
      %p140 = pneg %p84
      %p141 = scmp.lt.s32.totalorder %s14, 1
      %s142 = scalar_select %p141, %s14, 1
      %s143 = scalar_lea.vmem %s2, %s142
      %s144 = smul.u32 16, %s14
      %p145 = scmp.lt.s32.totalorder %s144, 31
      %s146 = scalar_select %p145, %s144, 31
      %s147 = smul.addr %s146, 2
      %s148 = smul.addr %s147, 8
      %s149 = scalar_lea.vmem %s0, %s148
      %s150 = smul.u32 16, %s14
      %s151 = smul.u32 4, %s14
      %p152 = scmp.lt.s32.totalorder %s151, 7
      %s153 = scalar_select %p152, %s151, 7
      %s154 = smul.addr %s153, 2
      %s155 = smul.addr %s154, 8
      %s156 = scalar_lea.vmem %s1, %s155
      %s157 = smul.u32 4, %s14
      %p158 = scmp.lt.s32.totalorder %s14, 1
      %s159 = scalar_select %p158, %s14, 1
      %s160 = scalar_lea.vmem %s2, %s159
      %v161 = vld [vmem:[%s149] sm:$0xff]
      %v162 = vld [vmem:[%s149 + $0x10] sm:$0xff]
      %v163 = vld [vmem:[%s149 + $0x20] sm:$0xff]
      %v164 = vld [vmem:[%s149 + $0x30] sm:$0xff]
      %v165 = vld [vmem:[%s149 + $0x40] sm:$0xff]
      %v166 = vld [vmem:[%s149 + $0x50] sm:$0xff]
      %v167 = vld [vmem:[%s149 + $0x60] sm:$0xff]
      %v168 = vld [vmem:[%s149 + $0x70] sm:$0xff]
      %v169 = vld [vmem:[%s149 + $0x80] sm:$0xff]
      %v170 = vld [vmem:[%s149 + $0x90] sm:$0xff]
      %v171 = vld [vmem:[%s149 + $0xa0] sm:$0xff]
      %v172 = vld [vmem:[%s149 + $0xb0] sm:$0xff]
      %v173 = vld [vmem:[%s149 + $0xc0] sm:$0xff]
      %v174 = vld [vmem:[%s149 + $0xd0] sm:$0xff]
      %v175 = vld [vmem:[%s149 + $0xe0] sm:$0xff]
      %v176 = vld [vmem:[%s149 + $0xf0] sm:$0xff]
      %v177 = vand.u32 2147483647, %v161
      %v178 = vand.u32 2147483647, %v162
      %v179 = vand.u32 2147483647, %v163
      %v180 = vand.u32 2147483647, %v164
      %v181 = vand.u32 2147483647, %v165
      %v182 = vand.u32 2147483647, %v166
      %v183 = vand.u32 2147483647, %v167
      %v184 = vand.u32 2147483647, %v168
      %v185 = vand.u32 2147483647, %v169
      %v186 = vand.u32 2147483647, %v170
      %v187 = vand.u32 2147483647, %v171
      %v188 = vand.u32 2147483647, %v172
      %v189 = vand.u32 2147483647, %v173
      %v190 = vand.u32 2147483647, %v174
      %v191 = vand.u32 2147483647, %v175
      %v192 = vand.u32 2147483647, %v176
      %v193 = vmax.f32 %v177, %v181
      %v194 = vmax.f32 %v178, %v182
      %v195 = vmax.f32 %v179, %v183
      %v196 = vmax.f32 %v180, %v184
      %v197 = vmax.f32 %v193, %v185
      %v198 = vmax.f32 %v194, %v186
      %v199 = vmax.f32 %v195, %v187
      %v200 = vmax.f32 %v196, %v188
      %v201 = vmax.f32 %v197, %v189
      %v202 = vmax.f32 %v198, %v190
      %v203 = vmax.f32 %v199, %v191
      %v204 = vmax.f32 %v200, %v192
      %v205 = vmax.f32 %v201, %v202
      %v206 = vmax.f32 %v203, %v204
      %v207 = vmax.f32 %v205, %v206
      %208 = vmax.xlane.f32.xlu0 %v207
      %v209 = vpop.xlane.xlu0 %208
      %v210 = vrot.slane %v209, 4
      %v211 = vmax.f32 %v209, %v210
      %v212 = vrot.slane %v211, 2
      %v213 = vmax.f32 %v211, %v212
      %v214 = vrot.slane %v213, 1
      %v215 = vmax.f32 %v213, %v214
      %s216 = vtos %v215
      %v217 = vstv %s216
      %v218 = vmax.f32 %v217, 1e-30
      %v219 = vrcp.pop %v218
      %v220 = vmul.f32 57344.0, %v219
      %v221 = vmul.f32 %v161, %v220
      %v222 = vmul.f32 %v162, %v220
      %v223 = vmul.f32 %v163, %v220
      %v224 = vmul.f32 %v164, %v220
      %v225 = vmul.f32 %v165, %v220
      %v226 = vmul.f32 %v166, %v220
      %v227 = vmul.f32 %v167, %v220
      %v228 = vmul.f32 %v168, %v220
      %v229 = vmul.f32 %v169, %v220
      %v230 = vmul.f32 %v170, %v220
      %v231 = vmul.f32 %v171, %v220
      %v232 = vmul.f32 %v172, %v220
      %v233 = vmul.f32 %v173, %v220
      %v234 = vmul.f32 %v174, %v220
      %v235 = vmul.f32 %v175, %v220
      %v236 = vmul.f32 %v176, %v220
      %v237 = vmax.f32 %v221, -57344.0
      %v238 = vmax.f32 %v222, -57344.0
      %v239 = vmax.f32 %v223, -57344.0
      %v240 = vmax.f32 %v224, -57344.0
      %v241 = vmax.f32 %v225, -57344.0
      %v242 = vmax.f32 %v226, -57344.0
      %v243 = vmax.f32 %v227, -57344.0
      %v244 = vmax.f32 %v228, -57344.0
      %v245 = vmax.f32 %v229, -57344.0
      %v246 = vmax.f32 %v230, -57344.0
      %v247 = vmax.f32 %v231, -57344.0
      %v248 = vmax.f32 %v232, -57344.0
      %v249 = vmax.f32 %v233, -57344.0
      %v250 = vmax.f32 %v234, -57344.0
      %v251 = vmax.f32 %v235, -57344.0
      %v252 = vmax.f32 %v236, -57344.0
      %v253 = vmin.f32 %v237, 57344.0
      %v254 = vmin.f32 %v238, 57344.0
      %v255 = vmin.f32 %v239, 57344.0
      %v256 = vmin.f32 %v240, 57344.0
      %v257 = vmin.f32 %v241, 57344.0
      %v258 = vmin.f32 %v242, 57344.0
      %v259 = vmin.f32 %v243, 57344.0
      %v260 = vmin.f32 %v244, 57344.0
      %v261 = vmin.f32 %v245, 57344.0
      %v262 = vmin.f32 %v246, 57344.0
      %v263 = vmin.f32 %v247, 57344.0
      %v264 = vmin.f32 %v248, 57344.0
      %v265 = vmin.f32 %v249, 57344.0
      %v266 = vmin.f32 %v250, 57344.0
      %v267 = vmin.f32 %v251, 57344.0
      %v268 = vmin.f32 %v252, 57344.0
      %v269 = vcvt.f32.f8e5m2 %v253
      %v270 = vcvt.f32.f8e5m2 %v254
      %v271 = vcvt.f32.f8e5m2 %v255
      %v272 = vcvt.f32.f8e5m2 %v256
      %v273 = vpack.c.b16 %v270, %v269
      %v274 = vpack.c.b16 %v272, %v271
      %v275 = vpack.c.b8 %v274, %v273
      %v277 = vcvt.f32.f8e5m2 %v257
      %v278 = vcvt.f32.f8e5m2 %v258
      %v279 = vcvt.f32.f8e5m2 %v259
      %v280 = vcvt.f32.f8e5m2 %v260
      %v281 = vpack.c.b16 %v278, %v277
      %v282 = vpack.c.b16 %v280, %v279
      %v283 = vpack.c.b8 %v282, %v281
      %v285 = vcvt.f32.f8e5m2 %v261
      %v286 = vcvt.f32.f8e5m2 %v262
      %v287 = vcvt.f32.f8e5m2 %v263
      %v288 = vcvt.f32.f8e5m2 %v264
      %v289 = vpack.c.b16 %v286, %v285
      %v290 = vpack.c.b16 %v288, %v287
      %v291 = vpack.c.b8 %v290, %v289
      %v293 = vcvt.f32.f8e5m2 %v265
      %v294 = vcvt.f32.f8e5m2 %v266
      %v295 = vcvt.f32.f8e5m2 %v267
      %v296 = vcvt.f32.f8e5m2 %v268
      %v297 = vpack.c.b16 %v294, %v293
      %v298 = vpack.c.b16 %v296, %v295
      %v299 = vpack.c.b8 %v298, %v297
      %301 = vst [vmem:[%s156] sm:$0xff] %v275
      %302 = vst [vmem:[%s156 + $0x10] sm:$0xff] %v283
      %303 = vst [vmem:[%s156 + $0x20] sm:$0xff] %v291
      %304 = vst [vmem:[%s156 + $0x30] sm:$0xff] %v299
      %v305 = vmul.f32 %v218, 1.7438617e-05
      %v306 = vld [vmem:[%s149 + $0x8] sm:$0xff]
      %v307 = vld [vmem:[%s149 + $0x18] sm:$0xff]
      %v308 = vld [vmem:[%s149 + $0x28] sm:$0xff]
      %v309 = vld [vmem:[%s149 + $0x38] sm:$0xff]
      %v310 = vld [vmem:[%s149 + $0x48] sm:$0xff]
      %v311 = vld [vmem:[%s149 + $0x58] sm:$0xff]
      %v312 = vld [vmem:[%s149 + $0x68] sm:$0xff]
      %v313 = vld [vmem:[%s149 + $0x78] sm:$0xff]
      %v314 = vld [vmem:[%s149 + $0x88] sm:$0xff]
      %v315 = vld [vmem:[%s149 + $0x98] sm:$0xff]
      %v316 = vld [vmem:[%s149 + $0xa8] sm:$0xff]
      %v317 = vld [vmem:[%s149 + $0xb8] sm:$0xff]
      %v318 = vld [vmem:[%s149 + $0xc8] sm:$0xff]
      %v319 = vld [vmem:[%s149 + $0xd8] sm:$0xff]
      %v320 = vld [vmem:[%s149 + $0xe8] sm:$0xff]
      %v321 = vld [vmem:[%s149 + $0xf8] sm:$0xff]
      %v322 = vand.u32 2147483647, %v306
      %v323 = vand.u32 2147483647, %v307
      %v324 = vand.u32 2147483647, %v308
      %v325 = vand.u32 2147483647, %v309
      %v326 = vand.u32 2147483647, %v310
      %v327 = vand.u32 2147483647, %v311
      %v328 = vand.u32 2147483647, %v312
      %v329 = vand.u32 2147483647, %v313
      %v330 = vand.u32 2147483647, %v314
      %v331 = vand.u32 2147483647, %v315
      %v332 = vand.u32 2147483647, %v316
      %v333 = vand.u32 2147483647, %v317
      %v334 = vand.u32 2147483647, %v318
      %v335 = vand.u32 2147483647, %v319
      %v336 = vand.u32 2147483647, %v320
      %v337 = vand.u32 2147483647, %v321
      %v338 = vmax.f32 %v322, %v326
      %v339 = vmax.f32 %v323, %v327
      %v340 = vmax.f32 %v324, %v328
      %v341 = vmax.f32 %v325, %v329
      %v342 = vmax.f32 %v338, %v330
      %v343 = vmax.f32 %v339, %v331
      %v344 = vmax.f32 %v340, %v332
      %v345 = vmax.f32 %v341, %v333
      %v346 = vmax.f32 %v342, %v334
      %v347 = vmax.f32 %v343, %v335
      %v348 = vmax.f32 %v344, %v336
      %v349 = vmax.f32 %v345, %v337
      %v350 = vmax.f32 %v346, %v347
      %v351 = vmax.f32 %v348, %v349
      %v352 = vmax.f32 %v350, %v351
      %353 = vmax.xlane.f32.xlu0 %v352
      %v354 = vpop.xlane.xlu0 %353
      %v355 = vrot.slane %v354, 4
      %v356 = vmax.f32 %v354, %v355
      %v357 = vrot.slane %v356, 2
      %v358 = vmax.f32 %v356, %v357
      %v359 = vrot.slane %v358, 1
      %v360 = vmax.f32 %v358, %v359
      %s361 = vtos %v360
      %v362 = vstv %s361
      %v363 = vmax.f32 %v362, 1e-30
      %v364 = vrcp.pop %v363
      %v365 = vmul.f32 57344.0, %v364
      %v366 = vmul.f32 %v306, %v365
      %v367 = vmul.f32 %v307, %v365
      %v368 = vmul.f32 %v308, %v365
      %v369 = vmul.f32 %v309, %v365
      %v370 = vmul.f32 %v310, %v365
      %v371 = vmul.f32 %v311, %v365
      %v372 = vmul.f32 %v312, %v365
      %v373 = vmul.f32 %v313, %v365
      %v374 = vmul.f32 %v314, %v365
      %v375 = vmul.f32 %v315, %v365
      %v376 = vmul.f32 %v316, %v365
      %v377 = vmul.f32 %v317, %v365
      %v378 = vmul.f32 %v318, %v365
      %v379 = vmul.f32 %v319, %v365
      %v380 = vmul.f32 %v320, %v365
      %v381 = vmul.f32 %v321, %v365
      %v382 = vmax.f32 %v366, -57344.0
      %v383 = vmax.f32 %v367, -57344.0
      %v384 = vmax.f32 %v368, -57344.0
      %v385 = vmax.f32 %v369, -57344.0
      %v386 = vmax.f32 %v370, -57344.0
      %v387 = vmax.f32 %v371, -57344.0
      %v388 = vmax.f32 %v372, -57344.0
      %v389 = vmax.f32 %v373, -57344.0
      %v390 = vmax.f32 %v374, -57344.0
      %v391 = vmax.f32 %v375, -57344.0
      %v392 = vmax.f32 %v376, -57344.0
      %v393 = vmax.f32 %v377, -57344.0
      %v394 = vmax.f32 %v378, -57344.0
      %v395 = vmax.f32 %v379, -57344.0
      %v396 = vmax.f32 %v380, -57344.0
      %v397 = vmax.f32 %v381, -57344.0
      %v398 = vmin.f32 %v382, 57344.0
      %v399 = vmin.f32 %v383, 57344.0
      %v400 = vmin.f32 %v384, 57344.0
      %v401 = vmin.f32 %v385, 57344.0
      %v402 = vmin.f32 %v386, 57344.0
      %v403 = vmin.f32 %v387, 57344.0
      %v404 = vmin.f32 %v388, 57344.0
      %v405 = vmin.f32 %v389, 57344.0
      %v406 = vmin.f32 %v390, 57344.0
      %v407 = vmin.f32 %v391, 57344.0
      %v408 = vmin.f32 %v392, 57344.0
      %v409 = vmin.f32 %v393, 57344.0
      %v410 = vmin.f32 %v394, 57344.0
      %v411 = vmin.f32 %v395, 57344.0
      %v412 = vmin.f32 %v396, 57344.0
      %v413 = vmin.f32 %v397, 57344.0
      %v414 = vcvt.f32.f8e5m2 %v398
      %v415 = vcvt.f32.f8e5m2 %v399
      %v416 = vcvt.f32.f8e5m2 %v400
      %v417 = vcvt.f32.f8e5m2 %v401
      %v418 = vpack.c.b16 %v415, %v414
      %v419 = vpack.c.b16 %v417, %v416
      %v420 = vpack.c.b8 %v419, %v418
      %v422 = vcvt.f32.f8e5m2 %v402
      %v423 = vcvt.f32.f8e5m2 %v403
      %v424 = vcvt.f32.f8e5m2 %v404
      %v425 = vcvt.f32.f8e5m2 %v405
      %v426 = vpack.c.b16 %v423, %v422
      %v427 = vpack.c.b16 %v425, %v424
      %v428 = vpack.c.b8 %v427, %v426
      %v430 = vcvt.f32.f8e5m2 %v406
      %v431 = vcvt.f32.f8e5m2 %v407
      %v432 = vcvt.f32.f8e5m2 %v408
      %v433 = vcvt.f32.f8e5m2 %v409
      %v434 = vpack.c.b16 %v431, %v430
      %v435 = vpack.c.b16 %v433, %v432
      %v436 = vpack.c.b8 %v435, %v434
      %v438 = vcvt.f32.f8e5m2 %v410
      %v439 = vcvt.f32.f8e5m2 %v411
      %v440 = vcvt.f32.f8e5m2 %v412
      %v441 = vcvt.f32.f8e5m2 %v413
      %v442 = vpack.c.b16 %v439, %v438
      %v443 = vpack.c.b16 %v441, %v440
      %v444 = vpack.c.b8 %v443, %v442
      %446 = vst [vmem:[%s156 + $0x8] sm:$0xff] %v420
      %447 = vst [vmem:[%s156 + $0x18] sm:$0xff] %v428
      %448 = vst [vmem:[%s156 + $0x28] sm:$0xff] %v436
      %449 = vst [vmem:[%s156 + $0x38] sm:$0xff] %v444
      %v450 = vmul.f32 %v363, 1.7438617e-05
      %vm451 = vcmask 7168
      %v452 = vsel %vm451, %v305, %v450
      %vm453 = vcmask 8192
      %454 = vst.msk [vmem:[%s160] sm:$0x1] %vm453, %v452
      %s455 = smul.u32 4, %s14
      %p456 = scmp.lt.s32.totalorder %s455, 7
      %s457 = scalar_select %p456, %s455, 7
      %s458 = smul.addr %s457, 2
      %s459 = smul.addr %s458, 8
      %s460 = scalar_lea.vmem %s1, %s459
      %p461 = scmp.lt.s32.totalorder %s14, 1
      %s462 = scalar_select %p461, %s14, 1
      %s463 = scalar_lea.vmem %s2, %s462
      // Predicated region
      $region25: #{fp8_mlp_forward.7} parent=23 // pred_check
        %p464 = pneg %p58
      $region26: #{fp8_mlp_forward.7} parent=23 // pred_check_branch
        %466 = sbr.rel (%p464) target = $region28
      $region27: #{fp8_mlp_forward.7} parent=23 // pred_region
        %s467 = smul.u32 4, %s14
      $region28: #{fp8_mlp_forward.7} parent=23 // pred_fallthru
        _
      // Predicated region
      $region29: #{fp8_mlp_forward.7} parent=23 // pred_check
        %p468 = pneg %p84
      $region30: #{fp8_mlp_forward.7} parent=23 // pred_check_branch
        %470 = sbr.rel (%p468) target = $region32
      $region31: #{fp8_mlp_forward.7} parent=23 // pred_region
        _
      $region32: #{fp8_mlp_forward.7} parent=23 // pred_fallthru
        _
    $region24: #{fp8_mlp_forward.7} parent=5 // pred_fallthru
      _
    %p471 = scmp.le.s32.totalorder 2, %s9
    // Predicated region
    $region33: #{fp8_mlp_forward.7} parent=5 // pred_check
      %p472 = pneg %p471
    $region34: #{fp8_mlp_forward.7} parent=5 // pred_check_branch
      %474 = sbr.rel (%p472) target = $region36
    $region35: #{fp8_mlp_forward.7} parent=5 // pred_region
      %s475 = ssub.s32 %s9, 2
      // Predicated region
      $region37: #{fp8_mlp_forward.7} parent=35 // pred_check
        %p476 = pneg %p64
      $region38: #{fp8_mlp_forward.7} parent=35 // pred_check_branch
        %478 = sbr.rel (%p476) target = $region40
      $region39: #{fp8_mlp_forward.7} parent=35 // pred_region
        %s479 = smul.u32 4, %s15
        %p480 = scmp.lt.s32.totalorder %s479, 7
        %s481 = scalar_select %p480, %s479, 7
        %s482 = smul.addr %s481, 2
        %s483 = smul.addr %s482, 8
        %s484 = scalar_lea.vmem %s1, %s483
      $region40: #{fp8_mlp_forward.7} parent=35 // pred_fallthru
        _
      // Predicated region
      $region41: #{fp8_mlp_forward.7} parent=35 // pred_check
        %p485 = pneg %p90
      $region42: #{fp8_mlp_forward.7} parent=35 // pred_check_branch
        %487 = sbr.rel (%p485) target = $region44
      $region43: #{fp8_mlp_forward.7} parent=35 // pred_region
        %p488 = scmp.lt.s32.totalorder %s15, 1
        %s489 = scalar_select %p488, %s15, 1
        %s490 = scalar_lea.vmem %s2, %s489
      $region44: #{fp8_mlp_forward.7} parent=35 // pred_fallthru
        _
    $region36: #{fp8_mlp_forward.7} parent=5 // pred_fallthru
      _
  $region6: #{fp8_mlp_forward.7} parent=0 // loop_footer
    %s13 = sadd.s32 1, %s9
  $region7: #{fp8_mlp_forward.7} parent=0 // loop_footer_branch
    %8 = sbr.rel target = $region3
  $region8: #{fp8_mlp_forward.7} parent=0 // loop_exit
    _

// kernel: fp8_mlp_forward.11
$region0: #{fp8_mlp_forward.11}
  #allocation0 [shape = 'u32[]', space=smem, size = 0x4, offset = 0x4, fixed_abs, tag = 'smem constant byte address 0x4 - core index']
  #allocation1 [shape = 'u32[144,128]{1,0:T(1,128)}', space=vmem, size = 0x12000, scoped, tag = 'internal scratch']
  #allocation2 [shape = 'f32[128,256]{1,0:T(8,128)}', space=vmem, size = 0x20000, scoped, tag = 'scratch operand']
  #allocation3 [shape = 'bf16[128,256]{1,0:T(8,128)(2,1)}', space=vmem, size = 0x10000, scoped, tag = 'scratch operand']
  #allocation4 [shape = 'bf16[256,256]{1,0:T(8,128)(2,1)}', space=vmem, size = 0x20000, scoped, tag = 'scratch operand']
  %s0 = inlined_call_operand.vmem [shape: f8e5m2[128,256], index: 0, kind: input, shape index: {}]
  %s1 = inlined_call_operand.vmem [shape: f8e5m2[256,256], index: 1, kind: input, shape index: {}]
  %s2 = inlined_call_operand.vmem [shape: f32[1,128,2], index: 2, kind: input, shape index: {}]
  %s3 = inlined_call_operand.vmem [shape: f32[1,256,2], index: 3, kind: input, shape index: {}]
  %s4 = inlined_call_operand.vmem [shape: bf16[128,256], index: 4, kind: output, shape index: {}]
  %s5 = sld [smem:[#allocation0]]
  $region34: #{fp8_mlp_forward.11} parent=0
    _
  %s7 = ssub.s32 1, %s5
  %s8 = scalar_select 0, %s7, %s5
  // Predicated region
  $region2: #{fp8_mlp_forward.11} parent=0 // pred_check
    _
  $region3: #{fp8_mlp_forward.11} parent=0 // pred_check_branch
    %10 = sbr.rel (0) target = $region5
  $region4: #{fp8_mlp_forward.11} parent=0 // pred_region
    _
  $region5: #{fp8_mlp_forward.11} parent=0 // pred_fallthru
    _
  // Predicated region
  $region6: #{fp8_mlp_forward.11} parent=0 // pred_check
    _
  $region7: #{fp8_mlp_forward.11} parent=0 // pred_check_branch
    %12 = sbr.rel (0) target = $region9
  $region8: #{fp8_mlp_forward.11} parent=0 // pred_region
    _
  $region9: #{fp8_mlp_forward.11} parent=0 // pred_fallthru
    _
  // Predicated region
  $region10: #{fp8_mlp_forward.11} parent=0 // pred_check
    _
  $region11: #{fp8_mlp_forward.11} parent=0 // pred_check_branch
    %14 = sbr.rel (0) target = $region13
  $region12: #{fp8_mlp_forward.11} parent=0 // pred_region
    _
  $region13: #{fp8_mlp_forward.11} parent=0 // pred_fallthru
    _
  // Predicated region
  $region14: #{fp8_mlp_forward.11} parent=0 // pred_check
    _
  $region15: #{fp8_mlp_forward.11} parent=0 // pred_check_branch
    %16 = sbr.rel (0) target = $region17
  $region16: #{fp8_mlp_forward.11} parent=0 // pred_region
    _
  $region17: #{fp8_mlp_forward.11} parent=0 // pred_fallthru
    _
  %p17 = scmp.eq.s32.totalorder 0, 0
  // Predicated region
  $region18: #{fp8_mlp_forward.11} parent=0 // pred_check
    %p18 = pneg %p17
  $region19: #{fp8_mlp_forward.11} parent=0 // pred_check_branch
    %20 = sbr.rel (%p18) target = $region21
  $region20: #{fp8_mlp_forward.11} parent=0 // pred_region
    %21 = vst [vmem:[#allocation2] sm:$0xff] 0.0
    %22 = vst [vmem:[#allocation2 + $0x8] sm:$0xff] 0.0
    %23 = vst [vmem:[#allocation2 + $0x10] sm:$0xff] 0.0
    %24 = vst [vmem:[#allocation2 + $0x18] sm:$0xff] 0.0
    %25 = vst [vmem:[#allocation2 + $0x20] sm:$0xff] 0.0
    %26 = vst [vmem:[#allocation2 + $0x28] sm:$0xff] 0.0
    %27 = vst [vmem:[#allocation2 + $0x30] sm:$0xff] 0.0
    %28 = vst [vmem:[#allocation2 + $0x38] sm:$0xff] 0.0
    %29 = vst [vmem:[#allocation2 + $0x40] sm:$0xff] 0.0
    %30 = vst [vmem:[#allocation2 + $0x48] sm:$0xff] 0.0
    %31 = vst [vmem:[#allocation2 + $0x50] sm:$0xff] 0.0
    %32 = vst [vmem:[#allocation2 + $0x58] sm:$0xff] 0.0
    %33 = vst [vmem:[#allocation2 + $0x60] sm:$0xff] 0.0
    %34 = vst [vmem:[#allocation2 + $0x68] sm:$0xff] 0.0
    %35 = vst [vmem:[#allocation2 + $0x70] sm:$0xff] 0.0
    %36 = vst [vmem:[#allocation2 + $0x78] sm:$0xff] 0.0
    %37 = vst [vmem:[#allocation2 + $0x80] sm:$0xff] 0.0
    %38 = vst [vmem:[#allocation2 + $0x88] sm:$0xff] 0.0
    %39 = vst [vmem:[#allocation2 + $0x90] sm:$0xff] 0.0
    %40 = vst [vmem:[#allocation2 + $0x98] sm:$0xff] 0.0
    %41 = vst [vmem:[#allocation2 + $0xa0] sm:$0xff] 0.0
    %42 = vst [vmem:[#allocation2 + $0xa8] sm:$0xff] 0.0
    %43 = vst [vmem:[#allocation2 + $0xb0] sm:$0xff] 0.0
    %44 = vst [vmem:[#allocation2 + $0xb8] sm:$0xff] 0.0
    %45 = vst [vmem:[#allocation2 + $0xc0] sm:$0xff] 0.0
    %46 = vst [vmem:[#allocation2 + $0xc8] sm:$0xff] 0.0
    %47 = vst [vmem:[#allocation2 + $0xd0] sm:$0xff] 0.0
    %48 = vst [vmem:[#allocation2 + $0xd8] sm:$0xff] 0.0
    %49 = vst [vmem:[#allocation2 + $0xe0] sm:$0xff] 0.0
    %50 = vst [vmem:[#allocation2 + $0xe8] sm:$0xff] 0.0
    %51 = vst [vmem:[#allocation2 + $0xf0] sm:$0xff] 0.0
    %52 = vst [vmem:[#allocation2 + $0xf8] sm:$0xff] 0.0
  $region21: #{fp8_mlp_forward.11} parent=0 // pred_fallthru
    _
  %v53 = vld [vmem:[%s2] sm:$0xff]
  %v54 = vld [vmem:[%s2 + $0x8] sm:$0xff]
  %v55 = vld [vmem:[%s2 + $0x10] sm:$0xff]
  %v56 = vld [vmem:[%s2 + $0x18] sm:$0xff]
  %v57 = vld [vmem:[%s2 + $0x20] sm:$0xff]
  %v58 = vld [vmem:[%s2 + $0x28] sm:$0xff]
  %v59 = vld [vmem:[%s2 + $0x30] sm:$0xff]
  %v60 = vld [vmem:[%s2 + $0x38] sm:$0xff]
  %v61 = vld [vmem:[%s2 + $0x40] sm:$0xff]
  %v62 = vld [vmem:[%s2 + $0x48] sm:$0xff]
  %v63 = vld [vmem:[%s2 + $0x50] sm:$0xff]
  %v64 = vld [vmem:[%s2 + $0x58] sm:$0xff]
  %v65 = vld [vmem:[%s2 + $0x60] sm:$0xff]
  %v66 = vld [vmem:[%s2 + $0x68] sm:$0xff]
  %v67 = vld [vmem:[%s2 + $0x70] sm:$0xff]
  %v68 = vld [vmem:[%s2 + $0x78] sm:$0xff]
  %v69 = vld [vmem:[%s3] sm:$0xff]
  %v70 = vld [vmem:[%s3 + $0x8] sm:$0xff]
  %v71 = vld [vmem:[%s3 + $0x10] sm:$0xff]
  %v72 = vld [vmem:[%s3 + $0x18] sm:$0xff]
  %v73 = vld [vmem:[%s3 + $0x20] sm:$0xff]
  %v74 = vld [vmem:[%s3 + $0x28] sm:$0xff]
  %v75 = vld [vmem:[%s3 + $0x30] sm:$0xff]
  %v76 = vld [vmem:[%s3 + $0x38] sm:$0xff]
  %v77 = vld [vmem:[%s3 + $0x40] sm:$0xff]
  %v78 = vld [vmem:[%s3 + $0x48] sm:$0xff]
  %v79 = vld [vmem:[%s3 + $0x50] sm:$0xff]
  %v80 = vld [vmem:[%s3 + $0x58] sm:$0xff]
  %v81 = vld [vmem:[%s3 + $0x60] sm:$0xff]
  %v82 = vld [vmem:[%s3 + $0x68] sm:$0xff]
  %v83 = vld [vmem:[%s3 + $0x70] sm:$0xff]
  %v84 = vld [vmem:[%s3 + $0x78] sm:$0xff]
  %v85 = vld [vmem:[%s3 + $0x80] sm:$0xff]
  %v86 = vld [vmem:[%s3 + $0x88] sm:$0xff]
  %v87 = vld [vmem:[%s3 + $0x90] sm:$0xff]
  %v88 = vld [vmem:[%s3 + $0x98] sm:$0xff]
  %v89 = vld [vmem:[%s3 + $0xa0] sm:$0xff]
  %v90 = vld [vmem:[%s3 + $0xa8] sm:$0xff]
  %v91 = vld [vmem:[%s3 + $0xb0] sm:$0xff]
  %v92 = vld [vmem:[%s3 + $0xb8] sm:$0xff]
  %v93 = vld [vmem:[%s3 + $0xc0] sm:$0xff]
  %v94 = vld [vmem:[%s3 + $0xc8] sm:$0xff]
  %v95 = vld [vmem:[%s3 + $0xd0] sm:$0xff]
  %v96 = vld [vmem:[%s3 + $0xd8] sm:$0xff]
  %v97 = vld [vmem:[%s3 + $0xe0] sm:$0xff]
  %v98 = vld [vmem:[%s3 + $0xe8] sm:$0xff]
  %v99 = vld [vmem:[%s3 + $0xf0] sm:$0xff]
  %v100 = vld [vmem:[%s3 + $0xf8] sm:$0xff]
  %v101 = vld [vmem:[%s0] sm:$0xff]
  %v102 = vld [vmem:[%s0 + $0x10] sm:$0xff]
  %v103 = vld [vmem:[%s0 + $0x20] sm:$0xff]
  %v104 = vld [vmem:[%s0 + $0x30] sm:$0xff]
  %v105 = vunpack.c.0.bf8 %v101
  %v106 = vunpack.c.1.bf8 %v101
  %v107 = vunpack.c.2.bf8 %v101
  %v108 = vunpack.c.3.bf8 %v101
  %v109 = vunpack.c.0.bf8 %v102
  %v110 = vunpack.c.1.bf8 %v102
  %v111 = vunpack.c.2.bf8 %v102
  %v112 = vunpack.c.3.bf8 %v102
  %v113 = vunpack.c.0.bf8 %v103
  %v114 = vunpack.c.1.bf8 %v103
  %v115 = vunpack.c.2.bf8 %v103
  %v116 = vunpack.c.3.bf8 %v103
  %v117 = vunpack.c.0.bf8 %v104
  %v118 = vunpack.c.1.bf8 %v104
  %v119 = vunpack.c.2.bf8 %v104
  %v120 = vunpack.c.3.bf8 %v104
  %v121 = vld [vmem:[%s1] sm:$0xff]
  %v122 = vld [vmem:[%s1 + $0x10] sm:$0xff]
  %v123 = vld [vmem:[%s1 + $0x20] sm:$0xff]
  %v124 = vld [vmem:[%s1 + $0x30] sm:$0xff]
  %v125 = vld [vmem:[%s1 + $0x40] sm:$0xff]
  %v126 = vld [vmem:[%s1 + $0x50] sm:$0xff]
  %v127 = vld [vmem:[%s1 + $0x60] sm:$0xff]
  %v128 = vld [vmem:[%s1 + $0x70] sm:$0xff]
  %v129 = vunpack.c.0.bf8 %v121
  %v130 = vunpack.c.1.bf8 %v121
  %v131 = vunpack.c.2.bf8 %v121
  %v132 = vunpack.c.3.bf8 %v121
  %v133 = vunpack.c.0.bf8 %v122
  %v134 = vunpack.c.1.bf8 %v122
  %v135 = vunpack.c.2.bf8 %v122
  %v136 = vunpack.c.3.bf8 %v122
  %v137 = vunpack.c.0.bf8 %v123
  %v138 = vunpack.c.1.bf8 %v123
  %v139 = vunpack.c.2.bf8 %v123
  %v140 = vunpack.c.3.bf8 %v123
  %v141 = vunpack.c.0.bf8 %v124
  %v142 = vunpack.c.1.bf8 %v124
  %v143 = vunpack.c.2.bf8 %v124
  %v144 = vunpack.c.3.bf8 %v124
  %v145 = vunpack.c.0.bf8 %v125
  %v146 = vunpack.c.1.bf8 %v125
  %v147 = vunpack.c.2.bf8 %v125
  %v148 = vunpack.c.3.bf8 %v125
  %v149 = vunpack.c.0.bf8 %v126
  %v150 = vunpack.c.1.bf8 %v126
  %v151 = vunpack.c.2.bf8 %v126
  %v152 = vunpack.c.3.bf8 %v126
  %v153 = vunpack.c.0.bf8 %v127
  %v154 = vunpack.c.1.bf8 %v127
  %v155 = vunpack.c.2.bf8 %v127
  %v156 = vunpack.c.3.bf8 %v127
  %v157 = vunpack.c.0.bf8 %v128
  %v158 = vunpack.c.1.bf8 %v128
  %v159 = vunpack.c.2.bf8 %v128
  %v160 = vunpack.c.3.bf8 %v128
  %162 = vset.pattern.permute.xlu0 0
  %163 = vperm.xlu0 %162, %v53
  %v164 = vpop.permute.xlu0 %163
  %167 = vset.pattern.permute.xlu0 0
  %168 = vperm.xlu0 %167, %v54
  %v169 = vpop.permute.xlu0 %168
  %172 = vset.pattern.permute.xlu0 0
  %173 = vperm.xlu0 %172, %v55
  %v174 = vpop.permute.xlu0 %173
  %177 = vset.pattern.permute.xlu0 0
  %178 = vperm.xlu0 %177, %v56
  %v179 = vpop.permute.xlu0 %178
  %182 = vset.pattern.permute.xlu0 0
  %183 = vperm.xlu0 %182, %v57
  %v184 = vpop.permute.xlu0 %183
  %187 = vset.pattern.permute.xlu0 0
  %188 = vperm.xlu0 %187, %v58
  %v189 = vpop.permute.xlu0 %188
  %192 = vset.pattern.permute.xlu0 0
  %193 = vperm.xlu0 %192, %v59
  %v194 = vpop.permute.xlu0 %193
  %197 = vset.pattern.permute.xlu0 0
  %198 = vperm.xlu0 %197, %v60
  %v199 = vpop.permute.xlu0 %198
  %202 = vset.pattern.permute.xlu0 0
  %203 = vperm.xlu0 %202, %v61
  %v204 = vpop.permute.xlu0 %203
  %207 = vset.pattern.permute.xlu0 0
  %208 = vperm.xlu0 %207, %v62
  %v209 = vpop.permute.xlu0 %208
  %212 = vset.pattern.permute.xlu0 0
  %213 = vperm.xlu0 %212, %v63
  %v214 = vpop.permute.xlu0 %213
  %217 = vset.pattern.permute.xlu0 0
  %218 = vperm.xlu0 %217, %v64
  %v219 = vpop.permute.xlu0 %218
  %222 = vset.pattern.permute.xlu0 0
  %223 = vperm.xlu0 %222, %v65
  %v224 = vpop.permute.xlu0 %223
  %227 = vset.pattern.permute.xlu0 0
  %228 = vperm.xlu0 %227, %v66
  %v229 = vpop.permute.xlu0 %228
  %232 = vset.pattern.permute.xlu0 0
  %233 = vperm.xlu0 %232, %v67
  %v234 = vpop.permute.xlu0 %233
  %237 = vset.pattern.permute.xlu0 0
  %238 = vperm.xlu0 %237, %v68
  %v239 = vpop.permute.xlu0 %238
  %v241 = vmul.f32 %v105, %v164
  %v242 = vmul.f32 %v106, %v169
  %v243 = vmul.f32 %v107, %v174
  %v244 = vmul.f32 %v108, %v179
  %v245 = vmul.f32 %v109, %v184
  %v246 = vmul.f32 %v110, %v189
  %v247 = vmul.f32 %v111, %v194
  %v248 = vmul.f32 %v112, %v199
  %v249 = vmul.f32 %v113, %v204
  %v250 = vmul.f32 %v114, %v209
  %v251 = vmul.f32 %v115, %v214
  %v252 = vmul.f32 %v116, %v219
  %v253 = vmul.f32 %v117, %v224
  %v254 = vmul.f32 %v118, %v229
  %v255 = vmul.f32 %v119, %v234
  %v256 = vmul.f32 %v120, %v239
  %v257 = vpack.c.bf16 %v242, %v241
  %v258 = vpack.c.bf16 %v244, %v243
  %v259 = vpack.c.bf16 %v246, %v245
  %v260 = vpack.c.bf16 %v248, %v247
  %v261 = vpack.c.bf16 %v250, %v249
  %v262 = vpack.c.bf16 %v252, %v251
  %v263 = vpack.c.bf16 %v254, %v253
  %v264 = vpack.c.bf16 %v256, %v255
  %v273 = vunpack.c.l.b16 %v257
  %v274 = vunpack.c.h.b16 %v257
  %v275 = vunpack.c.l.b16 %v258
  %v276 = vunpack.c.h.b16 %v258
  %v277 = vunpack.c.l.b16 %v259
  %v278 = vunpack.c.h.b16 %v259
  %v279 = vunpack.c.l.b16 %v260
  %v280 = vunpack.c.h.b16 %v260
  %v281 = vunpack.c.l.b16 %v261
  %v282 = vunpack.c.h.b16 %v261
  %v283 = vunpack.c.l.b16 %v262
  %v284 = vunpack.c.h.b16 %v262
  %v285 = vunpack.c.l.b16 %v263
  %v286 = vunpack.c.h.b16 %v263
  %v287 = vunpack.c.l.b16 %v264
  %v288 = vunpack.c.h.b16 %v264
  %v289 = vpack.c.b16 %v273, %v273
  %v290 = vpack.c.b16 %v274, %v274
  %v291 = vpack.c.b16 %v275, %v275
  %v292 = vpack.c.b16 %v276, %v276
  %v293 = vpack.c.b16 %v277, %v277
  %v294 = vpack.c.b16 %v278, %v278
  %v295 = vpack.c.b16 %v279, %v279
  %v296 = vpack.c.b16 %v280, %v280
  %v297 = vpack.c.b16 %v281, %v281
  %v298 = vpack.c.b16 %v282, %v282
  %v299 = vpack.c.b16 %v283, %v283
  %v300 = vpack.c.b16 %v284, %v284
  %v301 = vpack.c.b16 %v285, %v285
  %v302 = vpack.c.b16 %v286, %v286
  %v303 = vpack.c.b16 %v287, %v287
  %v304 = vpack.c.b16 %v288, %v288
  %321 = vst [vmem:[#allocation3] sm:$0xf] %v289
  %322 = vst [vmem:[#allocation3 + $0x8] sm:$0xf] %v290
  %323 = vst [vmem:[#allocation3 + $0x10] sm:$0xf] %v291
  %324 = vst [vmem:[#allocation3 + $0x18] sm:$0xf] %v292
  %325 = vst [vmem:[#allocation3 + $0x20] sm:$0xf] %v293
  %326 = vst [vmem:[#allocation3 + $0x28] sm:$0xf] %v294
  %327 = vst [vmem:[#allocation3 + $0x30] sm:$0xf] %v295
  %328 = vst [vmem:[#allocation3 + $0x38] sm:$0xf] %v296
  %329 = vst [vmem:[#allocation3 + $0x40] sm:$0xf] %v297
  %330 = vst [vmem:[#allocation3 + $0x48] sm:$0xf] %v298
  %331 = vst [vmem:[#allocation3 + $0x50] sm:$0xf] %v299
  %332 = vst [vmem:[#allocation3 + $0x58] sm:$0xf] %v300
  %333 = vst [vmem:[#allocation3 + $0x60] sm:$0xf] %v301
  %334 = vst [vmem:[#allocation3 + $0x68] sm:$0xf] %v302
  %335 = vst [vmem:[#allocation3 + $0x70] sm:$0xf] %v303
  %336 = vst [vmem:[#allocation3 + $0x78] sm:$0xf] %v304
  %338 = vset.pattern.permute.xlu0 0
  %339 = vperm.xlu0 %338, %v69
  %v340 = vpop.permute.xlu0 %339
  %343 = vset.pattern.permute.xlu0 0
  %344 = vperm.xlu0 %343, %v70
  %v345 = vpop.permute.xlu0 %344
  %348 = vset.pattern.permute.xlu0 0
  %349 = vperm.xlu0 %348, %v71
  %v350 = vpop.permute.xlu0 %349
  %353 = vset.pattern.permute.xlu0 0
  %354 = vperm.xlu0 %353, %v72
  %v355 = vpop.permute.xlu0 %354
  %358 = vset.pattern.permute.xlu0 0
  %359 = vperm.xlu0 %358, %v73
  %v360 = vpop.permute.xlu0 %359
  %363 = vset.pattern.permute.xlu0 0
  %364 = vperm.xlu0 %363, %v74
  %v365 = vpop.permute.xlu0 %364
  %368 = vset.pattern.permute.xlu0 0
  %369 = vperm.xlu0 %368, %v75
  %v370 = vpop.permute.xlu0 %369
  %373 = vset.pattern.permute.xlu0 0
  %374 = vperm.xlu0 %373, %v76
  %v375 = vpop.permute.xlu0 %374
  %378 = vset.pattern.permute.xlu0 0
  %379 = vperm.xlu0 %378, %v77
  %v380 = vpop.permute.xlu0 %379
  %383 = vset.pattern.permute.xlu0 0
  %384 = vperm.xlu0 %383, %v78
  %v385 = vpop.permute.xlu0 %384
  %388 = vset.pattern.permute.xlu0 0
  %389 = vperm.xlu0 %388, %v79
  %v390 = vpop.permute.xlu0 %389
  %393 = vset.pattern.permute.xlu0 0
  %394 = vperm.xlu0 %393, %v80
  %v395 = vpop.permute.xlu0 %394
  %398 = vset.pattern.permute.xlu0 0
  %399 = vperm.xlu0 %398, %v81
  %v400 = vpop.permute.xlu0 %399
  %403 = vset.pattern.permute.xlu0 0
  %404 = vperm.xlu0 %403, %v82
  %v405 = vpop.permute.xlu0 %404
  %408 = vset.pattern.permute.xlu0 0
  %409 = vperm.xlu0 %408, %v83
  %v410 = vpop.permute.xlu0 %409
  %413 = vset.pattern.permute.xlu0 0
  %414 = vperm.xlu0 %413, %v84
  %v415 = vpop.permute.xlu0 %414
  %418 = vset.pattern.permute.xlu0 0
  %419 = vperm.xlu0 %418, %v85
  %v420 = vpop.permute.xlu0 %419
  %423 = vset.pattern.permute.xlu0 0
  %424 = vperm.xlu0 %423, %v86
  %v425 = vpop.permute.xlu0 %424
  %428 = vset.pattern.permute.xlu0 0
  %429 = vperm.xlu0 %428, %v87
  %v430 = vpop.permute.xlu0 %429
  %433 = vset.pattern.permute.xlu0 0
  %434 = vperm.xlu0 %433, %v88
  %v435 = vpop.permute.xlu0 %434
  %438 = vset.pattern.permute.xlu0 0
  %439 = vperm.xlu0 %438, %v89
  %v440 = vpop.permute.xlu0 %439
  %443 = vset.pattern.permute.xlu0 0
  %444 = vperm.xlu0 %443, %v90
  %v445 = vpop.permute.xlu0 %444
  %448 = vset.pattern.permute.xlu0 0
  %449 = vperm.xlu0 %448, %v91
  %v450 = vpop.permute.xlu0 %449
  %453 = vset.pattern.permute.xlu0 0
  %454 = vperm.xlu0 %453, %v92
  %v455 = vpop.permute.xlu0 %454
  %458 = vset.pattern.permute.xlu0 0
  %459 = vperm.xlu0 %458, %v93
  %v460 = vpop.permute.xlu0 %459
  %463 = vset.pattern.permute.xlu0 0
  %464 = vperm.xlu0 %463, %v94
  %v465 = vpop.permute.xlu0 %464
  %468 = vset.pattern.permute.xlu0 0
  %469 = vperm.xlu0 %468, %v95
  %v470 = vpop.permute.xlu0 %469
  %473 = vset.pattern.permute.xlu0 0
  %474 = vperm.xlu0 %473, %v96
  %v475 = vpop.permute.xlu0 %474
  %478 = vset.pattern.permute.xlu0 0
  %479 = vperm.xlu0 %478, %v97
  %v480 = vpop.permute.xlu0 %479
  %483 = vset.pattern.permute.xlu0 0
  %484 = vperm.xlu0 %483, %v98
  %v485 = vpop.permute.xlu0 %484
  %488 = vset.pattern.permute.xlu0 0
  %489 = vperm.xlu0 %488, %v99
  %v490 = vpop.permute.xlu0 %489
  %493 = vset.pattern.permute.xlu0 0
  %494 = vperm.xlu0 %493, %v100
  %v495 = vpop.permute.xlu0 %494
  %v497 = vmul.f32 %v129, %v340
  %v498 = vmul.f32 %v130, %v345
  %v499 = vmul.f32 %v131, %v350
  %v500 = vmul.f32 %v132, %v355
  %v501 = vmul.f32 %v133, %v360
  %v502 = vmul.f32 %v134, %v365
  %v503 = vmul.f32 %v135, %v370
  %v504 = vmul.f32 %v136, %v375
  %v505 = vmul.f32 %v137, %v380
  %v506 = vmul.f32 %v138, %v385
  %v507 = vmul.f32 %v139, %v390
  %v508 = vmul.f32 %v140, %v395
  %v509 = vmul.f32 %v141, %v400
  %v510 = vmul.f32 %v142, %v405
  %v511 = vmul.f32 %v143, %v410
  %v512 = vmul.f32 %v144, %v415
  %v513 = vmul.f32 %v145, %v420
  %v514 = vmul.f32 %v146, %v425
  %v515 = vmul.f32 %v147, %v430
  %v516 = vmul.f32 %v148, %v435
  %v517 = vmul.f32 %v149, %v440
  %v518 = vmul.f32 %v150, %v445
  %v519 = vmul.f32 %v151, %v450
  %v520 = vmul.f32 %v152, %v455
  %v521 = vmul.f32 %v153, %v460
  %v522 = vmul.f32 %v154, %v465
  %v523 = vmul.f32 %v155, %v470
  %v524 = vmul.f32 %v156, %v475
  %v525 = vmul.f32 %v157, %v480
  %v526 = vmul.f32 %v158, %v485
  %v527 = vmul.f32 %v159, %v490
  %v528 = vmul.f32 %v160, %v495
  %v529 = vpack.c.bf16 %v498, %v497
  %v530 = vpack.c.bf16 %v500, %v499
  %v531 = vpack.c.bf16 %v502, %v501
  %v532 = vpack.c.bf16 %v504, %v503
  %v533 = vpack.c.bf16 %v506, %v505
  %v534 = vpack.c.bf16 %v508, %v507
  %v535 = vpack.c.bf16 %v510, %v509
  %v536 = vpack.c.bf16 %v512, %v511
  %v537 = vpack.c.bf16 %v514, %v513
  %v538 = vpack.c.bf16 %v516, %v515
  %v539 = vpack.c.bf16 %v518, %v517
  %v540 = vpack.c.bf16 %v520, %v519
  %v541 = vpack.c.bf16 %v522, %v521
  %v542 = vpack.c.bf16 %v524, %v523
  %v543 = vpack.c.bf16 %v526, %v525
  %v544 = vpack.c.bf16 %v528, %v527
  %v561 = vunpack.c.l.b16 %v529
  %v562 = vunpack.c.h.b16 %v529
  %v563 = vunpack.c.l.b16 %v530
  %v564 = vunpack.c.h.b16 %v530
  %v565 = vunpack.c.l.b16 %v531
  %v566 = vunpack.c.h.b16 %v531
  %v567 = vunpack.c.l.b16 %v532
  %v568 = vunpack.c.h.b16 %v532
  %v569 = vunpack.c.l.b16 %v533
  %v570 = vunpack.c.h.b16 %v533
  %v571 = vunpack.c.l.b16 %v534
  %v572 = vunpack.c.h.b16 %v534
  %v573 = vunpack.c.l.b16 %v535
  %v574 = vunpack.c.h.b16 %v535
  %v575 = vunpack.c.l.b16 %v536
  %v576 = vunpack.c.h.b16 %v536
  %v577 = vunpack.c.l.b16 %v537
  %v578 = vunpack.c.h.b16 %v537
  %v579 = vunpack.c.l.b16 %v538
  %v580 = vunpack.c.h.b16 %v538
  %v581 = vunpack.c.l.b16 %v539
  %v582 = vunpack.c.h.b16 %v539
  %v583 = vunpack.c.l.b16 %v540
  %v584 = vunpack.c.h.b16 %v540
  %v585 = vunpack.c.l.b16 %v541
  %v586 = vunpack.c.h.b16 %v541
  %v587 = vunpack.c.l.b16 %v542
  %v588 = vunpack.c.h.b16 %v542
  %v589 = vunpack.c.l.b16 %v543
  %v590 = vunpack.c.h.b16 %v543
  %v591 = vunpack.c.l.b16 %v544
  %v592 = vunpack.c.h.b16 %v544
  %v593 = vpack.c.b16 %v561, %v561
  %v594 = vpack.c.b16 %v562, %v562
  %v595 = vpack.c.b16 %v563, %v563
  %v596 = vpack.c.b16 %v564, %v564
  %v597 = vpack.c.b16 %v565, %v565
  %v598 = vpack.c.b16 %v566, %v566
  %v599 = vpack.c.b16 %v567, %v567
  %v600 = vpack.c.b16 %v568, %v568
  %v601 = vpack.c.b16 %v569, %v569
  %v602 = vpack.c.b16 %v570, %v570
  %v603 = vpack.c.b16 %v571, %v571
  %v604 = vpack.c.b16 %v572, %v572
  %v605 = vpack.c.b16 %v573, %v573
  %v606 = vpack.c.b16 %v574, %v574
  %v607 = vpack.c.b16 %v575, %v575
  %v608 = vpack.c.b16 %v576, %v576
  %v609 = vpack.c.b16 %v577, %v577
  %v610 = vpack.c.b16 %v578, %v578
  %v611 = vpack.c.b16 %v579, %v579
  %v612 = vpack.c.b16 %v580, %v580
  %v613 = vpack.c.b16 %v581, %v581
  %v614 = vpack.c.b16 %v582, %v582
  %v615 = vpack.c.b16 %v583, %v583
  %v616 = vpack.c.b16 %v584, %v584
  %v617 = vpack.c.b16 %v585, %v585
  %v618 = vpack.c.b16 %v586, %v586
  %v619 = vpack.c.b16 %v587, %v587
  %v620 = vpack.c.b16 %v588, %v588
  %v621 = vpack.c.b16 %v589, %v589
  %v622 = vpack.c.b16 %v590, %v590
  %v623 = vpack.c.b16 %v591, %v591
  %v624 = vpack.c.b16 %v592, %v592
  %657 = vst [vmem:[#allocation4] sm:$0xf] %v593
  %658 = vst [vmem:[#allocation4 + $0x8] sm:$0xf] %v594
  %659 = vst [vmem:[#allocation4 + $0x10] sm:$0xf] %v595
  %660 = vst [vmem:[#allocation4 + $0x18] sm:$0xf] %v596
  %661 = vst [vmem:[#allocation4 + $0x20] sm:$0xf] %v597
  %662 = vst [vmem:[#allocation4 + $0x28] sm:$0xf] %v598
  %663 = vst [vmem:[#allocation4 + $0x30] sm:$0xf] %v599
  %664 = vst [vmem:[#allocation4 + $0x38] sm:$0xf] %v600
  %665 = vst [vmem:[#allocation4 + $0x40] sm:$0xf] %v601
  %666 = vst [vmem:[#allocation4 + $0x48] sm:$0xf] %v602
  %667 = vst [vmem:[#allocation4 + $0x50] sm:$0xf] %v603
  %668 = vst [vmem:[#allocation4 + $0x58] sm:$0xf] %v604
  %669 = vst [vmem:[#allocation4 + $0x60] sm:$0xf] %v605
  %670 = vst [vmem:[#allocation4 + $0x68] sm:$0xf] %v606
  %671 = vst [vmem:[#allocation4 + $0x70] sm:$0xf] %v607
  %672 = vst [vmem:[#allocation4 + $0x78] sm:$0xf] %v608
  %673 = vst [vmem:[#allocation4 + $0x80] sm:$0xf] %v609
  %674 = vst [vmem:[#allocation4 + $0x88] sm:$0xf] %v610
  %675 = vst [vmem:[#allocation4 + $0x90] sm:$0xf] %v611
  %676 = vst [vmem:[#allocation4 + $0x98] sm:$0xf] %v612
  %677 = vst [vmem:[#allocation4 + $0xa0] sm:$0xf] %v613
  %678 = vst [vmem:[#allocation4 + $0xa8] sm:$0xf] %v614
  %679 = vst [vmem:[#allocation4 + $0xb0] sm:$0xf] %v615
  %680 = vst [vmem:[#allocation4 + $0xb8] sm:$0xf] %v616
  %681 = vst [vmem:[#allocation4 + $0xc0] sm:$0xf] %v617
  %682 = vst [vmem:[#allocation4 + $0xc8] sm:$0xf] %v618
  %683 = vst [vmem:[#allocation4 + $0xd0] sm:$0xf] %v619
  %684 = vst [vmem:[#allocation4 + $0xd8] sm:$0xf] %v620
  %685 = vst [vmem:[#allocation4 + $0xe0] sm:$0xf] %v621
  %686 = vst [vmem:[#allocation4 + $0xe8] sm:$0xf] %v622
  %687 = vst [vmem:[#allocation4 + $0xf0] sm:$0xf] %v623
  %688 = vst [vmem:[#allocation4 + $0xf8] sm:$0xf] %v624
  %v689 = vld [vmem:[%s0 + $0x8] sm:$0xff]
  %v690 = vld [vmem:[%s0 + $0x18] sm:$0xff]
  %v691 = vld [vmem:[%s0 + $0x28] sm:$0xff]
  %v692 = vld [vmem:[%s0 + $0x38] sm:$0xff]
  %v693 = vunpack.c.0.bf8 %v689
  %v694 = vunpack.c.1.bf8 %v689
  %v695 = vunpack.c.2.bf8 %v689
  %v696 = vunpack.c.3.bf8 %v689
  %v697 = vunpack.c.0.bf8 %v690
  %v698 = vunpack.c.1.bf8 %v690
  %v699 = vunpack.c.2.bf8 %v690
  %v700 = vunpack.c.3.bf8 %v690
  %v701 = vunpack.c.0.bf8 %v691
  %v702 = vunpack.c.1.bf8 %v691
  %v703 = vunpack.c.2.bf8 %v691
  %v704 = vunpack.c.3.bf8 %v691
  %v705 = vunpack.c.0.bf8 %v692
  %v706 = vunpack.c.1.bf8 %v692
  %v707 = vunpack.c.2.bf8 %v692
  %v708 = vunpack.c.3.bf8 %v692
  %v709 = vld [vmem:[%s1 + $0x8] sm:$0xff]
  %v710 = vld [vmem:[%s1 + $0x18] sm:$0xff]
  %v711 = vld [vmem:[%s1 + $0x28] sm:$0xff]
  %v712 = vld [vmem:[%s1 + $0x38] sm:$0xff]
  %v713 = vld [vmem:[%s1 + $0x48] sm:$0xff]
  %v714 = vld [vmem:[%s1 + $0x58] sm:$0xff]
  %v715 = vld [vmem:[%s1 + $0x68] sm:$0xff]
  %v716 = vld [vmem:[%s1 + $0x78] sm:$0xff]
  %v717 = vunpack.c.0.bf8 %v709
  %v718 = vunpack.c.1.bf8 %v709
  %v719 = vunpack.c.2.bf8 %v709
  %v720 = vunpack.c.3.bf8 %v709
  %v721 = vunpack.c.0.bf8 %v710
  %v722 = vunpack.c.1.bf8 %v710
  %v723 = vunpack.c.2.bf8 %v710
  %v724 = vunpack.c.3.bf8 %v710
  %v725 = vunpack.c.0.bf8 %v711
  %v726 = vunpack.c.1.bf8 %v711
  %v727 = vunpack.c.2.bf8 %v711
  %v728 = vunpack.c.3.bf8 %v711
  %v729 = vunpack.c.0.bf8 %v712
  %v730 = vunpack.c.1.bf8 %v712
  %v731 = vunpack.c.2.bf8 %v712
  %v732 = vunpack.c.3.bf8 %v712
  %v733 = vunpack.c.0.bf8 %v713
  %v734 = vunpack.c.1.bf8 %v713
  %v735 = vunpack.c.2.bf8 %v713
  %v736 = vunpack.c.3.bf8 %v713
  %v737 = vunpack.c.0.bf8 %v714
  %v738 = vunpack.c.1.bf8 %v714
  %v739 = vunpack.c.2.bf8 %v714
  %v740 = vunpack.c.3.bf8 %v714
  %v741 = vunpack.c.0.bf8 %v715
  %v742 = vunpack.c.1.bf8 %v715
  %v743 = vunpack.c.2.bf8 %v715
  %v744 = vunpack.c.3.bf8 %v715
  %v745 = vunpack.c.0.bf8 %v716
  %v746 = vunpack.c.1.bf8 %v716
  %v747 = vunpack.c.2.bf8 %v716
  %v748 = vunpack.c.3.bf8 %v716
  %749 = vset.pattern.permute.xlu0 1
  %750 = vperm.xlu0 %749, %v53
  %v751 = vpop.permute.xlu0 %750
  %753 = vset.pattern.permute.xlu0 1
  %754 = vperm.xlu0 %753, %v54
  %v755 = vpop.permute.xlu0 %754
  %757 = vset.pattern.permute.xlu0 1
  %758 = vperm.xlu0 %757, %v55
  %v759 = vpop.permute.xlu0 %758
  %761 = vset.pattern.permute.xlu0 1
  %762 = vperm.xlu0 %761, %v56
  %v763 = vpop.permute.xlu0 %762
  %765 = vset.pattern.permute.xlu0 1
  %766 = vperm.xlu0 %765, %v57
  %v767 = vpop.permute.xlu0 %766
  %769 = vset.pattern.permute.xlu0 1
  %770 = vperm.xlu0 %769, %v58
  %v771 = vpop.permute.xlu0 %770
  %773 = vset.pattern.permute.xlu0 1
  %774 = vperm.xlu0 %773, %v59
  %v775 = vpop.permute.xlu0 %774
  %777 = vset.pattern.permute.xlu0 1
  %778 = vperm.xlu0 %777, %v60
  %v779 = vpop.permute.xlu0 %778
  %781 = vset.pattern.permute.xlu0 1
  %782 = vperm.xlu0 %781, %v61
  %v783 = vpop.permute.xlu0 %782
  %785 = vset.pattern.permute.xlu0 1
  %786 = vperm.xlu0 %785, %v62
  %v787 = vpop.permute.xlu0 %786
  %789 = vset.pattern.permute.xlu0 1
  %790 = vperm.xlu0 %789, %v63
  %v791 = vpop.permute.xlu0 %790
  %793 = vset.pattern.permute.xlu0 1
  %794 = vperm.xlu0 %793, %v64
  %v795 = vpop.permute.xlu0 %794
  %797 = vset.pattern.permute.xlu0 1
  %798 = vperm.xlu0 %797, %v65
  %v799 = vpop.permute.xlu0 %798
  %801 = vset.pattern.permute.xlu0 1
  %802 = vperm.xlu0 %801, %v66
  %v803 = vpop.permute.xlu0 %802
  %805 = vset.pattern.permute.xlu0 1
  %806 = vperm.xlu0 %805, %v67
  %v807 = vpop.permute.xlu0 %806
  %809 = vset.pattern.permute.xlu0 1
  %810 = vperm.xlu0 %809, %v68
  %v811 = vpop.permute.xlu0 %810
  %v813 = vmul.f32 %v693, %v751
  %v814 = vmul.f32 %v694, %v755
  %v815 = vmul.f32 %v695, %v759
  %v816 = vmul.f32 %v696, %v763
  %v817 = vmul.f32 %v697, %v767
  %v818 = vmul.f32 %v698, %v771
  %v819 = vmul.f32 %v699, %v775
  %v820 = vmul.f32 %v700, %v779
  %v821 = vmul.f32 %v701, %v783
  %v822 = vmul.f32 %v702, %v787
  %v823 = vmul.f32 %v703, %v791
  %v824 = vmul.f32 %v704, %v795
  %v825 = vmul.f32 %v705, %v799
  %v826 = vmul.f32 %v706, %v803
  %v827 = vmul.f32 %v707, %v807
  %v828 = vmul.f32 %v708, %v811
  %v829 = vpack.c.bf16 %v814, %v813
  %v830 = vpack.c.bf16 %v816, %v815
  %v831 = vpack.c.bf16 %v818, %v817
  %v832 = vpack.c.bf16 %v820, %v819
  %v833 = vpack.c.bf16 %v822, %v821
  %v834 = vpack.c.bf16 %v824, %v823
  %v835 = vpack.c.bf16 %v826, %v825
  %v836 = vpack.c.bf16 %v828, %v827
  %v845 = vunpack.c.l.b16 %v829
  %v846 = vunpack.c.h.b16 %v829
  %v847 = vunpack.c.l.b16 %v830
  %v848 = vunpack.c.h.b16 %v830
  %v849 = vunpack.c.l.b16 %v831
  %v850 = vunpack.c.h.b16 %v831
  %v851 = vunpack.c.l.b16 %v832
  %v852 = vunpack.c.h.b16 %v832
  %v853 = vunpack.c.l.b16 %v833
  %v854 = vunpack.c.h.b16 %v833
  %v855 = vunpack.c.l.b16 %v834
  %v856 = vunpack.c.h.b16 %v834
  %v857 = vunpack.c.l.b16 %v835
  %v858 = vunpack.c.h.b16 %v835
  %v859 = vunpack.c.l.b16 %v836
  %v860 = vunpack.c.h.b16 %v836
  %v861 = vpack.c.b16 %v845, %v845
  %v862 = vpack.c.b16 %v846, %v846
  %v863 = vpack.c.b16 %v847, %v847
  %v864 = vpack.c.b16 %v848, %v848
  %v865 = vpack.c.b16 %v849, %v849
  %v866 = vpack.c.b16 %v850, %v850
  %v867 = vpack.c.b16 %v851, %v851
  %v868 = vpack.c.b16 %v852, %v852
  %v869 = vpack.c.b16 %v853, %v853
  %v870 = vpack.c.b16 %v854, %v854
  %v871 = vpack.c.b16 %v855, %v855
  %v872 = vpack.c.b16 %v856, %v856
  %v873 = vpack.c.b16 %v857, %v857
  %v874 = vpack.c.b16 %v858, %v858
  %v875 = vpack.c.b16 %v859, %v859
  %v876 = vpack.c.b16 %v860, %v860
  %893 = vst [vmem:[#allocation3 + $0x4] sm:$0xf] %v861
  %894 = vst [vmem:[#allocation3 + $0xc] sm:$0xf] %v862
  %895 = vst [vmem:[#allocation3 + $0x14] sm:$0xf] %v863
  %896 = vst [vmem:[#allocation3 + $0x1c] sm:$0xf] %v864
  %897 = vst [vmem:[#allocation3 + $0x24] sm:$0xf] %v865
  %898 = vst [vmem:[#allocation3 + $0x2c] sm:$0xf] %v866
  %899 = vst [vmem:[#allocation3 + $0x34] sm:$0xf] %v867
  %900 = vst [vmem:[#allocation3 + $0x3c] sm:$0xf] %v868
  %901 = vst [vmem:[#allocation3 + $0x44] sm:$0xf] %v869
  %902 = vst [vmem:[#allocation3 + $0x4c] sm:$0xf] %v870
  %903 = vst [vmem:[#allocation3 + $0x54] sm:$0xf] %v871
  %904 = vst [vmem:[#allocation3 + $0x5c] sm:$0xf] %v872
  %905 = vst [vmem:[#allocation3 + $0x64] sm:$0xf] %v873
  %906 = vst [vmem:[#allocation3 + $0x6c] sm:$0xf] %v874
  %907 = vst [vmem:[#allocation3 + $0x74] sm:$0xf] %v875
  %908 = vst [vmem:[#allocation3 + $0x7c] sm:$0xf] %v876
  %909 = vset.pattern.permute.xlu0 1
  %910 = vperm.xlu0 %909, %v69
  %v911 = vpop.permute.xlu0 %910
  %913 = vset.pattern.permute.xlu0 1
  %914 = vperm.xlu0 %913, %v70
  %v915 = vpop.permute.xlu0 %914
  %917 = vset.pattern.permute.xlu0 1
  %918 = vperm.xlu0 %917, %v71
  %v919 = vpop.permute.xlu0 %918
  %921 = vset.pattern.permute.xlu0 1
  %922 = vperm.xlu0 %921, %v72
  %v923 = vpop.permute.xlu0 %922
  %925 = vset.pattern.permute.xlu0 1
  %926 = vperm.xlu0 %925, %v73
  %v927 = vpop.permute.xlu0 %926
  %929 = vset.pattern.permute.xlu0 1
  %930 = vperm.xlu0 %929, %v74
  %v931 = vpop.permute.xlu0 %930
  %933 = vset.pattern.permute.xlu0 1
  %934 = vperm.xlu0 %933, %v75
  %v935 = vpop.permute.xlu0 %934
  %937 = vset.pattern.permute.xlu0 1
  %938 = vperm.xlu0 %937, %v76
  %v939 = vpop.permute.xlu0 %938
  %941 = vset.pattern.permute.xlu0 1
  %942 = vperm.xlu0 %941, %v77
  %v943 = vpop.permute.xlu0 %942
  %945 = vset.pattern.permute.xlu0 1
  %946 = vperm.xlu0 %945, %v78
  %v947 = vpop.permute.xlu0 %946
  %949 = vset.pattern.permute.xlu0 1
  %950 = vperm.xlu0 %949, %v79
  %v951 = vpop.permute.xlu0 %950
  %953 = vset.pattern.permute.xlu0 1
  %954 = vperm.xlu0 %953, %v80
  %v955 = vpop.permute.xlu0 %954
  %957 = vset.pattern.permute.xlu0 1
  %958 = vperm.xlu0 %957, %v81
  %v959 = vpop.permute.xlu0 %958
  %961 = vset.pattern.permute.xlu0 1
  %962 = vperm.xlu0 %961, %v82
  %v963 = vpop.permute.xlu0 %962
  %965 = vset.pattern.permute.xlu0 1
  %966 = vperm.xlu0 %965, %v83
  %v967 = vpop.permute.xlu0 %966
  %969 = vset.pattern.permute.xlu0 1
  %970 = vperm.xlu0 %969, %v84
  %v971 = vpop.permute.xlu0 %970
  %973 = vset.pattern.permute.xlu0 1
  %974 = vperm.xlu0 %973, %v85
  %v975 = vpop.permute.xlu0 %974
  %977 = vset.pattern.permute.xlu0 1
  %978 = vperm.xlu0 %977, %v86
  %v979 = vpop.permute.xlu0 %978
  %981 = vset.pattern.permute.xlu0 1
  %982 = vperm.xlu0 %981, %v87
  %v983 = vpop.permute.xlu0 %982
  %985 = vset.pattern.permute.xlu0 1
  %986 = vperm.xlu0 %985, %v88
  %v987 = vpop.permute.xlu0 %986
  %989 = vset.pattern.permute.xlu0 1
  %990 = vperm.xlu0 %989, %v89
  %v991 = vpop.permute.xlu0 %990
  %993 = vset.pattern.permute.xlu0 1
  %994 = vperm.xlu0 %993, %v90
  %v995 = vpop.permute.xlu0 %994
  %997 = vset.pattern.permute.xlu0 1
  %998 = vperm.xlu0 %997, %v91
  %v999 = vpop.permute.xlu0 %998
  %1001 = vset.pattern.permute.xlu0 1
  %1002 = vperm.xlu0 %1001, %v92
  %v1003 = vpop.permute.xlu0 %1002
  %1005 = vset.pattern.permute.xlu0 1
  %1006 = vperm.xlu0 %1005, %v93
  %v1007 = vpop.permute.xlu0 %1006
  %1009 = vset.pattern.permute.xlu0 1
  %1010 = vperm.xlu0 %1009, %v94
  %v1011 = vpop.permute.xlu0 %1010
  %1013 = vset.pattern.permute.xlu0 1
  %1014 = vperm.xlu0 %1013, %v95
  %v1015 = vpop.permute.xlu0 %1014
  %1017 = vset.pattern.permute.xlu0 1
  %1018 = vperm.xlu0 %1017, %v96
  %v1019 = vpop.permute.xlu0 %1018
  %1021 = vset.pattern.permute.xlu0 1
  %1022 = vperm.xlu0 %1021, %v97
  %v1023 = vpop.permute.xlu0 %1022
  %1025 = vset.pattern.permute.xlu0 1
  %1026 = vperm.xlu0 %1025, %v98
  %v1027 = vpop.permute.xlu0 %1026
  %1029 = vset.pattern.permute.xlu0 1
  %1030 = vperm.xlu0 %1029, %v99
  %v1031 = vpop.permute.xlu0 %1030
  %1033 = vset.pattern.permute.xlu0 1
  %1034 = vperm.xlu0 %1033, %v100
  %v1035 = vpop.permute.xlu0 %1034
  %v1037 = vmul.f32 %v717, %v911
  %v1038 = vmul.f32 %v718, %v915
  %v1039 = vmul.f32 %v719, %v919
  %v1040 = vmul.f32 %v720, %v923
  %v1041 = vmul.f32 %v721, %v927
  %v1042 = vmul.f32 %v722, %v931
  %v1043 = vmul.f32 %v723, %v935
  %v1044 = vmul.f32 %v724, %v939
  %v1045 = vmul.f32 %v725, %v943
  %v1046 = vmul.f32 %v726, %v947
  %v1047 = vmul.f32 %v727, %v951
  %v1048 = vmul.f32 %v728, %v955
  %v1049 = vmul.f32 %v729, %v959
  %v1050 = vmul.f32 %v730, %v963
  %v1051 = vmul.f32 %v731, %v967
  %v1052 = vmul.f32 %v732, %v971
  %v1053 = vmul.f32 %v733, %v975
  %v1054 = vmul.f32 %v734, %v979
  %v1055 = vmul.f32 %v735, %v983
  %v1056 = vmul.f32 %v736, %v987
  %v1057 = vmul.f32 %v737, %v991
  %v1058 = vmul.f32 %v738, %v995
  %v1059 = vmul.f32 %v739, %v999
  %v1060 = vmul.f32 %v740, %v1003
  %v1061 = vmul.f32 %v741, %v1007
  %v1062 = vmul.f32 %v742, %v1011
  %v1063 = vmul.f32 %v743, %v1015
  %v1064 = vmul.f32 %v744, %v1019
  %v1065 = vmul.f32 %v745, %v1023
  %v1066 = vmul.f32 %v746, %v1027
  %v1067 = vmul.f32 %v747, %v1031
  %v1068 = vmul.f32 %v748, %v1035
  %v1069 = vpack.c.bf16 %v1038, %v1037
  %v1070 = vpack.c.bf16 %v1040, %v1039
  %v1071 = vpack.c.bf16 %v1042, %v1041
  %v1072 = vpack.c.bf16 %v1044, %v1043
  %v1073 = vpack.c.bf16 %v1046, %v1045
  %v1074 = vpack.c.bf16 %v1048, %v1047
  %v1075 = vpack.c.bf16 %v1050, %v1049
  %v1076 = vpack.c.bf16 %v1052, %v1051
  %v1077 = vpack.c.bf16 %v1054, %v1053
  %v1078 = vpack.c.bf16 %v1056, %v1055
  %v1079 = vpack.c.bf16 %v1058, %v1057
  %v1080 = vpack.c.bf16 %v1060, %v1059
  %v1081 = vpack.c.bf16 %v1062, %v1061
  %v1082 = vpack.c.bf16 %v1064, %v1063
  %v1083 = vpack.c.bf16 %v1066, %v1065
  %v1084 = vpack.c.bf16 %v1068, %v1067
  %v1101 = vunpack.c.l.b16 %v1069
  %v1102 = vunpack.c.h.b16 %v1069
  %v1103 = vunpack.c.l.b16 %v1070
  %v1104 = vunpack.c.h.b16 %v1070
  %v1105 = vunpack.c.l.b16 %v1071
  %v1106 = vunpack.c.h.b16 %v1071
  %v1107 = vunpack.c.l.b16 %v1072
  %v1108 = vunpack.c.h.b16 %v1072
  %v1109 = vunpack.c.l.b16 %v1073
  %v1110 = vunpack.c.h.b16 %v1073
  %v1111 = vunpack.c.l.b16 %v1074
  %v1112 = vunpack.c.h.b16 %v1074
  %v1113 = vunpack.c.l.b16 %v1075
  %v1114 = vunpack.c.h.b16 %v1075
  %v1115 = vunpack.c.l.b16 %v1076
  %v1116 = vunpack.c.h.b16 %v1076
  %v1117 = vunpack.c.l.b16 %v1077
  %v1118 = vunpack.c.h.b16 %v1077
  %v1119 = vunpack.c.l.b16 %v1078
  %v1120 = vunpack.c.h.b16 %v1078
  %v1121 = vunpack.c.l.b16 %v1079
  %v1122 = vunpack.c.h.b16 %v1079
  %v1123 = vunpack.c.l.b16 %v1080
  %v1124 = vunpack.c.h.b16 %v1080
  %v1125 = vunpack.c.l.b16 %v1081
  %v1126 = vunpack.c.h.b16 %v1081
  %v1127 = vunpack.c.l.b16 %v1082
  %v1128 = vunpack.c.h.b16 %v1082
  %v1129 = vunpack.c.l.b16 %v1083
  %v1130 = vunpack.c.h.b16 %v1083
  %v1131 = vunpack.c.l.b16 %v1084
  %v1132 = vunpack.c.h.b16 %v1084
  %v1133 = vpack.c.b16 %v1101, %v1101
  %v1134 = vpack.c.b16 %v1102, %v1102
  %v1135 = vpack.c.b16 %v1103, %v1103
  %v1136 = vpack.c.b16 %v1104, %v1104
  %v1137 = vpack.c.b16 %v1105, %v1105
  %v1138 = vpack.c.b16 %v1106, %v1106
  %v1139 = vpack.c.b16 %v1107, %v1107
  %v1140 = vpack.c.b16 %v1108, %v1108
  %v1141 = vpack.c.b16 %v1109, %v1109
  %v1142 = vpack.c.b16 %v1110, %v1110
  %v1143 = vpack.c.b16 %v1111, %v1111
  %v1144 = vpack.c.b16 %v1112, %v1112
  %v1145 = vpack.c.b16 %v1113, %v1113
  %v1146 = vpack.c.b16 %v1114, %v1114
  %v1147 = vpack.c.b16 %v1115, %v1115
  %v1148 = vpack.c.b16 %v1116, %v1116
  %v1149 = vpack.c.b16 %v1117, %v1117
  %v1150 = vpack.c.b16 %v1118, %v1118
  %v1151 = vpack.c.b16 %v1119, %v1119
  %v1152 = vpack.c.b16 %v1120, %v1120
  %v1153 = vpack.c.b16 %v1121, %v1121
  %v1154 = vpack.c.b16 %v1122, %v1122
  %v1155 = vpack.c.b16 %v1123, %v1123
  %v1156 = vpack.c.b16 %v1124, %v1124
  %v1157 = vpack.c.b16 %v1125, %v1125
  %v1158 = vpack.c.b16 %v1126, %v1126
  %v1159 = vpack.c.b16 %v1127, %v1127
  %v1160 = vpack.c.b16 %v1128, %v1128
  %v1161 = vpack.c.b16 %v1129, %v1129
  %v1162 = vpack.c.b16 %v1130, %v1130
  %v1163 = vpack.c.b16 %v1131, %v1131
  %v1164 = vpack.c.b16 %v1132, %v1132
  %1197 = vst [vmem:[#allocation4 + $0x4] sm:$0xf] %v1133
  %1198 = vst [vmem:[#allocation4 + $0xc] sm:$0xf] %v1134
  %1199 = vst [vmem:[#allocation4 + $0x14] sm:$0xf] %v1135
  %1200 = vst [vmem:[#allocation4 + $0x1c] sm:$0xf] %v1136
  %1201 = vst [vmem:[#allocation4 + $0x24] sm:$0xf] %v1137
  %1202 = vst [vmem:[#allocation4 + $0x2c] sm:$0xf] %v1138
  %1203 = vst [vmem:[#allocation4 + $0x34] sm:$0xf] %v1139
  %1204 = vst [vmem:[#allocation4 + $0x3c] sm:$0xf] %v1140
  %1205 = vst [vmem:[#allocation4 + $0x44] sm:$0xf] %v1141
  %1206 = vst [vmem:[#allocation4 + $0x4c] sm:$0xf] %v1142
  %1207 = vst [vmem:[#allocation4 + $0x54] sm:$0xf] %v1143
  %1208 = vst [vmem:[#allocation4 + $0x5c] sm:$0xf] %v1144
  %1209 = vst [vmem:[#allocation4 + $0x64] sm:$0xf] %v1145
  %1210 = vst [vmem:[#allocation4 + $0x6c] sm:$0xf] %v1146
  %1211 = vst [vmem:[#allocation4 + $0x74] sm:$0xf] %v1147
  %1212 = vst [vmem:[#allocation4 + $0x7c] sm:$0xf] %v1148
  %1213 = vst [vmem:[#allocation4 + $0x84] sm:$0xf] %v1149
  %1214 = vst [vmem:[#allocation4 + $0x8c] sm:$0xf] %v1150
  %1215 = vst [vmem:[#allocation4 + $0x94] sm:$0xf] %v1151
  %1216 = vst [vmem:[#allocation4 + $0x9c] sm:$0xf] %v1152
  %1217 = vst [vmem:[#allocation4 + $0xa4] sm:$0xf] %v1153
  %1218 = vst [vmem:[#allocation4 + $0xac] sm:$0xf] %v1154
  %1219 = vst [vmem:[#allocation4 + $0xb4] sm:$0xf] %v1155
  %1220 = vst [vmem:[#allocation4 + $0xbc] sm:$0xf] %v1156
  %1221 = vst [vmem:[#allocation4 + $0xc4] sm:$0xf] %v1157
  %1222 = vst [vmem:[#allocation4 + $0xcc] sm:$0xf] %v1158
  %1223 = vst [vmem:[#allocation4 + $0xd4] sm:$0xf] %v1159
  %1224 = vst [vmem:[#allocation4 + $0xdc] sm:$0xf] %v1160
  %1225 = vst [vmem:[#allocation4 + $0xe4] sm:$0xf] %v1161
  %1226 = vst [vmem:[#allocation4 + $0xec] sm:$0xf] %v1162
  %1227 = vst [vmem:[#allocation4 + $0xf4] sm:$0xf] %v1163
  %1228 = vst [vmem:[#allocation4 + $0xfc] sm:$0xf] %v1164
  %v1229 = vld [vmem:[#allocation2] sm:$0xff]
  %v1230 = vld [vmem:[#allocation2 + $0x8] sm:$0xff]
  %v1231 = vld [vmem:[#allocation2 + $0x10] sm:$0xff]
  %v1232 = vld [vmem:[#allocation2 + $0x18] sm:$0xff]
  %v1233 = vld [vmem:[#allocation2 + $0x20] sm:$0xff]
  %v1234 = vld [vmem:[#allocation2 + $0x28] sm:$0xff]
  %v1235 = vld [vmem:[#allocation2 + $0x30] sm:$0xff]
  %v1236 = vld [vmem:[#allocation2 + $0x38] sm:$0xff]
  %v1237 = vld [vmem:[#allocation2 + $0x40] sm:$0xff]
  %v1238 = vld [vmem:[#allocation2 + $0x48] sm:$0xff]
  %v1239 = vld [vmem:[#allocation2 + $0x50] sm:$0xff]
  %v1240 = vld [vmem:[#allocation2 + $0x58] sm:$0xff]
  %v1241 = vld [vmem:[#allocation2 + $0x60] sm:$0xff]
  %v1242 = vld [vmem:[#allocation2 + $0x68] sm:$0xff]
  %v1243 = vld [vmem:[#allocation2 + $0x70] sm:$0xff]
  %v1244 = vld [vmem:[#allocation2 + $0x78] sm:$0xff]
  %v1245 = vld [vmem:[#allocation2 + $0x80] sm:$0xff]
  %v1246 = vld [vmem:[#allocation2 + $0x88] sm:$0xff]
  %v1247 = vld [vmem:[#allocation2 + $0x90] sm:$0xff]
  %v1248 = vld [vmem:[#allocation2 + $0x98] sm:$0xff]
  %v1249 = vld [vmem:[#allocation2 + $0xa0] sm:$0xff]
  %v1250 = vld [vmem:[#allocation2 + $0xa8] sm:$0xff]
  %v1251 = vld [vmem:[#allocation2 + $0xb0] sm:$0xff]
  %v1252 = vld [vmem:[#allocation2 + $0xb8] sm:$0xff]
  %v1253 = vld [vmem:[#allocation2 + $0xc0] sm:$0xff]
  %v1254 = vld [vmem:[#allocation2 + $0xc8] sm:$0xff]
  %v1255 = vld [vmem:[#allocation2 + $0xd0] sm:$0xff]
  %v1256 = vld [vmem:[#allocation2 + $0xd8] sm:$0xff]
  %v1257 = vld [vmem:[#allocation2 + $0xe0] sm:$0xff]
  %v1258 = vld [vmem:[#allocation2 + $0xe8] sm:$0xff]
  %v1259 = vld [vmem:[#allocation2 + $0xf0] sm:$0xff]
  %v1260 = vld [vmem:[#allocation2 + $0xf8] sm:$0xff]
  %v1261 = vld [vmem:[#allocation3] sm:$0xff]
  %v1262 = vld [vmem:[#allocation3 + $0x8] sm:$0xff]
  %v1263 = vld [vmem:[#allocation3 + $0x10] sm:$0xff]
  %v1264 = vld [vmem:[#allocation3 + $0x18] sm:$0xff]
  %v1265 = vld [vmem:[#allocation3 + $0x20] sm:$0xff]
  %v1266 = vld [vmem:[#allocation3 + $0x28] sm:$0xff]
  %v1267 = vld [vmem:[#allocation3 + $0x30] sm:$0xff]
  %v1268 = vld [vmem:[#allocation3 + $0x38] sm:$0xff]
  %v1269 = vld [vmem:[#allocation3 + $0x40] sm:$0xff]
  %v1270 = vld [vmem:[#allocation3 + $0x48] sm:$0xff]
  %v1271 = vld [vmem:[#allocation3 + $0x50] sm:$0xff]
  %v1272 = vld [vmem:[#allocation3 + $0x58] sm:$0xff]
  %v1273 = vld [vmem:[#allocation3 + $0x60] sm:$0xff]
  %v1274 = vld [vmem:[#allocation3 + $0x68] sm:$0xff]
  %v1275 = vld [vmem:[#allocation3 + $0x70] sm:$0xff]
  %v1276 = vld [vmem:[#allocation3 + $0x78] sm:$0xff]
  %v1277 = vld [vmem:[#allocation4] sm:$0xff]
  %v1278 = vld [vmem:[#allocation4 + $0x8] sm:$0xff]
  %v1279 = vld [vmem:[#allocation4 + $0x10] sm:$0xff]
  %v1280 = vld [vmem:[#allocation4 + $0x18] sm:$0xff]
  %v1281 = vld [vmem:[#allocation4 + $0x20] sm:$0xff]
  %v1282 = vld [vmem:[#allocation4 + $0x28] sm:$0xff]
  %v1283 = vld [vmem:[#allocation4 + $0x30] sm:$0xff]
  %v1284 = vld [vmem:[#allocation4 + $0x38] sm:$0xff]
  %v1285 = vld [vmem:[#allocation4 + $0x40] sm:$0xff]
  %v1286 = vld [vmem:[#allocation4 + $0x48] sm:$0xff]
  %v1287 = vld [vmem:[#allocation4 + $0x50] sm:$0xff]
  %v1288 = vld [vmem:[#allocation4 + $0x58] sm:$0xff]
  %v1289 = vld [vmem:[#allocation4 + $0x60] sm:$0xff]
  %v1290 = vld [vmem:[#allocation4 + $0x68] sm:$0xff]
  %v1291 = vld [vmem:[#allocation4 + $0x70] sm:$0xff]
  %v1292 = vld [vmem:[#allocation4 + $0x78] sm:$0xff]
  %v1293 = vld [vmem:[#allocation4 + $0x80] sm:$0xff]
  %v1294 = vld [vmem:[#allocation4 + $0x88] sm:$0xff]
  %v1295 = vld [vmem:[#allocation4 + $0x90] sm:$0xff]
  %v1296 = vld [vmem:[#allocation4 + $0x98] sm:$0xff]
  %v1297 = vld [vmem:[#allocation4 + $0xa0] sm:$0xff]
  %v1298 = vld [vmem:[#allocation4 + $0xa8] sm:$0xff]
  %v1299 = vld [vmem:[#allocation4 + $0xb0] sm:$0xff]
  %v1300 = vld [vmem:[#allocation4 + $0xb8] sm:$0xff]
  %v1301 = vld [vmem:[#allocation4 + $0xc0] sm:$0xff]
  %v1302 = vld [vmem:[#allocation4 + $0xc8] sm:$0xff]
  %v1303 = vld [vmem:[#allocation4 + $0xd0] sm:$0xff]
  %v1304 = vld [vmem:[#allocation4 + $0xd8] sm:$0xff]
  %v1305 = vld [vmem:[#allocation4 + $0xe0] sm:$0xff]
  %v1306 = vld [vmem:[#allocation4 + $0xe8] sm:$0xff]
  %v1307 = vld [vmem:[#allocation4 + $0xf0] sm:$0xff]
  %v1308 = vld [vmem:[#allocation4 + $0xf8] sm:$0xff]
  %v1325 = vunpack.c.l.b16 %v1261
  %v1326 = vunpack.c.h.b16 %v1261
  %v1327 = vunpack.c.l.b16 %v1262
  %v1328 = vunpack.c.h.b16 %v1262
  %v1329 = vunpack.c.l.b16 %v1263
  %v1330 = vunpack.c.h.b16 %v1263
  %v1331 = vunpack.c.l.b16 %v1264
  %v1332 = vunpack.c.h.b16 %v1264
  %v1333 = vunpack.c.l.b16 %v1265
  %v1334 = vunpack.c.h.b16 %v1265
  %v1335 = vunpack.c.l.b16 %v1266
  %v1336 = vunpack.c.h.b16 %v1266
  %v1337 = vunpack.c.l.b16 %v1267
  %v1338 = vunpack.c.h.b16 %v1267
  %v1339 = vunpack.c.l.b16 %v1268
  %v1340 = vunpack.c.h.b16 %v1268
  %v1341 = vunpack.c.l.b16 %v1269
  %v1342 = vunpack.c.h.b16 %v1269
  %v1343 = vunpack.c.l.b16 %v1270
  %v1344 = vunpack.c.h.b16 %v1270
  %v1345 = vunpack.c.l.b16 %v1271
  %v1346 = vunpack.c.h.b16 %v1271
  %v1347 = vunpack.c.l.b16 %v1272
  %v1348 = vunpack.c.h.b16 %v1272
  %v1349 = vunpack.c.l.b16 %v1273
  %v1350 = vunpack.c.h.b16 %v1273
  %v1351 = vunpack.c.l.b16 %v1274
  %v1352 = vunpack.c.h.b16 %v1274
  %v1353 = vunpack.c.l.b16 %v1275
  %v1354 = vunpack.c.h.b16 %v1275
  %v1355 = vunpack.c.l.b16 %v1276
  %v1356 = vunpack.c.h.b16 %v1276
  %v1357 = vpack.c.b16 %v1327, %v1325
  %v1358 = vpack.c.b16 %v1328, %v1326
  %v1359 = vpack.c.b16 %v1331, %v1329
  %v1360 = vpack.c.b16 %v1332, %v1330
  %v1361 = vpack.c.b16 %v1335, %v1333
  %v1362 = vpack.c.b16 %v1336, %v1334
  %v1363 = vpack.c.b16 %v1339, %v1337
  %v1364 = vpack.c.b16 %v1340, %v1338
  %v1365 = vpack.c.b16 %v1343, %v1341
  %v1366 = vpack.c.b16 %v1344, %v1342
  %v1367 = vpack.c.b16 %v1347, %v1345
  %v1368 = vpack.c.b16 %v1348, %v1346
  %v1369 = vpack.c.b16 %v1351, %v1349
  %v1370 = vpack.c.b16 %v1352, %v1350
  %v1371 = vpack.c.b16 %v1355, %v1353
  %v1372 = vpack.c.b16 %v1356, %v1354
  %v1421 = vunpack.c.l.b16 %v1277
  %v1422 = vunpack.c.h.b16 %v1277
  %v1423 = vunpack.c.l.b16 %v1278
  %v1424 = vunpack.c.h.b16 %v1278
  %v1425 = vunpack.c.l.b16 %v1279
  %v1426 = vunpack.c.h.b16 %v1279
  %v1427 = vunpack.c.l.b16 %v1280
  %v1428 = vunpack.c.h.b16 %v1280
  %v1429 = vunpack.c.l.b16 %v1281
  %v1430 = vunpack.c.h.b16 %v1281
  %v1431 = vunpack.c.l.b16 %v1282
  %v1432 = vunpack.c.h.b16 %v1282
  %v1433 = vunpack.c.l.b16 %v1283
  %v1434 = vunpack.c.h.b16 %v1283
  %v1435 = vunpack.c.l.b16 %v1284
  %v1436 = vunpack.c.h.b16 %v1284
  %v1437 = vunpack.c.l.b16 %v1285
  %v1438 = vunpack.c.h.b16 %v1285
  %v1439 = vunpack.c.l.b16 %v1286
  %v1440 = vunpack.c.h.b16 %v1286
  %v1441 = vunpack.c.l.b16 %v1287
  %v1442 = vunpack.c.h.b16 %v1287
  %v1443 = vunpack.c.l.b16 %v1288
  %v1444 = vunpack.c.h.b16 %v1288
  %v1445 = vunpack.c.l.b16 %v1289
  %v1446 = vunpack.c.h.b16 %v1289
  %v1447 = vunpack.c.l.b16 %v1290
  %v1448 = vunpack.c.h.b16 %v1290
  %v1449 = vunpack.c.l.b16 %v1291
  %v1450 = vunpack.c.h.b16 %v1291
  %v1451 = vunpack.c.l.b16 %v1292
  %v1452 = vunpack.c.h.b16 %v1292
  %v1453 = vunpack.c.l.b16 %v1293
  %v1454 = vunpack.c.h.b16 %v1293
  %v1455 = vunpack.c.l.b16 %v1294
  %v1456 = vunpack.c.h.b16 %v1294
  %v1457 = vunpack.c.l.b16 %v1295
  %v1458 = vunpack.c.h.b16 %v1295
  %v1459 = vunpack.c.l.b16 %v1296
  %v1460 = vunpack.c.h.b16 %v1296
  %v1461 = vunpack.c.l.b16 %v1297
  %v1462 = vunpack.c.h.b16 %v1297
  %v1463 = vunpack.c.l.b16 %v1298
  %v1464 = vunpack.c.h.b16 %v1298
  %v1465 = vunpack.c.l.b16 %v1299
  %v1466 = vunpack.c.h.b16 %v1299
  %v1467 = vunpack.c.l.b16 %v1300
  %v1468 = vunpack.c.h.b16 %v1300
  %v1469 = vunpack.c.l.b16 %v1301
  %v1470 = vunpack.c.h.b16 %v1301
  %v1471 = vunpack.c.l.b16 %v1302
  %v1472 = vunpack.c.h.b16 %v1302
  %v1473 = vunpack.c.l.b16 %v1303
  %v1474 = vunpack.c.h.b16 %v1303
  %v1475 = vunpack.c.l.b16 %v1304
  %v1476 = vunpack.c.h.b16 %v1304
  %v1477 = vunpack.c.l.b16 %v1305
  %v1478 = vunpack.c.h.b16 %v1305
  %v1479 = vunpack.c.l.b16 %v1306
  %v1480 = vunpack.c.h.b16 %v1306
  %v1481 = vunpack.c.l.b16 %v1307
  %v1482 = vunpack.c.h.b16 %v1307
  %v1483 = vunpack.c.l.b16 %v1308
  %v1484 = vunpack.c.h.b16 %v1308
  %v1485 = vpack.c.b16 %v1423, %v1421
  %v1486 = vpack.c.b16 %v1424, %v1422
  %v1487 = vpack.c.b16 %v1427, %v1425
  %v1488 = vpack.c.b16 %v1428, %v1426
  %v1489 = vpack.c.b16 %v1431, %v1429
  %v1490 = vpack.c.b16 %v1432, %v1430
  %v1491 = vpack.c.b16 %v1435, %v1433
  %v1492 = vpack.c.b16 %v1436, %v1434
  %v1493 = vpack.c.b16 %v1439, %v1437
  %v1494 = vpack.c.b16 %v1440, %v1438
  %v1495 = vpack.c.b16 %v1443, %v1441
  %v1496 = vpack.c.b16 %v1444, %v1442
  %v1497 = vpack.c.b16 %v1447, %v1445
  %v1498 = vpack.c.b16 %v1448, %v1446
  %v1499 = vpack.c.b16 %v1451, %v1449
  %v1500 = vpack.c.b16 %v1452, %v1450
  %v1501 = vpack.c.b16 %v1455, %v1453
  %v1502 = vpack.c.b16 %v1456, %v1454
  %v1503 = vpack.c.b16 %v1459, %v1457
  %v1504 = vpack.c.b16 %v1460, %v1458
  %v1505 = vpack.c.b16 %v1463, %v1461
  %v1506 = vpack.c.b16 %v1464, %v1462
  %v1507 = vpack.c.b16 %v1467, %v1465
  %v1508 = vpack.c.b16 %v1468, %v1466
  %v1509 = vpack.c.b16 %v1471, %v1469
  %v1510 = vpack.c.b16 %v1472, %v1470
  %v1511 = vpack.c.b16 %v1475, %v1473
  %v1512 = vpack.c.b16 %v1476, %v1474
  %v1513 = vpack.c.b16 %v1479, %v1477
  %v1514 = vpack.c.b16 %v1480, %v1478
  %v1515 = vpack.c.b16 %v1483, %v1481
  %v1516 = vpack.c.b16 %v1484, %v1482
  %1549 = vmatprep.subr.bf16.mxu0 %v1500
  %1550 = vmatpush1.bf16.xpose.msra.mxu0 %v1499
  %1551 = vmatprep.subr.bf16.mxu0 %v1498
  %1552 = vmatpush1.bf16.xpose.msra.mxu0 %v1497
  %1553 = vmatprep.subr.bf16.mxu0 %v1496
  %1554 = vmatpush1.bf16.xpose.msra.mxu0 %v1495
  %1555 = vmatprep.subr.bf16.mxu0 %v1494
  %1556 = vmatpush1.bf16.xpose.msra.mxu0 %v1493
  %1557 = vmatprep.subr.bf16.mxu0 %v1492
  %1558 = vmatpush1.bf16.xpose.msra.mxu0 %v1491
  %1559 = vmatprep.subr.bf16.mxu0 %v1490
  %1560 = vmatpush1.bf16.xpose.msra.mxu0 %v1489
  %1561 = vmatprep.subr.bf16.mxu0 %v1488
  %1562 = vmatpush1.bf16.xpose.msra.mxu0 %v1487
  %1563 = vmatprep.subr.bf16.mxu0 %v1486
  %1564 = vmatpush1.bf16.xpose.msra.mxu0 %v1485
  %1565 = vmatprep.subr.bf16.mxu0 %v1516
  %1566 = vmatpush2.bf16.xpose.msra.mxu0 %v1515
  %1567 = vmatprep.subr.bf16.mxu0 %v1514
  %1568 = vmatpush2.bf16.xpose.msra.mxu0 %v1513
  %1569 = vmatprep.subr.bf16.mxu0 %v1512
  %1570 = vmatpush2.bf16.xpose.msra.mxu0 %v1511
  %1571 = vmatprep.subr.bf16.mxu0 %v1510
  %1572 = vmatpush2.bf16.xpose.msra.mxu0 %v1509
  %1573 = vmatprep.subr.bf16.mxu0 %v1508
  %1574 = vmatpush2.bf16.xpose.msra.mxu0 %v1507
  %1575 = vmatprep.subr.bf16.mxu0 %v1506
  %1576 = vmatpush2.bf16.xpose.msra.mxu0 %v1505
  %1577 = vmatprep.subr.bf16.mxu0 %v1504
  %1578 = vmatpush2.bf16.xpose.msra.mxu0 %v1503
  %1579 = vmatprep.subr.bf16.mxu0 %v1502
  %1580 = vmatpush2.bf16.xpose.msra.mxu0 %v1501
  %1581 = vmatprep.mubr.bf16.mxu0 %v1358
  %1582 = vmatmul.mubr.bf16.gmra.mxu0 %v1357
  %v1583 = vpop.f32.mrf.mxu0
  %v1584 = vadd.f32 0.0, %v1583
  %v1585 = vpop.f32.mrf.mxu0
  %v1586 = vadd.f32 0.0, %v1585
  %v1587 = vpop.f32.mrf.mxu0
  %v1588 = vadd.f32 0.0, %v1587
  %v1589 = vpop.f32.mrf.mxu0
  %v1590 = vadd.f32 0.0, %v1589
  %1591 = vmatprep.mubr.bf16.mxu0 %v1360
  %1592 = vmatmul.mubr.bf16.gmra.mxu0 %v1359
  %v1593 = vpop.f32.mrf.mxu0
  %v1594 = vadd.f32 0.0, %v1593
  %v1595 = vpop.f32.mrf.mxu0
  %v1596 = vadd.f32 0.0, %v1595
  %v1597 = vpop.f32.mrf.mxu0
  %v1598 = vadd.f32 0.0, %v1597
  %v1599 = vpop.f32.mrf.mxu0
  %v1600 = vadd.f32 0.0, %v1599
  %1601 = vmatprep.mubr.bf16.mxu0 %v1362
  %1602 = vmatmul.mubr.bf16.gmra.mxu0 %v1361
  %v1603 = vpop.f32.mrf.mxu0
  %v1604 = vadd.f32 0.0, %v1603
  %v1605 = vpop.f32.mrf.mxu0
  %v1606 = vadd.f32 0.0, %v1605
  %v1607 = vpop.f32.mrf.mxu0
  %v1608 = vadd.f32 0.0, %v1607
  %v1609 = vpop.f32.mrf.mxu0
  %v1610 = vadd.f32 0.0, %v1609
  %1611 = vmatprep.mubr.bf16.mxu0 %v1364
  %1612 = vmatmul.mubr.bf16.gmra.mxu0 %v1363
  %v1613 = vpop.f32.mrf.mxu0
  %v1614 = vadd.f32 0.0, %v1613
  %v1615 = vpop.f32.mrf.mxu0
  %v1616 = vadd.f32 0.0, %v1615
  %v1617 = vpop.f32.mrf.mxu0
  %v1618 = vadd.f32 0.0, %v1617
  %v1619 = vpop.f32.mrf.mxu0
  %v1620 = vadd.f32 0.0, %v1619
  %1621 = vmatprep.mubr.bf16.mxu0 %v1366
  %1622 = vmatmul.mubr.bf16.gmra.mxu0 %v1365
  %v1623 = vpop.f32.mrf.mxu0
  %v1624 = vadd.f32 0.0, %v1623
  %v1625 = vpop.f32.mrf.mxu0
  %v1626 = vadd.f32 0.0, %v1625
  %v1627 = vpop.f32.mrf.mxu0
  %v1628 = vadd.f32 0.0, %v1627
  %v1629 = vpop.f32.mrf.mxu0
  %v1630 = vadd.f32 0.0, %v1629
  %1631 = vmatprep.mubr.bf16.mxu0 %v1368
  %1632 = vmatmul.mubr.bf16.gmra.mxu0 %v1367
  %v1633 = vpop.f32.mrf.mxu0
  %v1634 = vadd.f32 0.0, %v1633
  %v1635 = vpop.f32.mrf.mxu0
  %v1636 = vadd.f32 0.0, %v1635
  %v1637 = vpop.f32.mrf.mxu0
  %v1638 = vadd.f32 0.0, %v1637
  %v1639 = vpop.f32.mrf.mxu0
  %v1640 = vadd.f32 0.0, %v1639
  %1641 = vmatprep.mubr.bf16.mxu0 %v1370
  %1642 = vmatmul.mubr.bf16.gmra.mxu0 %v1369
  %v1643 = vpop.f32.mrf.mxu0
  %v1644 = vadd.f32 0.0, %v1643
  %v1645 = vpop.f32.mrf.mxu0
  %v1646 = vadd.f32 0.0, %v1645
  %v1647 = vpop.f32.mrf.mxu0
  %v1648 = vadd.f32 0.0, %v1647
  %v1649 = vpop.f32.mrf.mxu0
  %v1650 = vadd.f32 0.0, %v1649
  %1651 = vmatprep.mubr.bf16.mxu0 %v1372
  %1652 = vmatmul.mubr.bf16.gmra.mxu0 %v1371
  %v1653 = vpop.f32.mrf.mxu0
  %v1654 = vadd.f32 0.0, %v1653
  %v1655 = vpop.f32.mrf.mxu0
  %v1656 = vadd.f32 0.0, %v1655
  %v1657 = vpop.f32.mrf.mxu0
  %v1658 = vadd.f32 0.0, %v1657
  %v1659 = vpop.f32.mrf.mxu0
  %v1660 = vadd.f32 0.0, %v1659
  %1661 = vdwg.mxu0
  %v1662 = vadd.f32 %v1229, %v1584
  %v1663 = vadd.f32 %v1230, %v1586
  %v1664 = vadd.f32 %v1231, %v1588
  %v1665 = vadd.f32 %v1232, %v1590
  %v1666 = vadd.f32 %v1233, %v1594
  %v1667 = vadd.f32 %v1234, %v1596
  %v1668 = vadd.f32 %v1235, %v1598
  %v1669 = vadd.f32 %v1236, %v1600
  %v1670 = vadd.f32 %v1237, %v1604
  %v1671 = vadd.f32 %v1238, %v1606
  %v1672 = vadd.f32 %v1239, %v1608
  %v1673 = vadd.f32 %v1240, %v1610
  %v1674 = vadd.f32 %v1241, %v1614
  %v1675 = vadd.f32 %v1242, %v1616
  %v1676 = vadd.f32 %v1243, %v1618
  %v1677 = vadd.f32 %v1244, %v1620
  %v1678 = vadd.f32 %v1245, %v1624
  %v1679 = vadd.f32 %v1246, %v1626
  %v1680 = vadd.f32 %v1247, %v1628
  %v1681 = vadd.f32 %v1248, %v1630
  %v1682 = vadd.f32 %v1249, %v1634
  %v1683 = vadd.f32 %v1250, %v1636
  %v1684 = vadd.f32 %v1251, %v1638
  %v1685 = vadd.f32 %v1252, %v1640
  %v1686 = vadd.f32 %v1253, %v1644
  %v1687 = vadd.f32 %v1254, %v1646
  %v1688 = vadd.f32 %v1255, %v1648
  %v1689 = vadd.f32 %v1256, %v1650
  %v1690 = vadd.f32 %v1257, %v1654
  %v1691 = vadd.f32 %v1258, %v1656
  %v1692 = vadd.f32 %v1259, %v1658
  %v1693 = vadd.f32 %v1260, %v1660
  %1694 = vst [vmem:[#allocation2] sm:$0xff] %v1662
  %1695 = vst [vmem:[#allocation2 + $0x8] sm:$0xff] %v1663
  %1696 = vst [vmem:[#allocation2 + $0x10] sm:$0xff] %v1664
  %1697 = vst [vmem:[#allocation2 + $0x18] sm:$0xff] %v1665
  %1698 = vst [vmem:[#allocation2 + $0x20] sm:$0xff] %v1666
  %1699 = vst [vmem:[#allocation2 + $0x28] sm:$0xff] %v1667
  %1700 = vst [vmem:[#allocation2 + $0x30] sm:$0xff] %v1668
  %1701 = vst [vmem:[#allocation2 + $0x38] sm:$0xff] %v1669
  %1702 = vst [vmem:[#allocation2 + $0x40] sm:$0xff] %v1670
  %1703 = vst [vmem:[#allocation2 + $0x48] sm:$0xff] %v1671
  %1704 = vst [vmem:[#allocation2 + $0x50] sm:$0xff] %v1672
  %1705 = vst [vmem:[#allocation2 + $0x58] sm:$0xff] %v1673
  %1706 = vst [vmem:[#allocation2 + $0x60] sm:$0xff] %v1674
  %1707 = vst [vmem:[#allocation2 + $0x68] sm:$0xff] %v1675
  %1708 = vst [vmem:[#allocation2 + $0x70] sm:$0xff] %v1676
  %1709 = vst [vmem:[#allocation2 + $0x78] sm:$0xff] %v1677
  %1710 = vst [vmem:[#allocation2 + $0x80] sm:$0xff] %v1678
  %1711 = vst [vmem:[#allocation2 + $0x88] sm:$0xff] %v1679
  %1712 = vst [vmem:[#allocation2 + $0x90] sm:$0xff] %v1680
  %1713 = vst [vmem:[#allocation2 + $0x98] sm:$0xff] %v1681
  %1714 = vst [vmem:[#allocation2 + $0xa0] sm:$0xff] %v1682
  %1715 = vst [vmem:[#allocation2 + $0xa8] sm:$0xff] %v1683
  %1716 = vst [vmem:[#allocation2 + $0xb0] sm:$0xff] %v1684
  %1717 = vst [vmem:[#allocation2 + $0xb8] sm:$0xff] %v1685
  %1718 = vst [vmem:[#allocation2 + $0xc0] sm:$0xff] %v1686
  %1719 = vst [vmem:[#allocation2 + $0xc8] sm:$0xff] %v1687
  %1720 = vst [vmem:[#allocation2 + $0xd0] sm:$0xff] %v1688
  %1721 = vst [vmem:[#allocation2 + $0xd8] sm:$0xff] %v1689
  %1722 = vst [vmem:[#allocation2 + $0xe0] sm:$0xff] %v1690
  %1723 = vst [vmem:[#allocation2 + $0xe8] sm:$0xff] %v1691
  %1724 = vst [vmem:[#allocation2 + $0xf0] sm:$0xff] %v1692
  %1725 = vst [vmem:[#allocation2 + $0xf8] sm:$0xff] %v1693
  // Predicated region
  $region22: #{fp8_mlp_forward.11} parent=0 // pred_check
    %p1726 = pneg %p17
  $region23: #{fp8_mlp_forward.11} parent=0 // pred_check_branch
    %1728 = sbr.rel (%p1726) target = $region25
  $region24: #{fp8_mlp_forward.11} parent=0 // pred_region
    %v1729 = vld [vmem:[#allocation2] sm:$0xff]
    %v1730 = vld [vmem:[#allocation2 + $0x8] sm:$0xff]
    %v1731 = vld [vmem:[#allocation2 + $0x10] sm:$0xff]
    %v1732 = vld [vmem:[#allocation2 + $0x18] sm:$0xff]
    %v1733 = vld [vmem:[#allocation2 + $0x20] sm:$0xff]
    %v1734 = vld [vmem:[#allocation2 + $0x28] sm:$0xff]
    %v1735 = vld [vmem:[#allocation2 + $0x30] sm:$0xff]
    %v1736 = vld [vmem:[#allocation2 + $0x38] sm:$0xff]
    %v1737 = vld [vmem:[#allocation2 + $0x40] sm:$0xff]
    %v1738 = vld [vmem:[#allocation2 + $0x48] sm:$0xff]
    %v1739 = vld [vmem:[#allocation2 + $0x50] sm:$0xff]
    %v1740 = vld [vmem:[#allocation2 + $0x58] sm:$0xff]
    %v1741 = vld [vmem:[#allocation2 + $0x60] sm:$0xff]
    %v1742 = vld [vmem:[#allocation2 + $0x68] sm:$0xff]
    %v1743 = vld [vmem:[#allocation2 + $0x70] sm:$0xff]
    %v1744 = vld [vmem:[#allocation2 + $0x78] sm:$0xff]
    %v1745 = vld [vmem:[#allocation2 + $0x80] sm:$0xff]
    %v1746 = vld [vmem:[#allocation2 + $0x88] sm:$0xff]
    %v1747 = vld [vmem:[#allocation2 + $0x90] sm:$0xff]
    %v1748 = vld [vmem:[#allocation2 + $0x98] sm:$0xff]
    %v1749 = vld [vmem:[#allocation2 + $0xa0] sm:$0xff]
    %v1750 = vld [vmem:[#allocation2 + $0xa8] sm:$0xff]
    %v1751 = vld [vmem:[#allocation2 + $0xb0] sm:$0xff]
    %v1752 = vld [vmem:[#allocation2 + $0xb8] sm:$0xff]
    %v1753 = vld [vmem:[#allocation2 + $0xc0] sm:$0xff]
    %v1754 = vld [vmem:[#allocation2 + $0xc8] sm:$0xff]
    %v1755 = vld [vmem:[#allocation2 + $0xd0] sm:$0xff]
    %v1756 = vld [vmem:[#allocation2 + $0xd8] sm:$0xff]
    %v1757 = vld [vmem:[#allocation2 + $0xe0] sm:$0xff]
    %v1758 = vld [vmem:[#allocation2 + $0xe8] sm:$0xff]
    %v1759 = vld [vmem:[#allocation2 + $0xf0] sm:$0xff]
    %v1760 = vld [vmem:[#allocation2 + $0xf8] sm:$0xff]
    %v1761 = vpack.c.bf16 %v1731, %v1729
    %v1762 = vpack.c.bf16 %v1732, %v1730
    %v1763 = vpack.c.bf16 %v1735, %v1733
    %v1764 = vpack.c.bf16 %v1736, %v1734
    %v1765 = vpack.c.bf16 %v1739, %v1737
    %v1766 = vpack.c.bf16 %v1740, %v1738
    %v1767 = vpack.c.bf16 %v1743, %v1741
    %v1768 = vpack.c.bf16 %v1744, %v1742
    %v1769 = vpack.c.bf16 %v1747, %v1745
    %v1770 = vpack.c.bf16 %v1748, %v1746
    %v1771 = vpack.c.bf16 %v1751, %v1749
    %v1772 = vpack.c.bf16 %v1752, %v1750
    %v1773 = vpack.c.bf16 %v1755, %v1753
    %v1774 = vpack.c.bf16 %v1756, %v1754
    %v1775 = vpack.c.bf16 %v1759, %v1757
    %v1776 = vpack.c.bf16 %v1760, %v1758
    %v1793 = vunpack.c.l.b16 %v1761
    %v1794 = vunpack.c.l.b16 %v1762
    %v1795 = vunpack.c.h.b16 %v1761
    %v1796 = vunpack.c.h.b16 %v1762
    %v1797 = vunpack.c.l.b16 %v1763
    %v1798 = vunpack.c.l.b16 %v1764
    %v1799 = vunpack.c.h.b16 %v1763
    %v1800 = vunpack.c.h.b16 %v1764
    %v1801 = vunpack.c.l.b16 %v1765
    %v1802 = vunpack.c.l.b16 %v1766
    %v1803 = vunpack.c.h.b16 %v1765
    %v1804 = vunpack.c.h.b16 %v1766
    %v1805 = vunpack.c.l.b16 %v1767
    %v1806 = vunpack.c.l.b16 %v1768
    %v1807 = vunpack.c.h.b16 %v1767
    %v1808 = vunpack.c.h.b16 %v1768
    %v1809 = vunpack.c.l.b16 %v1769
    %v1810 = vunpack.c.l.b16 %v1770
    %v1811 = vunpack.c.h.b16 %v1769
    %v1812 = vunpack.c.h.b16 %v1770
    %v1813 = vunpack.c.l.b16 %v1771
    %v1814 = vunpack.c.l.b16 %v1772
    %v1815 = vunpack.c.h.b16 %v1771
    %v1816 = vunpack.c.h.b16 %v1772
    %v1817 = vunpack.c.l.b16 %v1773
    %v1818 = vunpack.c.l.b16 %v1774
    %v1819 = vunpack.c.h.b16 %v1773
    %v1820 = vunpack.c.h.b16 %v1774
    %v1821 = vunpack.c.l.b16 %v1775
    %v1822 = vunpack.c.l.b16 %v1776
    %v1823 = vunpack.c.h.b16 %v1775
    %v1824 = vunpack.c.h.b16 %v1776
    %v1825 = vpack.c.b16 %v1794, %v1793
    %v1826 = vpack.c.b16 %v1796, %v1795
    %v1827 = vpack.c.b16 %v1798, %v1797
    %v1828 = vpack.c.b16 %v1800, %v1799
    %v1829 = vpack.c.b16 %v1802, %v1801
    %v1830 = vpack.c.b16 %v1804, %v1803
    %v1831 = vpack.c.b16 %v1806, %v1805
    %v1832 = vpack.c.b16 %v1808, %v1807
    %v1833 = vpack.c.b16 %v1810, %v1809
    %v1834 = vpack.c.b16 %v1812, %v1811
    %v1835 = vpack.c.b16 %v1814, %v1813
    %v1836 = vpack.c.b16 %v1816, %v1815
    %v1837 = vpack.c.b16 %v1818, %v1817
    %v1838 = vpack.c.b16 %v1820, %v1819
    %v1839 = vpack.c.b16 %v1822, %v1821
    %v1840 = vpack.c.b16 %v1824, %v1823
    %1857 = vst [vmem:[%s4] sm:$0xff] %v1825
    %1858 = vst [vmem:[%s4 + $0x8] sm:$0xff] %v1826
    %1859 = vst [vmem:[%s4 + $0x10] sm:$0xff] %v1827
    %1860 = vst [vmem:[%s4 + $0x18] sm:$0xff] %v1828
    %1861 = vst [vmem:[%s4 + $0x20] sm:$0xff] %v1829
    %1862 = vst [vmem:[%s4 + $0x28] sm:$0xff] %v1830
    %1863 = vst [vmem:[%s4 + $0x30] sm:$0xff] %v1831
    %1864 = vst [vmem:[%s4 + $0x38] sm:$0xff] %v1832
    %1865 = vst [vmem:[%s4 + $0x40] sm:$0xff] %v1833
    %1866 = vst [vmem:[%s4 + $0x48] sm:$0xff] %v1834
    %1867 = vst [vmem:[%s4 + $0x50] sm:$0xff] %v1835
    %1868 = vst [vmem:[%s4 + $0x58] sm:$0xff] %v1836
    %1869 = vst [vmem:[%s4 + $0x60] sm:$0xff] %v1837
    %1870 = vst [vmem:[%s4 + $0x68] sm:$0xff] %v1838
    %1871 = vst [vmem:[%s4 + $0x70] sm:$0xff] %v1839
    %1872 = vst [vmem:[%s4 + $0x78] sm:$0xff] %v1840
  $region25: #{fp8_mlp_forward.11} parent=0 // pred_fallthru
    _
  // Predicated region
  $region26: #{fp8_mlp_forward.11} parent=0 // pred_check
    _
  $region27: #{fp8_mlp_forward.11} parent=0 // pred_check_branch
    %1874 = sbr.rel (0) target = $region29
  $region28: #{fp8_mlp_forward.11} parent=0 // pred_region
    _
  $region29: #{fp8_mlp_forward.11} parent=0 // pred_fallthru
    _
  // Predicated region
  $region30: #{fp8_mlp_forward.11} parent=0 // pred_check
    _
  $region31: #{fp8_mlp_forward.11} parent=0 // pred_check_branch
    %1876 = sbr.rel (0) target = $region33
  $region32: #{fp8_mlp_forward.11} parent=0 // pred_region
    _
  $region33: #{fp8_mlp_forward.11} parent=0 // pred_fallthru
    _

// kernel: fp8_mlp_forward.9
$region0: #{fp8_mlp_forward.9}
  #allocation0 [shape = 'u32[]', space=smem, size = 0x4, offset = 0x4, fixed_abs, tag = 'smem constant byte address 0x4 - core index']
  #allocation1 [shape = 'u32[144,128]{1,0:T(1,128)}', space=vmem, size = 0x12000, scoped, tag = 'internal scratch']
  #allocation2 [shape = 'f32[128,512]{1,0:T(8,128)}', space=vmem, size = 0x40000, scoped, tag = 'scratch operand']
  #allocation3 [shape = 'bf16[128,256]{1,0:T(8,128)(2,1)}', space=vmem, size = 0x10000, scoped, tag = 'scratch operand']
  #allocation4 [shape = 'bf16[512,256]{1,0:T(8,128)(2,1)}', space=vmem, size = 0x40000, scoped, tag = 'scratch operand']
  %s0 = inlined_call_operand.vmem [shape: f8e5m2[128,256], index: 0, kind: input, shape index: {}]
  %s1 = inlined_call_operand.vmem [shape: f8e5m2[512,256], index: 1, kind: input, shape index: {}]
  %s2 = inlined_call_operand.vmem [shape: f32[1,128,2], index: 2, kind: input, shape index: {}]
  %s3 = inlined_call_operand.vmem [shape: f32[1,512,2], index: 3, kind: input, shape index: {}]
  %s4 = inlined_call_operand.vmem [shape: bf16[128,512], index: 4, kind: output, shape index: {}]
  %s5 = sld [smem:[#allocation0]]
  $region34: #{fp8_mlp_forward.9} parent=0
    _
  %s7 = ssub.s32 1, %s5
  %s8 = scalar_select 0, %s7, %s5
  // Predicated region
  $region2: #{fp8_mlp_forward.9} parent=0 // pred_check
    _
  $region3: #{fp8_mlp_forward.9} parent=0 // pred_check_branch
    %10 = sbr.rel (0) target = $region5
  $region4: #{fp8_mlp_forward.9} parent=0 // pred_region
    _
  $region5: #{fp8_mlp_forward.9} parent=0 // pred_fallthru
    _
  // Predicated region
  $region6: #{fp8_mlp_forward.9} parent=0 // pred_check
    _
  $region7: #{fp8_mlp_forward.9} parent=0 // pred_check_branch
    %12 = sbr.rel (0) target = $region9
  $region8: #{fp8_mlp_forward.9} parent=0 // pred_region
    _
  $region9: #{fp8_mlp_forward.9} parent=0 // pred_fallthru
    _
  // Predicated region
  $region10: #{fp8_mlp_forward.9} parent=0 // pred_check
    _
  $region11: #{fp8_mlp_forward.9} parent=0 // pred_check_branch
    %14 = sbr.rel (0) target = $region13
  $region12: #{fp8_mlp_forward.9} parent=0 // pred_region
    _
  $region13: #{fp8_mlp_forward.9} parent=0 // pred_fallthru
    _
  // Predicated region
  $region14: #{fp8_mlp_forward.9} parent=0 // pred_check
    _
  $region15: #{fp8_mlp_forward.9} parent=0 // pred_check_branch
    %16 = sbr.rel (0) target = $region17
  $region16: #{fp8_mlp_forward.9} parent=0 // pred_region
    _
  $region17: #{fp8_mlp_forward.9} parent=0 // pred_fallthru
    _
  %p17 = scmp.eq.s32.totalorder 0, 0
  // Predicated region
  $region18: #{fp8_mlp_forward.9} parent=0 // pred_check
    %p18 = pneg %p17
  $region19: #{fp8_mlp_forward.9} parent=0 // pred_check_branch
    %20 = sbr.rel (%p18) target = $region21
  $region20: #{fp8_mlp_forward.9} parent=0 // pred_region
    %21 = vst [vmem:[#allocation2] sm:$0xff] 0.0
    %22 = vst [vmem:[#allocation2 + $0x8] sm:$0xff] 0.0
    %23 = vst [vmem:[#allocation2 + $0x10] sm:$0xff] 0.0
    %24 = vst [vmem:[#allocation2 + $0x18] sm:$0xff] 0.0
    %25 = vst [vmem:[#allocation2 + $0x20] sm:$0xff] 0.0
    %26 = vst [vmem:[#allocation2 + $0x28] sm:$0xff] 0.0
    %27 = vst [vmem:[#allocation2 + $0x30] sm:$0xff] 0.0
    %28 = vst [vmem:[#allocation2 + $0x38] sm:$0xff] 0.0
    %29 = vst [vmem:[#allocation2 + $0x40] sm:$0xff] 0.0
    %30 = vst [vmem:[#allocation2 + $0x48] sm:$0xff] 0.0
    %31 = vst [vmem:[#allocation2 + $0x50] sm:$0xff] 0.0
    %32 = vst [vmem:[#allocation2 + $0x58] sm:$0xff] 0.0
    %33 = vst [vmem:[#allocation2 + $0x60] sm:$0xff] 0.0
    %34 = vst [vmem:[#allocation2 + $0x68] sm:$0xff] 0.0
    %35 = vst [vmem:[#allocation2 + $0x70] sm:$0xff] 0.0
    %36 = vst [vmem:[#allocation2 + $0x78] sm:$0xff] 0.0
    %37 = vst [vmem:[#allocation2 + $0x80] sm:$0xff] 0.0
    %38 = vst [vmem:[#allocation2 + $0x88] sm:$0xff] 0.0
    %39 = vst [vmem:[#allocation2 + $0x90] sm:$0xff] 0.0
    %40 = vst [vmem:[#allocation2 + $0x98] sm:$0xff] 0.0
    %41 = vst [vmem:[#allocation2 + $0xa0] sm:$0xff] 0.0
    %42 = vst [vmem:[#allocation2 + $0xa8] sm:$0xff] 0.0
    %43 = vst [vmem:[#allocation2 + $0xb0] sm:$0xff] 0.0
    %44 = vst [vmem:[#allocation2 + $0xb8] sm:$0xff] 0.0
    %45 = vst [vmem:[#allocation2 + $0xc0] sm:$0xff] 0.0
    %46 = vst [vmem:[#allocation2 + $0xc8] sm:$0xff] 0.0
    %47 = vst [vmem:[#allocation2 + $0xd0] sm:$0xff] 0.0
    %48 = vst [vmem:[#allocation2 + $0xd8] sm:$0xff] 0.0
    %49 = vst [vmem:[#allocation2 + $0xe0] sm:$0xff] 0.0
    %50 = vst [vmem:[#allocation2 + $0xe8] sm:$0xff] 0.0
    %51 = vst [vmem:[#allocation2 + $0xf0] sm:$0xff] 0.0
    %52 = vst [vmem:[#allocation2 + $0xf8] sm:$0xff] 0.0
    %53 = vst [vmem:[#allocation2 + $0x100] sm:$0xff] 0.0
    %54 = vst [vmem:[#allocation2 + $0x108] sm:$0xff] 0.0
    %55 = vst [vmem:[#allocation2 + $0x110] sm:$0xff] 0.0
    %56 = vst [vmem:[#allocation2 + $0x118] sm:$0xff] 0.0
    %57 = vst [vmem:[#allocation2 + $0x120] sm:$0xff] 0.0
    %58 = vst [vmem:[#allocation2 + $0x128] sm:$0xff] 0.0
    %59 = vst [vmem:[#allocation2 + $0x130] sm:$0xff] 0.0
    %60 = vst [vmem:[#allocation2 + $0x138] sm:$0xff] 0.0
    %61 = vst [vmem:[#allocation2 + $0x140] sm:$0xff] 0.0
    %62 = vst [vmem:[#allocation2 + $0x148] sm:$0xff] 0.0
    %63 = vst [vmem:[#allocation2 + $0x150] sm:$0xff] 0.0
    %64 = vst [vmem:[#allocation2 + $0x158] sm:$0xff] 0.0
    %65 = vst [vmem:[#allocation2 + $0x160] sm:$0xff] 0.0
    %66 = vst [vmem:[#allocation2 + $0x168] sm:$0xff] 0.0
    %67 = vst [vmem:[#allocation2 + $0x170] sm:$0xff] 0.0
    %68 = vst [vmem:[#allocation2 + $0x178] sm:$0xff] 0.0
    %69 = vst [vmem:[#allocation2 + $0x180] sm:$0xff] 0.0
    %70 = vst [vmem:[#allocation2 + $0x188] sm:$0xff] 0.0
    %71 = vst [vmem:[#allocation2 + $0x190] sm:$0xff] 0.0
    %72 = vst [vmem:[#allocation2 + $0x198] sm:$0xff] 0.0
    %73 = vst [vmem:[#allocation2 + $0x1a0] sm:$0xff] 0.0
    %74 = vst [vmem:[#allocation2 + $0x1a8] sm:$0xff] 0.0
    %75 = vst [vmem:[#allocation2 + $0x1b0] sm:$0xff] 0.0
    %76 = vst [vmem:[#allocation2 + $0x1b8] sm:$0xff] 0.0
    %77 = vst [vmem:[#allocation2 + $0x1c0] sm:$0xff] 0.0
    %78 = vst [vmem:[#allocation2 + $0x1c8] sm:$0xff] 0.0
    %79 = vst [vmem:[#allocation2 + $0x1d0] sm:$0xff] 0.0
    %80 = vst [vmem:[#allocation2 + $0x1d8] sm:$0xff] 0.0
    %81 = vst [vmem:[#allocation2 + $0x1e0] sm:$0xff] 0.0
    %82 = vst [vmem:[#allocation2 + $0x1e8] sm:$0xff] 0.0
    %83 = vst [vmem:[#allocation2 + $0x1f0] sm:$0xff] 0.0
    %84 = vst [vmem:[#allocation2 + $0x1f8] sm:$0xff] 0.0
  $region21: #{fp8_mlp_forward.9} parent=0 // pred_fallthru
    _
  %v85 = vld [vmem:[%s2] sm:$0xff]
  %v86 = vld [vmem:[%s2 + $0x8] sm:$0xff]
  %v87 = vld [vmem:[%s2 + $0x10] sm:$0xff]
  %v88 = vld [vmem:[%s2 + $0x18] sm:$0xff]
  %v89 = vld [vmem:[%s2 + $0x20] sm:$0xff]
  %v90 = vld [vmem:[%s2 + $0x28] sm:$0xff]
  %v91 = vld [vmem:[%s2 + $0x30] sm:$0xff]
  %v92 = vld [vmem:[%s2 + $0x38] sm:$0xff]
  %v93 = vld [vmem:[%s2 + $0x40] sm:$0xff]
  %v94 = vld [vmem:[%s2 + $0x48] sm:$0xff]
  %v95 = vld [vmem:[%s2 + $0x50] sm:$0xff]
  %v96 = vld [vmem:[%s2 + $0x58] sm:$0xff]
  %v97 = vld [vmem:[%s2 + $0x60] sm:$0xff]
  %v98 = vld [vmem:[%s2 + $0x68] sm:$0xff]
  %v99 = vld [vmem:[%s2 + $0x70] sm:$0xff]
  %v100 = vld [vmem:[%s2 + $0x78] sm:$0xff]
  %v101 = vld [vmem:[%s3] sm:$0xff]
  %v102 = vld [vmem:[%s3 + $0x8] sm:$0xff]
  %v103 = vld [vmem:[%s3 + $0x10] sm:$0xff]
  %v104 = vld [vmem:[%s3 + $0x18] sm:$0xff]
  %v105 = vld [vmem:[%s3 + $0x20] sm:$0xff]
  %v106 = vld [vmem:[%s3 + $0x28] sm:$0xff]
  %v107 = vld [vmem:[%s3 + $0x30] sm:$0xff]
  %v108 = vld [vmem:[%s3 + $0x38] sm:$0xff]
  %v109 = vld [vmem:[%s3 + $0x40] sm:$0xff]
  %v110 = vld [vmem:[%s3 + $0x48] sm:$0xff]
  %v111 = vld [vmem:[%s3 + $0x50] sm:$0xff]
  %v112 = vld [vmem:[%s3 + $0x58] sm:$0xff]
  %v113 = vld [vmem:[%s3 + $0x60] sm:$0xff]
  %v114 = vld [vmem:[%s3 + $0x68] sm:$0xff]
  %v115 = vld [vmem:[%s3 + $0x70] sm:$0xff]
  %v116 = vld [vmem:[%s3 + $0x78] sm:$0xff]
  %v117 = vld [vmem:[%s3 + $0x80] sm:$0xff]
  %v118 = vld [vmem:[%s3 + $0x88] sm:$0xff]
  %v119 = vld [vmem:[%s3 + $0x90] sm:$0xff]
  %v120 = vld [vmem:[%s3 + $0x98] sm:$0xff]
  %v121 = vld [vmem:[%s3 + $0xa0] sm:$0xff]
  %v122 = vld [vmem:[%s3 + $0xa8] sm:$0xff]
  %v123 = vld [vmem:[%s3 + $0xb0] sm:$0xff]
  %v124 = vld [vmem:[%s3 + $0xb8] sm:$0xff]
  %v125 = vld [vmem:[%s3 + $0xc0] sm:$0xff]
  %v126 = vld [vmem:[%s3 + $0xc8] sm:$0xff]
  %v127 = vld [vmem:[%s3 + $0xd0] sm:$0xff]
  %v128 = vld [vmem:[%s3 + $0xd8] sm:$0xff]
  %v129 = vld [vmem:[%s3 + $0xe0] sm:$0xff]
  %v130 = vld [vmem:[%s3 + $0xe8] sm:$0xff]
  %v131 = vld [vmem:[%s3 + $0xf0] sm:$0xff]
  %v132 = vld [vmem:[%s3 + $0xf8] sm:$0xff]
  %v133 = vld [vmem:[%s3 + $0x100] sm:$0xff]
  %v134 = vld [vmem:[%s3 + $0x108] sm:$0xff]
  %v135 = vld [vmem:[%s3 + $0x110] sm:$0xff]
  %v136 = vld [vmem:[%s3 + $0x118] sm:$0xff]
  %v137 = vld [vmem:[%s3 + $0x120] sm:$0xff]
  %v138 = vld [vmem:[%s3 + $0x128] sm:$0xff]
  %v139 = vld [vmem:[%s3 + $0x130] sm:$0xff]
  %v140 = vld [vmem:[%s3 + $0x138] sm:$0xff]
  %v141 = vld [vmem:[%s3 + $0x140] sm:$0xff]
  %v142 = vld [vmem:[%s3 + $0x148] sm:$0xff]
  %v143 = vld [vmem:[%s3 + $0x150] sm:$0xff]
  %v144 = vld [vmem:[%s3 + $0x158] sm:$0xff]
  %v145 = vld [vmem:[%s3 + $0x160] sm:$0xff]
  %v146 = vld [vmem:[%s3 + $0x168] sm:$0xff]
  %v147 = vld [vmem:[%s3 + $0x170] sm:$0xff]
  %v148 = vld [vmem:[%s3 + $0x178] sm:$0xff]
  %v149 = vld [vmem:[%s3 + $0x180] sm:$0xff]
  %v150 = vld [vmem:[%s3 + $0x188] sm:$0xff]
  %v151 = vld [vmem:[%s3 + $0x190] sm:$0xff]
  %v152 = vld [vmem:[%s3 + $0x198] sm:$0xff]
  %v153 = vld [vmem:[%s3 + $0x1a0] sm:$0xff]
  %v154 = vld [vmem:[%s3 + $0x1a8] sm:$0xff]
  %v155 = vld [vmem:[%s3 + $0x1b0] sm:$0xff]
  %v156 = vld [vmem:[%s3 + $0x1b8] sm:$0xff]
  %v157 = vld [vmem:[%s3 + $0x1c0] sm:$0xff]
  %v158 = vld [vmem:[%s3 + $0x1c8] sm:$0xff]
  %v159 = vld [vmem:[%s3 + $0x1d0] sm:$0xff]
  %v160 = vld [vmem:[%s3 + $0x1d8] sm:$0xff]
  %v161 = vld [vmem:[%s3 + $0x1e0] sm:$0xff]
  %v162 = vld [vmem:[%s3 + $0x1e8] sm:$0xff]
  %v163 = vld [vmem:[%s3 + $0x1f0] sm:$0xff]
  %v164 = vld [vmem:[%s3 + $0x1f8] sm:$0xff]
  %v165 = vld [vmem:[%s0] sm:$0xff]
  %v166 = vld [vmem:[%s0 + $0x10] sm:$0xff]
  %v167 = vld [vmem:[%s0 + $0x20] sm:$0xff]
  %v168 = vld [vmem:[%s0 + $0x30] sm:$0xff]
  %v169 = vunpack.c.0.bf8 %v165
  %v170 = vunpack.c.1.bf8 %v165
  %v171 = vunpack.c.2.bf8 %v165
  %v172 = vunpack.c.3.bf8 %v165
  %v173 = vunpack.c.0.bf8 %v166
  %v174 = vunpack.c.1.bf8 %v166
  %v175 = vunpack.c.2.bf8 %v166
  %v176 = vunpack.c.3.bf8 %v166
  %v177 = vunpack.c.0.bf8 %v167
  %v178 = vunpack.c.1.bf8 %v167
  %v179 = vunpack.c.2.bf8 %v167
  %v180 = vunpack.c.3.bf8 %v167
  %v181 = vunpack.c.0.bf8 %v168
  %v182 = vunpack.c.1.bf8 %v168
  %v183 = vunpack.c.2.bf8 %v168
  %v184 = vunpack.c.3.bf8 %v168
  %v185 = vld [vmem:[%s1] sm:$0xff]
  %v186 = vld [vmem:[%s1 + $0x10] sm:$0xff]
  %v187 = vld [vmem:[%s1 + $0x20] sm:$0xff]
  %v188 = vld [vmem:[%s1 + $0x30] sm:$0xff]
  %v189 = vld [vmem:[%s1 + $0x40] sm:$0xff]
  %v190 = vld [vmem:[%s1 + $0x50] sm:$0xff]
  %v191 = vld [vmem:[%s1 + $0x60] sm:$0xff]
  %v192 = vld [vmem:[%s1 + $0x70] sm:$0xff]
  %v193 = vld [vmem:[%s1 + $0x80] sm:$0xff]
  %v194 = vld [vmem:[%s1 + $0x90] sm:$0xff]
  %v195 = vld [vmem:[%s1 + $0xa0] sm:$0xff]
  %v196 = vld [vmem:[%s1 + $0xb0] sm:$0xff]
  %v197 = vld [vmem:[%s1 + $0xc0] sm:$0xff]
  %v198 = vld [vmem:[%s1 + $0xd0] sm:$0xff]
  %v199 = vld [vmem:[%s1 + $0xe0] sm:$0xff]
  %v200 = vld [vmem:[%s1 + $0xf0] sm:$0xff]
  %v201 = vunpack.c.0.bf8 %v185
  %v202 = vunpack.c.1.bf8 %v185
  %v203 = vunpack.c.2.bf8 %v185
  %v204 = vunpack.c.3.bf8 %v185
  %v205 = vunpack.c.0.bf8 %v186
  %v206 = vunpack.c.1.bf8 %v186
  %v207 = vunpack.c.2.bf8 %v186
  %v208 = vunpack.c.3.bf8 %v186
  %v209 = vunpack.c.0.bf8 %v187
  %v210 = vunpack.c.1.bf8 %v187
  %v211 = vunpack.c.2.bf8 %v187
  %v212 = vunpack.c.3.bf8 %v187
  %v213 = vunpack.c.0.bf8 %v188
  %v214 = vunpack.c.1.bf8 %v188
  %v215 = vunpack.c.2.bf8 %v188
  %v216 = vunpack.c.3.bf8 %v188
  %v217 = vunpack.c.0.bf8 %v189
  %v218 = vunpack.c.1.bf8 %v189
  %v219 = vunpack.c.2.bf8 %v189
  %v220 = vunpack.c.3.bf8 %v189
  %v221 = vunpack.c.0.bf8 %v190
  %v222 = vunpack.c.1.bf8 %v190
  %v223 = vunpack.c.2.bf8 %v190
  %v224 = vunpack.c.3.bf8 %v190
  %v225 = vunpack.c.0.bf8 %v191
  %v226 = vunpack.c.1.bf8 %v191
  %v227 = vunpack.c.2.bf8 %v191
  %v228 = vunpack.c.3.bf8 %v191
  %v229 = vunpack.c.0.bf8 %v192
  %v230 = vunpack.c.1.bf8 %v192
  %v231 = vunpack.c.2.bf8 %v192
  %v232 = vunpack.c.3.bf8 %v192
  %v233 = vunpack.c.0.bf8 %v193
  %v234 = vunpack.c.1.bf8 %v193
  %v235 = vunpack.c.2.bf8 %v193
  %v236 = vunpack.c.3.bf8 %v193
  %v237 = vunpack.c.0.bf8 %v194
  %v238 = vunpack.c.1.bf8 %v194
  %v239 = vunpack.c.2.bf8 %v194
  %v240 = vunpack.c.3.bf8 %v194
  %v241 = vunpack.c.0.bf8 %v195
  %v242 = vunpack.c.1.bf8 %v195
  %v243 = vunpack.c.2.bf8 %v195
  %v244 = vunpack.c.3.bf8 %v195
  %v245 = vunpack.c.0.bf8 %v196
  %v246 = vunpack.c.1.bf8 %v196
  %v247 = vunpack.c.2.bf8 %v196
  %v248 = vunpack.c.3.bf8 %v196
  %v249 = vunpack.c.0.bf8 %v197
  %v250 = vunpack.c.1.bf8 %v197
  %v251 = vunpack.c.2.bf8 %v197
  %v252 = vunpack.c.3.bf8 %v197
  %v253 = vunpack.c.0.bf8 %v198
  %v254 = vunpack.c.1.bf8 %v198
  %v255 = vunpack.c.2.bf8 %v198
  %v256 = vunpack.c.3.bf8 %v198
  %v257 = vunpack.c.0.bf8 %v199
  %v258 = vunpack.c.1.bf8 %v199
  %v259 = vunpack.c.2.bf8 %v199
  %v260 = vunpack.c.3.bf8 %v199
  %v261 = vunpack.c.0.bf8 %v200
  %v262 = vunpack.c.1.bf8 %v200
  %v263 = vunpack.c.2.bf8 %v200
  %v264 = vunpack.c.3.bf8 %v200
  %266 = vset.pattern.permute.xlu0 0
  %267 = vperm.xlu0 %266, %v85
  %v268 = vpop.permute.xlu0 %267
  %271 = vset.pattern.permute.xlu0 0
  %272 = vperm.xlu0 %271, %v86
  %v273 = vpop.permute.xlu0 %272
  %276 = vset.pattern.permute.xlu0 0
  %277 = vperm.xlu0 %276, %v87
  %v278 = vpop.permute.xlu0 %277
  %281 = vset.pattern.permute.xlu0 0
  %282 = vperm.xlu0 %281, %v88
  %v283 = vpop.permute.xlu0 %282
  %286 = vset.pattern.permute.xlu0 0
  %287 = vperm.xlu0 %286, %v89
  %v288 = vpop.permute.xlu0 %287
  %291 = vset.pattern.permute.xlu0 0
  %292 = vperm.xlu0 %291, %v90
  %v293 = vpop.permute.xlu0 %292
  %296 = vset.pattern.permute.xlu0 0
  %297 = vperm.xlu0 %296, %v91
  %v298 = vpop.permute.xlu0 %297
  %301 = vset.pattern.permute.xlu0 0
  %302 = vperm.xlu0 %301, %v92
  %v303 = vpop.permute.xlu0 %302
  %306 = vset.pattern.permute.xlu0 0
  %307 = vperm.xlu0 %306, %v93
  %v308 = vpop.permute.xlu0 %307
  %311 = vset.pattern.permute.xlu0 0
  %312 = vperm.xlu0 %311, %v94
  %v313 = vpop.permute.xlu0 %312
  %316 = vset.pattern.permute.xlu0 0
  %317 = vperm.xlu0 %316, %v95
  %v318 = vpop.permute.xlu0 %317
  %321 = vset.pattern.permute.xlu0 0
  %322 = vperm.xlu0 %321, %v96
  %v323 = vpop.permute.xlu0 %322
  %326 = vset.pattern.permute.xlu0 0
  %327 = vperm.xlu0 %326, %v97
  %v328 = vpop.permute.xlu0 %327
  %331 = vset.pattern.permute.xlu0 0
  %332 = vperm.xlu0 %331, %v98
  %v333 = vpop.permute.xlu0 %332
  %336 = vset.pattern.permute.xlu0 0
  %337 = vperm.xlu0 %336, %v99
  %v338 = vpop.permute.xlu0 %337
  %341 = vset.pattern.permute.xlu0 0
  %342 = vperm.xlu0 %341, %v100
  %v343 = vpop.permute.xlu0 %342
  %v345 = vmul.f32 %v169, %v268
  %v346 = vmul.f32 %v170, %v273
  %v347 = vmul.f32 %v171, %v278
  %v348 = vmul.f32 %v172, %v283
  %v349 = vmul.f32 %v173, %v288
  %v350 = vmul.f32 %v174, %v293
  %v351 = vmul.f32 %v175, %v298
  %v352 = vmul.f32 %v176, %v303
  %v353 = vmul.f32 %v177, %v308
  %v354 = vmul.f32 %v178, %v313
  %v355 = vmul.f32 %v179, %v318
  %v356 = vmul.f32 %v180, %v323
  %v357 = vmul.f32 %v181, %v328
  %v358 = vmul.f32 %v182, %v333
  %v359 = vmul.f32 %v183, %v338
  %v360 = vmul.f32 %v184, %v343
  %v361 = vpack.c.bf16 %v346, %v345
  %v362 = vpack.c.bf16 %v348, %v347
  %v363 = vpack.c.bf16 %v350, %v349
  %v364 = vpack.c.bf16 %v352, %v351
  %v365 = vpack.c.bf16 %v354, %v353
  %v366 = vpack.c.bf16 %v356, %v355
  %v367 = vpack.c.bf16 %v358, %v357
  %v368 = vpack.c.bf16 %v360, %v359
  %v377 = vunpack.c.l.b16 %v361
  %v378 = vunpack.c.h.b16 %v361
  %v379 = vunpack.c.l.b16 %v362
  %v380 = vunpack.c.h.b16 %v362
  %v381 = vunpack.c.l.b16 %v363
  %v382 = vunpack.c.h.b16 %v363
  %v383 = vunpack.c.l.b16 %v364
  %v384 = vunpack.c.h.b16 %v364
  %v385 = vunpack.c.l.b16 %v365
  %v386 = vunpack.c.h.b16 %v365
  %v387 = vunpack.c.l.b16 %v366
  %v388 = vunpack.c.h.b16 %v366
  %v389 = vunpack.c.l.b16 %v367
  %v390 = vunpack.c.h.b16 %v367
  %v391 = vunpack.c.l.b16 %v368
  %v392 = vunpack.c.h.b16 %v368
  %v393 = vpack.c.b16 %v377, %v377
  %v394 = vpack.c.b16 %v378, %v378
  %v395 = vpack.c.b16 %v379, %v379
  %v396 = vpack.c.b16 %v380, %v380
  %v397 = vpack.c.b16 %v381, %v381
  %v398 = vpack.c.b16 %v382, %v382
  %v399 = vpack.c.b16 %v383, %v383
  %v400 = vpack.c.b16 %v384, %v384
  %v401 = vpack.c.b16 %v385, %v385
  %v402 = vpack.c.b16 %v386, %v386
  %v403 = vpack.c.b16 %v387, %v387
  %v404 = vpack.c.b16 %v388, %v388
  %v405 = vpack.c.b16 %v389, %v389
  %v406 = vpack.c.b16 %v390, %v390
  %v407 = vpack.c.b16 %v391, %v391
  %v408 = vpack.c.b16 %v392, %v392
  %425 = vst [vmem:[#allocation3] sm:$0xf] %v393
  %426 = vst [vmem:[#allocation3 + $0x8] sm:$0xf] %v394
  %427 = vst [vmem:[#allocation3 + $0x10] sm:$0xf] %v395
  %428 = vst [vmem:[#allocation3 + $0x18] sm:$0xf] %v396
  %429 = vst [vmem:[#allocation3 + $0x20] sm:$0xf] %v397
  %430 = vst [vmem:[#allocation3 + $0x28] sm:$0xf] %v398
  %431 = vst [vmem:[#allocation3 + $0x30] sm:$0xf] %v399
  %432 = vst [vmem:[#allocation3 + $0x38] sm:$0xf] %v400
  %433 = vst [vmem:[#allocation3 + $0x40] sm:$0xf] %v401
  %434 = vst [vmem:[#allocation3 + $0x48] sm:$0xf] %v402
  %435 = vst [vmem:[#allocation3 + $0x50] sm:$0xf] %v403
  %436 = vst [vmem:[#allocation3 + $0x58] sm:$0xf] %v404
  %437 = vst [vmem:[#allocation3 + $0x60] sm:$0xf] %v405
  %438 = vst [vmem:[#allocation3 + $0x68] sm:$0xf] %v406
  %439 = vst [vmem:[#allocation3 + $0x70] sm:$0xf] %v407
  %440 = vst [vmem:[#allocation3 + $0x78] sm:$0xf] %v408
  %442 = vset.pattern.permute.xlu0 0
  %443 = vperm.xlu0 %442, %v101
  %v444 = vpop.permute.xlu0 %443
  %447 = vset.pattern.permute.xlu0 0
  %448 = vperm.xlu0 %447, %v102
  %v449 = vpop.permute.xlu0 %448
  %452 = vset.pattern.permute.xlu0 0
  %453 = vperm.xlu0 %452, %v103
  %v454 = vpop.permute.xlu0 %453
  %457 = vset.pattern.permute.xlu0 0
  %458 = vperm.xlu0 %457, %v104
  %v459 = vpop.permute.xlu0 %458
  %462 = vset.pattern.permute.xlu0 0
  %463 = vperm.xlu0 %462, %v105
  %v464 = vpop.permute.xlu0 %463
  %467 = vset.pattern.permute.xlu0 0
  %468 = vperm.xlu0 %467, %v106
  %v469 = vpop.permute.xlu0 %468
  %472 = vset.pattern.permute.xlu0 0
  %473 = vperm.xlu0 %472, %v107
  %v474 = vpop.permute.xlu0 %473
  %477 = vset.pattern.permute.xlu0 0
  %478 = vperm.xlu0 %477, %v108
  %v479 = vpop.permute.xlu0 %478
  %482 = vset.pattern.permute.xlu0 0
  %483 = vperm.xlu0 %482, %v109
  %v484 = vpop.permute.xlu0 %483
  %487 = vset.pattern.permute.xlu0 0
  %488 = vperm.xlu0 %487, %v110
  %v489 = vpop.permute.xlu0 %488
  %492 = vset.pattern.permute.xlu0 0
  %493 = vperm.xlu0 %492, %v111
  %v494 = vpop.permute.xlu0 %493
  %497 = vset.pattern.permute.xlu0 0
  %498 = vperm.xlu0 %497, %v112
  %v499 = vpop.permute.xlu0 %498
  %502 = vset.pattern.permute.xlu0 0
  %503 = vperm.xlu0 %502, %v113
  %v504 = vpop.permute.xlu0 %503
  %507 = vset.pattern.permute.xlu0 0
  %508 = vperm.xlu0 %507, %v114
  %v509 = vpop.permute.xlu0 %508
  %512 = vset.pattern.permute.xlu0 0
  %513 = vperm.xlu0 %512, %v115
  %v514 = vpop.permute.xlu0 %513
  %517 = vset.pattern.permute.xlu0 0
  %518 = vperm.xlu0 %517, %v116
  %v519 = vpop.permute.xlu0 %518
  %522 = vset.pattern.permute.xlu0 0
  %523 = vperm.xlu0 %522, %v117
  %v524 = vpop.permute.xlu0 %523
  %527 = vset.pattern.permute.xlu0 0
  %528 = vperm.xlu0 %527, %v118
  %v529 = vpop.permute.xlu0 %528
  %532 = vset.pattern.permute.xlu0 0
  %533 = vperm.xlu0 %532, %v119
  %v534 = vpop.permute.xlu0 %533
  %537 = vset.pattern.permute.xlu0 0
  %538 = vperm.xlu0 %537, %v120
  %v539 = vpop.permute.xlu0 %538
  %542 = vset.pattern.permute.xlu0 0
  %543 = vperm.xlu0 %542, %v121
  %v544 = vpop.permute.xlu0 %543
  %547 = vset.pattern.permute.xlu0 0
  %548 = vperm.xlu0 %547, %v122
  %v549 = vpop.permute.xlu0 %548
  %552 = vset.pattern.permute.xlu0 0
  %553 = vperm.xlu0 %552, %v123
  %v554 = vpop.permute.xlu0 %553
  %557 = vset.pattern.permute.xlu0 0
  %558 = vperm.xlu0 %557, %v124
  %v559 = vpop.permute.xlu0 %558
  %562 = vset.pattern.permute.xlu0 0
  %563 = vperm.xlu0 %562, %v125
  %v564 = vpop.permute.xlu0 %563
  %567 = vset.pattern.permute.xlu0 0
  %568 = vperm.xlu0 %567, %v126
  %v569 = vpop.permute.xlu0 %568
  %572 = vset.pattern.permute.xlu0 0
  %573 = vperm.xlu0 %572, %v127
  %v574 = vpop.permute.xlu0 %573
  %577 = vset.pattern.permute.xlu0 0
  %578 = vperm.xlu0 %577, %v128
  %v579 = vpop.permute.xlu0 %578
  %582 = vset.pattern.permute.xlu0 0
  %583 = vperm.xlu0 %582, %v129
  %v584 = vpop.permute.xlu0 %583
  %587 = vset.pattern.permute.xlu0 0
  %588 = vperm.xlu0 %587, %v130
  %v589 = vpop.permute.xlu0 %588
  %592 = vset.pattern.permute.xlu0 0
  %593 = vperm.xlu0 %592, %v131
  %v594 = vpop.permute.xlu0 %593
  %597 = vset.pattern.permute.xlu0 0
  %598 = vperm.xlu0 %597, %v132
  %v599 = vpop.permute.xlu0 %598
  %602 = vset.pattern.permute.xlu0 0
  %603 = vperm.xlu0 %602, %v133
  %v604 = vpop.permute.xlu0 %603
  %607 = vset.pattern.permute.xlu0 0
  %608 = vperm.xlu0 %607, %v134
  %v609 = vpop.permute.xlu0 %608
  %612 = vset.pattern.permute.xlu0 0
  %613 = vperm.xlu0 %612, %v135
  %v614 = vpop.permute.xlu0 %613
  %617 = vset.pattern.permute.xlu0 0
  %618 = vperm.xlu0 %617, %v136
  %v619 = vpop.permute.xlu0 %618
  %622 = vset.pattern.permute.xlu0 0
  %623 = vperm.xlu0 %622, %v137
  %v624 = vpop.permute.xlu0 %623
  %627 = vset.pattern.permute.xlu0 0
  %628 = vperm.xlu0 %627, %v138
  %v629 = vpop.permute.xlu0 %628
  %632 = vset.pattern.permute.xlu0 0
  %633 = vperm.xlu0 %632, %v139
  %v634 = vpop.permute.xlu0 %633
  %637 = vset.pattern.permute.xlu0 0
  %638 = vperm.xlu0 %637, %v140
  %v639 = vpop.permute.xlu0 %638
  %642 = vset.pattern.permute.xlu0 0
  %643 = vperm.xlu0 %642, %v141
  %v644 = vpop.permute.xlu0 %643
  %647 = vset.pattern.permute.xlu0 0
  %648 = vperm.xlu0 %647, %v142
  %v649 = vpop.permute.xlu0 %648
  %652 = vset.pattern.permute.xlu0 0
  %653 = vperm.xlu0 %652, %v143
  %v654 = vpop.permute.xlu0 %653
  %657 = vset.pattern.permute.xlu0 0
  %658 = vperm.xlu0 %657, %v144
  %v659 = vpop.permute.xlu0 %658
  %662 = vset.pattern.permute.xlu0 0
  %663 = vperm.xlu0 %662, %v145
  %v664 = vpop.permute.xlu0 %663
  %667 = vset.pattern.permute.xlu0 0
  %668 = vperm.xlu0 %667, %v146
  %v669 = vpop.permute.xlu0 %668
  %672 = vset.pattern.permute.xlu0 0
  %673 = vperm.xlu0 %672, %v147
  %v674 = vpop.permute.xlu0 %673
  %677 = vset.pattern.permute.xlu0 0
  %678 = vperm.xlu0 %677, %v148
  %v679 = vpop.permute.xlu0 %678
  %682 = vset.pattern.permute.xlu0 0
  %683 = vperm.xlu0 %682, %v149
  %v684 = vpop.permute.xlu0 %683
  %687 = vset.pattern.permute.xlu0 0
  %688 = vperm.xlu0 %687, %v150
  %v689 = vpop.permute.xlu0 %688
  %692 = vset.pattern.permute.xlu0 0
  %693 = vperm.xlu0 %692, %v151
  %v694 = vpop.permute.xlu0 %693
  %697 = vset.pattern.permute.xlu0 0
  %698 = vperm.xlu0 %697, %v152
  %v699 = vpop.permute.xlu0 %698
  %702 = vset.pattern.permute.xlu0 0
  %703 = vperm.xlu0 %702, %v153
  %v704 = vpop.permute.xlu0 %703
  %707 = vset.pattern.permute.xlu0 0
  %708 = vperm.xlu0 %707, %v154
  %v709 = vpop.permute.xlu0 %708
  %712 = vset.pattern.permute.xlu0 0
  %713 = vperm.xlu0 %712, %v155
  %v714 = vpop.permute.xlu0 %713
  %717 = vset.pattern.permute.xlu0 0
  %718 = vperm.xlu0 %717, %v156
  %v719 = vpop.permute.xlu0 %718
  %722 = vset.pattern.permute.xlu0 0
  %723 = vperm.xlu0 %722, %v157
  %v724 = vpop.permute.xlu0 %723
  %727 = vset.pattern.permute.xlu0 0
  %728 = vperm.xlu0 %727, %v158
  %v729 = vpop.permute.xlu0 %728
  %732 = vset.pattern.permute.xlu0 0
  %733 = vperm.xlu0 %732, %v159
  %v734 = vpop.permute.xlu0 %733
  %737 = vset.pattern.permute.xlu0 0
  %738 = vperm.xlu0 %737, %v160
  %v739 = vpop.permute.xlu0 %738
  %742 = vset.pattern.permute.xlu0 0
  %743 = vperm.xlu0 %742, %v161
  %v744 = vpop.permute.xlu0 %743
  %747 = vset.pattern.permute.xlu0 0
  %748 = vperm.xlu0 %747, %v162
  %v749 = vpop.permute.xlu0 %748
  %752 = vset.pattern.permute.xlu0 0
  %753 = vperm.xlu0 %752, %v163
  %v754 = vpop.permute.xlu0 %753
  %757 = vset.pattern.permute.xlu0 0
  %758 = vperm.xlu0 %757, %v164
  %v759 = vpop.permute.xlu0 %758
  %v761 = vmul.f32 %v201, %v444
  %v762 = vmul.f32 %v202, %v449
  %v763 = vmul.f32 %v203, %v454
  %v764 = vmul.f32 %v204, %v459
  %v765 = vmul.f32 %v205, %v464
  %v766 = vmul.f32 %v206, %v469
  %v767 = vmul.f32 %v207, %v474
  %v768 = vmul.f32 %v208, %v479
  %v769 = vmul.f32 %v209, %v484
  %v770 = vmul.f32 %v210, %v489
  %v771 = vmul.f32 %v211, %v494
  %v772 = vmul.f32 %v212, %v499
  %v773 = vmul.f32 %v213, %v504
  %v774 = vmul.f32 %v214, %v509
  %v775 = vmul.f32 %v215, %v514
  %v776 = vmul.f32 %v216, %v519
  %v777 = vmul.f32 %v217, %v524
  %v778 = vmul.f32 %v218, %v529
  %v779 = vmul.f32 %v219, %v534
  %v780 = vmul.f32 %v220, %v539
  %v781 = vmul.f32 %v221, %v544
  %v782 = vmul.f32 %v222, %v549
  %v783 = vmul.f32 %v223, %v554
  %v784 = vmul.f32 %v224, %v559
  %v785 = vmul.f32 %v225, %v564
  %v786 = vmul.f32 %v226, %v569
  %v787 = vmul.f32 %v227, %v574
  %v788 = vmul.f32 %v228, %v579
  %v789 = vmul.f32 %v229, %v584
  %v790 = vmul.f32 %v230, %v589
  %v791 = vmul.f32 %v231, %v594
  %v792 = vmul.f32 %v232, %v599
  %v793 = vmul.f32 %v233, %v604
  %v794 = vmul.f32 %v234, %v609
  %v795 = vmul.f32 %v235, %v614
  %v796 = vmul.f32 %v236, %v619
  %v797 = vmul.f32 %v237, %v624
  %v798 = vmul.f32 %v238, %v629
  %v799 = vmul.f32 %v239, %v634
  %v800 = vmul.f32 %v240, %v639
  %v801 = vmul.f32 %v241, %v644
  %v802 = vmul.f32 %v242, %v649
  %v803 = vmul.f32 %v243, %v654
  %v804 = vmul.f32 %v244, %v659
  %v805 = vmul.f32 %v245, %v664
  %v806 = vmul.f32 %v246, %v669
  %v807 = vmul.f32 %v247, %v674
  %v808 = vmul.f32 %v248, %v679
  %v809 = vmul.f32 %v249, %v684
  %v810 = vmul.f32 %v250, %v689
  %v811 = vmul.f32 %v251, %v694
  %v812 = vmul.f32 %v252, %v699
  %v813 = vmul.f32 %v253, %v704
  %v814 = vmul.f32 %v254, %v709
  %v815 = vmul.f32 %v255, %v714
  %v816 = vmul.f32 %v256, %v719
  %v817 = vmul.f32 %v257, %v724
  %v818 = vmul.f32 %v258, %v729
  %v819 = vmul.f32 %v259, %v734
  %v820 = vmul.f32 %v260, %v739
  %v821 = vmul.f32 %v261, %v744
  %v822 = vmul.f32 %v262, %v749
  %v823 = vmul.f32 %v263, %v754
  %v824 = vmul.f32 %v264, %v759
  %v825 = vpack.c.bf16 %v762, %v761
  %v826 = vpack.c.bf16 %v764, %v763
  %v827 = vpack.c.bf16 %v766, %v765
  %v828 = vpack.c.bf16 %v768, %v767
  %v829 = vpack.c.bf16 %v770, %v769
  %v830 = vpack.c.bf16 %v772, %v771
  %v831 = vpack.c.bf16 %v774, %v773
  %v832 = vpack.c.bf16 %v776, %v775
  %v833 = vpack.c.bf16 %v778, %v777
  %v834 = vpack.c.bf16 %v780, %v779
  %v835 = vpack.c.bf16 %v782, %v781
  %v836 = vpack.c.bf16 %v784, %v783
  %v837 = vpack.c.bf16 %v786, %v785
  %v838 = vpack.c.bf16 %v788, %v787
  %v839 = vpack.c.bf16 %v790, %v789
  %v840 = vpack.c.bf16 %v792, %v791
  %v841 = vpack.c.bf16 %v794, %v793
  %v842 = vpack.c.bf16 %v796, %v795
  %v843 = vpack.c.bf16 %v798, %v797
  %v844 = vpack.c.bf16 %v800, %v799
  %v845 = vpack.c.bf16 %v802, %v801
  %v846 = vpack.c.bf16 %v804, %v803
  %v847 = vpack.c.bf16 %v806, %v805
  %v848 = vpack.c.bf16 %v808, %v807
  %v849 = vpack.c.bf16 %v810, %v809
  %v850 = vpack.c.bf16 %v812, %v811
  %v851 = vpack.c.bf16 %v814, %v813
  %v852 = vpack.c.bf16 %v816, %v815
  %v853 = vpack.c.bf16 %v818, %v817
  %v854 = vpack.c.bf16 %v820, %v819
  %v855 = vpack.c.bf16 %v822, %v821
  %v856 = vpack.c.bf16 %v824, %v823
  %v889 = vunpack.c.l.b16 %v825
  %v890 = vunpack.c.h.b16 %v825
  %v891 = vunpack.c.l.b16 %v826
  %v892 = vunpack.c.h.b16 %v826
  %v893 = vunpack.c.l.b16 %v827
  %v894 = vunpack.c.h.b16 %v827
  %v895 = vunpack.c.l.b16 %v828
  %v896 = vunpack.c.h.b16 %v828
  %v897 = vunpack.c.l.b16 %v829
  %v898 = vunpack.c.h.b16 %v829
  %v899 = vunpack.c.l.b16 %v830
  %v900 = vunpack.c.h.b16 %v830
  %v901 = vunpack.c.l.b16 %v831
  %v902 = vunpack.c.h.b16 %v831
  %v903 = vunpack.c.l.b16 %v832
  %v904 = vunpack.c.h.b16 %v832
  %v905 = vunpack.c.l.b16 %v833
  %v906 = vunpack.c.h.b16 %v833
  %v907 = vunpack.c.l.b16 %v834
  %v908 = vunpack.c.h.b16 %v834
  %v909 = vunpack.c.l.b16 %v835
  %v910 = vunpack.c.h.b16 %v835
  %v911 = vunpack.c.l.b16 %v836
  %v912 = vunpack.c.h.b16 %v836
  %v913 = vunpack.c.l.b16 %v837
  %v914 = vunpack.c.h.b16 %v837
  %v915 = vunpack.c.l.b16 %v838
  %v916 = vunpack.c.h.b16 %v838
  %v917 = vunpack.c.l.b16 %v839
  %v918 = vunpack.c.h.b16 %v839
  %v919 = vunpack.c.l.b16 %v840
  %v920 = vunpack.c.h.b16 %v840
  %v921 = vunpack.c.l.b16 %v841
  %v922 = vunpack.c.h.b16 %v841
  %v923 = vunpack.c.l.b16 %v842
  %v924 = vunpack.c.h.b16 %v842
  %v925 = vunpack.c.l.b16 %v843
  %v926 = vunpack.c.h.b16 %v843
  %v927 = vunpack.c.l.b16 %v844
  %v928 = vunpack.c.h.b16 %v844
  %v929 = vunpack.c.l.b16 %v845
  %v930 = vunpack.c.h.b16 %v845
  %v931 = vunpack.c.l.b16 %v846
  %v932 = vunpack.c.h.b16 %v846
  %v933 = vunpack.c.l.b16 %v847
  %v934 = vunpack.c.h.b16 %v847
  %v935 = vunpack.c.l.b16 %v848
  %v936 = vunpack.c.h.b16 %v848
  %v937 = vunpack.c.l.b16 %v849
  %v938 = vunpack.c.h.b16 %v849
  %v939 = vunpack.c.l.b16 %v850
  %v940 = vunpack.c.h.b16 %v850
  %v941 = vunpack.c.l.b16 %v851
  %v942 = vunpack.c.h.b16 %v851
  %v943 = vunpack.c.l.b16 %v852
  %v944 = vunpack.c.h.b16 %v852
  %v945 = vunpack.c.l.b16 %v853
  %v946 = vunpack.c.h.b16 %v853
  %v947 = vunpack.c.l.b16 %v854
  %v948 = vunpack.c.h.b16 %v854
  %v949 = vunpack.c.l.b16 %v855
  %v950 = vunpack.c.h.b16 %v855
  %v951 = vunpack.c.l.b16 %v856
  %v952 = vunpack.c.h.b16 %v856
  %v953 = vpack.c.b16 %v889, %v889
  %v954 = vpack.c.b16 %v890, %v890
  %v955 = vpack.c.b16 %v891, %v891
  %v956 = vpack.c.b16 %v892, %v892
  %v957 = vpack.c.b16 %v893, %v893
  %v958 = vpack.c.b16 %v894, %v894
  %v959 = vpack.c.b16 %v895, %v895
  %v960 = vpack.c.b16 %v896, %v896
  %v961 = vpack.c.b16 %v897, %v897
  %v962 = vpack.c.b16 %v898, %v898
  %v963 = vpack.c.b16 %v899, %v899
  %v964 = vpack.c.b16 %v900, %v900
  %v965 = vpack.c.b16 %v901, %v901
  %v966 = vpack.c.b16 %v902, %v902
  %v967 = vpack.c.b16 %v903, %v903
  %v968 = vpack.c.b16 %v904, %v904
  %v969 = vpack.c.b16 %v905, %v905
  %v970 = vpack.c.b16 %v906, %v906
  %v971 = vpack.c.b16 %v907, %v907
  %v972 = vpack.c.b16 %v908, %v908
  %v973 = vpack.c.b16 %v909, %v909
  %v974 = vpack.c.b16 %v910, %v910
  %v975 = vpack.c.b16 %v911, %v911
  %v976 = vpack.c.b16 %v912, %v912
  %v977 = vpack.c.b16 %v913, %v913
  %v978 = vpack.c.b16 %v914, %v914
  %v979 = vpack.c.b16 %v915, %v915
  %v980 = vpack.c.b16 %v916, %v916
  %v981 = vpack.c.b16 %v917, %v917
  %v982 = vpack.c.b16 %v918, %v918
  %v983 = vpack.c.b16 %v919, %v919
  %v984 = vpack.c.b16 %v920, %v920
  %v985 = vpack.c.b16 %v921, %v921
  %v986 = vpack.c.b16 %v922, %v922
  %v987 = vpack.c.b16 %v923, %v923
  %v988 = vpack.c.b16 %v924, %v924
  %v989 = vpack.c.b16 %v925, %v925
  %v990 = vpack.c.b16 %v926, %v926
  %v991 = vpack.c.b16 %v927, %v927
  %v992 = vpack.c.b16 %v928, %v928
  %v993 = vpack.c.b16 %v929, %v929
  %v994 = vpack.c.b16 %v930, %v930
  %v995 = vpack.c.b16 %v931, %v931
  %v996 = vpack.c.b16 %v932, %v932
  %v997 = vpack.c.b16 %v933, %v933
  %v998 = vpack.c.b16 %v934, %v934
  %v999 = vpack.c.b16 %v935, %v935
  %v1000 = vpack.c.b16 %v936, %v936
  %v1001 = vpack.c.b16 %v937, %v937
  %v1002 = vpack.c.b16 %v938, %v938
  %v1003 = vpack.c.b16 %v939, %v939
  %v1004 = vpack.c.b16 %v940, %v940
  %v1005 = vpack.c.b16 %v941, %v941
  %v1006 = vpack.c.b16 %v942, %v942
  %v1007 = vpack.c.b16 %v943, %v943
  %v1008 = vpack.c.b16 %v944, %v944
  %v1009 = vpack.c.b16 %v945, %v945
  %v1010 = vpack.c.b16 %v946, %v946
  %v1011 = vpack.c.b16 %v947, %v947
  %v1012 = vpack.c.b16 %v948, %v948
  %v1013 = vpack.c.b16 %v949, %v949
  %v1014 = vpack.c.b16 %v950, %v950
  %v1015 = vpack.c.b16 %v951, %v951
  %v1016 = vpack.c.b16 %v952, %v952
  %1081 = vst [vmem:[#allocation4] sm:$0xf] %v953
  %1082 = vst [vmem:[#allocation4 + $0x8] sm:$0xf] %v954
  %1083 = vst [vmem:[#allocation4 + $0x10] sm:$0xf] %v955
  %1084 = vst [vmem:[#allocation4 + $0x18] sm:$0xf] %v956
  %1085 = vst [vmem:[#allocation4 + $0x20] sm:$0xf] %v957
  %1086 = vst [vmem:[#allocation4 + $0x28] sm:$0xf] %v958
  %1087 = vst [vmem:[#allocation4 + $0x30] sm:$0xf] %v959
  %1088 = vst [vmem:[#allocation4 + $0x38] sm:$0xf] %v960
  %1089 = vst [vmem:[#allocation4 + $0x40] sm:$0xf] %v961
  %1090 = vst [vmem:[#allocation4 + $0x48] sm:$0xf] %v962
  %1091 = vst [vmem:[#allocation4 + $0x50] sm:$0xf] %v963
  %1092 = vst [vmem:[#allocation4 + $0x58] sm:$0xf] %v964
  %1093 = vst [vmem:[#allocation4 + $0x60] sm:$0xf] %v965
  %1094 = vst [vmem:[#allocation4 + $0x68] sm:$0xf] %v966
  %1095 = vst [vmem:[#allocation4 + $0x70] sm:$0xf] %v967
  %1096 = vst [vmem:[#allocation4 + $0x78] sm:$0xf] %v968
  %1097 = vst [vmem:[#allocation4 + $0x80] sm:$0xf] %v969
  %1098 = vst [vmem:[#allocation4 + $0x88] sm:$0xf] %v970
  %1099 = vst [vmem:[#allocation4 + $0x90] sm:$0xf] %v971
  %1100 = vst [vmem:[#allocation4 + $0x98] sm:$0xf] %v972
  %1101 = vst [vmem:[#allocation4 + $0xa0] sm:$0xf] %v973
  %1102 = vst [vmem:[#allocation4 + $0xa8] sm:$0xf] %v974
  %1103 = vst [vmem:[#allocation4 + $0xb0] sm:$0xf] %v975
  %1104 = vst [vmem:[#allocation4 + $0xb8] sm:$0xf] %v976
  %1105 = vst [vmem:[#allocation4 + $0xc0] sm:$0xf] %v977
  %1106 = vst [vmem:[#allocation4 + $0xc8] sm:$0xf] %v978
  %1107 = vst [vmem:[#allocation4 + $0xd0] sm:$0xf] %v979
  %1108 = vst [vmem:[#allocation4 + $0xd8] sm:$0xf] %v980
  %1109 = vst [vmem:[#allocation4 + $0xe0] sm:$0xf] %v981
  %1110 = vst [vmem:[#allocation4 + $0xe8] sm:$0xf] %v982
  %1111 = vst [vmem:[#allocation4 + $0xf0] sm:$0xf] %v983
  %1112 = vst [vmem:[#allocation4 + $0xf8] sm:$0xf] %v984
  %1113 = vst [vmem:[#allocation4 + $0x100] sm:$0xf] %v985
  %1114 = vst [vmem:[#allocation4 + $0x108] sm:$0xf] %v986
  %1115 = vst [vmem:[#allocation4 + $0x110] sm:$0xf] %v987
  %1116 = vst [vmem:[#allocation4 + $0x118] sm:$0xf] %v988
  %1117 = vst [vmem:[#allocation4 + $0x120] sm:$0xf] %v989
  %1118 = vst [vmem:[#allocation4 + $0x128] sm:$0xf] %v990
  %1119 = vst [vmem:[#allocation4 + $0x130] sm:$0xf] %v991
  %1120 = vst [vmem:[#allocation4 + $0x138] sm:$0xf] %v992
  %1121 = vst [vmem:[#allocation4 + $0x140] sm:$0xf] %v993
  %1122 = vst [vmem:[#allocation4 + $0x148] sm:$0xf] %v994
  %1123 = vst [vmem:[#allocation4 + $0x150] sm:$0xf] %v995
  %1124 = vst [vmem:[#allocation4 + $0x158] sm:$0xf] %v996
  %1125 = vst [vmem:[#allocation4 + $0x160] sm:$0xf] %v997
  %1126 = vst [vmem:[#allocation4 + $0x168] sm:$0xf] %v998
  %1127 = vst [vmem:[#allocation4 + $0x170] sm:$0xf] %v999
  %1128 = vst [vmem:[#allocation4 + $0x178] sm:$0xf] %v1000
  %1129 = vst [vmem:[#allocation4 + $0x180] sm:$0xf] %v1001
  %1130 = vst [vmem:[#allocation4 + $0x188] sm:$0xf] %v1002
  %1131 = vst [vmem:[#allocation4 + $0x190] sm:$0xf] %v1003
  %1132 = vst [vmem:[#allocation4 + $0x198] sm:$0xf] %v1004
  %1133 = vst [vmem:[#allocation4 + $0x1a0] sm:$0xf] %v1005
  %1134 = vst [vmem:[#allocation4 + $0x1a8] sm:$0xf] %v1006
  %1135 = vst [vmem:[#allocation4 + $0x1b0] sm:$0xf] %v1007
  %1136 = vst [vmem:[#allocation4 + $0x1b8] sm:$0xf] %v1008
  %1137 = vst [vmem:[#allocation4 + $0x1c0] sm:$0xf] %v1009
  %1138 = vst [vmem:[#allocation4 + $0x1c8] sm:$0xf] %v1010
  %1139 = vst [vmem:[#allocation4 + $0x1d0] sm:$0xf] %v1011
  %1140 = vst [vmem:[#allocation4 + $0x1d8] sm:$0xf] %v1012
  %1141 = vst [vmem:[#allocation4 + $0x1e0] sm:$0xf] %v1013
  %1142 = vst [vmem:[#allocation4 + $0x1e8] sm:$0xf] %v1014
  %1143 = vst [vmem:[#allocation4 + $0x1f0] sm:$0xf] %v1015
  %1144 = vst [vmem:[#allocation4 + $0x1f8] sm:$0xf] %v1016
  %v1145 = vld [vmem:[%s0 + $0x8] sm:$0xff]
  %v1146 = vld [vmem:[%s0 + $0x18] sm:$0xff]
  %v1147 = vld [vmem:[%s0 + $0x28] sm:$0xff]
  %v1148 = vld [vmem:[%s0 + $0x38] sm:$0xff]
  %v1149 = vunpack.c.0.bf8 %v1145
  %v1150 = vunpack.c.1.bf8 %v1145
  %v1151 = vunpack.c.2.bf8 %v1145
  %v1152 = vunpack.c.3.bf8 %v1145
  %v1153 = vunpack.c.0.bf8 %v1146
  %v1154 = vunpack.c.1.bf8 %v1146
  %v1155 = vunpack.c.2.bf8 %v1146
  %v1156 = vunpack.c.3.bf8 %v1146
  %v1157 = vunpack.c.0.bf8 %v1147
  %v1158 = vunpack.c.1.bf8 %v1147
  %v1159 = vunpack.c.2.bf8 %v1147
  %v1160 = vunpack.c.3.bf8 %v1147
  %v1161 = vunpack.c.0.bf8 %v1148
  %v1162 = vunpack.c.1.bf8 %v1148
  %v1163 = vunpack.c.2.bf8 %v1148
  %v1164 = vunpack.c.3.bf8 %v1148
  %v1165 = vld [vmem:[%s1 + $0x8] sm:$0xff]
  %v1166 = vld [vmem:[%s1 + $0x18] sm:$0xff]
  %v1167 = vld [vmem:[%s1 + $0x28] sm:$0xff]
  %v1168 = vld [vmem:[%s1 + $0x38] sm:$0xff]
  %v1169 = vld [vmem:[%s1 + $0x48] sm:$0xff]
  %v1170 = vld [vmem:[%s1 + $0x58] sm:$0xff]
  %v1171 = vld [vmem:[%s1 + $0x68] sm:$0xff]
  %v1172 = vld [vmem:[%s1 + $0x78] sm:$0xff]
  %v1173 = vld [vmem:[%s1 + $0x88] sm:$0xff]
  %v1174 = vld [vmem:[%s1 + $0x98] sm:$0xff]
  %v1175 = vld [vmem:[%s1 + $0xa8] sm:$0xff]
  %v1176 = vld [vmem:[%s1 + $0xb8] sm:$0xff]
  %v1177 = vld [vmem:[%s1 + $0xc8] sm:$0xff]
  %v1178 = vld [vmem:[%s1 + $0xd8] sm:$0xff]
  %v1179 = vld [vmem:[%s1 + $0xe8] sm:$0xff]
  %v1180 = vld [vmem:[%s1 + $0xf8] sm:$0xff]
  %v1181 = vunpack.c.0.bf8 %v1165
  %v1182 = vunpack.c.1.bf8 %v1165
  %v1183 = vunpack.c.2.bf8 %v1165
  %v1184 = vunpack.c.3.bf8 %v1165
  %v1185 = vunpack.c.0.bf8 %v1166
  %v1186 = vunpack.c.1.bf8 %v1166
  %v1187 = vunpack.c.2.bf8 %v1166
  %v1188 = vunpack.c.3.bf8 %v1166
  %v1189 = vunpack.c.0.bf8 %v1167
  %v1190 = vunpack.c.1.bf8 %v1167
  %v1191 = vunpack.c.2.bf8 %v1167
  %v1192 = vunpack.c.3.bf8 %v1167
  %v1193 = vunpack.c.0.bf8 %v1168
  %v1194 = vunpack.c.1.bf8 %v1168
  %v1195 = vunpack.c.2.bf8 %v1168
  %v1196 = vunpack.c.3.bf8 %v1168
  %v1197 = vunpack.c.0.bf8 %v1169
  %v1198 = vunpack.c.1.bf8 %v1169
  %v1199 = vunpack.c.2.bf8 %v1169
  %v1200 = vunpack.c.3.bf8 %v1169
  %v1201 = vunpack.c.0.bf8 %v1170
  %v1202 = vunpack.c.1.bf8 %v1170
  %v1203 = vunpack.c.2.bf8 %v1170
  %v1204 = vunpack.c.3.bf8 %v1170
  %v1205 = vunpack.c.0.bf8 %v1171
  %v1206 = vunpack.c.1.bf8 %v1171
  %v1207 = vunpack.c.2.bf8 %v1171
  %v1208 = vunpack.c.3.bf8 %v1171
  %v1209 = vunpack.c.0.bf8 %v1172
  %v1210 = vunpack.c.1.bf8 %v1172
  %v1211 = vunpack.c.2.bf8 %v1172
  %v1212 = vunpack.c.3.bf8 %v1172
  %v1213 = vunpack.c.0.bf8 %v1173
  %v1214 = vunpack.c.1.bf8 %v1173
  %v1215 = vunpack.c.2.bf8 %v1173
  %v1216 = vunpack.c.3.bf8 %v1173
  %v1217 = vunpack.c.0.bf8 %v1174
  %v1218 = vunpack.c.1.bf8 %v1174
  %v1219 = vunpack.c.2.bf8 %v1174
  %v1220 = vunpack.c.3.bf8 %v1174
  %v1221 = vunpack.c.0.bf8 %v1175
  %v1222 = vunpack.c.1.bf8 %v1175
  %v1223 = vunpack.c.2.bf8 %v1175
  %v1224 = vunpack.c.3.bf8 %v1175
  %v1225 = vunpack.c.0.bf8 %v1176
  %v1226 = vunpack.c.1.bf8 %v1176
  %v1227 = vunpack.c.2.bf8 %v1176
  %v1228 = vunpack.c.3.bf8 %v1176
  %v1229 = vunpack.c.0.bf8 %v1177
  %v1230 = vunpack.c.1.bf8 %v1177
  %v1231 = vunpack.c.2.bf8 %v1177
  %v1232 = vunpack.c.3.bf8 %v1177
  %v1233 = vunpack.c.0.bf8 %v1178
  %v1234 = vunpack.c.1.bf8 %v1178
  %v1235 = vunpack.c.2.bf8 %v1178
  %v1236 = vunpack.c.3.bf8 %v1178
  %v1237 = vunpack.c.0.bf8 %v1179
  %v1238 = vunpack.c.1.bf8 %v1179
  %v1239 = vunpack.c.2.bf8 %v1179
  %v1240 = vunpack.c.3.bf8 %v1179
  %v1241 = vunpack.c.0.bf8 %v1180
  %v1242 = vunpack.c.1.bf8 %v1180
  %v1243 = vunpack.c.2.bf8 %v1180
  %v1244 = vunpack.c.3.bf8 %v1180
  %1245 = vset.pattern.permute.xlu0 1
  %1246 = vperm.xlu0 %1245, %v85
  %v1247 = vpop.permute.xlu0 %1246
  %1249 = vset.pattern.permute.xlu0 1
  %1250 = vperm.xlu0 %1249, %v86
  %v1251 = vpop.permute.xlu0 %1250
  %1253 = vset.pattern.permute.xlu0 1
  %1254 = vperm.xlu0 %1253, %v87
  %v1255 = vpop.permute.xlu0 %1254
  %1257 = vset.pattern.permute.xlu0 1
  %1258 = vperm.xlu0 %1257, %v88
  %v1259 = vpop.permute.xlu0 %1258
  %1261 = vset.pattern.permute.xlu0 1
  %1262 = vperm.xlu0 %1261, %v89
  %v1263 = vpop.permute.xlu0 %1262
  %1265 = vset.pattern.permute.xlu0 1
  %1266 = vperm.xlu0 %1265, %v90
  %v1267 = vpop.permute.xlu0 %1266
  %1269 = vset.pattern.permute.xlu0 1
  %1270 = vperm.xlu0 %1269, %v91
  %v1271 = vpop.permute.xlu0 %1270
  %1273 = vset.pattern.permute.xlu0 1
  %1274 = vperm.xlu0 %1273, %v92
  %v1275 = vpop.permute.xlu0 %1274
  %1277 = vset.pattern.permute.xlu0 1
  %1278 = vperm.xlu0 %1277, %v93
  %v1279 = vpop.permute.xlu0 %1278
  %1281 = vset.pattern.permute.xlu0 1
  %1282 = vperm.xlu0 %1281, %v94
  %v1283 = vpop.permute.xlu0 %1282
  %1285 = vset.pattern.permute.xlu0 1
  %1286 = vperm.xlu0 %1285, %v95
  %v1287 = vpop.permute.xlu0 %1286
  %1289 = vset.pattern.permute.xlu0 1
  %1290 = vperm.xlu0 %1289, %v96
  %v1291 = vpop.permute.xlu0 %1290
  %1293 = vset.pattern.permute.xlu0 1
  %1294 = vperm.xlu0 %1293, %v97
  %v1295 = vpop.permute.xlu0 %1294
  %1297 = vset.pattern.permute.xlu0 1
  %1298 = vperm.xlu0 %1297, %v98
  %v1299 = vpop.permute.xlu0 %1298
  %1301 = vset.pattern.permute.xlu0 1
  %1302 = vperm.xlu0 %1301, %v99
  %v1303 = vpop.permute.xlu0 %1302
  %1305 = vset.pattern.permute.xlu0 1
  %1306 = vperm.xlu0 %1305, %v100
  %v1307 = vpop.permute.xlu0 %1306
  %v1309 = vmul.f32 %v1149, %v1247
  %v1310 = vmul.f32 %v1150, %v1251
  %v1311 = vmul.f32 %v1151, %v1255
  %v1312 = vmul.f32 %v1152, %v1259
  %v1313 = vmul.f32 %v1153, %v1263
  %v1314 = vmul.f32 %v1154, %v1267
  %v1315 = vmul.f32 %v1155, %v1271
  %v1316 = vmul.f32 %v1156, %v1275
  %v1317 = vmul.f32 %v1157, %v1279
  %v1318 = vmul.f32 %v1158, %v1283
  %v1319 = vmul.f32 %v1159, %v1287
  %v1320 = vmul.f32 %v1160, %v1291
  %v1321 = vmul.f32 %v1161, %v1295
  %v1322 = vmul.f32 %v1162, %v1299
  %v1323 = vmul.f32 %v1163, %v1303
  %v1324 = vmul.f32 %v1164, %v1307
  %v1325 = vpack.c.bf16 %v1310, %v1309
  %v1326 = vpack.c.bf16 %v1312, %v1311
  %v1327 = vpack.c.bf16 %v1314, %v1313
  %v1328 = vpack.c.bf16 %v1316, %v1315
  %v1329 = vpack.c.bf16 %v1318, %v1317
  %v1330 = vpack.c.bf16 %v1320, %v1319
  %v1331 = vpack.c.bf16 %v1322, %v1321
  %v1332 = vpack.c.bf16 %v1324, %v1323
  %v1341 = vunpack.c.l.b16 %v1325
  %v1342 = vunpack.c.h.b16 %v1325
  %v1343 = vunpack.c.l.b16 %v1326
  %v1344 = vunpack.c.h.b16 %v1326
  %v1345 = vunpack.c.l.b16 %v1327
  %v1346 = vunpack.c.h.b16 %v1327
  %v1347 = vunpack.c.l.b16 %v1328
  %v1348 = vunpack.c.h.b16 %v1328
  %v1349 = vunpack.c.l.b16 %v1329
  %v1350 = vunpack.c.h.b16 %v1329
  %v1351 = vunpack.c.l.b16 %v1330
  %v1352 = vunpack.c.h.b16 %v1330
  %v1353 = vunpack.c.l.b16 %v1331
  %v1354 = vunpack.c.h.b16 %v1331
  %v1355 = vunpack.c.l.b16 %v1332
  %v1356 = vunpack.c.h.b16 %v1332
  %v1357 = vpack.c.b16 %v1341, %v1341
  %v1358 = vpack.c.b16 %v1342, %v1342
  %v1359 = vpack.c.b16 %v1343, %v1343
  %v1360 = vpack.c.b16 %v1344, %v1344
  %v1361 = vpack.c.b16 %v1345, %v1345
  %v1362 = vpack.c.b16 %v1346, %v1346
  %v1363 = vpack.c.b16 %v1347, %v1347
  %v1364 = vpack.c.b16 %v1348, %v1348
  %v1365 = vpack.c.b16 %v1349, %v1349
  %v1366 = vpack.c.b16 %v1350, %v1350
  %v1367 = vpack.c.b16 %v1351, %v1351
  %v1368 = vpack.c.b16 %v1352, %v1352
  %v1369 = vpack.c.b16 %v1353, %v1353
  %v1370 = vpack.c.b16 %v1354, %v1354
  %v1371 = vpack.c.b16 %v1355, %v1355
  %v1372 = vpack.c.b16 %v1356, %v1356
  %1389 = vst [vmem:[#allocation3 + $0x4] sm:$0xf] %v1357
  %1390 = vst [vmem:[#allocation3 + $0xc] sm:$0xf] %v1358
  %1391 = vst [vmem:[#allocation3 + $0x14] sm:$0xf] %v1359
  %1392 = vst [vmem:[#allocation3 + $0x1c] sm:$0xf] %v1360
  %1393 = vst [vmem:[#allocation3 + $0x24] sm:$0xf] %v1361
  %1394 = vst [vmem:[#allocation3 + $0x2c] sm:$0xf] %v1362
  %1395 = vst [vmem:[#allocation3 + $0x34] sm:$0xf] %v1363
  %1396 = vst [vmem:[#allocation3 + $0x3c] sm:$0xf] %v1364
  %1397 = vst [vmem:[#allocation3 + $0x44] sm:$0xf] %v1365
  %1398 = vst [vmem:[#allocation3 + $0x4c] sm:$0xf] %v1366
  %1399 = vst [vmem:[#allocation3 + $0x54] sm:$0xf] %v1367
  %1400 = vst [vmem:[#allocation3 + $0x5c] sm:$0xf] %v1368
  %1401 = vst [vmem:[#allocation3 + $0x64] sm:$0xf] %v1369
  %1402 = vst [vmem:[#allocation3 + $0x6c] sm:$0xf] %v1370
  %1403 = vst [vmem:[#allocation3 + $0x74] sm:$0xf] %v1371
  %1404 = vst [vmem:[#allocation3 + $0x7c] sm:$0xf] %v1372
  %1405 = vset.pattern.permute.xlu0 1
  %1406 = vperm.xlu0 %1405, %v101
  %v1407 = vpop.permute.xlu0 %1406
  %1409 = vset.pattern.permute.xlu0 1
  %1410 = vperm.xlu0 %1409, %v102
  %v1411 = vpop.permute.xlu0 %1410
  %1413 = vset.pattern.permute.xlu0 1
  %1414 = vperm.xlu0 %1413, %v103
  %v1415 = vpop.permute.xlu0 %1414
  %1417 = vset.pattern.permute.xlu0 1
  %1418 = vperm.xlu0 %1417, %v104
  %v1419 = vpop.permute.xlu0 %1418
  %1421 = vset.pattern.permute.xlu0 1
  %1422 = vperm.xlu0 %1421, %v105
  %v1423 = vpop.permute.xlu0 %1422
  %1425 = vset.pattern.permute.xlu0 1
  %1426 = vperm.xlu0 %1425, %v106
  %v1427 = vpop.permute.xlu0 %1426
  %1429 = vset.pattern.permute.xlu0 1
  %1430 = vperm.xlu0 %1429, %v107
  %v1431 = vpop.permute.xlu0 %1430
  %1433 = vset.pattern.permute.xlu0 1
  %1434 = vperm.xlu0 %1433, %v108
  %v1435 = vpop.permute.xlu0 %1434
  %1437 = vset.pattern.permute.xlu0 1
  %1438 = vperm.xlu0 %1437, %v109
  %v1439 = vpop.permute.xlu0 %1438
  %1441 = vset.pattern.permute.xlu0 1
  %1442 = vperm.xlu0 %1441, %v110
  %v1443 = vpop.permute.xlu0 %1442
  %1445 = vset.pattern.permute.xlu0 1
  %1446 = vperm.xlu0 %1445, %v111
  %v1447 = vpop.permute.xlu0 %1446
  %1449 = vset.pattern.permute.xlu0 1
  %1450 = vperm.xlu0 %1449, %v112
  %v1451 = vpop.permute.xlu0 %1450
  %1453 = vset.pattern.permute.xlu0 1
  %1454 = vperm.xlu0 %1453, %v113
  %v1455 = vpop.permute.xlu0 %1454
  %1457 = vset.pattern.permute.xlu0 1
  %1458 = vperm.xlu0 %1457, %v114
  %v1459 = vpop.permute.xlu0 %1458
  %1461 = vset.pattern.permute.xlu0 1
  %1462 = vperm.xlu0 %1461, %v115
  %v1463 = vpop.permute.xlu0 %1462
  %1465 = vset.pattern.permute.xlu0 1
  %1466 = vperm.xlu0 %1465, %v116
  %v1467 = vpop.permute.xlu0 %1466
  %1469 = vset.pattern.permute.xlu0 1
  %1470 = vperm.xlu0 %1469, %v117
  %v1471 = vpop.permute.xlu0 %1470
  %1473 = vset.pattern.permute.xlu0 1
  %1474 = vperm.xlu0 %1473, %v118
  %v1475 = vpop.permute.xlu0 %1474
  %1477 = vset.pattern.permute.xlu0 1
  %1478 = vperm.xlu0 %1477, %v119
  %v1479 = vpop.permute.xlu0 %1478
  %1481 = vset.pattern.permute.xlu0 1
  %1482 = vperm.xlu0 %1481, %v120
  %v1483 = vpop.permute.xlu0 %1482
  %1485 = vset.pattern.permute.xlu0 1
  %1486 = vperm.xlu0 %1485, %v121
  %v1487 = vpop.permute.xlu0 %1486
  %1489 = vset.pattern.permute.xlu0 1
  %1490 = vperm.xlu0 %1489, %v122
  %v1491 = vpop.permute.xlu0 %1490
  %1493 = vset.pattern.permute.xlu0 1
  %1494 = vperm.xlu0 %1493, %v123
  %v1495 = vpop.permute.xlu0 %1494
  %1497 = vset.pattern.permute.xlu0 1
  %1498 = vperm.xlu0 %1497, %v124
  %v1499 = vpop.permute.xlu0 %1498
  %1501 = vset.pattern.permute.xlu0 1
  %1502 = vperm.xlu0 %1501, %v125
  %v1503 = vpop.permute.xlu0 %1502
  %1505 = vset.pattern.permute.xlu0 1
  %1506 = vperm.xlu0 %1505, %v126
  %v1507 = vpop.permute.xlu0 %1506
  %1509 = vset.pattern.permute.xlu0 1
  %1510 = vperm.xlu0 %1509, %v127
  %v1511 = vpop.permute.xlu0 %1510
  %1513 = vset.pattern.permute.xlu0 1
  %1514 = vperm.xlu0 %1513, %v128
  %v1515 = vpop.permute.xlu0 %1514
  %1517 = vset.pattern.permute.xlu0 1
  %1518 = vperm.xlu0 %1517, %v129
  %v1519 = vpop.permute.xlu0 %1518
  %1521 = vset.pattern.permute.xlu0 1
  %1522 = vperm.xlu0 %1521, %v130
  %v1523 = vpop.permute.xlu0 %1522
  %1525 = vset.pattern.permute.xlu0 1
  %1526 = vperm.xlu0 %1525, %v131
  %v1527 = vpop.permute.xlu0 %1526
  %1529 = vset.pattern.permute.xlu0 1
  %1530 = vperm.xlu0 %1529, %v132
  %v1531 = vpop.permute.xlu0 %1530
  %1533 = vset.pattern.permute.xlu0 1
  %1534 = vperm.xlu0 %1533, %v133
  %v1535 = vpop.permute.xlu0 %1534
  %1537 = vset.pattern.permute.xlu0 1
  %1538 = vperm.xlu0 %1537, %v134
  %v1539 = vpop.permute.xlu0 %1538
  %1541 = vset.pattern.permute.xlu0 1
  %1542 = vperm.xlu0 %1541, %v135
  %v1543 = vpop.permute.xlu0 %1542
  %1545 = vset.pattern.permute.xlu0 1
  %1546 = vperm.xlu0 %1545, %v136
  %v1547 = vpop.permute.xlu0 %1546
  %1549 = vset.pattern.permute.xlu0 1
  %1550 = vperm.xlu0 %1549, %v137
  %v1551 = vpop.permute.xlu0 %1550
  %1553 = vset.pattern.permute.xlu0 1
  %1554 = vperm.xlu0 %1553, %v138
  %v1555 = vpop.permute.xlu0 %1554
  %1557 = vset.pattern.permute.xlu0 1
  %1558 = vperm.xlu0 %1557, %v139
  %v1559 = vpop.permute.xlu0 %1558
  %1561 = vset.pattern.permute.xlu0 1
  %1562 = vperm.xlu0 %1561, %v140
  %v1563 = vpop.permute.xlu0 %1562
  %1565 = vset.pattern.permute.xlu0 1
  %1566 = vperm.xlu0 %1565, %v141
  %v1567 = vpop.permute.xlu0 %1566
  %1569 = vset.pattern.permute.xlu0 1
  %1570 = vperm.xlu0 %1569, %v142
  %v1571 = vpop.permute.xlu0 %1570
  %1573 = vset.pattern.permute.xlu0 1
  %1574 = vperm.xlu0 %1573, %v143
  %v1575 = vpop.permute.xlu0 %1574
  %1577 = vset.pattern.permute.xlu0 1
  %1578 = vperm.xlu0 %1577, %v144
  %v1579 = vpop.permute.xlu0 %1578
  %1581 = vset.pattern.permute.xlu0 1
  %1582 = vperm.xlu0 %1581, %v145
  %v1583 = vpop.permute.xlu0 %1582
  %1585 = vset.pattern.permute.xlu0 1
  %1586 = vperm.xlu0 %1585, %v146
  %v1587 = vpop.permute.xlu0 %1586
  %1589 = vset.pattern.permute.xlu0 1
  %1590 = vperm.xlu0 %1589, %v147
  %v1591 = vpop.permute.xlu0 %1590
  %1593 = vset.pattern.permute.xlu0 1
  %1594 = vperm.xlu0 %1593, %v148
  %v1595 = vpop.permute.xlu0 %1594
  %1597 = vset.pattern.permute.xlu0 1
  %1598 = vperm.xlu0 %1597, %v149
  %v1599 = vpop.permute.xlu0 %1598
  %1601 = vset.pattern.permute.xlu0 1
  %1602 = vperm.xlu0 %1601, %v150
  %v1603 = vpop.permute.xlu0 %1602
  %1605 = vset.pattern.permute.xlu0 1
  %1606 = vperm.xlu0 %1605, %v151
  %v1607 = vpop.permute.xlu0 %1606
  %1609 = vset.pattern.permute.xlu0 1
  %1610 = vperm.xlu0 %1609, %v152
  %v1611 = vpop.permute.xlu0 %1610
  %1613 = vset.pattern.permute.xlu0 1
  %1614 = vperm.xlu0 %1613, %v153
  %v1615 = vpop.permute.xlu0 %1614
  %1617 = vset.pattern.permute.xlu0 1
  %1618 = vperm.xlu0 %1617, %v154
  %v1619 = vpop.permute.xlu0 %1618
  %1621 = vset.pattern.permute.xlu0 1
  %1622 = vperm.xlu0 %1621, %v155
  %v1623 = vpop.permute.xlu0 %1622
  %1625 = vset.pattern.permute.xlu0 1
  %1626 = vperm.xlu0 %1625, %v156
  %v1627 = vpop.permute.xlu0 %1626
  %1629 = vset.pattern.permute.xlu0 1
  %1630 = vperm.xlu0 %1629, %v157
  %v1631 = vpop.permute.xlu0 %1630
  %1633 = vset.pattern.permute.xlu0 1
  %1634 = vperm.xlu0 %1633, %v158
  %v1635 = vpop.permute.xlu0 %1634
  %1637 = vset.pattern.permute.xlu0 1
  %1638 = vperm.xlu0 %1637, %v159
  %v1639 = vpop.permute.xlu0 %1638
  %1641 = vset.pattern.permute.xlu0 1
  %1642 = vperm.xlu0 %1641, %v160
  %v1643 = vpop.permute.xlu0 %1642
  %1645 = vset.pattern.permute.xlu0 1
  %1646 = vperm.xlu0 %1645, %v161
  %v1647 = vpop.permute.xlu0 %1646
  %1649 = vset.pattern.permute.xlu0 1
  %1650 = vperm.xlu0 %1649, %v162
  %v1651 = vpop.permute.xlu0 %1650
  %1653 = vset.pattern.permute.xlu0 1
  %1654 = vperm.xlu0 %1653, %v163
  %v1655 = vpop.permute.xlu0 %1654
  %1657 = vset.pattern.permute.xlu0 1
  %1658 = vperm.xlu0 %1657, %v164
  %v1659 = vpop.permute.xlu0 %1658
  %v1661 = vmul.f32 %v1181, %v1407
  %v1662 = vmul.f32 %v1182, %v1411
  %v1663 = vmul.f32 %v1183, %v1415
  %v1664 = vmul.f32 %v1184, %v1419
  %v1665 = vmul.f32 %v1185, %v1423
  %v1666 = vmul.f32 %v1186, %v1427
  %v1667 = vmul.f32 %v1187, %v1431
  %v1668 = vmul.f32 %v1188, %v1435
  %v1669 = vmul.f32 %v1189, %v1439
  %v1670 = vmul.f32 %v1190, %v1443
  %v1671 = vmul.f32 %v1191, %v1447
  %v1672 = vmul.f32 %v1192, %v1451
  %v1673 = vmul.f32 %v1193, %v1455
  %v1674 = vmul.f32 %v1194, %v1459
  %v1675 = vmul.f32 %v1195, %v1463
  %v1676 = vmul.f32 %v1196, %v1467
  %v1677 = vmul.f32 %v1197, %v1471
  %v1678 = vmul.f32 %v1198, %v1475
  %v1679 = vmul.f32 %v1199, %v1479
  %v1680 = vmul.f32 %v1200, %v1483
  %v1681 = vmul.f32 %v1201, %v1487
  %v1682 = vmul.f32 %v1202, %v1491
  %v1683 = vmul.f32 %v1203, %v1495
  %v1684 = vmul.f32 %v1204, %v1499
  %v1685 = vmul.f32 %v1205, %v1503
  %v1686 = vmul.f32 %v1206, %v1507
  %v1687 = vmul.f32 %v1207, %v1511
  %v1688 = vmul.f32 %v1208, %v1515
  %v1689 = vmul.f32 %v1209, %v1519
  %v1690 = vmul.f32 %v1210, %v1523
  %v1691 = vmul.f32 %v1211, %v1527
  %v1692 = vmul.f32 %v1212, %v1531
  %v1693 = vmul.f32 %v1213, %v1535
  %v1694 = vmul.f32 %v1214, %v1539
  %v1695 = vmul.f32 %v1215, %v1543
  %v1696 = vmul.f32 %v1216, %v1547
  %v1697 = vmul.f32 %v1217, %v1551
  %v1698 = vmul.f32 %v1218, %v1555
  %v1699 = vmul.f32 %v1219, %v1559
  %v1700 = vmul.f32 %v1220, %v1563
  %v1701 = vmul.f32 %v1221, %v1567
  %v1702 = vmul.f32 %v1222, %v1571
  %v1703 = vmul.f32 %v1223, %v1575
  %v1704 = vmul.f32 %v1224, %v1579
  %v1705 = vmul.f32 %v1225, %v1583
  %v1706 = vmul.f32 %v1226, %v1587
  %v1707 = vmul.f32 %v1227, %v1591
  %v1708 = vmul.f32 %v1228, %v1595
  %v1709 = vmul.f32 %v1229, %v1599
  %v1710 = vmul.f32 %v1230, %v1603
  %v1711 = vmul.f32 %v1231, %v1607
  %v1712 = vmul.f32 %v1232, %v1611
  %v1713 = vmul.f32 %v1233, %v1615
  %v1714 = vmul.f32 %v1234, %v1619
  %v1715 = vmul.f32 %v1235, %v1623
  %v1716 = vmul.f32 %v1236, %v1627
  %v1717 = vmul.f32 %v1237, %v1631
  %v1718 = vmul.f32 %v1238, %v1635
  %v1719 = vmul.f32 %v1239, %v1639
  %v1720 = vmul.f32 %v1240, %v1643
  %v1721 = vmul.f32 %v1241, %v1647
  %v1722 = vmul.f32 %v1242, %v1651
  %v1723 = vmul.f32 %v1243, %v1655
  %v1724 = vmul.f32 %v1244, %v1659
  %v1725 = vpack.c.bf16 %v1662, %v1661
  %v1726 = vpack.c.bf16 %v1664, %v1663
  %v1727 = vpack.c.bf16 %v1666, %v1665
  %v1728 = vpack.c.bf16 %v1668, %v1667
  %v1729 = vpack.c.bf16 %v1670, %v1669
  %v1730 = vpack.c.bf16 %v1672, %v1671
  %v1731 = vpack.c.bf16 %v1674, %v1673
  %v1732 = vpack.c.bf16 %v1676, %v1675
  %v1733 = vpack.c.bf16 %v1678, %v1677
  %v1734 = vpack.c.bf16 %v1680, %v1679
  %v1735 = vpack.c.bf16 %v1682, %v1681
  %v1736 = vpack.c.bf16 %v1684, %v1683
  %v1737 = vpack.c.bf16 %v1686, %v1685
  %v1738 = vpack.c.bf16 %v1688, %v1687
  %v1739 = vpack.c.bf16 %v1690, %v1689
  %v1740 = vpack.c.bf16 %v1692, %v1691
  %v1741 = vpack.c.bf16 %v1694, %v1693
  %v1742 = vpack.c.bf16 %v1696, %v1695
  %v1743 = vpack.c.bf16 %v1698, %v1697
  %v1744 = vpack.c.bf16 %v1700, %v1699
  %v1745 = vpack.c.bf16 %v1702, %v1701
  %v1746 = vpack.c.bf16 %v1704, %v1703
  %v1747 = vpack.c.bf16 %v1706, %v1705
  %v1748 = vpack.c.bf16 %v1708, %v1707
  %v1749 = vpack.c.bf16 %v1710, %v1709
  %v1750 = vpack.c.bf16 %v1712, %v1711
  %v1751 = vpack.c.bf16 %v1714, %v1713
  %v1752 = vpack.c.bf16 %v1716, %v1715
  %v1753 = vpack.c.bf16 %v1718, %v1717
  %v1754 = vpack.c.bf16 %v1720, %v1719
  %v1755 = vpack.c.bf16 %v1722, %v1721
  %v1756 = vpack.c.bf16 %v1724, %v1723
  %v1789 = vunpack.c.l.b16 %v1725
  %v1790 = vunpack.c.h.b16 %v1725
  %v1791 = vunpack.c.l.b16 %v1726
  %v1792 = vunpack.c.h.b16 %v1726
  %v1793 = vunpack.c.l.b16 %v1727
  %v1794 = vunpack.c.h.b16 %v1727
  %v1795 = vunpack.c.l.b16 %v1728
  %v1796 = vunpack.c.h.b16 %v1728
  %v1797 = vunpack.c.l.b16 %v1729
  %v1798 = vunpack.c.h.b16 %v1729
  %v1799 = vunpack.c.l.b16 %v1730
  %v1800 = vunpack.c.h.b16 %v1730
  %v1801 = vunpack.c.l.b16 %v1731
  %v1802 = vunpack.c.h.b16 %v1731
  %v1803 = vunpack.c.l.b16 %v1732
  %v1804 = vunpack.c.h.b16 %v1732
  %v1805 = vunpack.c.l.b16 %v1733
  %v1806 = vunpack.c.h.b16 %v1733
  %v1807 = vunpack.c.l.b16 %v1734
  %v1808 = vunpack.c.h.b16 %v1734
  %v1809 = vunpack.c.l.b16 %v1735
  %v1810 = vunpack.c.h.b16 %v1735
  %v1811 = vunpack.c.l.b16 %v1736
  %v1812 = vunpack.c.h.b16 %v1736
  %v1813 = vunpack.c.l.b16 %v1737
  %v1814 = vunpack.c.h.b16 %v1737
  %v1815 = vunpack.c.l.b16 %v1738
  %v1816 = vunpack.c.h.b16 %v1738
  %v1817 = vunpack.c.l.b16 %v1739
  %v1818 = vunpack.c.h.b16 %v1739
  %v1819 = vunpack.c.l.b16 %v1740
  %v1820 = vunpack.c.h.b16 %v1740
  %v1821 = vunpack.c.l.b16 %v1741
  %v1822 = vunpack.c.h.b16 %v1741
  %v1823 = vunpack.c.l.b16 %v1742
  %v1824 = vunpack.c.h.b16 %v1742
  %v1825 = vunpack.c.l.b16 %v1743
  %v1826 = vunpack.c.h.b16 %v1743
  %v1827 = vunpack.c.l.b16 %v1744
  %v1828 = vunpack.c.h.b16 %v1744
  %v1829 = vunpack.c.l.b16 %v1745
  %v1830 = vunpack.c.h.b16 %v1745
  %v1831 = vunpack.c.l.b16 %v1746
  %v1832 = vunpack.c.h.b16 %v1746
  %v1833 = vunpack.c.l.b16 %v1747
  %v1834 = vunpack.c.h.b16 %v1747
  %v1835 = vunpack.c.l.b16 %v1748
  %v1836 = vunpack.c.h.b16 %v1748
  %v1837 = vunpack.c.l.b16 %v1749
  %v1838 = vunpack.c.h.b16 %v1749
  %v1839 = vunpack.c.l.b16 %v1750
  %v1840 = vunpack.c.h.b16 %v1750
  %v1841 = vunpack.c.l.b16 %v1751
  %v1842 = vunpack.c.h.b16 %v1751
  %v1843 = vunpack.c.l.b16 %v1752
  %v1844 = vunpack.c.h.b16 %v1752
  %v1845 = vunpack.c.l.b16 %v1753
  %v1846 = vunpack.c.h.b16 %v1753
  %v1847 = vunpack.c.l.b16 %v1754
  %v1848 = vunpack.c.h.b16 %v1754
  %v1849 = vunpack.c.l.b16 %v1755
  %v1850 = vunpack.c.h.b16 %v1755
  %v1851 = vunpack.c.l.b16 %v1756
  %v1852 = vunpack.c.h.b16 %v1756
  %v1853 = vpack.c.b16 %v1789, %v1789
  %v1854 = vpack.c.b16 %v1790, %v1790
  %v1855 = vpack.c.b16 %v1791, %v1791
  %v1856 = vpack.c.b16 %v1792, %v1792
  %v1857 = vpack.c.b16 %v1793, %v1793
  %v1858 = vpack.c.b16 %v1794, %v1794
  %v1859 = vpack.c.b16 %v1795, %v1795
  %v1860 = vpack.c.b16 %v1796, %v1796
  %v1861 = vpack.c.b16 %v1797, %v1797
  %v1862 = vpack.c.b16 %v1798, %v1798
  %v1863 = vpack.c.b16 %v1799, %v1799
  %v1864 = vpack.c.b16 %v1800, %v1800
  %v1865 = vpack.c.b16 %v1801, %v1801
  %v1866 = vpack.c.b16 %v1802, %v1802
  %v1867 = vpack.c.b16 %v1803, %v1803
  %v1868 = vpack.c.b16 %v1804, %v1804
  %v1869 = vpack.c.b16 %v1805, %v1805
  %v1870 = vpack.c.b16 %v1806, %v1806
  %v1871 = vpack.c.b16 %v1807, %v1807
  %v1872 = vpack.c.b16 %v1808, %v1808
  %v1873 = vpack.c.b16 %v1809, %v1809
  %v1874 = vpack.c.b16 %v1810, %v1810
  %v1875 = vpack.c.b16 %v1811, %v1811
  %v1876 = vpack.c.b16 %v1812, %v1812
  %v1877 = vpack.c.b16 %v1813, %v1813
  %v1878 = vpack.c.b16 %v1814, %v1814
  %v1879 = vpack.c.b16 %v1815, %v1815
  %v1880 = vpack.c.b16 %v1816, %v1816
  %v1881 = vpack.c.b16 %v1817, %v1817
  %v1882 = vpack.c.b16 %v1818, %v1818
  %v1883 = vpack.c.b16 %v1819, %v1819
  %v1884 = vpack.c.b16 %v1820, %v1820
  %v1885 = vpack.c.b16 %v1821, %v1821
  %v1886 = vpack.c.b16 %v1822, %v1822
  %v1887 = vpack.c.b16 %v1823, %v1823
  %v1888 = vpack.c.b16 %v1824, %v1824
  %v1889 = vpack.c.b16 %v1825, %v1825
  %v1890 = vpack.c.b16 %v1826, %v1826
  %v1891 = vpack.c.b16 %v1827, %v1827
  %v1892 = vpack.c.b16 %v1828, %v1828
  %v1893 = vpack.c.b16 %v1829, %v1829
  %v1894 = vpack.c.b16 %v1830, %v1830
  %v1895 = vpack.c.b16 %v1831, %v1831
  %v1896 = vpack.c.b16 %v1832, %v1832
  %v1897 = vpack.c.b16 %v1833, %v1833
  %v1898 = vpack.c.b16 %v1834, %v1834
  %v1899 = vpack.c.b16 %v1835, %v1835
  %v1900 = vpack.c.b16 %v1836, %v1836
  %v1901 = vpack.c.b16 %v1837, %v1837
  %v1902 = vpack.c.b16 %v1838, %v1838
  %v1903 = vpack.c.b16 %v1839, %v1839
  %v1904 = vpack.c.b16 %v1840, %v1840
  %v1905 = vpack.c.b16 %v1841, %v1841
  %v1906 = vpack.c.b16 %v1842, %v1842
  %v1907 = vpack.c.b16 %v1843, %v1843
  %v1908 = vpack.c.b16 %v1844, %v1844
  %v1909 = vpack.c.b16 %v1845, %v1845
  %v1910 = vpack.c.b16 %v1846, %v1846
  %v1911 = vpack.c.b16 %v1847, %v1847
  %v1912 = vpack.c.b16 %v1848, %v1848
  %v1913 = vpack.c.b16 %v1849, %v1849
  %v1914 = vpack.c.b16 %v1850, %v1850
  %v1915 = vpack.c.b16 %v1851, %v1851
  %v1916 = vpack.c.b16 %v1852, %v1852
  %1981 = vst [vmem:[#allocation4 + $0x4] sm:$0xf] %v1853
  %1982 = vst [vmem:[#allocation4 + $0xc] sm:$0xf] %v1854
  %1983 = vst [vmem:[#allocation4 + $0x14] sm:$0xf] %v1855
  %1984 = vst [vmem:[#allocation4 + $0x1c] sm:$0xf] %v1856
  %1985 = vst [vmem:[#allocation4 + $0x24] sm:$0xf] %v1857
  %1986 = vst [vmem:[#allocation4 + $0x2c] sm:$0xf] %v1858
  %1987 = vst [vmem:[#allocation4 + $0x34] sm:$0xf] %v1859
  %1988 = vst [vmem:[#allocation4 + $0x3c] sm:$0xf] %v1860
  %1989 = vst [vmem:[#allocation4 + $0x44] sm:$0xf] %v1861
  %1990 = vst [vmem:[#allocation4 + $0x4c] sm:$0xf] %v1862
  %1991 = vst [vmem:[#allocation4 + $0x54] sm:$0xf] %v1863
  %1992 = vst [vmem:[#allocation4 + $0x5c] sm:$0xf] %v1864
  %1993 = vst [vmem:[#allocation4 + $0x64] sm:$0xf] %v1865
  %1994 = vst [vmem:[#allocation4 + $0x6c] sm:$0xf] %v1866
  %1995 = vst [vmem:[#allocation4 + $0x74] sm:$0xf] %v1867
  %1996 = vst [vmem:[#allocation4 + $0x7c] sm:$0xf] %v1868
  %1997 = vst [vmem:[#allocation4 + $0x84] sm:$0xf] %v1869
  %1998 = vst [vmem:[#allocation4 + $0x8c] sm:$0xf] %v1870
  %1999 = vst [vmem:[#allocation4 + $0x94] sm:$0xf] %v1871
  %2000 = vst [vmem:[#allocation4 + $0x9c] sm:$0xf] %v1872
  %2001 = vst [vmem:[#allocation4 + $0xa4] sm:$0xf] %v1873
  %2002 = vst [vmem:[#allocation4 + $0xac] sm:$0xf] %v1874
  %2003 = vst [vmem:[#allocation4 + $0xb4] sm:$0xf] %v1875
  %2004 = vst [vmem:[#allocation4 + $0xbc] sm:$0xf] %v1876
  %2005 = vst [vmem:[#allocation4 + $0xc4] sm:$0xf] %v1877
  %2006 = vst [vmem:[#allocation4 + $0xcc] sm:$0xf] %v1878
  %2007 = vst [vmem:[#allocation4 + $0xd4] sm:$0xf] %v1879
  %2008 = vst [vmem:[#allocation4 + $0xdc] sm:$0xf] %v1880
  %2009 = vst [vmem:[#allocation4 + $0xe4] sm:$0xf] %v1881
  %2010 = vst [vmem:[#allocation4 + $0xec] sm:$0xf] %v1882
  %2011 = vst [vmem:[#allocation4 + $0xf4] sm:$0xf] %v1883
  %2012 = vst [vmem:[#allocation4 + $0xfc] sm:$0xf] %v1884
  %2013 = vst [vmem:[#allocation4 + $0x104] sm:$0xf] %v1885
  %2014 = vst [vmem:[#allocation4 + $0x10c] sm:$0xf] %v1886
  %2015 = vst [vmem:[#allocation4 + $0x114] sm:$0xf] %v1887
  %2016 = vst [vmem:[#allocation4 + $0x11c] sm:$0xf] %v1888
  %2017 = vst [vmem:[#allocation4 + $0x124] sm:$0xf] %v1889
  %2018 = vst [vmem:[#allocation4 + $0x12c] sm:$0xf] %v1890
  %2019 = vst [vmem:[#allocation4 + $0x134] sm:$0xf] %v1891
  %2020 = vst [vmem:[#allocation4 + $0x13c] sm:$0xf] %v1892
  %2021 = vst [vmem:[#allocation4 + $0x144] sm:$0xf] %v1893
  %2022 = vst [vmem:[#allocation4 + $0x14c] sm:$0xf] %v1894
  %2023 = vst [vmem:[#allocation4 + $0x154] sm:$0xf] %v1895
  %2024 = vst [vmem:[#allocation4 + $0x15c] sm:$0xf] %v1896
  %2025 = vst [vmem:[#allocation4 + $0x164] sm:$0xf] %v1897
  %2026 = vst [vmem:[#allocation4 + $0x16c] sm:$0xf] %v1898
  %2027 = vst [vmem:[#allocation4 + $0x174] sm:$0xf] %v1899
  %2028 = vst [vmem:[#allocation4 + $0x17c] sm:$0xf] %v1900
  %2029 = vst [vmem:[#allocation4 + $0x184] sm:$0xf] %v1901
  %2030 = vst [vmem:[#allocation4 + $0x18c] sm:$0xf] %v1902
  %2031 = vst [vmem:[#allocation4 + $0x194] sm:$0xf] %v1903
  %2032 = vst [vmem:[#allocation4 + $0x19c] sm:$0xf] %v1904
  %2033 = vst [vmem:[#allocation4 + $0x1a4] sm:$0xf] %v1905
  %2034 = vst [vmem:[#allocation4 + $0x1ac] sm:$0xf] %v1906
  %2035 = vst [vmem:[#allocation4 + $0x1b4] sm:$0xf] %v1907
  %2036 = vst [vmem:[#allocation4 + $0x1bc] sm:$0xf] %v1908
  %2037 = vst [vmem:[#allocation4 + $0x1c4] sm:$0xf] %v1909
  %2038 = vst [vmem:[#allocation4 + $0x1cc] sm:$0xf] %v1910
  %2039 = vst [vmem:[#allocation4 + $0x1d4] sm:$0xf] %v1911
  %2040 = vst [vmem:[#allocation4 + $0x1dc] sm:$0xf] %v1912
  %2041 = vst [vmem:[#allocation4 + $0x1e4] sm:$0xf] %v1913
  %2042 = vst [vmem:[#allocation4 + $0x1ec] sm:$0xf] %v1914
  %2043 = vst [vmem:[#allocation4 + $0x1f4] sm:$0xf] %v1915
  %2044 = vst [vmem:[#allocation4 + $0x1fc] sm:$0xf] %v1916
  %v2045 = vld [vmem:[#allocation2] sm:$0xff]
  %v2046 = vld [vmem:[#allocation2 + $0x8] sm:$0xff]
  %v2047 = vld [vmem:[#allocation2 + $0x10] sm:$0xff]
  %v2048 = vld [vmem:[#allocation2 + $0x18] sm:$0xff]
  %v2049 = vld [vmem:[#allocation2 + $0x20] sm:$0xff]
  %v2050 = vld [vmem:[#allocation2 + $0x28] sm:$0xff]
  %v2051 = vld [vmem:[#allocation2 + $0x30] sm:$0xff]
  %v2052 = vld [vmem:[#allocation2 + $0x38] sm:$0xff]
  %v2053 = vld [vmem:[#allocation2 + $0x40] sm:$0xff]
  %v2054 = vld [vmem:[#allocation2 + $0x48] sm:$0xff]
  %v2055 = vld [vmem:[#allocation2 + $0x50] sm:$0xff]
  %v2056 = vld [vmem:[#allocation2 + $0x58] sm:$0xff]
  %v2057 = vld [vmem:[#allocation2 + $0x60] sm:$0xff]
  %v2058 = vld [vmem:[#allocation2 + $0x68] sm:$0xff]
  %v2059 = vld [vmem:[#allocation2 + $0x70] sm:$0xff]
  %v2060 = vld [vmem:[#allocation2 + $0x78] sm:$0xff]
  %v2061 = vld [vmem:[#allocation2 + $0x80] sm:$0xff]
  %v2062 = vld [vmem:[#allocation2 + $0x88] sm:$0xff]
  %v2063 = vld [vmem:[#allocation2 + $0x90] sm:$0xff]
  %v2064 = vld [vmem:[#allocation2 + $0x98] sm:$0xff]
  %v2065 = vld [vmem:[#allocation2 + $0xa0] sm:$0xff]
  %v2066 = vld [vmem:[#allocation2 + $0xa8] sm:$0xff]
  %v2067 = vld [vmem:[#allocation2 + $0xb0] sm:$0xff]
  %v2068 = vld [vmem:[#allocation2 + $0xb8] sm:$0xff]
  %v2069 = vld [vmem:[#allocation2 + $0xc0] sm:$0xff]
  %v2070 = vld [vmem:[#allocation2 + $0xc8] sm:$0xff]
  %v2071 = vld [vmem:[#allocation2 + $0xd0] sm:$0xff]
  %v2072 = vld [vmem:[#allocation2 + $0xd8] sm:$0xff]
  %v2073 = vld [vmem:[#allocation2 + $0xe0] sm:$0xff]
  %v2074 = vld [vmem:[#allocation2 + $0xe8] sm:$0xff]
  %v2075 = vld [vmem:[#allocation2 + $0xf0] sm:$0xff]
  %v2076 = vld [vmem:[#allocation2 + $0xf8] sm:$0xff]
  %v2077 = vld [vmem:[#allocation2 + $0x100] sm:$0xff]
  %v2078 = vld [vmem:[#allocation2 + $0x108] sm:$0xff]
  %v2079 = vld [vmem:[#allocation2 + $0x110] sm:$0xff]
  %v2080 = vld [vmem:[#allocation2 + $0x118] sm:$0xff]
  %v2081 = vld [vmem:[#allocation2 + $0x120] sm:$0xff]
  %v2082 = vld [vmem:[#allocation2 + $0x128] sm:$0xff]
  %v2083 = vld [vmem:[#allocation2 + $0x130] sm:$0xff]
  %v2084 = vld [vmem:[#allocation2 + $0x138] sm:$0xff]
  %v2085 = vld [vmem:[#allocation2 + $0x140] sm:$0xff]
  %v2086 = vld [vmem:[#allocation2 + $0x148] sm:$0xff]
  %v2087 = vld [vmem:[#allocation2 + $0x150] sm:$0xff]
  %v2088 = vld [vmem:[#allocation2 + $0x158] sm:$0xff]
  %v2089 = vld [vmem:[#allocation2 + $0x160] sm:$0xff]
  %v2090 = vld [vmem:[#allocation2 + $0x168] sm:$0xff]
  %v2091 = vld [vmem:[#allocation2 + $0x170] sm:$0xff]
  %v2092 = vld [vmem:[#allocation2 + $0x178] sm:$0xff]
  %v2093 = vld [vmem:[#allocation2 + $0x180] sm:$0xff]
  %v2094 = vld [vmem:[#allocation2 + $0x188] sm:$0xff]
  %v2095 = vld [vmem:[#allocation2 + $0x190] sm:$0xff]
  %v2096 = vld [vmem:[#allocation2 + $0x198] sm:$0xff]
  %v2097 = vld [vmem:[#allocation2 + $0x1a0] sm:$0xff]
  %v2098 = vld [vmem:[#allocation2 + $0x1a8] sm:$0xff]
  %v2099 = vld [vmem:[#allocation2 + $0x1b0] sm:$0xff]
  %v2100 = vld [vmem:[#allocation2 + $0x1b8] sm:$0xff]
  %v2101 = vld [vmem:[#allocation2 + $0x1c0] sm:$0xff]
  %v2102 = vld [vmem:[#allocation2 + $0x1c8] sm:$0xff]
  %v2103 = vld [vmem:[#allocation2 + $0x1d0] sm:$0xff]
  %v2104 = vld [vmem:[#allocation2 + $0x1d8] sm:$0xff]
  %v2105 = vld [vmem:[#allocation2 + $0x1e0] sm:$0xff]
  %v2106 = vld [vmem:[#allocation2 + $0x1e8] sm:$0xff]
  %v2107 = vld [vmem:[#allocation2 + $0x1f0] sm:$0xff]
  %v2108 = vld [vmem:[#allocation2 + $0x1f8] sm:$0xff]
  %v2109 = vld [vmem:[#allocation3] sm:$0xff]
  %v2110 = vld [vmem:[#allocation3 + $0x8] sm:$0xff]
  %v2111 = vld [vmem:[#allocation3 + $0x10] sm:$0xff]
  %v2112 = vld [vmem:[#allocation3 + $0x18] sm:$0xff]
  %v2113 = vld [vmem:[#allocation3 + $0x20] sm:$0xff]
  %v2114 = vld [vmem:[#allocation3 + $0x28] sm:$0xff]
  %v2115 = vld [vmem:[#allocation3 + $0x30] sm:$0xff]
  %v2116 = vld [vmem:[#allocation3 + $0x38] sm:$0xff]
  %v2117 = vld [vmem:[#allocation3 + $0x40] sm:$0xff]
  %v2118 = vld [vmem:[#allocation3 + $0x48] sm:$0xff]
  %v2119 = vld [vmem:[#allocation3 + $0x50] sm:$0xff]
  %v2120 = vld [vmem:[#allocation3 + $0x58] sm:$0xff]
  %v2121 = vld [vmem:[#allocation3 + $0x60] sm:$0xff]
  %v2122 = vld [vmem:[#allocation3 + $0x68] sm:$0xff]
  %v2123 = vld [vmem:[#allocation3 + $0x70] sm:$0xff]
  %v2124 = vld [vmem:[#allocation3 + $0x78] sm:$0xff]
  %v2125 = vld [vmem:[#allocation4] sm:$0xff]
  %v2126 = vld [vmem:[#allocation4 + $0x8] sm:$0xff]
  %v2127 = vld [vmem:[#allocation4 + $0x10] sm:$0xff]
  %v2128 = vld [vmem:[#allocation4 + $0x18] sm:$0xff]
  %v2129 = vld [vmem:[#allocation4 + $0x20] sm:$0xff]
  %v2130 = vld [vmem:[#allocation4 + $0x28] sm:$0xff]
  %v2131 = vld [vmem:[#allocation4 + $0x30] sm:$0xff]
  %v2132 = vld [vmem:[#allocation4 + $0x38] sm:$0xff]
  %v2133 = vld [vmem:[#allocation4 + $0x40] sm:$0xff]
  %v2134 = vld [vmem:[#allocation4 + $0x48] sm:$0xff]
  %v2135 = vld [vmem:[#allocation4 + $0x50] sm:$0xff]
  %v2136 = vld [vmem:[#allocation4 + $0x58] sm:$0xff]
  %v2137 = vld [vmem:[#allocation4 + $0x60] sm:$0xff]
  %v2138 = vld [vmem:[#allocation4 + $0x68] sm:$0xff]
  %v2139 = vld [vmem:[#allocation4 + $0x70] sm:$0xff]
  %v2140 = vld [vmem:[#allocation4 + $0x78] sm:$0xff]
  %v2141 = vld [vmem:[#allocation4 + $0x80] sm:$0xff]
  %v2142 = vld [vmem:[#allocation4 + $0x88] sm:$0xff]
  %v2143 = vld [vmem:[#allocation4 + $0x90] sm:$0xff]
  %v2144 = vld [vmem:[#allocation4 + $0x98] sm:$0xff]
  %v2145 = vld [vmem:[#allocation4 + $0xa0] sm:$0xff]
  %v2146 = vld [vmem:[#allocation4 + $0xa8] sm:$0xff]
  %v2147 = vld [vmem:[#allocation4 + $0xb0] sm:$0xff]
  %v2148 = vld [vmem:[#allocation4 + $0xb8] sm:$0xff]
  %v2149 = vld [vmem:[#allocation4 + $0xc0] sm:$0xff]
  %v2150 = vld [vmem:[#allocation4 + $0xc8] sm:$0xff]
  %v2151 = vld [vmem:[#allocation4 + $0xd0] sm:$0xff]
  %v2152 = vld [vmem:[#allocation4 + $0xd8] sm:$0xff]
  %v2153 = vld [vmem:[#allocation4 + $0xe0] sm:$0xff]
  %v2154 = vld [vmem:[#allocation4 + $0xe8] sm:$0xff]
  %v2155 = vld [vmem:[#allocation4 + $0xf0] sm:$0xff]
  %v2156 = vld [vmem:[#allocation4 + $0xf8] sm:$0xff]
  %v2157 = vld [vmem:[#allocation4 + $0x100] sm:$0xff]
  %v2158 = vld [vmem:[#allocation4 + $0x108] sm:$0xff]
  %v2159 = vld [vmem:[#allocation4 + $0x110] sm:$0xff]
  %v2160 = vld [vmem:[#allocation4 + $0x118] sm:$0xff]
  %v2161 = vld [vmem:[#allocation4 + $0x120] sm:$0xff]
  %v2162 = vld [vmem:[#allocation4 + $0x128] sm:$0xff]
  %v2163 = vld [vmem:[#allocation4 + $0x130] sm:$0xff]
  %v2164 = vld [vmem:[#allocation4 + $0x138] sm:$0xff]
  %v2165 = vld [vmem:[#allocation4 + $0x140] sm:$0xff]
  %v2166 = vld [vmem:[#allocation4 + $0x148] sm:$0xff]
  %v2167 = vld [vmem:[#allocation4 + $0x150] sm:$0xff]
  %v2168 = vld [vmem:[#allocation4 + $0x158] sm:$0xff]
  %v2169 = vld [vmem:[#allocation4 + $0x160] sm:$0xff]
  %v2170 = vld [vmem:[#allocation4 + $0x168] sm:$0xff]
  %v2171 = vld [vmem:[#allocation4 + $0x170] sm:$0xff]
  %v2172 = vld [vmem:[#allocation4 + $0x178] sm:$0xff]
  %v2173 = vld [vmem:[#allocation4 + $0x180] sm:$0xff]
  %v2174 = vld [vmem:[#allocation4 + $0x188] sm:$0xff]
  %v2175 = vld [vmem:[#allocation4 + $0x190] sm:$0xff]
  %v2176 = vld [vmem:[#allocation4 + $0x198] sm:$0xff]
  %v2177 = vld [vmem:[#allocation4 + $0x1a0] sm:$0xff]
  %v2178 = vld [vmem:[#allocation4 + $0x1a8] sm:$0xff]
  %v2179 = vld [vmem:[#allocation4 + $0x1b0] sm:$0xff]
  %v2180 = vld [vmem:[#allocation4 + $0x1b8] sm:$0xff]
  %v2181 = vld [vmem:[#allocation4 + $0x1c0] sm:$0xff]
  %v2182 = vld [vmem:[#allocation4 + $0x1c8] sm:$0xff]
  %v2183 = vld [vmem:[#allocation4 + $0x1d0] sm:$0xff]
  %v2184 = vld [vmem:[#allocation4 + $0x1d8] sm:$0xff]
  %v2185 = vld [vmem:[#allocation4 + $0x1e0] sm:$0xff]
  %v2186 = vld [vmem:[#allocation4 + $0x1e8] sm:$0xff]
  %v2187 = vld [vmem:[#allocation4 + $0x1f0] sm:$0xff]
  %v2188 = vld [vmem:[#allocation4 + $0x1f8] sm:$0xff]
  %v2205 = vunpack.c.l.b16 %v2109
  %v2206 = vunpack.c.h.b16 %v2109
  %v2207 = vunpack.c.l.b16 %v2110
  %v2208 = vunpack.c.h.b16 %v2110
  %v2209 = vunpack.c.l.b16 %v2111
  %v2210 = vunpack.c.h.b16 %v2111
  %v2211 = vunpack.c.l.b16 %v2112
  %v2212 = vunpack.c.h.b16 %v2112
  %v2213 = vunpack.c.l.b16 %v2113
  %v2214 = vunpack.c.h.b16 %v2113
  %v2215 = vunpack.c.l.b16 %v2114
  %v2216 = vunpack.c.h.b16 %v2114
  %v2217 = vunpack.c.l.b16 %v2115
  %v2218 = vunpack.c.h.b16 %v2115
  %v2219 = vunpack.c.l.b16 %v2116
  %v2220 = vunpack.c.h.b16 %v2116
  %v2221 = vunpack.c.l.b16 %v2117
  %v2222 = vunpack.c.h.b16 %v2117
  %v2223 = vunpack.c.l.b16 %v2118
  %v2224 = vunpack.c.h.b16 %v2118
  %v2225 = vunpack.c.l.b16 %v2119
  %v2226 = vunpack.c.h.b16 %v2119
  %v2227 = vunpack.c.l.b16 %v2120
  %v2228 = vunpack.c.h.b16 %v2120
  %v2229 = vunpack.c.l.b16 %v2121
  %v2230 = vunpack.c.h.b16 %v2121
  %v2231 = vunpack.c.l.b16 %v2122
  %v2232 = vunpack.c.h.b16 %v2122
  %v2233 = vunpack.c.l.b16 %v2123
  %v2234 = vunpack.c.h.b16 %v2123
  %v2235 = vunpack.c.l.b16 %v2124
  %v2236 = vunpack.c.h.b16 %v2124
  %v2237 = vpack.c.b16 %v2207, %v2205
  %v2238 = vpack.c.b16 %v2208, %v2206
  %v2239 = vpack.c.b16 %v2211, %v2209
  %v2240 = vpack.c.b16 %v2212, %v2210
  %v2241 = vpack.c.b16 %v2215, %v2213
  %v2242 = vpack.c.b16 %v2216, %v2214
  %v2243 = vpack.c.b16 %v2219, %v2217
  %v2244 = vpack.c.b16 %v2220, %v2218
  %v2245 = vpack.c.b16 %v2223, %v2221
  %v2246 = vpack.c.b16 %v2224, %v2222
  %v2247 = vpack.c.b16 %v2227, %v2225
  %v2248 = vpack.c.b16 %v2228, %v2226
  %v2249 = vpack.c.b16 %v2231, %v2229
  %v2250 = vpack.c.b16 %v2232, %v2230
  %v2251 = vpack.c.b16 %v2235, %v2233
  %v2252 = vpack.c.b16 %v2236, %v2234
  %v2333 = vunpack.c.l.b16 %v2125
  %v2334 = vunpack.c.h.b16 %v2125
  %v2335 = vunpack.c.l.b16 %v2126
  %v2336 = vunpack.c.h.b16 %v2126
  %v2337 = vunpack.c.l.b16 %v2127
  %v2338 = vunpack.c.h.b16 %v2127
  %v2339 = vunpack.c.l.b16 %v2128
  %v2340 = vunpack.c.h.b16 %v2128
  %v2341 = vunpack.c.l.b16 %v2129
  %v2342 = vunpack.c.h.b16 %v2129
  %v2343 = vunpack.c.l.b16 %v2130
  %v2344 = vunpack.c.h.b16 %v2130
  %v2345 = vunpack.c.l.b16 %v2131
  %v2346 = vunpack.c.h.b16 %v2131
  %v2347 = vunpack.c.l.b16 %v2132
  %v2348 = vunpack.c.h.b16 %v2132
  %v2349 = vunpack.c.l.b16 %v2133
  %v2350 = vunpack.c.h.b16 %v2133
  %v2351 = vunpack.c.l.b16 %v2134
  %v2352 = vunpack.c.h.b16 %v2134
  %v2353 = vunpack.c.l.b16 %v2135
  %v2354 = vunpack.c.h.b16 %v2135
  %v2355 = vunpack.c.l.b16 %v2136
  %v2356 = vunpack.c.h.b16 %v2136
  %v2357 = vunpack.c.l.b16 %v2137
  %v2358 = vunpack.c.h.b16 %v2137
  %v2359 = vunpack.c.l.b16 %v2138
  %v2360 = vunpack.c.h.b16 %v2138
  %v2361 = vunpack.c.l.b16 %v2139
  %v2362 = vunpack.c.h.b16 %v2139
  %v2363 = vunpack.c.l.b16 %v2140
  %v2364 = vunpack.c.h.b16 %v2140
  %v2365 = vunpack.c.l.b16 %v2141
  %v2366 = vunpack.c.h.b16 %v2141
  %v2367 = vunpack.c.l.b16 %v2142
  %v2368 = vunpack.c.h.b16 %v2142
  %v2369 = vunpack.c.l.b16 %v2143
  %v2370 = vunpack.c.h.b16 %v2143
  %v2371 = vunpack.c.l.b16 %v2144
  %v2372 = vunpack.c.h.b16 %v2144
  %v2373 = vunpack.c.l.b16 %v2145
  %v2374 = vunpack.c.h.b16 %v2145
  %v2375 = vunpack.c.l.b16 %v2146
  %v2376 = vunpack.c.h.b16 %v2146
  %v2377 = vunpack.c.l.b16 %v2147
  %v2378 = vunpack.c.h.b16 %v2147
  %v2379 = vunpack.c.l.b16 %v2148
  %v2380 = vunpack.c.h.b16 %v2148
  %v2381 = vunpack.c.l.b16 %v2149
  %v2382 = vunpack.c.h.b16 %v2149
  %v2383 = vunpack.c.l.b16 %v2150
  %v2384 = vunpack.c.h.b16 %v2150
  %v2385 = vunpack.c.l.b16 %v2151
  %v2386 = vunpack.c.h.b16 %v2151
  %v2387 = vunpack.c.l.b16 %v2152
  %v2388 = vunpack.c.h.b16 %v2152
  %v2389 = vunpack.c.l.b16 %v2153
  %v2390 = vunpack.c.h.b16 %v2153
  %v2391 = vunpack.c.l.b16 %v2154
  %v2392 = vunpack.c.h.b16 %v2154
  %v2393 = vunpack.c.l.b16 %v2155
  %v2394 = vunpack.c.h.b16 %v2155
  %v2395 = vunpack.c.l.b16 %v2156
  %v2396 = vunpack.c.h.b16 %v2156
  %v2397 = vunpack.c.l.b16 %v2157
  %v2398 = vunpack.c.h.b16 %v2157
  %v2399 = vunpack.c.l.b16 %v2158
  %v2400 = vunpack.c.h.b16 %v2158
  %v2401 = vunpack.c.l.b16 %v2159
  %v2402 = vunpack.c.h.b16 %v2159
  %v2403 = vunpack.c.l.b16 %v2160
  %v2404 = vunpack.c.h.b16 %v2160
  %v2405 = vunpack.c.l.b16 %v2161
  %v2406 = vunpack.c.h.b16 %v2161
  %v2407 = vunpack.c.l.b16 %v2162
  %v2408 = vunpack.c.h.b16 %v2162
  %v2409 = vunpack.c.l.b16 %v2163
  %v2410 = vunpack.c.h.b16 %v2163
  %v2411 = vunpack.c.l.b16 %v2164
  %v2412 = vunpack.c.h.b16 %v2164
  %v2413 = vunpack.c.l.b16 %v2165
  %v2414 = vunpack.c.h.b16 %v2165
  %v2415 = vunpack.c.l.b16 %v2166
  %v2416 = vunpack.c.h.b16 %v2166
  %v2417 = vunpack.c.l.b16 %v2167
  %v2418 = vunpack.c.h.b16 %v2167
  %v2419 = vunpack.c.l.b16 %v2168
  %v2420 = vunpack.c.h.b16 %v2168
  %v2421 = vunpack.c.l.b16 %v2169
  %v2422 = vunpack.c.h.b16 %v2169
  %v2423 = vunpack.c.l.b16 %v2170
  %v2424 = vunpack.c.h.b16 %v2170
  %v2425 = vunpack.c.l.b16 %v2171
  %v2426 = vunpack.c.h.b16 %v2171
  %v2427 = vunpack.c.l.b16 %v2172
  %v2428 = vunpack.c.h.b16 %v2172
  %v2429 = vunpack.c.l.b16 %v2173
  %v2430 = vunpack.c.h.b16 %v2173
  %v2431 = vunpack.c.l.b16 %v2174
  %v2432 = vunpack.c.h.b16 %v2174
  %v2433 = vunpack.c.l.b16 %v2175
  %v2434 = vunpack.c.h.b16 %v2175
  %v2435 = vunpack.c.l.b16 %v2176
  %v2436 = vunpack.c.h.b16 %v2176
  %v2437 = vunpack.c.l.b16 %v2177
  %v2438 = vunpack.c.h.b16 %v2177
  %v2439 = vunpack.c.l.b16 %v2178
  %v2440 = vunpack.c.h.b16 %v2178
  %v2441 = vunpack.c.l.b16 %v2179
  %v2442 = vunpack.c.h.b16 %v2179
  %v2443 = vunpack.c.l.b16 %v2180
  %v2444 = vunpack.c.h.b16 %v2180
  %v2445 = vunpack.c.l.b16 %v2181
  %v2446 = vunpack.c.h.b16 %v2181
  %v2447 = vunpack.c.l.b16 %v2182
  %v2448 = vunpack.c.h.b16 %v2182
  %v2449 = vunpack.c.l.b16 %v2183
  %v2450 = vunpack.c.h.b16 %v2183
  %v2451 = vunpack.c.l.b16 %v2184
  %v2452 = vunpack.c.h.b16 %v2184
  %v2453 = vunpack.c.l.b16 %v2185
  %v2454 = vunpack.c.h.b16 %v2185
  %v2455 = vunpack.c.l.b16 %v2186
  %v2456 = vunpack.c.h.b16 %v2186
  %v2457 = vunpack.c.l.b16 %v2187
  %v2458 = vunpack.c.h.b16 %v2187
  %v2459 = vunpack.c.l.b16 %v2188
  %v2460 = vunpack.c.h.b16 %v2188
  %v2461 = vpack.c.b16 %v2335, %v2333
  %v2462 = vpack.c.b16 %v2336, %v2334
  %v2463 = vpack.c.b16 %v2339, %v2337
  %v2464 = vpack.c.b16 %v2340, %v2338
  %v2465 = vpack.c.b16 %v2343, %v2341
  %v2466 = vpack.c.b16 %v2344, %v2342
  %v2467 = vpack.c.b16 %v2347, %v2345
  %v2468 = vpack.c.b16 %v2348, %v2346
  %v2469 = vpack.c.b16 %v2351, %v2349
  %v2470 = vpack.c.b16 %v2352, %v2350
  %v2471 = vpack.c.b16 %v2355, %v2353
  %v2472 = vpack.c.b16 %v2356, %v2354
  %v2473 = vpack.c.b16 %v2359, %v2357
  %v2474 = vpack.c.b16 %v2360, %v2358
  %v2475 = vpack.c.b16 %v2363, %v2361
  %v2476 = vpack.c.b16 %v2364, %v2362
  %v2477 = vpack.c.b16 %v2367, %v2365
  %v2478 = vpack.c.b16 %v2368, %v2366
  %v2479 = vpack.c.b16 %v2371, %v2369
  %v2480 = vpack.c.b16 %v2372, %v2370
  %v2481 = vpack.c.b16 %v2375, %v2373
  %v2482 = vpack.c.b16 %v2376, %v2374
  %v2483 = vpack.c.b16 %v2379, %v2377
  %v2484 = vpack.c.b16 %v2380, %v2378
  %v2485 = vpack.c.b16 %v2383, %v2381
  %v2486 = vpack.c.b16 %v2384, %v2382
  %v2487 = vpack.c.b16 %v2387, %v2385
  %v2488 = vpack.c.b16 %v2388, %v2386
  %v2489 = vpack.c.b16 %v2391, %v2389
  %v2490 = vpack.c.b16 %v2392, %v2390
  %v2491 = vpack.c.b16 %v2395, %v2393
  %v2492 = vpack.c.b16 %v2396, %v2394
  %v2493 = vpack.c.b16 %v2399, %v2397
  %v2494 = vpack.c.b16 %v2400, %v2398
  %v2495 = vpack.c.b16 %v2403, %v2401
  %v2496 = vpack.c.b16 %v2404, %v2402
  %v2497 = vpack.c.b16 %v2407, %v2405
  %v2498 = vpack.c.b16 %v2408, %v2406
  %v2499 = vpack.c.b16 %v2411, %v2409
  %v2500 = vpack.c.b16 %v2412, %v2410
  %v2501 = vpack.c.b16 %v2415, %v2413
  %v2502 = vpack.c.b16 %v2416, %v2414
  %v2503 = vpack.c.b16 %v2419, %v2417
  %v2504 = vpack.c.b16 %v2420, %v2418
  %v2505 = vpack.c.b16 %v2423, %v2421
  %v2506 = vpack.c.b16 %v2424, %v2422
  %v2507 = vpack.c.b16 %v2427, %v2425
  %v2508 = vpack.c.b16 %v2428, %v2426
  %v2509 = vpack.c.b16 %v2431, %v2429
  %v2510 = vpack.c.b16 %v2432, %v2430
  %v2511 = vpack.c.b16 %v2435, %v2433
  %v2512 = vpack.c.b16 %v2436, %v2434
  %v2513 = vpack.c.b16 %v2439, %v2437
  %v2514 = vpack.c.b16 %v2440, %v2438
  %v2515 = vpack.c.b16 %v2443, %v2441
  %v2516 = vpack.c.b16 %v2444, %v2442
  %v2517 = vpack.c.b16 %v2447, %v2445
  %v2518 = vpack.c.b16 %v2448, %v2446
  %v2519 = vpack.c.b16 %v2451, %v2449
  %v2520 = vpack.c.b16 %v2452, %v2450
  %v2521 = vpack.c.b16 %v2455, %v2453
  %v2522 = vpack.c.b16 %v2456, %v2454
  %v2523 = vpack.c.b16 %v2459, %v2457
  %v2524 = vpack.c.b16 %v2460, %v2458
  %2589 = vmatprep.subr.bf16.mxu0 %v2476
  %2590 = vmatpush1.bf16.xpose.msra.mxu0 %v2475
  %2591 = vmatprep.subr.bf16.mxu0 %v2474
  %2592 = vmatpush1.bf16.xpose.msra.mxu0 %v2473
  %2593 = vmatprep.subr.bf16.mxu0 %v2472
  %2594 = vmatpush1.bf16.xpose.msra.mxu0 %v2471
  %2595 = vmatprep.subr.bf16.mxu0 %v2470
  %2596 = vmatpush1.bf16.xpose.msra.mxu0 %v2469
  %2597 = vmatprep.subr.bf16.mxu0 %v2468
  %2598 = vmatpush1.bf16.xpose.msra.mxu0 %v2467
  %2599 = vmatprep.subr.bf16.mxu0 %v2466
  %2600 = vmatpush1.bf16.xpose.msra.mxu0 %v2465
  %2601 = vmatprep.subr.bf16.mxu0 %v2464
  %2602 = vmatpush1.bf16.xpose.msra.mxu0 %v2463
  %2603 = vmatprep.subr.bf16.mxu0 %v2462
  %2604 = vmatpush1.bf16.xpose.msra.mxu0 %v2461
  %2605 = vmatprep.subr.bf16.mxu0 %v2492
  %2606 = vmatpush2.bf16.xpose.msra.mxu0 %v2491
  %2607 = vmatprep.subr.bf16.mxu0 %v2490
  %2608 = vmatpush2.bf16.xpose.msra.mxu0 %v2489
  %2609 = vmatprep.subr.bf16.mxu0 %v2488
  %2610 = vmatpush2.bf16.xpose.msra.mxu0 %v2487
  %2611 = vmatprep.subr.bf16.mxu0 %v2486
  %2612 = vmatpush2.bf16.xpose.msra.mxu0 %v2485
  %2613 = vmatprep.subr.bf16.mxu0 %v2484
  %2614 = vmatpush2.bf16.xpose.msra.mxu0 %v2483
  %2615 = vmatprep.subr.bf16.mxu0 %v2482
  %2616 = vmatpush2.bf16.xpose.msra.mxu0 %v2481
  %2617 = vmatprep.subr.bf16.mxu0 %v2480
  %2618 = vmatpush2.bf16.xpose.msra.mxu0 %v2479
  %2619 = vmatprep.subr.bf16.mxu0 %v2478
  %2620 = vmatpush2.bf16.xpose.msra.mxu0 %v2477
  %2621 = vmatprep.mubr.bf16.mxu0 %v2238
  %2622 = vmatmul.mubr.bf16.gmra.mxu0 %v2237
  %v2623 = vpop.f32.mrf.mxu0
  %v2624 = vadd.f32 0.0, %v2623
  %v2625 = vpop.f32.mrf.mxu0
  %v2626 = vadd.f32 0.0, %v2625
  %v2627 = vpop.f32.mrf.mxu0
  %v2628 = vadd.f32 0.0, %v2627
  %v2629 = vpop.f32.mrf.mxu0
  %v2630 = vadd.f32 0.0, %v2629
  %2631 = vmatprep.mubr.bf16.mxu0 %v2240
  %2632 = vmatmul.mubr.bf16.gmra.mxu0 %v2239
  %v2633 = vpop.f32.mrf.mxu0
  %v2634 = vadd.f32 0.0, %v2633
  %v2635 = vpop.f32.mrf.mxu0
  %v2636 = vadd.f32 0.0, %v2635
  %v2637 = vpop.f32.mrf.mxu0
  %v2638 = vadd.f32 0.0, %v2637
  %v2639 = vpop.f32.mrf.mxu0
  %v2640 = vadd.f32 0.0, %v2639
  %2641 = vmatprep.mubr.bf16.mxu0 %v2242
  %2642 = vmatmul.mubr.bf16.gmra.mxu0 %v2241
  %v2643 = vpop.f32.mrf.mxu0
  %v2644 = vadd.f32 0.0, %v2643
  %v2645 = vpop.f32.mrf.mxu0
  %v2646 = vadd.f32 0.0, %v2645
  %v2647 = vpop.f32.mrf.mxu0
  %v2648 = vadd.f32 0.0, %v2647
  %v2649 = vpop.f32.mrf.mxu0
  %v2650 = vadd.f32 0.0, %v2649
  %2651 = vmatprep.mubr.bf16.mxu0 %v2244
  %2652 = vmatmul.mubr.bf16.gmra.mxu0 %v2243
  %v2653 = vpop.f32.mrf.mxu0
  %v2654 = vadd.f32 0.0, %v2653
  %v2655 = vpop.f32.mrf.mxu0
  %v2656 = vadd.f32 0.0, %v2655
  %v2657 = vpop.f32.mrf.mxu0
  %v2658 = vadd.f32 0.0, %v2657
  %v2659 = vpop.f32.mrf.mxu0
  %v2660 = vadd.f32 0.0, %v2659
  %2661 = vmatprep.mubr.bf16.mxu0 %v2246
  %2662 = vmatmul.mubr.bf16.gmra.mxu0 %v2245
  %v2663 = vpop.f32.mrf.mxu0
  %v2664 = vadd.f32 0.0, %v2663
  %v2665 = vpop.f32.mrf.mxu0
  %v2666 = vadd.f32 0.0, %v2665
  %v2667 = vpop.f32.mrf.mxu0
  %v2668 = vadd.f32 0.0, %v2667
  %v2669 = vpop.f32.mrf.mxu0
  %v2670 = vadd.f32 0.0, %v2669
  %2671 = vmatprep.mubr.bf16.mxu0 %v2248
  %2672 = vmatmul.mubr.bf16.gmra.mxu0 %v2247
  %v2673 = vpop.f32.mrf.mxu0
  %v2674 = vadd.f32 0.0, %v2673
  %v2675 = vpop.f32.mrf.mxu0
  %v2676 = vadd.f32 0.0, %v2675
  %v2677 = vpop.f32.mrf.mxu0
  %v2678 = vadd.f32 0.0, %v2677
  %v2679 = vpop.f32.mrf.mxu0
  %v2680 = vadd.f32 0.0, %v2679
  %2681 = vmatprep.mubr.bf16.mxu0 %v2250
  %2682 = vmatmul.mubr.bf16.gmra.mxu0 %v2249
  %v2683 = vpop.f32.mrf.mxu0
  %v2684 = vadd.f32 0.0, %v2683
  %v2685 = vpop.f32.mrf.mxu0
  %v2686 = vadd.f32 0.0, %v2685
  %v2687 = vpop.f32.mrf.mxu0
  %v2688 = vadd.f32 0.0, %v2687
  %v2689 = vpop.f32.mrf.mxu0
  %v2690 = vadd.f32 0.0, %v2689
  %2691 = vmatprep.mubr.bf16.mxu0 %v2252
  %2692 = vmatmul.mubr.bf16.gmra.mxu0 %v2251
  %v2693 = vpop.f32.mrf.mxu0
  %v2694 = vadd.f32 0.0, %v2693
  %v2695 = vpop.f32.mrf.mxu0
  %v2696 = vadd.f32 0.0, %v2695
  %v2697 = vpop.f32.mrf.mxu0
  %v2698 = vadd.f32 0.0, %v2697
  %v2699 = vpop.f32.mrf.mxu0
  %v2700 = vadd.f32 0.0, %v2699
  %2701 = vdwg.mxu0
  %2702 = vmatprep.subr.bf16.mxu0 %v2508
  %2703 = vmatpush1.bf16.xpose.msra.mxu0 %v2507
  %2704 = vmatprep.subr.bf16.mxu0 %v2506
  %2705 = vmatpush1.bf16.xpose.msra.mxu0 %v2505
  %2706 = vmatprep.subr.bf16.mxu0 %v2504
  %2707 = vmatpush1.bf16.xpose.msra.mxu0 %v2503
  %2708 = vmatprep.subr.bf16.mxu0 %v2502
  %2709 = vmatpush1.bf16.xpose.msra.mxu0 %v2501
  %2710 = vmatprep.subr.bf16.mxu0 %v2500
  %2711 = vmatpush1.bf16.xpose.msra.mxu0 %v2499
  %2712 = vmatprep.subr.bf16.mxu0 %v2498
  %2713 = vmatpush1.bf16.xpose.msra.mxu0 %v2497
  %2714 = vmatprep.subr.bf16.mxu0 %v2496
  %2715 = vmatpush1.bf16.xpose.msra.mxu0 %v2495
  %2716 = vmatprep.subr.bf16.mxu0 %v2494
  %2717 = vmatpush1.bf16.xpose.msra.mxu0 %v2493
  %2718 = vmatprep.subr.bf16.mxu0 %v2524
  %2719 = vmatpush2.bf16.xpose.msra.mxu0 %v2523
  %2720 = vmatprep.subr.bf16.mxu0 %v2522
  %2721 = vmatpush2.bf16.xpose.msra.mxu0 %v2521
  %2722 = vmatprep.subr.bf16.mxu0 %v2520
  %2723 = vmatpush2.bf16.xpose.msra.mxu0 %v2519
  %2724 = vmatprep.subr.bf16.mxu0 %v2518
  %2725 = vmatpush2.bf16.xpose.msra.mxu0 %v2517
  %2726 = vmatprep.subr.bf16.mxu0 %v2516
  %2727 = vmatpush2.bf16.xpose.msra.mxu0 %v2515
  %2728 = vmatprep.subr.bf16.mxu0 %v2514
  %2729 = vmatpush2.bf16.xpose.msra.mxu0 %v2513
  %2730 = vmatprep.subr.bf16.mxu0 %v2512
  %2731 = vmatpush2.bf16.xpose.msra.mxu0 %v2511
  %2732 = vmatprep.subr.bf16.mxu0 %v2510
  %2733 = vmatpush2.bf16.xpose.msra.mxu0 %v2509
  %2734 = vmatprep.mubr.bf16.mxu0 %v2238
  %2735 = vmatmul.mubr.bf16.gmra.mxu0 %v2237
  %v2736 = vpop.f32.mrf.mxu0
  %v2737 = vadd.f32 0.0, %v2736
  %v2738 = vpop.f32.mrf.mxu0
  %v2739 = vadd.f32 0.0, %v2738
  %v2740 = vpop.f32.mrf.mxu0
  %v2741 = vadd.f32 0.0, %v2740
  %v2742 = vpop.f32.mrf.mxu0
  %v2743 = vadd.f32 0.0, %v2742
  %2744 = vmatprep.mubr.bf16.mxu0 %v2240
  %2745 = vmatmul.mubr.bf16.gmra.mxu0 %v2239
  %v2746 = vpop.f32.mrf.mxu0
  %v2747 = vadd.f32 0.0, %v2746
  %v2748 = vpop.f32.mrf.mxu0
  %v2749 = vadd.f32 0.0, %v2748
  %v2750 = vpop.f32.mrf.mxu0
  %v2751 = vadd.f32 0.0, %v2750
  %v2752 = vpop.f32.mrf.mxu0
  %v2753 = vadd.f32 0.0, %v2752
  %2754 = vmatprep.mubr.bf16.mxu0 %v2242
  %2755 = vmatmul.mubr.bf16.gmra.mxu0 %v2241
  %v2756 = vpop.f32.mrf.mxu0
  %v2757 = vadd.f32 0.0, %v2756
  %v2758 = vpop.f32.mrf.mxu0
  %v2759 = vadd.f32 0.0, %v2758
  %v2760 = vpop.f32.mrf.mxu0
  %v2761 = vadd.f32 0.0, %v2760
  %v2762 = vpop.f32.mrf.mxu0
  %v2763 = vadd.f32 0.0, %v2762
  %2764 = vmatprep.mubr.bf16.mxu0 %v2244
  %2765 = vmatmul.mubr.bf16.gmra.mxu0 %v2243
  %v2766 = vpop.f32.mrf.mxu0
  %v2767 = vadd.f32 0.0, %v2766
  %v2768 = vpop.f32.mrf.mxu0
  %v2769 = vadd.f32 0.0, %v2768
  %v2770 = vpop.f32.mrf.mxu0
  %v2771 = vadd.f32 0.0, %v2770
  %v2772 = vpop.f32.mrf.mxu0
  %v2773 = vadd.f32 0.0, %v2772
  %2774 = vmatprep.mubr.bf16.mxu0 %v2246
  %2775 = vmatmul.mubr.bf16.gmra.mxu0 %v2245
  %v2776 = vpop.f32.mrf.mxu0
  %v2777 = vadd.f32 0.0, %v2776
  %v2778 = vpop.f32.mrf.mxu0
  %v2779 = vadd.f32 0.0, %v2778
  %v2780 = vpop.f32.mrf.mxu0
  %v2781 = vadd.f32 0.0, %v2780
  %v2782 = vpop.f32.mrf.mxu0
  %v2783 = vadd.f32 0.0, %v2782
  %2784 = vmatprep.mubr.bf16.mxu0 %v2248
  %2785 = vmatmul.mubr.bf16.gmra.mxu0 %v2247
  %v2786 = vpop.f32.mrf.mxu0
  %v2787 = vadd.f32 0.0, %v2786
  %v2788 = vpop.f32.mrf.mxu0
  %v2789 = vadd.f32 0.0, %v2788
  %v2790 = vpop.f32.mrf.mxu0
  %v2791 = vadd.f32 0.0, %v2790
  %v2792 = vpop.f32.mrf.mxu0
  %v2793 = vadd.f32 0.0, %v2792
  %2794 = vmatprep.mubr.bf16.mxu0 %v2250
  %2795 = vmatmul.mubr.bf16.gmra.mxu0 %v2249
  %v2796 = vpop.f32.mrf.mxu0
  %v2797 = vadd.f32 0.0, %v2796
  %v2798 = vpop.f32.mrf.mxu0
  %v2799 = vadd.f32 0.0, %v2798
  %v2800 = vpop.f32.mrf.mxu0
  %v2801 = vadd.f32 0.0, %v2800
  %v2802 = vpop.f32.mrf.mxu0
  %v2803 = vadd.f32 0.0, %v2802
  %2804 = vmatprep.mubr.bf16.mxu0 %v2252
  %2805 = vmatmul.mubr.bf16.gmra.mxu0 %v2251
  %v2806 = vpop.f32.mrf.mxu0
  %v2807 = vadd.f32 0.0, %v2806
  %v2808 = vpop.f32.mrf.mxu0
  %v2809 = vadd.f32 0.0, %v2808
  %v2810 = vpop.f32.mrf.mxu0
  %v2811 = vadd.f32 0.0, %v2810
  %v2812 = vpop.f32.mrf.mxu0
  %v2813 = vadd.f32 0.0, %v2812
  %2814 = vdwg.mxu0
  %v2815 = vadd.f32 %v2045, %v2624
  %v2816 = vadd.f32 %v2046, %v2626
  %v2817 = vadd.f32 %v2047, %v2737
  %v2818 = vadd.f32 %v2048, %v2739
  %v2819 = vadd.f32 %v2049, %v2628
  %v2820 = vadd.f32 %v2050, %v2630
  %v2821 = vadd.f32 %v2051, %v2741
  %v2822 = vadd.f32 %v2052, %v2743
  %v2823 = vadd.f32 %v2053, %v2634
  %v2824 = vadd.f32 %v2054, %v2636
  %v2825 = vadd.f32 %v2055, %v2747
  %v2826 = vadd.f32 %v2056, %v2749
  %v2827 = vadd.f32 %v2057, %v2638
  %v2828 = vadd.f32 %v2058, %v2640
  %v2829 = vadd.f32 %v2059, %v2751
  %v2830 = vadd.f32 %v2060, %v2753
  %v2831 = vadd.f32 %v2061, %v2644
  %v2832 = vadd.f32 %v2062, %v2646
  %v2833 = vadd.f32 %v2063, %v2757
  %v2834 = vadd.f32 %v2064, %v2759
  %v2835 = vadd.f32 %v2065, %v2648
  %v2836 = vadd.f32 %v2066, %v2650
  %v2837 = vadd.f32 %v2067, %v2761
  %v2838 = vadd.f32 %v2068, %v2763
  %v2839 = vadd.f32 %v2069, %v2654
  %v2840 = vadd.f32 %v2070, %v2656
  %v2841 = vadd.f32 %v2071, %v2767
  %v2842 = vadd.f32 %v2072, %v2769
  %v2843 = vadd.f32 %v2073, %v2658
  %v2844 = vadd.f32 %v2074, %v2660
  %v2845 = vadd.f32 %v2075, %v2771
  %v2846 = vadd.f32 %v2076, %v2773
  %v2847 = vadd.f32 %v2077, %v2664
  %v2848 = vadd.f32 %v2078, %v2666
  %v2849 = vadd.f32 %v2079, %v2777
  %v2850 = vadd.f32 %v2080, %v2779
  %v2851 = vadd.f32 %v2081, %v2668
  %v2852 = vadd.f32 %v2082, %v2670
  %v2853 = vadd.f32 %v2083, %v2781
  %v2854 = vadd.f32 %v2084, %v2783
  %v2855 = vadd.f32 %v2085, %v2674
  %v2856 = vadd.f32 %v2086, %v2676
  %v2857 = vadd.f32 %v2087, %v2787
  %v2858 = vadd.f32 %v2088, %v2789
  %v2859 = vadd.f32 %v2089, %v2678
  %v2860 = vadd.f32 %v2090, %v2680
  %v2861 = vadd.f32 %v2091, %v2791
  %v2862 = vadd.f32 %v2092, %v2793
  %v2863 = vadd.f32 %v2093, %v2684
  %v2864 = vadd.f32 %v2094, %v2686
  %v2865 = vadd.f32 %v2095, %v2797
  %v2866 = vadd.f32 %v2096, %v2799
  %v2867 = vadd.f32 %v2097, %v2688
  %v2868 = vadd.f32 %v2098, %v2690
  %v2869 = vadd.f32 %v2099, %v2801
  %v2870 = vadd.f32 %v2100, %v2803
  %v2871 = vadd.f32 %v2101, %v2694
  %v2872 = vadd.f32 %v2102, %v2696
  %v2873 = vadd.f32 %v2103, %v2807
  %v2874 = vadd.f32 %v2104, %v2809
  %v2875 = vadd.f32 %v2105, %v2698
  %v2876 = vadd.f32 %v2106, %v2700
  %v2877 = vadd.f32 %v2107, %v2811
  %v2878 = vadd.f32 %v2108, %v2813
  %2879 = vst [vmem:[#allocation2] sm:$0xff] %v2815
  %2880 = vst [vmem:[#allocation2 + $0x8] sm:$0xff] %v2816
  %2881 = vst [vmem:[#allocation2 + $0x10] sm:$0xff] %v2817
  %2882 = vst [vmem:[#allocation2 + $0x18] sm:$0xff] %v2818
  %2883 = vst [vmem:[#allocation2 + $0x20] sm:$0xff] %v2819
  %2884 = vst [vmem:[#allocation2 + $0x28] sm:$0xff] %v2820
  %2885 = vst [vmem:[#allocation2 + $0x30] sm:$0xff] %v2821
  %2886 = vst [vmem:[#allocation2 + $0x38] sm:$0xff] %v2822
  %2887 = vst [vmem:[#allocation2 + $0x40] sm:$0xff] %v2823
  %2888 = vst [vmem:[#allocation2 + $0x48] sm:$0xff] %v2824
  %2889 = vst [vmem:[#allocation2 + $0x50] sm:$0xff] %v2825
  %2890 = vst [vmem:[#allocation2 + $0x58] sm:$0xff] %v2826
  %2891 = vst [vmem:[#allocation2 + $0x60] sm:$0xff] %v2827
  %2892 = vst [vmem:[#allocation2 + $0x68] sm:$0xff] %v2828
  %2893 = vst [vmem:[#allocation2 + $0x70] sm:$0xff] %v2829
  %2894 = vst [vmem:[#allocation2 + $0x78] sm:$0xff] %v2830
  %2895 = vst [vmem:[#allocation2 + $0x80] sm:$0xff] %v2831
  %2896 = vst [vmem:[#allocation2 + $0x88] sm:$0xff] %v2832
  %2897 = vst [vmem:[#allocation2 + $0x90] sm:$0xff] %v2833
  %2898 = vst [vmem:[#allocation2 + $0x98] sm:$0xff] %v2834
  %2899 = vst [vmem:[#allocation2 + $0xa0] sm:$0xff] %v2835
  %2900 = vst [vmem:[#allocation2 + $0xa8] sm:$0xff] %v2836
  %2901 = vst [vmem:[#allocation2 + $0xb0] sm:$0xff] %v2837
  %2902 = vst [vmem:[#allocation2 + $0xb8] sm:$0xff] %v2838
  %2903 = vst [vmem:[#allocation2 + $0xc0] sm:$0xff] %v2839
  %2904 = vst [vmem:[#allocation2 + $0xc8] sm:$0xff] %v2840
  %2905 = vst [vmem:[#allocation2 + $0xd0] sm:$0xff] %v2841
  %2906 = vst [vmem:[#allocation2 + $0xd8] sm:$0xff] %v2842
  %2907 = vst [vmem:[#allocation2 + $0xe0] sm:$0xff] %v2843
  %2908 = vst [vmem:[#allocation2 + $0xe8] sm:$0xff] %v2844
  %2909 = vst [vmem:[#allocation2 + $0xf0] sm:$0xff] %v2845
  %2910 = vst [vmem:[#allocation2 + $0xf8] sm:$0xff] %v2846
  %2911 = vst [vmem:[#allocation2 + $0x100] sm:$0xff] %v2847
  %2912 = vst [vmem:[#allocation2 + $0x108] sm:$0xff] %v2848
  %2913 = vst [vmem:[#allocation2 + $0x110] sm:$0xff] %v2849
  %2914 = vst [vmem:[#allocation2 + $0x118] sm:$0xff] %v2850
  %2915 = vst [vmem:[#allocation2 + $0x120] sm:$0xff] %v2851
  %2916 = vst [vmem:[#allocation2 + $0x128] sm:$0xff] %v2852
  %2917 = vst [vmem:[#allocation2 + $0x130] sm:$0xff] %v2853
  %2918 = vst [vmem:[#allocation2 + $0x138] sm:$0xff] %v2854
  %2919 = vst [vmem:[#allocation2 + $0x140] sm:$0xff] %v2855
  %2920 = vst [vmem:[#allocation2 + $0x148] sm:$0xff] %v2856
  %2921 = vst [vmem:[#allocation2 + $0x150] sm:$0xff] %v2857
  %2922 = vst [vmem:[#allocation2 + $0x158] sm:$0xff] %v2858
  %2923 = vst [vmem:[#allocation2 + $0x160] sm:$0xff] %v2859
  %2924 = vst [vmem:[#allocation2 + $0x168] sm:$0xff] %v2860
  %2925 = vst [vmem:[#allocation2 + $0x170] sm:$0xff] %v2861
  %2926 = vst [vmem:[#allocation2 + $0x178] sm:$0xff] %v2862
  %2927 = vst [vmem:[#allocation2 + $0x180] sm:$0xff] %v2863
  %2928 = vst [vmem:[#allocation2 + $0x188] sm:$0xff] %v2864
  %2929 = vst [vmem:[#allocation2 + $0x190] sm:$0xff] %v2865
  %2930 = vst [vmem:[#allocation2 + $0x198] sm:$0xff] %v2866
  %2931 = vst [vmem:[#allocation2 + $0x1a0] sm:$0xff] %v2867
  %2932 = vst [vmem:[#allocation2 + $0x1a8] sm:$0xff] %v2868
  %2933 = vst [vmem:[#allocation2 + $0x1b0] sm:$0xff] %v2869
  %2934 = vst [vmem:[#allocation2 + $0x1b8] sm:$0xff] %v2870
  %2935 = vst [vmem:[#allocation2 + $0x1c0] sm:$0xff] %v2871
  %2936 = vst [vmem:[#allocation2 + $0x1c8] sm:$0xff] %v2872
  %2937 = vst [vmem:[#allocation2 + $0x1d0] sm:$0xff] %v2873
  %2938 = vst [vmem:[#allocation2 + $0x1d8] sm:$0xff] %v2874
  %2939 = vst [vmem:[#allocation2 + $0x1e0] sm:$0xff] %v2875
  %2940 = vst [vmem:[#allocation2 + $0x1e8] sm:$0xff] %v2876
  %2941 = vst [vmem:[#allocation2 + $0x1f0] sm:$0xff] %v2877
  %2942 = vst [vmem:[#allocation2 + $0x1f8] sm:$0xff] %v2878
  // Predicated region
  $region22: #{fp8_mlp_forward.9} parent=0 // pred_check
    %p2943 = pneg %p17
  $region23: #{fp8_mlp_forward.9} parent=0 // pred_check_branch
    %2945 = sbr.rel (%p2943) target = $region25
  $region24: #{fp8_mlp_forward.9} parent=0 // pred_region
    %v2946 = vld [vmem:[#allocation2] sm:$0xff]
    %v2947 = vld [vmem:[#allocation2 + $0x8] sm:$0xff]
    %v2948 = vld [vmem:[#allocation2 + $0x10] sm:$0xff]
    %v2949 = vld [vmem:[#allocation2 + $0x18] sm:$0xff]
    %v2950 = vld [vmem:[#allocation2 + $0x20] sm:$0xff]
    %v2951 = vld [vmem:[#allocation2 + $0x28] sm:$0xff]
    %v2952 = vld [vmem:[#allocation2 + $0x30] sm:$0xff]
    %v2953 = vld [vmem:[#allocation2 + $0x38] sm:$0xff]
    %v2954 = vld [vmem:[#allocation2 + $0x40] sm:$0xff]
    %v2955 = vld [vmem:[#allocation2 + $0x48] sm:$0xff]
    %v2956 = vld [vmem:[#allocation2 + $0x50] sm:$0xff]
    %v2957 = vld [vmem:[#allocation2 + $0x58] sm:$0xff]
    %v2958 = vld [vmem:[#allocation2 + $0x60] sm:$0xff]
    %v2959 = vld [vmem:[#allocation2 + $0x68] sm:$0xff]
    %v2960 = vld [vmem:[#allocation2 + $0x70] sm:$0xff]
    %v2961 = vld [vmem:[#allocation2 + $0x78] sm:$0xff]
    %v2962 = vld [vmem:[#allocation2 + $0x80] sm:$0xff]
    %v2963 = vld [vmem:[#allocation2 + $0x88] sm:$0xff]
    %v2964 = vld [vmem:[#allocation2 + $0x90] sm:$0xff]
    %v2965 = vld [vmem:[#allocation2 + $0x98] sm:$0xff]
    %v2966 = vld [vmem:[#allocation2 + $0xa0] sm:$0xff]
    %v2967 = vld [vmem:[#allocation2 + $0xa8] sm:$0xff]
    %v2968 = vld [vmem:[#allocation2 + $0xb0] sm:$0xff]
    %v2969 = vld [vmem:[#allocation2 + $0xb8] sm:$0xff]
    %v2970 = vld [vmem:[#allocation2 + $0xc0] sm:$0xff]
    %v2971 = vld [vmem:[#allocation2 + $0xc8] sm:$0xff]
    %v2972 = vld [vmem:[#allocation2 + $0xd0] sm:$0xff]
    %v2973 = vld [vmem:[#allocation2 + $0xd8] sm:$0xff]
    %v2974 = vld [vmem:[#allocation2 + $0xe0] sm:$0xff]
    %v2975 = vld [vmem:[#allocation2 + $0xe8] sm:$0xff]
    %v2976 = vld [vmem:[#allocation2 + $0xf0] sm:$0xff]
    %v2977 = vld [vmem:[#allocation2 + $0xf8] sm:$0xff]
    %v2978 = vld [vmem:[#allocation2 + $0x100] sm:$0xff]
    %v2979 = vld [vmem:[#allocation2 + $0x108] sm:$0xff]
    %v2980 = vld [vmem:[#allocation2 + $0x110] sm:$0xff]
    %v2981 = vld [vmem:[#allocation2 + $0x118] sm:$0xff]
    %v2982 = vld [vmem:[#allocation2 + $0x120] sm:$0xff]
    %v2983 = vld [vmem:[#allocation2 + $0x128] sm:$0xff]
    %v2984 = vld [vmem:[#allocation2 + $0x130] sm:$0xff]
    %v2985 = vld [vmem:[#allocation2 + $0x138] sm:$0xff]
    %v2986 = vld [vmem:[#allocation2 + $0x140] sm:$0xff]
    %v2987 = vld [vmem:[#allocation2 + $0x148] sm:$0xff]
    %v2988 = vld [vmem:[#allocation2 + $0x150] sm:$0xff]
    %v2989 = vld [vmem:[#allocation2 + $0x158] sm:$0xff]
    %v2990 = vld [vmem:[#allocation2 + $0x160] sm:$0xff]
    %v2991 = vld [vmem:[#allocation2 + $0x168] sm:$0xff]
    %v2992 = vld [vmem:[#allocation2 + $0x170] sm:$0xff]
    %v2993 = vld [vmem:[#allocation2 + $0x178] sm:$0xff]
    %v2994 = vld [vmem:[#allocation2 + $0x180] sm:$0xff]
    %v2995 = vld [vmem:[#allocation2 + $0x188] sm:$0xff]
    %v2996 = vld [vmem:[#allocation2 + $0x190] sm:$0xff]
    %v2997 = vld [vmem:[#allocation2 + $0x198] sm:$0xff]
    %v2998 = vld [vmem:[#allocation2 + $0x1a0] sm:$0xff]
    %v2999 = vld [vmem:[#allocation2 + $0x1a8] sm:$0xff]
    %v3000 = vld [vmem:[#allocation2 + $0x1b0] sm:$0xff]
    %v3001 = vld [vmem:[#allocation2 + $0x1b8] sm:$0xff]
    %v3002 = vld [vmem:[#allocation2 + $0x1c0] sm:$0xff]
    %v3003 = vld [vmem:[#allocation2 + $0x1c8] sm:$0xff]
    %v3004 = vld [vmem:[#allocation2 + $0x1d0] sm:$0xff]
    %v3005 = vld [vmem:[#allocation2 + $0x1d8] sm:$0xff]
    %v3006 = vld [vmem:[#allocation2 + $0x1e0] sm:$0xff]
    %v3007 = vld [vmem:[#allocation2 + $0x1e8] sm:$0xff]
    %v3008 = vld [vmem:[#allocation2 + $0x1f0] sm:$0xff]
    %v3009 = vld [vmem:[#allocation2 + $0x1f8] sm:$0xff]
    %v3010 = vpack.c.bf16 %v2950, %v2946
    %v3011 = vpack.c.bf16 %v2951, %v2947
    %v3012 = vpack.c.bf16 %v2952, %v2948
    %v3013 = vpack.c.bf16 %v2953, %v2949
    %v3014 = vpack.c.bf16 %v2958, %v2954
    %v3015 = vpack.c.bf16 %v2959, %v2955
    %v3016 = vpack.c.bf16 %v2960, %v2956
    %v3017 = vpack.c.bf16 %v2961, %v2957
    %v3018 = vpack.c.bf16 %v2966, %v2962
    %v3019 = vpack.c.bf16 %v2967, %v2963
    %v3020 = vpack.c.bf16 %v2968, %v2964
    %v3021 = vpack.c.bf16 %v2969, %v2965
    %v3022 = vpack.c.bf16 %v2974, %v2970
    %v3023 = vpack.c.bf16 %v2975, %v2971
    %v3024 = vpack.c.bf16 %v2976, %v2972
    %v3025 = vpack.c.bf16 %v2977, %v2973
    %v3026 = vpack.c.bf16 %v2982, %v2978
    %v3027 = vpack.c.bf16 %v2983, %v2979
    %v3028 = vpack.c.bf16 %v2984, %v2980
    %v3029 = vpack.c.bf16 %v2985, %v2981
    %v3030 = vpack.c.bf16 %v2990, %v2986
    %v3031 = vpack.c.bf16 %v2991, %v2987
    %v3032 = vpack.c.bf16 %v2992, %v2988
    %v3033 = vpack.c.bf16 %v2993, %v2989
    %v3034 = vpack.c.bf16 %v2998, %v2994
    %v3035 = vpack.c.bf16 %v2999, %v2995
    %v3036 = vpack.c.bf16 %v3000, %v2996
    %v3037 = vpack.c.bf16 %v3001, %v2997
    %v3038 = vpack.c.bf16 %v3006, %v3002
    %v3039 = vpack.c.bf16 %v3007, %v3003
    %v3040 = vpack.c.bf16 %v3008, %v3004
    %v3041 = vpack.c.bf16 %v3009, %v3005
    %v3074 = vunpack.c.l.b16 %v3010
    %v3075 = vunpack.c.l.b16 %v3011
    %v3076 = vunpack.c.l.b16 %v3012
    %v3077 = vunpack.c.l.b16 %v3013
    %v3078 = vunpack.c.h.b16 %v3010
    %v3079 = vunpack.c.h.b16 %v3011
    %v3080 = vunpack.c.h.b16 %v3012
    %v3081 = vunpack.c.h.b16 %v3013
    %v3082 = vunpack.c.l.b16 %v3014
    %v3083 = vunpack.c.l.b16 %v3015
    %v3084 = vunpack.c.l.b16 %v3016
    %v3085 = vunpack.c.l.b16 %v3017
    %v3086 = vunpack.c.h.b16 %v3014
    %v3087 = vunpack.c.h.b16 %v3015
    %v3088 = vunpack.c.h.b16 %v3016
    %v3089 = vunpack.c.h.b16 %v3017
    %v3090 = vunpack.c.l.b16 %v3018
    %v3091 = vunpack.c.l.b16 %v3019
    %v3092 = vunpack.c.l.b16 %v3020
    %v3093 = vunpack.c.l.b16 %v3021
    %v3094 = vunpack.c.h.b16 %v3018
    %v3095 = vunpack.c.h.b16 %v3019
    %v3096 = vunpack.c.h.b16 %v3020
    %v3097 = vunpack.c.h.b16 %v3021
    %v3098 = vunpack.c.l.b16 %v3022
    %v3099 = vunpack.c.l.b16 %v3023
    %v3100 = vunpack.c.l.b16 %v3024
    %v3101 = vunpack.c.l.b16 %v3025
    %v3102 = vunpack.c.h.b16 %v3022
    %v3103 = vunpack.c.h.b16 %v3023
    %v3104 = vunpack.c.h.b16 %v3024
    %v3105 = vunpack.c.h.b16 %v3025
    %v3106 = vunpack.c.l.b16 %v3026
    %v3107 = vunpack.c.l.b16 %v3027
    %v3108 = vunpack.c.l.b16 %v3028
    %v3109 = vunpack.c.l.b16 %v3029
    %v3110 = vunpack.c.h.b16 %v3026
    %v3111 = vunpack.c.h.b16 %v3027
    %v3112 = vunpack.c.h.b16 %v3028
    %v3113 = vunpack.c.h.b16 %v3029
    %v3114 = vunpack.c.l.b16 %v3030
    %v3115 = vunpack.c.l.b16 %v3031
    %v3116 = vunpack.c.l.b16 %v3032
    %v3117 = vunpack.c.l.b16 %v3033
    %v3118 = vunpack.c.h.b16 %v3030
    %v3119 = vunpack.c.h.b16 %v3031
    %v3120 = vunpack.c.h.b16 %v3032
    %v3121 = vunpack.c.h.b16 %v3033
    %v3122 = vunpack.c.l.b16 %v3034
    %v3123 = vunpack.c.l.b16 %v3035
    %v3124 = vunpack.c.l.b16 %v3036
    %v3125 = vunpack.c.l.b16 %v3037
    %v3126 = vunpack.c.h.b16 %v3034
    %v3127 = vunpack.c.h.b16 %v3035
    %v3128 = vunpack.c.h.b16 %v3036
    %v3129 = vunpack.c.h.b16 %v3037
    %v3130 = vunpack.c.l.b16 %v3038
    %v3131 = vunpack.c.l.b16 %v3039
    %v3132 = vunpack.c.l.b16 %v3040
    %v3133 = vunpack.c.l.b16 %v3041
    %v3134 = vunpack.c.h.b16 %v3038
    %v3135 = vunpack.c.h.b16 %v3039
    %v3136 = vunpack.c.h.b16 %v3040
    %v3137 = vunpack.c.h.b16 %v3041
    %v3138 = vpack.c.b16 %v3075, %v3074
    %v3139 = vpack.c.b16 %v3077, %v3076
    %v3140 = vpack.c.b16 %v3079, %v3078
    %v3141 = vpack.c.b16 %v3081, %v3080
    %v3142 = vpack.c.b16 %v3083, %v3082
    %v3143 = vpack.c.b16 %v3085, %v3084
    %v3144 = vpack.c.b16 %v3087, %v3086
    %v3145 = vpack.c.b16 %v3089, %v3088
    %v3146 = vpack.c.b16 %v3091, %v3090
    %v3147 = vpack.c.b16 %v3093, %v3092
    %v3148 = vpack.c.b16 %v3095, %v3094
    %v3149 = vpack.c.b16 %v3097, %v3096
    %v3150 = vpack.c.b16 %v3099, %v3098
    %v3151 = vpack.c.b16 %v3101, %v3100
    %v3152 = vpack.c.b16 %v3103, %v3102
    %v3153 = vpack.c.b16 %v3105, %v3104
    %v3154 = vpack.c.b16 %v3107, %v3106
    %v3155 = vpack.c.b16 %v3109, %v3108
    %v3156 = vpack.c.b16 %v3111, %v3110
    %v3157 = vpack.c.b16 %v3113, %v3112
    %v3158 = vpack.c.b16 %v3115, %v3114
    %v3159 = vpack.c.b16 %v3117, %v3116
    %v3160 = vpack.c.b16 %v3119, %v3118
    %v3161 = vpack.c.b16 %v3121, %v3120
    %v3162 = vpack.c.b16 %v3123, %v3122
    %v3163 = vpack.c.b16 %v3125, %v3124
    %v3164 = vpack.c.b16 %v3127, %v3126
    %v3165 = vpack.c.b16 %v3129, %v3128
    %v3166 = vpack.c.b16 %v3131, %v3130
    %v3167 = vpack.c.b16 %v3133, %v3132
    %v3168 = vpack.c.b16 %v3135, %v3134
    %v3169 = vpack.c.b16 %v3137, %v3136
    %3202 = vst [vmem:[%s4] sm:$0xff] %v3138
    %3203 = vst [vmem:[%s4 + $0x8] sm:$0xff] %v3139
    %3204 = vst [vmem:[%s4 + $0x10] sm:$0xff] %v3140
    %3205 = vst [vmem:[%s4 + $0x18] sm:$0xff] %v3141
    %3206 = vst [vmem:[%s4 + $0x20] sm:$0xff] %v3142
    %3207 = vst [vmem:[%s4 + $0x28] sm:$0xff] %v3143
    %3208 = vst [vmem:[%s4 + $0x30] sm:$0xff] %v3144
    %3209 = vst [vmem:[%s4 + $0x38] sm:$0xff] %v3145
    %3210 = vst [vmem:[%s4 + $0x40] sm:$0xff] %v3146
    %3211 = vst [vmem:[%s4 + $0x48] sm:$0xff] %v3147
    %3212 = vst [vmem:[%s4 + $0x50] sm:$0xff] %v3148
    %3213 = vst [vmem:[%s4 + $0x58] sm:$0xff] %v3149
    %3214 = vst [vmem:[%s4 + $0x60] sm:$0xff] %v3150
    %3215 = vst [vmem:[%s4 + $0x68] sm:$0xff] %v3151
    %3216 = vst [vmem:[%s4 + $0x70] sm:$0xff] %v3152
    %3217 = vst [vmem:[%s4 + $0x78] sm:$0xff] %v3153
    %3218 = vst [vmem:[%s4 + $0x80] sm:$0xff] %v3154
    %3219 = vst [vmem:[%s4 + $0x88] sm:$0xff] %v3155
    %3220 = vst [vmem:[%s4 + $0x90] sm:$0xff] %v3156
    %3221 = vst [vmem:[%s4 + $0x98] sm:$0xff] %v3157
    %3222 = vst [vmem:[%s4 + $0xa0] sm:$0xff] %v3158
    %3223 = vst [vmem:[%s4 + $0xa8] sm:$0xff] %v3159
    %3224 = vst [vmem:[%s4 + $0xb0] sm:$0xff] %v3160
    %3225 = vst [vmem:[%s4 + $0xb8] sm:$0xff] %v3161
    %3226 = vst [vmem:[%s4 + $0xc0] sm:$0xff] %v3162
    %3227 = vst [vmem:[%s4 + $0xc8] sm:$0xff] %v3163
    %3228 = vst [vmem:[%s4 + $0xd0] sm:$0xff] %v3164
    %3229 = vst [vmem:[%s4 + $0xd8] sm:$0xff] %v3165
    %3230 = vst [vmem:[%s4 + $0xe0] sm:$0xff] %v3166
    %3231 = vst [vmem:[%s4 + $0xe8] sm:$0xff] %v3167
    %3232 = vst [vmem:[%s4 + $0xf0] sm:$0xff] %v3168
    %3233 = vst [vmem:[%s4 + $0xf8] sm:$0xff] %v3169
  $region25: #{fp8_mlp_forward.9} parent=0 // pred_fallthru
    _
  // Predicated region
  $region26: #{fp8_mlp_forward.9} parent=0 // pred_check
    _
  $region27: #{fp8_mlp_forward.9} parent=0 // pred_check_branch
    %3235 = sbr.rel (0) target = $region29
  $region28: #{fp8_mlp_forward.9} parent=0 // pred_region
    _
  $region29: #{fp8_mlp_forward.9} parent=0 // pred_fallthru
    _
  // Predicated region
  $region30: #{fp8_mlp_forward.9} parent=0 // pred_check
    _
  $region31: #{fp8_mlp_forward.9} parent=0 // pred_check_branch
    %3237 = sbr.rel (0) target = $region33
  $region32: #{fp8_mlp_forward.9} parent=0 // pred_region
    _
  $region33: #{fp8_mlp_forward.9} parent=0 // pred_fallthru
    _

</llo_original>
